<compile_context>
chip_gen: v7x
topology: tpu7x:2x2x1
jax: 0.10.0
libtpu: 0.0.40
codegen_flags: <defaults>
</compile_context>

<pallas_src>
import functools

import jax
import jax.numpy as jnp
from jax.experimental import pallas as pl
from jax.experimental.pallas import tpu as pltpu

C = 64          # channels fixed by VoxResModule (BatchNorm3d(64) / Conv3d(64, 64, 3))
K = 3           # 3x3x3 conv
EPS = 1e-5      # BatchNorm eps (PyTorch default)


def _bn_relu_conv_kernel(x_ref, scale_ref, shift_ref, w_ref, b_ref, *rest,
                         add_residual: bool, compute_stats: bool, mb: int):
    """h = relu(x*scale+shift); out = conv3d(h, w, pad=1) + b [+ residual]; [stats of out]."""
    i = 0
    res_ref = None
    if add_residual:
        res_ref = rest[i]; i += 1
    o_ref = rest[i]; i += 1
    stats_ref = rest[i] if compute_stats else None
    g_ref, acc_ref = rest[-2], rest[-1]        # kw-folded halo buffer / f32 matmul accumulator

    _, D, H, W, Cc = x_ref.shape
    C3 = 3 * Cc
    HW = H * W
    scale = scale_ref[0]                       # (C,) f32
    shift = shift_ref[0]
    bias = b_ref[0]

    # ---- Zero only the D/H halo faces (interior + W halo are fully rewritten below).
    #      Re-done every grid step so the scratch is valid under megacore partitioning. ----
    g_ref[0] = jnp.zeros((H + 2, W, C3), jnp.bfloat16)
    g_ref[D + 1] = jnp.zeros((H + 2, W, C3), jnp.bfloat16)
    g_ref[1:D + 1, 0] = jnp.zeros((D, W, C3), jnp.bfloat16)
    g_ref[1:D + 1, H + 1] = jnp.zeros((D, W, C3), jnp.bfloat16)

    # ---- BN affine + ReLU, writing the kw-folded rows:
    #      g[d+1, h+1, w, kw*C:(kw+1)*C] = h_pad[d, h, w + kw - 1]  (zero outside). ----
    zcol = jnp.zeros((H, 1, Cc), jnp.bfloat16)
    for d in range(D):   # unrolled: fine at small D (switch to pl.loop once D >~ 16)
        h = jnp.maximum(x_ref[0, d].astype(jnp.float32) * scale + shift, 0.0)
        hb = h.astype(jnp.bfloat16)                                  # (H, W, C)
        left = jnp.concatenate([zcol, hb[:, :W - 1, :]], axis=1)     # w-1 neighbour
        right = jnp.concatenate([hb[:, 1:, :], zcol], axis=1)        # w+1 neighbour
        g_ref[d + 1, 1:H + 1] = jnp.concatenate([left, hb, right], axis=-1)

    if compute_stats:
        sum_c = jnp.zeros((1, Cc), jnp.float32)
        sq_c = jnp.zeros((1, Cc), jnp.float32)

    # ---- Conv: per depth chunk of `mb` output slices, 3 bf16 MXU matmuls with
    #      M=(mb+2)*H*W, K=3C, N=3C (kw folded into K, kd folded into N), accumulated over kh
    #      in the VMEM f32 scratch; then the three kd column groups are combined with
    #      depth-shifted adds and stored per output depth slice. ----
    for c in range(D // mb):
        d0 = c * mb
        for kh in range(K):
            lhs = g_ref[d0:d0 + mb + 2, kh:kh + H].reshape((mb + 2) * HW, C3)
            y = jnp.dot(lhs, w_ref[kh], preferred_element_type=jnp.float32)
            if kh == 0:
                acc_ref[...] = y
            else:
                acc_ref[...] += y

        for dd in range(mb):
            r0 = dd * HW
            a0 = acc_ref[r0:r0 + HW, :]
            a1 = acc_ref[r0 + HW:r0 + 2 * HW, :]
            a2 = acc_ref[r0 + 2 * HW:r0 + 3 * HW, :]
            out = a0[:, :Cc] + a1[:, Cc:2 * Cc] + a2[:, 2 * Cc:] + bias     # (HW, C) f32
            if compute_stats:
                sum_c = sum_c + jnp.sum(out, axis=0, keepdims=True)
                sq_c = sq_c + jnp.sum(out * out, axis=0, keepdims=True)
            out = out.reshape(H, W, Cc)
            if add_residual:
                out = out + res_ref[0, d0 + dd].astype(jnp.float32)
            o_ref[0, d0 + dd] = out.astype(o_ref.dtype)

    if compute_stats:
        stats_ref[0, 0:1] = sum_c
        stats_ref[0, 1:2] = sq_c


def _pick_mb(D, H, W):
    """Largest divisor of D whose f32 accumulator ((mb+2)*H*W, 3C->256 lanes) stays <= ~4 MiB.

    TODO(synk): also tile H once H*W alone exceeds the row budget (production 64^3 volumes).
    """
    budget = 4 * 1024 * 1024
    best = 1
    for mb in range(1, D + 1):
        if D % mb:
            continue
        if (mb + 2) * H * W * 256 * 4 <= budget:
            best = mb
    return best


def _vmem_limit_bytes(D, H, W, mb, in_itemsize, out_itemsize, add_residual):
    """Derive the scoped-VMEM request from actual block + scratch sizes (per-generation cap)."""
    lane = lambda n: -(-n // 128) * 128
    sub = lambda n: -(-n // 8) * 8
    c3p = lane(3 * C)                                    # 192 -> 256 lanes
    g_b = (D + 2) * (H + 2) * sub(W) * c3p * 2           # bf16 kw-folded halo buffer
    acc_b = sub((mb + 2) * H * W) * c3p * 4              # f32 accumulator
    blk = D * H * sub(W) * lane(C)                       # one activation block (padded elems)
    io_b = 2 * blk * (in_itemsize + out_itemsize)        # double-buffered in/out blocks
    if add_residual:
        io_b += 2 * blk * 4
    w_b = 2 * K * sub(3 * C) * c3p * 2                   # double-buffered bf16 weights
    est = g_b + acc_b + io_b + w_b + (6 << 20)           # slack for small operands/internal
    try:
        phys = pltpu.get_tpu_info().vmem_capacity_bytes
    except Exception:
        phys = 64 << 20                                  # conservative (v7x per-core VMEM)
    cap = int(phys * 0.85)
    return int(min(max(est, min(32 << 20, cap)), cap))


def bn_relu_conv(x, scale, shift, w_fold, bias, residual=None, compute_stats=False,
                 out_dtype=None):
    """x: (N, D, H, W, C); w_fold: (3, 3C, 3C) bf16 (kh, kw*C+ci, kd*C+co); vecs: (C,) f32."""
    N, D, H, W, Cc = x.shape
    add_residual = residual is not None
    out_dtype = x.dtype if out_dtype is None else out_dtype

    mb = _pick_mb(D, H, W)

    kernel = functools.partial(_bn_relu_conv_kernel, add_residual=add_residual,
                               compute_stats=compute_stats, mb=mb)

    scale2 = scale.reshape(1, Cc).astype(jnp.float32)
    shift2 = shift.reshape(1, Cc).astype(jnp.float32)
    bias2 = bias.reshape(1, Cc).astype(jnp.float32)

    act_spec = pl.BlockSpec((1, D, H, W, Cc), lambda n: (n, 0, 0, 0, 0))
    vec_spec = pl.BlockSpec((1, Cc), lambda n: (0, 0))

    in_specs = [
        act_spec,                                                    # x
        vec_spec,                                                    # scale
        vec_spec,                                                    # shift
        pl.BlockSpec((K, K * Cc, K * Cc), lambda n: (0, 0, 0)),      # folded bf16 weight taps
        vec_spec,                                                    # bias
    ]
    args = [x, scale2, shift2, w_fold, bias2]
    if add_residual:
        in_specs.append(act_spec)
        args.append(residual)

    out_shape = jax.ShapeDtypeStruct((N, D, H, W, Cc), out_dtype)
    out_specs = act_spec
    if compute_stats:
        out_shape = (out_shape, jax.ShapeDtypeStruct((N, 2, Cc), jnp.float32))
        out_specs = (act_spec, pl.BlockSpec((1, 2, Cc), lambda n: (n, 0, 0)))

    vmem_limit = _vmem_limit_bytes(D, H, W, mb, x.dtype.itemsize,
                                   jnp.dtype(out_dtype).itemsize, add_residual)

    return pl.pallas_call(
        kernel,
        out_shape=out_shape,
        grid_spec=pltpu.PrefetchScalarGridSpec(
            num_scalar_prefetch=0,
            grid=(N,),
            in_specs=in_specs,
            out_specs=out_specs,
            scratch_shapes=[
                pltpu.VMEM((D + 2, H + 2, W, 3 * Cc), jnp.bfloat16),   # kw-folded halo buffer
                pltpu.VMEM(((mb + 2) * H * W, 3 * Cc), jnp.float32),   # matmul accumulator
            ],
        ),
        compiler_params=pltpu.CompilerParams(
            dimension_semantics=("parallel",),
            vmem_limit_bytes=vmem_limit,
        ),
    )(*args)


def vox_res_module(x, params):
    """Forward of VoxResModule.  x: (N, D, H, W, C) f32, training-mode BatchNorm."""
    g1, be1, wf1, b1, g2, be2, wf2, b2 = params
    N, D, H, W, Cc = x.shape
    count = N * D * H * W

    # BN1 batch statistics in one pass over x (sum + sum-of-squares share a single read).
    mean1 = jnp.mean(x, axis=(0, 1, 2, 3))
    var1 = jnp.maximum(jnp.mean(jnp.square(x), axis=(0, 1, 2, 3)) - mean1 * mean1, 0.0)
    scale1 = g1 / jnp.sqrt(var1 + EPS)
    shift1 = be1 - mean1 * scale1

    # conv1(relu(bnorm1(x))) fused; also emits per-sample sum / sumsq of its output so BN2's
    # batch statistics need no extra HBM read pass over h1.  h1 stored bf16.
    h1, stats = bn_relu_conv(x, scale1, shift1, wf1, b1, compute_stats=True,
                             out_dtype=jnp.bfloat16)
    mean2 = jnp.sum(stats[:, 0, :], axis=0) / count
    var2 = jnp.maximum(jnp.sum(stats[:, 1, :], axis=0) / count - mean2 * mean2, 0.0)
    scale2 = g2 / jnp.sqrt(var2 + EPS)
    shift2 = be2 - mean2 * scale2

    # conv2(relu(bnorm2(h1))) + x fused in-kernel.
    return bn_relu_conv(h1, scale2, shift2, wf2, b2, residual=x, out_dtype=x.dtype)


def reference(x, bn_params, w1_dhwio, w2_dhwio):
    """Pure-JAX f32 reference matching the PyTorch forward (training-mode BN)."""
    g1, be1, b1, g2, be2, b2 = bn_params

    def bn(h, gamma, beta):
        m = jnp.mean(h, axis=(0, 1, 2, 3))
        v = jnp.mean(jnp.square(h - m), axis=(0, 1, 2, 3))
        return (h - m) / jnp.sqrt(v + EPS) * gamma + beta

    def conv(h, w, b):
        out = jax.lax.conv_general_dilated(
            h, w, window_strides=(1, 1, 1), padding="SAME",
            dimension_numbers=("NDHWC", "DHWIO", "NDHWC"),
            precision=jax.lax.Precision.HIGHEST)
        return out + b

    h = jax.nn.relu(bn(x, g1, be1))
    h = conv(h, w1_dhwio, b1)
    h = jax.nn.relu(bn(h, g2, be2))
    h = conv(h, w2_dhwio, b2)
    return h + x


if __name__ == "__main__":
    key = jax.random.PRNGKey(0)
    kx, kw1, kb1, kw2, kb2, kg1, kbe1, kg2, kbe2 = jax.random.split(key, 9)

    N, D, H, W = 2, 8, 8, 8

    # Deterministic synthetic parameters (shapes from VoxResModule.__init__).
    w1_dhwio = jax.random.normal(kw1, (K, K, K, C, C), jnp.float32) * 0.05
    b1 = jax.random.normal(kb1, (C,), jnp.float32) * 0.05
    w2_dhwio = jax.random.normal(kw2, (K, K, K, C, C), jnp.float32) * 0.05
    b2 = jax.random.normal(kb2, (C,), jnp.float32) * 0.05
    g1 = 1.0 + 0.1 * jax.random.normal(kg1, (C,), jnp.float32)
    be1 = 0.1 * jax.random.normal(kbe1, (C,), jnp.float32)
    g2 = 1.0 + 0.1 * jax.random.normal(kg2, (C,), jnp.float32)
    be2 = 0.1 * jax.random.normal(kbe2, (C,), jnp.float32)

    # Fold weights for the kernel: (kd,kh,kw,ci,co) -> (kh, kw*C+ci, kd*C+co), bf16 in HBM.
    wf1 = jnp.transpose(w1_dhwio, (1, 2, 3, 0, 4)).reshape(K, K * C, K * C).astype(jnp.bfloat16)
    wf2 = jnp.transpose(w2_dhwio, (1, 2, 3, 0, 4)).reshape(K, K * C, K * C).astype(jnp.bfloat16)
    params = (g1, be1, wf1, b1, g2, be2, wf2, b2)

    # Module input in PyTorch NCDHW convention, transposed to kernel layout NDHWC.
    x_ncdhw = jax.random.normal(kx, (N, C, D, H, W), jnp.float32)
    x = jnp.transpose(x_ncdhw, (0, 2, 3, 4, 1))

    out = jax.block_until_ready(vox_res_module(x, params))
    ref = jax.block_until_ready(reference(x, (g1, be1, b1, g2, be2, b2), w1_dhwio, w2_dhwio))

    max_err = float(jnp.max(jnp.abs(out - ref)))
    ref_mag = float(jnp.max(jnp.abs(ref)))
    # bf16 conv operands / bf16 h1 with f32 accumulation: allow 2% of the output magnitude.
    assert max_err < 5e-3 + 2e-2 * ref_mag, (
        f"mismatch vs reference: abs={max_err:.4e}, ref_max={ref_mag:.4e}")
    print("KERNEL_OK")
</pallas_src>

<mosaic_0001>
module attributes {stable_mosaic.version = 11 : i64} {
  func.func @_bn_relu_conv_kernel(%arg0: i32, %arg1: memref<1x8x8x8x64xf32, #tpu.memory_space<vmem>>, %arg2: memref<1x64xf32, #tpu.memory_space<vmem>>, %arg3: memref<1x64xf32, #tpu.memory_space<vmem>>, %arg4: memref<3x192x192xbf16, #tpu.memory_space<vmem>>, %arg5: memref<1x64xf32, #tpu.memory_space<vmem>>, %arg6: memref<1x8x8x8x64xbf16, #tpu.memory_space<vmem>>, %arg7: memref<1x2x64xf32, #tpu.memory_space<vmem>>, %arg8: memref<10x10x8x192xbf16, #tpu.memory_space<vmem>>, %arg9: memref<640x192xf32, #tpu.memory_space<vmem>>) attributes {dimension_semantics = [#tpu.dimension_semantics<parallel>], iteration_bounds = array<i64: 2>, scalar_prefetch = 0 : i64, scratch_operands = 2 : i64, tpu.core_type = #tpu.core_type<tc>, window_params = [{transform_indices = @transform_0, window_bounds = array<i64: 1, 8, 8, 8, 64>}, {pipeline_mode = #tpu.pipeline_mode<synchronous>, transform_indices = @transform_1, window_bounds = array<i64: 1, 64>}, {pipeline_mode = #tpu.pipeline_mode<synchronous>, transform_indices = @transform_2, window_bounds = array<i64: 1, 64>}, {pipeline_mode = #tpu.pipeline_mode<synchronous>, transform_indices = @transform_3, window_bounds = array<i64: 3, 192, 192>}, {pipeline_mode = #tpu.pipeline_mode<synchronous>, transform_indices = @transform_4, window_bounds = array<i64: 1, 64>}, {transform_indices = @transform_5, window_bounds = array<i64: 1, 8, 8, 8, 64>}, {transform_indices = @transform_6, window_bounds = array<i64: 1, 2, 64>}]} {
    %c0 = arith.constant 0 : index
    %c0_0 = arith.constant 0 : index
    %0 = vector.load %arg2[%c0, %c0_0] : memref<1x64xf32, #tpu.memory_space<vmem>>, vector<1x64xf32>
    %1 = vector.shape_cast %0 : vector<1x64xf32> to vector<64xf32>
    %c0_1 = arith.constant 0 : index
    %c0_2 = arith.constant 0 : index
    %2 = vector.load %arg3[%c0_1, %c0_2] : memref<1x64xf32, #tpu.memory_space<vmem>>, vector<1x64xf32>
    %3 = vector.shape_cast %2 : vector<1x64xf32> to vector<64xf32>
    %c0_3 = arith.constant 0 : index
    %c0_4 = arith.constant 0 : index
    %4 = vector.load %arg5[%c0_3, %c0_4] : memref<1x64xf32, #tpu.memory_space<vmem>>, vector<1x64xf32>
    %5 = vector.shape_cast %4 : vector<1x64xf32> to vector<64xf32>
    %cst = arith.constant 0.000000e+00 : bf16
    %6 = vector.broadcast %cst : bf16 to vector<10x8x192xbf16>
    %c0_5 = arith.constant 0 : index
    %c0_6 = arith.constant 0 : index
    %c0_7 = arith.constant 0 : index
    %c0_8 = arith.constant 0 : index
    %7 = vector.load %arg8[%c0_5, %c0_6, %c0_7, %c0_8] : memref<10x10x8x192xbf16, #tpu.memory_space<vmem>>, vector<1x10x8x192xbf16>
    %8 = vector.shape_cast %7 : vector<1x10x8x192xbf16> to vector<10x8x192xbf16>
    %9 = vector.shape_cast %6 : vector<10x8x192xbf16> to vector<1x10x8x192xbf16>
    tpu.vector_store %arg8[%c0_5, %c0_6, %c0_7, %c0_8], %9 {strides = array<i32>} : memref<10x10x8x192xbf16, #tpu.memory_space<vmem>>, vector<1x10x8x192xbf16>,
    %cst_9 = arith.constant 0.000000e+00 : bf16
    %10 = vector.broadcast %cst_9 : bf16 to vector<10x8x192xbf16>
    %c9 = arith.constant 9 : index
    %c0_10 = arith.constant 0 : index
    %c0_11 = arith.constant 0 : index
    %c0_12 = arith.constant 0 : index
    %11 = vector.load %arg8[%c9, %c0_10, %c0_11, %c0_12] : memref<10x10x8x192xbf16, #tpu.memory_space<vmem>>, vector<1x10x8x192xbf16>
    %12 = vector.shape_cast %11 : vector<1x10x8x192xbf16> to vector<10x8x192xbf16>
    %13 = vector.shape_cast %10 : vector<10x8x192xbf16> to vector<1x10x8x192xbf16>
    tpu.vector_store %arg8[%c9, %c0_10, %c0_11, %c0_12], %13 {strides = array<i32>} : memref<10x10x8x192xbf16, #tpu.memory_space<vmem>>, vector<1x10x8x192xbf16>,
    %cst_13 = arith.constant 0.000000e+00 : bf16
    %14 = vector.broadcast %cst_13 : bf16 to vector<8x8x192xbf16>
    %c1 = arith.constant 1 : index
    %c0_14 = arith.constant 0 : index
    %c0_15 = arith.constant 0 : index
    %c0_16 = arith.constant 0 : index
    %15 = vector.load %arg8[%c1, %c0_14, %c0_15, %c0_16] : memref<10x10x8x192xbf16, #tpu.memory_space<vmem>>, vector<8x1x8x192xbf16>
    %16 = vector.shape_cast %15 : vector<8x1x8x192xbf16> to vector<8x8x192xbf16>
    %17 = vector.shape_cast %14 : vector<8x8x192xbf16> to vector<8x1x8x192xbf16>
    tpu.vector_store %arg8[%c1, %c0_14, %c0_15, %c0_16], %17 {strides = array<i32>} : memref<10x10x8x192xbf16, #tpu.memory_space<vmem>>, vector<8x1x8x192xbf16>,
    %cst_17 = arith.constant 0.000000e+00 : bf16
    %18 = vector.broadcast %cst_17 : bf16 to vector<8x8x192xbf16>
    %c1_18 = arith.constant 1 : index
    %c9_19 = arith.constant 9 : index
    %c0_20 = arith.constant 0 : index
    %c0_21 = arith.constant 0 : index
    %19 = vector.load %arg8[%c1_18, %c9_19, %c0_20, %c0_21] : memref<10x10x8x192xbf16, #tpu.memory_space<vmem>>, vector<8x1x8x192xbf16>
    %20 = vector.shape_cast %19 : vector<8x1x8x192xbf16> to vector<8x8x192xbf16>
    %21 = vector.shape_cast %18 : vector<8x8x192xbf16> to vector<8x1x8x192xbf16>
    tpu.vector_store %arg8[%c1_18, %c9_19, %c0_20, %c0_21], %21 {strides = array<i32>} : memref<10x10x8x192xbf16, #tpu.memory_space<vmem>>, vector<8x1x8x192xbf16>,
    %cst_22 = arith.constant 0.000000e+00 : bf16
    %22 = vector.broadcast %cst_22 : bf16 to vector<8x1x64xbf16>
    %c0_23 = arith.constant 0 : index
    %c0_24 = arith.constant 0 : index
    %c0_25 = arith.constant 0 : index
    %c0_26 = arith.constant 0 : index
    %c0_27 = arith.constant 0 : index
    %23 = vector.load %arg1[%c0_23, %c0_24, %c0_25, %c0_26, %c0_27] : memref<1x8x8x8x64xf32, #tpu.memory_space<vmem>>, vector<1x1x8x8x64xf32>
    %24 = vector.shape_cast %23 : vector<1x1x8x8x64xf32> to vector<8x8x64xf32>
    %25 = vector.shape_cast %1 : vector<64xf32> to vector<1x1x64xf32>
    %26 = vector.broadcast %25 : vector<1x1x64xf32> to vector<8x8x64xf32>
    %27 = arith.mulf %24, %26 : vector<8x8x64xf32>
    %28 = vector.shape_cast %3 : vector<64xf32> to vector<1x1x64xf32>
    %29 = vector.broadcast %28 : vector<1x1x64xf32> to vector<8x8x64xf32>
    %30 = arith.addf %27, %29 : vector<8x8x64xf32>
    %cst_28 = arith.constant 0.000000e+00 : f32
    %31 = vector.broadcast %cst_28 : f32 to vector<8x8x64xf32>
    %32 = arith.maximumf %30, %31 : vector<8x8x64xf32>
    %33 = arith.truncf %32 : vector<8x8x64xf32> to vector<8x8x64xbf16>
    %34 = vector.extract_strided_slice %33 {offsets = [0, 0, 0], sizes = [8, 7, 64], strides = [1, 1, 1]} : vector<8x8x64xbf16> to vector<8x7x64xbf16>
    %35 = tpu.concatenate %22, %34 in 1 : vector<8x1x64xbf16>, vector<8x7x64xbf16> -> vector<8x8x64xbf16>
    %36 = vector.extract_strided_slice %33 {offsets = [0, 1, 0], sizes = [8, 7, 64], strides = [1, 1, 1]} : vector<8x8x64xbf16> to vector<8x7x64xbf16>
    %37 = tpu.concatenate %36, %22 in 1 : vector<8x7x64xbf16>, vector<8x1x64xbf16> -> vector<8x8x64xbf16>
    %38 = tpu.concatenate %35, %33, %37 in 2 : vector<8x8x64xbf16>, vector<8x8x64xbf16>, vector<8x8x64xbf16> -> vector<8x8x192xbf16>
    %c1_29 = arith.constant 1 : index
    %c1_30 = arith.constant 1 : index
    %c0_31 = arith.constant 0 : index
    %c0_32 = arith.constant 0 : index
    %39 = vector.load %arg8[%c1_29, %c1_30, %c0_31, %c0_32] : memref<10x10x8x192xbf16, #tpu.memory_space<vmem>>, vector<1x8x8x192xbf16>
    %40 = vector.shape_cast %39 : vector<1x8x8x192xbf16> to vector<8x8x192xbf16>
    %41 = vector.shape_cast %38 : vector<8x8x192xbf16> to vector<1x8x8x192xbf16>
    tpu.vector_store %arg8[%c1_29, %c1_30, %c0_31, %c0_32], %41 {strides = array<i32>} : memref<10x10x8x192xbf16, #tpu.memory_space<vmem>>, vector<1x8x8x192xbf16>,
    %c0_33 = arith.constant 0 : index
    %c1_34 = arith.constant 1 : index
    %c0_35 = arith.constant 0 : index
    %c0_36 = arith.constant 0 : index
    %c0_37 = arith.constant 0 : index
    %42 = vector.load %arg1[%c0_33, %c1_34, %c0_35, %c0_36, %c0_37] : memref<1x8x8x8x64xf32, #tpu.memory_space<vmem>>, vector<1x1x8x8x64xf32>
    %43 = vector.shape_cast %42 : vector<1x1x8x8x64xf32> to vector<8x8x64xf32>
    %44 = vector.shape_cast %1 : vector<64xf32> to vector<1x1x64xf32>
    %45 = vector.broadcast %44 : vector<1x1x64xf32> to vector<8x8x64xf32>
    %46 = arith.mulf %43, %45 : vector<8x8x64xf32>
    %47 = vector.shape_cast %3 : vector<64xf32> to vector<1x1x64xf32>
    %48 = vector.broadcast %47 : vector<1x1x64xf32> to vector<8x8x64xf32>
    %49 = arith.addf %46, %48 : vector<8x8x64xf32>
    %cst_38 = arith.constant 0.000000e+00 : f32
    %50 = vector.broadcast %cst_38 : f32 to vector<8x8x64xf32>
    %51 = arith.maximumf %49, %50 : vector<8x8x64xf32>
    %52 = arith.truncf %51 : vector<8x8x64xf32> to vector<8x8x64xbf16>
    %53 = vector.extract_strided_slice %52 {offsets = [0, 0, 0], sizes = [8, 7, 64], strides = [1, 1, 1]} : vector<8x8x64xbf16> to vector<8x7x64xbf16>
    %54 = tpu.concatenate %22, %53 in 1 : vector<8x1x64xbf16>, vector<8x7x64xbf16> -> vector<8x8x64xbf16>
    %55 = vector.extract_strided_slice %52 {offsets = [0, 1, 0], sizes = [8, 7, 64], strides = [1, 1, 1]} : vector<8x8x64xbf16> to vector<8x7x64xbf16>
    %56 = tpu.concatenate %55, %22 in 1 : vector<8x7x64xbf16>, vector<8x1x64xbf16> -> vector<8x8x64xbf16>
    %57 = tpu.concatenate %54, %52, %56 in 2 : vector<8x8x64xbf16>, vector<8x8x64xbf16>, vector<8x8x64xbf16> -> vector<8x8x192xbf16>
    %c2 = arith.constant 2 : index
    %c1_39 = arith.constant 1 : index
    %c0_40 = arith.constant 0 : index
    %c0_41 = arith.constant 0 : index
    %58 = vector.load %arg8[%c2, %c1_39, %c0_40, %c0_41] : memref<10x10x8x192xbf16, #tpu.memory_space<vmem>>, vector<1x8x8x192xbf16>
    %59 = vector.shape_cast %58 : vector<1x8x8x192xbf16> to vector<8x8x192xbf16>
    %60 = vector.shape_cast %57 : vector<8x8x192xbf16> to vector<1x8x8x192xbf16>
    tpu.vector_store %arg8[%c2, %c1_39, %c0_40, %c0_41], %60 {strides = array<i32>} : memref<10x10x8x192xbf16, #tpu.memory_space<vmem>>, vector<1x8x8x192xbf16>,
    %c0_42 = arith.constant 0 : index
    %c2_43 = arith.constant 2 : index
    %c0_44 = arith.constant 0 : index
    %c0_45 = arith.constant 0 : index
    %c0_46 = arith.constant 0 : index
    %61 = vector.load %arg1[%c0_42, %c2_43, %c0_44, %c0_45, %c0_46] : memref<1x8x8x8x64xf32, #tpu.memory_space<vmem>>, vector<1x1x8x8x64xf32>
    %62 = vector.shape_cast %61 : vector<1x1x8x8x64xf32> to vector<8x8x64xf32>
    %63 = vector.shape_cast %1 : vector<64xf32> to vector<1x1x64xf32>
    %64 = vector.broadcast %63 : vector<1x1x64xf32> to vector<8x8x64xf32>
    %65 = arith.mulf %62, %64 : vector<8x8x64xf32>
    %66 = vector.shape_cast %3 : vector<64xf32> to vector<1x1x64xf32>
    %67 = vector.broadcast %66 : vector<1x1x64xf32> to vector<8x8x64xf32>
    %68 = arith.addf %65, %67 : vector<8x8x64xf32>
    %cst_47 = arith.constant 0.000000e+00 : f32
    %69 = vector.broadcast %cst_47 : f32 to vector<8x8x64xf32>
    %70 = arith.maximumf %68, %69 : vector<8x8x64xf32>
    %71 = arith.truncf %70 : vector<8x8x64xf32> to vector<8x8x64xbf16>
    %72 = vector.extract_strided_slice %71 {offsets = [0, 0, 0], sizes = [8, 7, 64], strides = [1, 1, 1]} : vector<8x8x64xbf16> to vector<8x7x64xbf16>
    %73 = tpu.concatenate %22, %72 in 1 : vector<8x1x64xbf16>, vector<8x7x64xbf16> -> vector<8x8x64xbf16>
    %74 = vector.extract_strided_slice %71 {offsets = [0, 1, 0], sizes = [8, 7, 64], strides = [1, 1, 1]} : vector<8x8x64xbf16> to vector<8x7x64xbf16>
    %75 = tpu.concatenate %74, %22 in 1 : vector<8x7x64xbf16>, vector<8x1x64xbf16> -> vector<8x8x64xbf16>
    %76 = tpu.concatenate %73, %71, %75 in 2 : vector<8x8x64xbf16>, vector<8x8x64xbf16>, vector<8x8x64xbf16> -> vector<8x8x192xbf16>
    %c3 = arith.constant 3 : index
    %c1_48 = arith.constant 1 : index
    %c0_49 = arith.constant 0 : index
    %c0_50 = arith.constant 0 : index
    %77 = vector.load %arg8[%c3, %c1_48, %c0_49, %c0_50] : memref<10x10x8x192xbf16, #tpu.memory_space<vmem>>, vector<1x8x8x192xbf16>
    %78 = vector.shape_cast %77 : vector<1x8x8x192xbf16> to vector<8x8x192xbf16>
    %79 = vector.shape_cast %76 : vector<8x8x192xbf16> to vector<1x8x8x192xbf16>
    tpu.vector_store %arg8[%c3, %c1_48, %c0_49, %c0_50], %79 {strides = array<i32>} : memref<10x10x8x192xbf16, #tpu.memory_space<vmem>>, vector<1x8x8x192xbf16>,
    %c0_51 = arith.constant 0 : index
    %c3_52 = arith.constant 3 : index
    %c0_53 = arith.constant 0 : index
    %c0_54 = arith.constant 0 : index
    %c0_55 = arith.constant 0 : index
    %80 = vector.load %arg1[%c0_51, %c3_52, %c0_53, %c0_54, %c0_55] : memref<1x8x8x8x64xf32, #tpu.memory_space<vmem>>, vector<1x1x8x8x64xf32>
    %81 = vector.shape_cast %80 : vector<1x1x8x8x64xf32> to vector<8x8x64xf32>
    %82 = vector.shape_cast %1 : vector<64xf32> to vector<1x1x64xf32>
    %83 = vector.broadcast %82 : vector<1x1x64xf32> to vector<8x8x64xf32>
    %84 = arith.mulf %81, %83 : vector<8x8x64xf32>
    %85 = vector.shape_cast %3 : vector<64xf32> to vector<1x1x64xf32>
    %86 = vector.broadcast %85 : vector<1x1x64xf32> to vector<8x8x64xf32>
    %87 = arith.addf %84, %86 : vector<8x8x64xf32>
    %cst_56 = arith.constant 0.000000e+00 : f32
    %88 = vector.broadcast %cst_56 : f32 to vector<8x8x64xf32>
    %89 = arith.maximumf %87, %88 : vector<8x8x64xf32>
    %90 = arith.truncf %89 : vector<8x8x64xf32> to vector<8x8x64xbf16>
    %91 = vector.extract_strided_slice %90 {offsets = [0, 0, 0], sizes = [8, 7, 64], strides = [1, 1, 1]} : vector<8x8x64xbf16> to vector<8x7x64xbf16>
    %92 = tpu.concatenate %22, %91 in 1 : vector<8x1x64xbf16>, vector<8x7x64xbf16> -> vector<8x8x64xbf16>
    %93 = vector.extract_strided_slice %90 {offsets = [0, 1, 0], sizes = [8, 7, 64], strides = [1, 1, 1]} : vector<8x8x64xbf16> to vector<8x7x64xbf16>
    %94 = tpu.concatenate %93, %22 in 1 : vector<8x7x64xbf16>, vector<8x1x64xbf16> -> vector<8x8x64xbf16>
    %95 = tpu.concatenate %92, %90, %94 in 2 : vector<8x8x64xbf16>, vector<8x8x64xbf16>, vector<8x8x64xbf16> -> vector<8x8x192xbf16>
    %c4 = arith.constant 4 : index
    %c1_57 = arith.constant 1 : index
    %c0_58 = arith.constant 0 : index
    %c0_59 = arith.constant 0 : index
    %96 = vector.load %arg8[%c4, %c1_57, %c0_58, %c0_59] : memref<10x10x8x192xbf16, #tpu.memory_space<vmem>>, vector<1x8x8x192xbf16>
    %97 = vector.shape_cast %96 : vector<1x8x8x192xbf16> to vector<8x8x192xbf16>
    %98 = vector.shape_cast %95 : vector<8x8x192xbf16> to vector<1x8x8x192xbf16>
    tpu.vector_store %arg8[%c4, %c1_57, %c0_58, %c0_59], %98 {strides = array<i32>} : memref<10x10x8x192xbf16, #tpu.memory_space<vmem>>, vector<1x8x8x192xbf16>,
    %c0_60 = arith.constant 0 : index
    %c4_61 = arith.constant 4 : index
    %c0_62 = arith.constant 0 : index
    %c0_63 = arith.constant 0 : index
    %c0_64 = arith.constant 0 : index
    %99 = vector.load %arg1[%c0_60, %c4_61, %c0_62, %c0_63, %c0_64] : memref<1x8x8x8x64xf32, #tpu.memory_space<vmem>>, vector<1x1x8x8x64xf32>
    %100 = vector.shape_cast %99 : vector<1x1x8x8x64xf32> to vector<8x8x64xf32>
    %101 = vector.shape_cast %1 : vector<64xf32> to vector<1x1x64xf32>
    %102 = vector.broadcast %101 : vector<1x1x64xf32> to vector<8x8x64xf32>
    %103 = arith.mulf %100, %102 : vector<8x8x64xf32>
    %104 = vector.shape_cast %3 : vector<64xf32> to vector<1x1x64xf32>
    %105 = vector.broadcast %104 : vector<1x1x64xf32> to vector<8x8x64xf32>
    %106 = arith.addf %103, %105 : vector<8x8x64xf32>
    %cst_65 = arith.constant 0.000000e+00 : f32
    %107 = vector.broadcast %cst_65 : f32 to vector<8x8x64xf32>
    %108 = arith.maximumf %106, %107 : vector<8x8x64xf32>
    %109 = arith.truncf %108 : vector<8x8x64xf32> to vector<8x8x64xbf16>
    %110 = vector.extract_strided_slice %109 {offsets = [0, 0, 0], sizes = [8, 7, 64], strides = [1, 1, 1]} : vector<8x8x64xbf16> to vector<8x7x64xbf16>
    %111 = tpu.concatenate %22, %110 in 1 : vector<8x1x64xbf16>, vector<8x7x64xbf16> -> vector<8x8x64xbf16>
    %112 = vector.extract_strided_slice %109 {offsets = [0, 1, 0], sizes = [8, 7, 64], strides = [1, 1, 1]} : vector<8x8x64xbf16> to vector<8x7x64xbf16>
    %113 = tpu.concatenate %112, %22 in 1 : vector<8x7x64xbf16>, vector<8x1x64xbf16> -> vector<8x8x64xbf16>
    %114 = tpu.concatenate %111, %109, %113 in 2 : vector<8x8x64xbf16>, vector<8x8x64xbf16>, vector<8x8x64xbf16> -> vector<8x8x192xbf16>
    %c5 = arith.constant 5 : index
    %c1_66 = arith.constant 1 : index
    %c0_67 = arith.constant 0 : index
    %c0_68 = arith.constant 0 : index
    %115 = vector.load %arg8[%c5, %c1_66, %c0_67, %c0_68] : memref<10x10x8x192xbf16, #tpu.memory_space<vmem>>, vector<1x8x8x192xbf16>
    %116 = vector.shape_cast %115 : vector<1x8x8x192xbf16> to vector<8x8x192xbf16>
    %117 = vector.shape_cast %114 : vector<8x8x192xbf16> to vector<1x8x8x192xbf16>
    tpu.vector_store %arg8[%c5, %c1_66, %c0_67, %c0_68], %117 {strides = array<i32>} : memref<10x10x8x192xbf16, #tpu.memory_space<vmem>>, vector<1x8x8x192xbf16>,
    %c0_69 = arith.constant 0 : index
    %c5_70 = arith.constant 5 : index
    %c0_71 = arith.constant 0 : index
    %c0_72 = arith.constant 0 : index
    %c0_73 = arith.constant 0 : index
    %118 = vector.load %arg1[%c0_69, %c5_70, %c0_71, %c0_72, %c0_73] : memref<1x8x8x8x64xf32, #tpu.memory_space<vmem>>, vector<1x1x8x8x64xf32>
    %119 = vector.shape_cast %118 : vector<1x1x8x8x64xf32> to vector<8x8x64xf32>
    %120 = vector.shape_cast %1 : vector<64xf32> to vector<1x1x64xf32>
    %121 = vector.broadcast %120 : vector<1x1x64xf32> to vector<8x8x64xf32>
    %122 = arith.mulf %119, %121 : vector<8x8x64xf32>
    %123 = vector.shape_cast %3 : vector<64xf32> to vector<1x1x64xf32>
    %124 = vector.broadcast %123 : vector<1x1x64xf32> to vector<8x8x64xf32>
    %125 = arith.addf %122, %124 : vector<8x8x64xf32>
    %cst_74 = arith.constant 0.000000e+00 : f32
    %126 = vector.broadcast %cst_74 : f32 to vector<8x8x64xf32>
    %127 = arith.maximumf %125, %126 : vector<8x8x64xf32>
    %128 = arith.truncf %127 : vector<8x8x64xf32> to vector<8x8x64xbf16>
    %129 = vector.extract_strided_slice %128 {offsets = [0, 0, 0], sizes = [8, 7, 64], strides = [1, 1, 1]} : vector<8x8x64xbf16> to vector<8x7x64xbf16>
    %130 = tpu.concatenate %22, %129 in 1 : vector<8x1x64xbf16>, vector<8x7x64xbf16> -> vector<8x8x64xbf16>
    %131 = vector.extract_strided_slice %128 {offsets = [0, 1, 0], sizes = [8, 7, 64], strides = [1, 1, 1]} : vector<8x8x64xbf16> to vector<8x7x64xbf16>
    %132 = tpu.concatenate %131, %22 in 1 : vector<8x7x64xbf16>, vector<8x1x64xbf16> -> vector<8x8x64xbf16>
    %133 = tpu.concatenate %130, %128, %132 in 2 : vector<8x8x64xbf16>, vector<8x8x64xbf16>, vector<8x8x64xbf16> -> vector<8x8x192xbf16>
    %c6 = arith.constant 6 : index
    %c1_75 = arith.constant 1 : index
    %c0_76 = arith.constant 0 : index
    %c0_77 = arith.constant 0 : index
    %134 = vector.load %arg8[%c6, %c1_75, %c0_76, %c0_77] : memref<10x10x8x192xbf16, #tpu.memory_space<vmem>>, vector<1x8x8x192xbf16>
    %135 = vector.shape_cast %134 : vector<1x8x8x192xbf16> to vector<8x8x192xbf16>
    %136 = vector.shape_cast %133 : vector<8x8x192xbf16> to vector<1x8x8x192xbf16>
    tpu.vector_store %arg8[%c6, %c1_75, %c0_76, %c0_77], %136 {strides = array<i32>} : memref<10x10x8x192xbf16, #tpu.memory_space<vmem>>, vector<1x8x8x192xbf16>,
    %c0_78 = arith.constant 0 : index
    %c6_79 = arith.constant 6 : index
    %c0_80 = arith.constant 0 : index
    %c0_81 = arith.constant 0 : index
    %c0_82 = arith.constant 0 : index
    %137 = vector.load %arg1[%c0_78, %c6_79, %c0_80, %c0_81, %c0_82] : memref<1x8x8x8x64xf32, #tpu.memory_space<vmem>>, vector<1x1x8x8x64xf32>
    %138 = vector.shape_cast %137 : vector<1x1x8x8x64xf32> to vector<8x8x64xf32>
    %139 = vector.shape_cast %1 : vector<64xf32> to vector<1x1x64xf32>
    %140 = vector.broadcast %139 : vector<1x1x64xf32> to vector<8x8x64xf32>
    %141 = arith.mulf %138, %140 : vector<8x8x64xf32>
    %142 = vector.shape_cast %3 : vector<64xf32> to vector<1x1x64xf32>
    %143 = vector.broadcast %142 : vector<1x1x64xf32> to vector<8x8x64xf32>
    %144 = arith.addf %141, %143 : vector<8x8x64xf32>
    %cst_83 = arith.constant 0.000000e+00 : f32
    %145 = vector.broadcast %cst_83 : f32 to vector<8x8x64xf32>
    %146 = arith.maximumf %144, %145 : vector<8x8x64xf32>
    %147 = arith.truncf %146 : vector<8x8x64xf32> to vector<8x8x64xbf16>
    %148 = vector.extract_strided_slice %147 {offsets = [0, 0, 0], sizes = [8, 7, 64], strides = [1, 1, 1]} : vector<8x8x64xbf16> to vector<8x7x64xbf16>
    %149 = tpu.concatenate %22, %148 in 1 : vector<8x1x64xbf16>, vector<8x7x64xbf16> -> vector<8x8x64xbf16>
    %150 = vector.extract_strided_slice %147 {offsets = [0, 1, 0], sizes = [8, 7, 64], strides = [1, 1, 1]} : vector<8x8x64xbf16> to vector<8x7x64xbf16>
    %151 = tpu.concatenate %150, %22 in 1 : vector<8x7x64xbf16>, vector<8x1x64xbf16> -> vector<8x8x64xbf16>
    %152 = tpu.concatenate %149, %147, %151 in 2 : vector<8x8x64xbf16>, vector<8x8x64xbf16>, vector<8x8x64xbf16> -> vector<8x8x192xbf16>
    %c7 = arith.constant 7 : index
    %c1_84 = arith.constant 1 : index
    %c0_85 = arith.constant 0 : index
    %c0_86 = arith.constant 0 : index
    %153 = vector.load %arg8[%c7, %c1_84, %c0_85, %c0_86] : memref<10x10x8x192xbf16, #tpu.memory_space<vmem>>, vector<1x8x8x192xbf16>
    %154 = vector.shape_cast %153 : vector<1x8x8x192xbf16> to vector<8x8x192xbf16>
    %155 = vector.shape_cast %152 : vector<8x8x192xbf16> to vector<1x8x8x192xbf16>
    tpu.vector_store %arg8[%c7, %c1_84, %c0_85, %c0_86], %155 {strides = array<i32>} : memref<10x10x8x192xbf16, #tpu.memory_space<vmem>>, vector<1x8x8x192xbf16>,
    %c0_87 = arith.constant 0 : index
    %c7_88 = arith.constant 7 : index
    %c0_89 = arith.constant 0 : index
    %c0_90 = arith.constant 0 : index
    %c0_91 = arith.constant 0 : index
    %156 = vector.load %arg1[%c0_87, %c7_88, %c0_89, %c0_90, %c0_91] : memref<1x8x8x8x64xf32, #tpu.memory_space<vmem>>, vector<1x1x8x8x64xf32>
    %157 = vector.shape_cast %156 : vector<1x1x8x8x64xf32> to vector<8x8x64xf32>
    %158 = vector.shape_cast %1 : vector<64xf32> to vector<1x1x64xf32>
    %159 = vector.broadcast %158 : vector<1x1x64xf32> to vector<8x8x64xf32>
    %160 = arith.mulf %157, %159 : vector<8x8x64xf32>
    %161 = vector.shape_cast %3 : vector<64xf32> to vector<1x1x64xf32>
    %162 = vector.broadcast %161 : vector<1x1x64xf32> to vector<8x8x64xf32>
    %163 = arith.addf %160, %162 : vector<8x8x64xf32>
    %cst_92 = arith.constant 0.000000e+00 : f32
    %164 = vector.broadcast %cst_92 : f32 to vector<8x8x64xf32>
    %165 = arith.maximumf %163, %164 : vector<8x8x64xf32>
    %166 = arith.truncf %165 : vector<8x8x64xf32> to vector<8x8x64xbf16>
    %167 = vector.extract_strided_slice %166 {offsets = [0, 0, 0], sizes = [8, 7, 64], strides = [1, 1, 1]} : vector<8x8x64xbf16> to vector<8x7x64xbf16>
    %168 = tpu.concatenate %22, %167 in 1 : vector<8x1x64xbf16>, vector<8x7x64xbf16> -> vector<8x8x64xbf16>
    %169 = vector.extract_strided_slice %166 {offsets = [0, 1, 0], sizes = [8, 7, 64], strides = [1, 1, 1]} : vector<8x8x64xbf16> to vector<8x7x64xbf16>
    %170 = tpu.concatenate %169, %22 in 1 : vector<8x7x64xbf16>, vector<8x1x64xbf16> -> vector<8x8x64xbf16>
    %171 = tpu.concatenate %168, %166, %170 in 2 : vector<8x8x64xbf16>, vector<8x8x64xbf16>, vector<8x8x64xbf16> -> vector<8x8x192xbf16>
    %c8 = arith.constant 8 : index
    %c1_93 = arith.constant 1 : index
    %c0_94 = arith.constant 0 : index
    %c0_95 = arith.constant 0 : index
    %172 = vector.load %arg8[%c8, %c1_93, %c0_94, %c0_95] : memref<10x10x8x192xbf16, #tpu.memory_space<vmem>>, vector<1x8x8x192xbf16>
    %173 = vector.shape_cast %172 : vector<1x8x8x192xbf16> to vector<8x8x192xbf16>
    %174 = vector.shape_cast %171 : vector<8x8x192xbf16> to vector<1x8x8x192xbf16>
    tpu.vector_store %arg8[%c8, %c1_93, %c0_94, %c0_95], %174 {strides = array<i32>} : memref<10x10x8x192xbf16, #tpu.memory_space<vmem>>, vector<1x8x8x192xbf16>,
    %cst_96 = arith.constant 0.000000e+00 : f32
    %175 = vector.broadcast %cst_96 : f32 to vector<1x64xf32>
    %cst_97 = arith.constant 0.000000e+00 : f32
    %176 = vector.broadcast %cst_97 : f32 to vector<1x64xf32>
    %c0_98 = arith.constant 0 : index
    %c0_99 = arith.constant 0 : index
    %c0_100 = arith.constant 0 : index
    %c0_101 = arith.constant 0 : index
    %177 = vector.load %arg8[%c0_98, %c0_99, %c0_100, %c0_101] : memref<10x10x8x192xbf16, #tpu.memory_space<vmem>>, vector<10x8x8x192xbf16>
    %178 = vector.shape_cast %177 : vector<10x8x8x192xbf16> to vector<640x192xbf16>
    %c0_102 = arith.constant 0 : index
    %c0_103 = arith.constant 0 : index
    %c0_104 = arith.constant 0 : index
    %179 = vector.load %arg4[%c0_102, %c0_103, %c0_104] : memref<3x192x192xbf16, #tpu.memory_space<vmem>>, vector<1x192x192xbf16>
    %180 = vector.shape_cast %179 : vector<1x192x192xbf16> to vector<192x192xbf16>
    %cst_105 = arith.constant dense<0.000000e+00> : vector<640x192xf32>
    %181 = tpu.matmul %178, %180, %cst_105 {dimension_numbers = #tpu.dot_dimension_numbers<[1], [0], [0], [1], [0, 0, 1, 1], [], []>} : vector<640x192xbf16>, vector<192x192xbf16>, vector<640x192xf32> -> vector<640x192xf32>
    %c0_106 = arith.constant 0 : index
    %c0_107 = arith.constant 0 : index
    %182 = vector.load %arg9[%c0_106, %c0_107] : memref<640x192xf32, #tpu.memory_space<vmem>>, vector<640x192xf32>
    tpu.vector_store %arg9[%c0_106, %c0_107], %181 {strides = array<i32>} : memref<640x192xf32, #tpu.memory_space<vmem>>, vector<640x192xf32>,
    %c0_108 = arith.constant 0 : index
    %c1_109 = arith.constant 1 : index
    %c0_110 = arith.constant 0 : index
    %c0_111 = arith.constant 0 : index
    %183 = vector.load %arg8[%c0_108, %c1_109, %c0_110, %c0_111] : memref<10x10x8x192xbf16, #tpu.memory_space<vmem>>, vector<10x8x8x192xbf16>
    %184 = vector.shape_cast %183 : vector<10x8x8x192xbf16> to vector<640x192xbf16>
    %c1_112 = arith.constant 1 : index
    %c0_113 = arith.constant 0 : index
    %c0_114 = arith.constant 0 : index
    %185 = vector.load %arg4[%c1_112, %c0_113, %c0_114] : memref<3x192x192xbf16, #tpu.memory_space<vmem>>, vector<1x192x192xbf16>
    %186 = vector.shape_cast %185 : vector<1x192x192xbf16> to vector<192x192xbf16>
    %cst_115 = arith.constant dense<0.000000e+00> : vector<640x192xf32>
    %187 = tpu.matmul %184, %186, %cst_115 {dimension_numbers = #tpu.dot_dimension_numbers<[1], [0], [0], [1], [0, 0, 1, 1], [], []>} : vector<640x192xbf16>, vector<192x192xbf16>, vector<640x192xf32> -> vector<640x192xf32>
    %c0_116 = arith.constant 0 : index
    %c0_117 = arith.constant 0 : index
    %188 = vector.load %arg9[%c0_116, %c0_117] : memref<640x192xf32, #tpu.memory_space<vmem>>, vector<640x192xf32>
    %189 = arith.addf %188, %187 : vector<640x192xf32>
    %c0_118 = arith.constant 0 : index
    %c0_119 = arith.constant 0 : index
    %190 = vector.load %arg9[%c0_118, %c0_119] : memref<640x192xf32, #tpu.memory_space<vmem>>, vector<640x192xf32>
    tpu.vector_store %arg9[%c0_118, %c0_119], %189 {strides = array<i32>} : memref<640x192xf32, #tpu.memory_space<vmem>>, vector<640x192xf32>,
    %c0_120 = arith.constant 0 : index
    %c2_121 = arith.constant 2 : index
    %c0_122 = arith.constant 0 : index
    %c0_123 = arith.constant 0 : index
    %191 = vector.load %arg8[%c0_120, %c2_121, %c0_122, %c0_123] : memref<10x10x8x192xbf16, #tpu.memory_space<vmem>>, vector<10x8x8x192xbf16>
    %192 = vector.shape_cast %191 : vector<10x8x8x192xbf16> to vector<640x192xbf16>
    %c2_124 = arith.constant 2 : index
    %c0_125 = arith.constant 0 : index
    %c0_126 = arith.constant 0 : index
    %193 = vector.load %arg4[%c2_124, %c0_125, %c0_126] : memref<3x192x192xbf16, #tpu.memory_space<vmem>>, vector<1x192x192xbf16>
    %194 = vector.shape_cast %193 : vector<1x192x192xbf16> to vector<192x192xbf16>
    %cst_127 = arith.constant dense<0.000000e+00> : vector<640x192xf32>
    %195 = tpu.matmul %192, %194, %cst_127 {dimension_numbers = #tpu.dot_dimension_numbers<[1], [0], [0], [1], [0, 0, 1, 1], [], []>} : vector<640x192xbf16>, vector<192x192xbf16>, vector<640x192xf32> -> vector<640x192xf32>
    %c0_128 = arith.constant 0 : index
    %c0_129 = arith.constant 0 : index
    %196 = vector.load %arg9[%c0_128, %c0_129] : memref<640x192xf32, #tpu.memory_space<vmem>>, vector<640x192xf32>
    %197 = arith.addf %196, %195 : vector<640x192xf32>
    %c0_130 = arith.constant 0 : index
    %c0_131 = arith.constant 0 : index
    %198 = vector.load %arg9[%c0_130, %c0_131] : memref<640x192xf32, #tpu.memory_space<vmem>>, vector<640x192xf32>
    tpu.vector_store %arg9[%c0_130, %c0_131], %197 {strides = array<i32>} : memref<640x192xf32, #tpu.memory_space<vmem>>, vector<640x192xf32>,
    %c0_132 = arith.constant 0 : index
    %c0_133 = arith.constant 0 : index
    %199 = vector.load %arg9[%c0_132, %c0_133] : memref<640x192xf32, #tpu.memory_space<vmem>>, vector<64x192xf32>
    %c64 = arith.constant 64 : index
    %c0_134 = arith.constant 0 : index
    %200 = vector.load %arg9[%c64, %c0_134] : memref<640x192xf32, #tpu.memory_space<vmem>>, vector<64x192xf32>
    %c128 = arith.constant 128 : index
    %c0_135 = arith.constant 0 : index
    %201 = vector.load %arg9[%c128, %c0_135] : memref<640x192xf32, #tpu.memory_space<vmem>>, vector<64x192xf32>
    %202 = vector.extract_strided_slice %199 {offsets = [0, 0], sizes = [64, 64], strides = [1, 1]} : vector<64x192xf32> to vector<64x64xf32>
    %203 = vector.extract_strided_slice %200 {offsets = [0, 64], sizes = [64, 64], strides = [1, 1]} : vector<64x192xf32> to vector<64x64xf32>
    %204 = arith.addf %202, %203 : vector<64x64xf32>
    %205 = vector.extract_strided_slice %201 {offsets = [0, 128], sizes = [64, 64], strides = [1, 1]} : vector<64x192xf32> to vector<64x64xf32>
    %206 = arith.addf %204, %205 : vector<64x64xf32>
    %207 = vector.shape_cast %5 : vector<64xf32> to vector<1x64xf32>
    %208 = vector.broadcast %207 : vector<1x64xf32> to vector<64x64xf32>
    %209 = arith.addf %206, %208 : vector<64x64xf32>
    %cst_136 = arith.constant dense<0.000000e+00> : vector<64xf32>
    %210 = vector.multi_reduction <add>, %209, %cst_136 [0] : vector<64x64xf32> to vector<64xf32>
    %211 = vector.shape_cast %210 : vector<64xf32> to vector<1x64xf32>
    %212 = arith.addf %175, %211 : vector<1x64xf32>
    %213 = arith.mulf %209, %209 : vector<64x64xf32>
    %cst_137 = arith.constant dense<0.000000e+00> : vector<64xf32>
    %214 = vector.multi_reduction <add>, %213, %cst_137 [0] : vector<64x64xf32> to vector<64xf32>
    %215 = vector.shape_cast %214 : vector<64xf32> to vector<1x64xf32>
    %216 = arith.addf %176, %215 : vector<1x64xf32>
    %217 = vector.shape_cast %209 : vector<64x64xf32> to vector<8x8x64xf32>
    %218 = arith.truncf %217 : vector<8x8x64xf32> to vector<8x8x64xbf16>
    %c0_138 = arith.constant 0 : index
    %c0_139 = arith.constant 0 : index
    %c0_140 = arith.constant 0 : index
    %c0_141 = arith.constant 0 : index
    %c0_142 = arith.constant 0 : index
    %219 = vector.load %arg6[%c0_138, %c0_139, %c0_140, %c0_141, %c0_142] : memref<1x8x8x8x64xbf16, #tpu.memory_space<vmem>>, vector<1x1x8x8x64xbf16>
    %220 = vector.shape_cast %219 : vector<1x1x8x8x64xbf16> to vector<8x8x64xbf16>
    %221 = vector.shape_cast %218 : vector<8x8x64xbf16> to vector<1x1x8x8x64xbf16>
    tpu.vector_store %arg6[%c0_138, %c0_139, %c0_140, %c0_141, %c0_142], %221 {strides = array<i32>} : memref<1x8x8x8x64xbf16, #tpu.memory_space<vmem>>, vector<1x1x8x8x64xbf16>,
    %c64_143 = arith.constant 64 : index
    %c0_144 = arith.constant 0 : index
    %222 = vector.load %arg9[%c64_143, %c0_144] : memref<640x192xf32, #tpu.memory_space<vmem>>, vector<64x192xf32>
    %c128_145 = arith.constant 128 : index
    %c0_146 = arith.constant 0 : index
    %223 = vector.load %arg9[%c128_145, %c0_146] : memref<640x192xf32, #tpu.memory_space<vmem>>, vector<64x192xf32>
    %c192 = arith.constant 192 : index
    %c0_147 = arith.constant 0 : index
    %224 = vector.load %arg9[%c192, %c0_147] : memref<640x192xf32, #tpu.memory_space<vmem>>, vector<64x192xf32>
    %225 = vector.extract_strided_slice %222 {offsets = [0, 0], sizes = [64, 64], strides = [1, 1]} : vector<64x192xf32> to vector<64x64xf32>
    %226 = vector.extract_strided_slice %223 {offsets = [0, 64], sizes = [64, 64], strides = [1, 1]} : vector<64x192xf32> to vector<64x64xf32>
    %227 = arith.addf %225, %226 : vector<64x64xf32>
    %228 = vector.extract_strided_slice %224 {offsets = [0, 128], sizes = [64, 64], strides = [1, 1]} : vector<64x192xf32> to vector<64x64xf32>
    %229 = arith.addf %227, %228 : vector<64x64xf32>
    %230 = vector.shape_cast %5 : vector<64xf32> to vector<1x64xf32>
    %231 = vector.broadcast %230 : vector<1x64xf32> to vector<64x64xf32>
    %232 = arith.addf %229, %231 : vector<64x64xf32>
    %cst_148 = arith.constant dense<0.000000e+00> : vector<64xf32>
    %233 = vector.multi_reduction <add>, %232, %cst_148 [0] : vector<64x64xf32> to vector<64xf32>
    %234 = vector.shape_cast %233 : vector<64xf32> to vector<1x64xf32>
    %235 = arith.addf %212, %234 : vector<1x64xf32>
    %236 = arith.mulf %232, %232 : vector<64x64xf32>
    %cst_149 = arith.constant dense<0.000000e+00> : vector<64xf32>
    %237 = vector.multi_reduction <add>, %236, %cst_149 [0] : vector<64x64xf32> to vector<64xf32>
    %238 = vector.shape_cast %237 : vector<64xf32> to vector<1x64xf32>
    %239 = arith.addf %216, %238 : vector<1x64xf32>
    %240 = vector.shape_cast %232 : vector<64x64xf32> to vector<8x8x64xf32>
    %241 = arith.truncf %240 : vector<8x8x64xf32> to vector<8x8x64xbf16>
    %c0_150 = arith.constant 0 : index
    %c1_151 = arith.constant 1 : index
    %c0_152 = arith.constant 0 : index
    %c0_153 = arith.constant 0 : index
    %c0_154 = arith.constant 0 : index
    %242 = vector.load %arg6[%c0_150, %c1_151, %c0_152, %c0_153, %c0_154] : memref<1x8x8x8x64xbf16, #tpu.memory_space<vmem>>, vector<1x1x8x8x64xbf16>
    %243 = vector.shape_cast %242 : vector<1x1x8x8x64xbf16> to vector<8x8x64xbf16>
    %244 = vector.shape_cast %241 : vector<8x8x64xbf16> to vector<1x1x8x8x64xbf16>
    tpu.vector_store %arg6[%c0_150, %c1_151, %c0_152, %c0_153, %c0_154], %244 {strides = array<i32>} : memref<1x8x8x8x64xbf16, #tpu.memory_space<vmem>>, vector<1x1x8x8x64xbf16>,
    %c128_155 = arith.constant 128 : index
    %c0_156 = arith.constant 0 : index
    %245 = vector.load %arg9[%c128_155, %c0_156] : memref<640x192xf32, #tpu.memory_space<vmem>>, vector<64x192xf32>
    %c192_157 = arith.constant 192 : index
    %c0_158 = arith.constant 0 : index
    %246 = vector.load %arg9[%c192_157, %c0_158] : memref<640x192xf32, #tpu.memory_space<vmem>>, vector<64x192xf32>
    %c256 = arith.constant 256 : index
    %c0_159 = arith.constant 0 : index
    %247 = vector.load %arg9[%c256, %c0_159] : memref<640x192xf32, #tpu.memory_space<vmem>>, vector<64x192xf32>
    %248 = vector.extract_strided_slice %245 {offsets = [0, 0], sizes = [64, 64], strides = [1, 1]} : vector<64x192xf32> to vector<64x64xf32>
    %249 = vector.extract_strided_slice %246 {offsets = [0, 64], sizes = [64, 64], strides = [1, 1]} : vector<64x192xf32> to vector<64x64xf32>
    %250 = arith.addf %248, %249 : vector<64x64xf32>
    %251 = vector.extract_strided_slice %247 {offsets = [0, 128], sizes = [64, 64], strides = [1, 1]} : vector<64x192xf32> to vector<64x64xf32>
    %252 = arith.addf %250, %251 : vector<64x64xf32>
    %253 = vector.shape_cast %5 : vector<64xf32> to vector<1x64xf32>
    %254 = vector.broadcast %253 : vector<1x64xf32> to vector<64x64xf32>
    %255 = arith.addf %252, %254 : vector<64x64xf32>
    %cst_160 = arith.constant dense<0.000000e+00> : vector<64xf32>
    %256 = vector.multi_reduction <add>, %255, %cst_160 [0] : vector<64x64xf32> to vector<64xf32>
    %257 = vector.shape_cast %256 : vector<64xf32> to vector<1x64xf32>
    %258 = arith.addf %235, %257 : vector<1x64xf32>
    %259 = arith.mulf %255, %255 : vector<64x64xf32>
    %cst_161 = arith.constant dense<0.000000e+00> : vector<64xf32>
    %260 = vector.multi_reduction <add>, %259, %cst_161 [0] : vector<64x64xf32> to vector<64xf32>
    %261 = vector.shape_cast %260 : vector<64xf32> to vector<1x64xf32>
    %262 = arith.addf %239, %261 : vector<1x64xf32>
    %263 = vector.shape_cast %255 : vector<64x64xf32> to vector<8x8x64xf32>
    %264 = arith.truncf %263 : vector<8x8x64xf32> to vector<8x8x64xbf16>
    %c0_162 = arith.constant 0 : index
    %c2_163 = arith.constant 2 : index
    %c0_164 = arith.constant 0 : index
    %c0_165 = arith.constant 0 : index
    %c0_166 = arith.constant 0 : index
    %265 = vector.load %arg6[%c0_162, %c2_163, %c0_164, %c0_165, %c0_166] : memref<1x8x8x8x64xbf16, #tpu.memory_space<vmem>>, vector<1x1x8x8x64xbf16>
    %266 = vector.shape_cast %265 : vector<1x1x8x8x64xbf16> to vector<8x8x64xbf16>
    %267 = vector.shape_cast %264 : vector<8x8x64xbf16> to vector<1x1x8x8x64xbf16>
    tpu.vector_store %arg6[%c0_162, %c2_163, %c0_164, %c0_165, %c0_166], %267 {strides = array<i32>} : memref<1x8x8x8x64xbf16, #tpu.memory_space<vmem>>, vector<1x1x8x8x64xbf16>,
    %c192_167 = arith.constant 192 : index
    %c0_168 = arith.constant 0 : index
    %268 = vector.load %arg9[%c192_167, %c0_168] : memref<640x192xf32, #tpu.memory_space<vmem>>, vector<64x192xf32>
    %c256_169 = arith.constant 256 : index
    %c0_170 = arith.constant 0 : index
    %269 = vector.load %arg9[%c256_169, %c0_170] : memref<640x192xf32, #tpu.memory_space<vmem>>, vector<64x192xf32>
    %c320 = arith.constant 320 : index
    %c0_171 = arith.constant 0 : index
    %270 = vector.load %arg9[%c320, %c0_171] : memref<640x192xf32, #tpu.memory_space<vmem>>, vector<64x192xf32>
    %271 = vector.extract_strided_slice %268 {offsets = [0, 0], sizes = [64, 64], strides = [1, 1]} : vector<64x192xf32> to vector<64x64xf32>
    %272 = vector.extract_strided_slice %269 {offsets = [0, 64], sizes = [64, 64], strides = [1, 1]} : vector<64x192xf32> to vector<64x64xf32>
    %273 = arith.addf %271, %272 : vector<64x64xf32>
    %274 = vector.extract_strided_slice %270 {offsets = [0, 128], sizes = [64, 64], strides = [1, 1]} : vector<64x192xf32> to vector<64x64xf32>
    %275 = arith.addf %273, %274 : vector<64x64xf32>
    %276 = vector.shape_cast %5 : vector<64xf32> to vector<1x64xf32>
    %277 = vector.broadcast %276 : vector<1x64xf32> to vector<64x64xf32>
    %278 = arith.addf %275, %277 : vector<64x64xf32>
    %cst_172 = arith.constant dense<0.000000e+00> : vector<64xf32>
    %279 = vector.multi_reduction <add>, %278, %cst_172 [0] : vector<64x64xf32> to vector<64xf32>
    %280 = vector.shape_cast %279 : vector<64xf32> to vector<1x64xf32>
    %281 = arith.addf %258, %280 : vector<1x64xf32>
    %282 = arith.mulf %278, %278 : vector<64x64xf32>
    %cst_173 = arith.constant dense<0.000000e+00> : vector<64xf32>
    %283 = vector.multi_reduction <add>, %282, %cst_173 [0] : vector<64x64xf32> to vector<64xf32>
    %284 = vector.shape_cast %283 : vector<64xf32> to vector<1x64xf32>
    %285 = arith.addf %262, %284 : vector<1x64xf32>
    %286 = vector.shape_cast %278 : vector<64x64xf32> to vector<8x8x64xf32>
    %287 = arith.truncf %286 : vector<8x8x64xf32> to vector<8x8x64xbf16>
    %c0_174 = arith.constant 0 : index
    %c3_175 = arith.constant 3 : index
    %c0_176 = arith.constant 0 : index
    %c0_177 = arith.constant 0 : index
    %c0_178 = arith.constant 0 : index
    %288 = vector.load %arg6[%c0_174, %c3_175, %c0_176, %c0_177, %c0_178] : memref<1x8x8x8x64xbf16, #tpu.memory_space<vmem>>, vector<1x1x8x8x64xbf16>
    %289 = vector.shape_cast %288 : vector<1x1x8x8x64xbf16> to vector<8x8x64xbf16>
    %290 = vector.shape_cast %287 : vector<8x8x64xbf16> to vector<1x1x8x8x64xbf16>
    tpu.vector_store %arg6[%c0_174, %c3_175, %c0_176, %c0_177, %c0_178], %290 {strides = array<i32>} : memref<1x8x8x8x64xbf16, #tpu.memory_space<vmem>>, vector<1x1x8x8x64xbf16>,
    %c256_179 = arith.constant 256 : index
    %c0_180 = arith.constant 0 : index
    %291 = vector.load %arg9[%c256_179, %c0_180] : memref<640x192xf32, #tpu.memory_space<vmem>>, vector<64x192xf32>
    %c320_181 = arith.constant 320 : index
    %c0_182 = arith.constant 0 : index
    %292 = vector.load %arg9[%c320_181, %c0_182] : memref<640x192xf32, #tpu.memory_space<vmem>>, vector<64x192xf32>
    %c384 = arith.constant 384 : index
    %c0_183 = arith.constant 0 : index
    %293 = vector.load %arg9[%c384, %c0_183] : memref<640x192xf32, #tpu.memory_space<vmem>>, vector<64x192xf32>
    %294 = vector.extract_strided_slice %291 {offsets = [0, 0], sizes = [64, 64], strides = [1, 1]} : vector<64x192xf32> to vector<64x64xf32>
    %295 = vector.extract_strided_slice %292 {offsets = [0, 64], sizes = [64, 64], strides = [1, 1]} : vector<64x192xf32> to vector<64x64xf32>
    %296 = arith.addf %294, %295 : vector<64x64xf32>
    %297 = vector.extract_strided_slice %293 {offsets = [0, 128], sizes = [64, 64], strides = [1, 1]} : vector<64x192xf32> to vector<64x64xf32>
    %298 = arith.addf %296, %297 : vector<64x64xf32>
    %299 = vector.shape_cast %5 : vector<64xf32> to vector<1x64xf32>
    %300 = vector.broadcast %299 : vector<1x64xf32> to vector<64x64xf32>
    %301 = arith.addf %298, %300 : vector<64x64xf32>
    %cst_184 = arith.constant dense<0.000000e+00> : vector<64xf32>
    %302 = vector.multi_reduction <add>, %301, %cst_184 [0] : vector<64x64xf32> to vector<64xf32>
    %303 = vector.shape_cast %302 : vector<64xf32> to vector<1x64xf32>
    %304 = arith.addf %281, %303 : vector<1x64xf32>
    %305 = arith.mulf %301, %301 : vector<64x64xf32>
    %cst_185 = arith.constant dense<0.000000e+00> : vector<64xf32>
    %306 = vector.multi_reduction <add>, %305, %cst_185 [0] : vector<64x64xf32> to vector<64xf32>
    %307 = vector.shape_cast %306 : vector<64xf32> to vector<1x64xf32>
    %308 = arith.addf %285, %307 : vector<1x64xf32>
    %309 = vector.shape_cast %301 : vector<64x64xf32> to vector<8x8x64xf32>
    %310 = arith.truncf %309 : vector<8x8x64xf32> to vector<8x8x64xbf16>
    %c0_186 = arith.constant 0 : index
    %c4_187 = arith.constant 4 : index
    %c0_188 = arith.constant 0 : index
    %c0_189 = arith.constant 0 : index
    %c0_190 = arith.constant 0 : index
    %311 = vector.load %arg6[%c0_186, %c4_187, %c0_188, %c0_189, %c0_190] : memref<1x8x8x8x64xbf16, #tpu.memory_space<vmem>>, vector<1x1x8x8x64xbf16>
    %312 = vector.shape_cast %311 : vector<1x1x8x8x64xbf16> to vector<8x8x64xbf16>
    %313 = vector.shape_cast %310 : vector<8x8x64xbf16> to vector<1x1x8x8x64xbf16>
    tpu.vector_store %arg6[%c0_186, %c4_187, %c0_188, %c0_189, %c0_190], %313 {strides = array<i32>} : memref<1x8x8x8x64xbf16, #tpu.memory_space<vmem>>, vector<1x1x8x8x64xbf16>,
    %c320_191 = arith.constant 320 : index
    %c0_192 = arith.constant 0 : index
    %314 = vector.load %arg9[%c320_191, %c0_192] : memref<640x192xf32, #tpu.memory_space<vmem>>, vector<64x192xf32>
    %c384_193 = arith.constant 384 : index
    %c0_194 = arith.constant 0 : index
    %315 = vector.load %arg9[%c384_193, %c0_194] : memref<640x192xf32, #tpu.memory_space<vmem>>, vector<64x192xf32>
    %c448 = arith.constant 448 : index
    %c0_195 = arith.constant 0 : index
    %316 = vector.load %arg9[%c448, %c0_195] : memref<640x192xf32, #tpu.memory_space<vmem>>, vector<64x192xf32>
    %317 = vector.extract_strided_slice %314 {offsets = [0, 0], sizes = [64, 64], strides = [1, 1]} : vector<64x192xf32> to vector<64x64xf32>
    %318 = vector.extract_strided_slice %315 {offsets = [0, 64], sizes = [64, 64], strides = [1, 1]} : vector<64x192xf32> to vector<64x64xf32>
    %319 = arith.addf %317, %318 : vector<64x64xf32>
    %320 = vector.extract_strided_slice %316 {offsets = [0, 128], sizes = [64, 64], strides = [1, 1]} : vector<64x192xf32> to vector<64x64xf32>
    %321 = arith.addf %319, %320 : vector<64x64xf32>
    %322 = vector.shape_cast %5 : vector<64xf32> to vector<1x64xf32>
    %323 = vector.broadcast %322 : vector<1x64xf32> to vector<64x64xf32>
    %324 = arith.addf %321, %323 : vector<64x64xf32>
    %cst_196 = arith.constant dense<0.000000e+00> : vector<64xf32>
    %325 = vector.multi_reduction <add>, %324, %cst_196 [0] : vector<64x64xf32> to vector<64xf32>
    %326 = vector.shape_cast %325 : vector<64xf32> to vector<1x64xf32>
    %327 = arith.addf %304, %326 : vector<1x64xf32>
    %328 = arith.mulf %324, %324 : vector<64x64xf32>
    %cst_197 = arith.constant dense<0.000000e+00> : vector<64xf32>
    %329 = vector.multi_reduction <add>, %328, %cst_197 [0] : vector<64x64xf32> to vector<64xf32>
    %330 = vector.shape_cast %329 : vector<64xf32> to vector<1x64xf32>
    %331 = arith.addf %308, %330 : vector<1x64xf32>
    %332 = vector.shape_cast %324 : vector<64x64xf32> to vector<8x8x64xf32>
    %333 = arith.truncf %332 : vector<8x8x64xf32> to vector<8x8x64xbf16>
    %c0_198 = arith.constant 0 : index
    %c5_199 = arith.constant 5 : index
    %c0_200 = arith.constant 0 : index
    %c0_201 = arith.constant 0 : index
    %c0_202 = arith.constant 0 : index
    %334 = vector.load %arg6[%c0_198, %c5_199, %c0_200, %c0_201, %c0_202] : memref<1x8x8x8x64xbf16, #tpu.memory_space<vmem>>, vector<1x1x8x8x64xbf16>
    %335 = vector.shape_cast %334 : vector<1x1x8x8x64xbf16> to vector<8x8x64xbf16>
    %336 = vector.shape_cast %333 : vector<8x8x64xbf16> to vector<1x1x8x8x64xbf16>
    tpu.vector_store %arg6[%c0_198, %c5_199, %c0_200, %c0_201, %c0_202], %336 {strides = array<i32>} : memref<1x8x8x8x64xbf16, #tpu.memory_space<vmem>>, vector<1x1x8x8x64xbf16>,
    %c384_203 = arith.constant 384 : index
    %c0_204 = arith.constant 0 : index
    %337 = vector.load %arg9[%c384_203, %c0_204] : memref<640x192xf32, #tpu.memory_space<vmem>>, vector<64x192xf32>
    %c448_205 = arith.constant 448 : index
    %c0_206 = arith.constant 0 : index
    %338 = vector.load %arg9[%c448_205, %c0_206] : memref<640x192xf32, #tpu.memory_space<vmem>>, vector<64x192xf32>
    %c512 = arith.constant 512 : index
    %c0_207 = arith.constant 0 : index
    %339 = vector.load %arg9[%c512, %c0_207] : memref<640x192xf32, #tpu.memory_space<vmem>>, vector<64x192xf32>
    %340 = vector.extract_strided_slice %337 {offsets = [0, 0], sizes = [64, 64], strides = [1, 1]} : vector<64x192xf32> to vector<64x64xf32>
    %341 = vector.extract_strided_slice %338 {offsets = [0, 64], sizes = [64, 64], strides = [1, 1]} : vector<64x192xf32> to vector<64x64xf32>
    %342 = arith.addf %340, %341 : vector<64x64xf32>
    %343 = vector.extract_strided_slice %339 {offsets = [0, 128], sizes = [64, 64], strides = [1, 1]} : vector<64x192xf32> to vector<64x64xf32>
    %344 = arith.addf %342, %343 : vector<64x64xf32>
    %345 = vector.shape_cast %5 : vector<64xf32> to vector<1x64xf32>
    %346 = vector.broadcast %345 : vector<1x64xf32> to vector<64x64xf32>
    %347 = arith.addf %344, %346 : vector<64x64xf32>
    %cst_208 = arith.constant dense<0.000000e+00> : vector<64xf32>
    %348 = vector.multi_reduction <add>, %347, %cst_208 [0] : vector<64x64xf32> to vector<64xf32>
    %349 = vector.shape_cast %348 : vector<64xf32> to vector<1x64xf32>
    %350 = arith.addf %327, %349 : vector<1x64xf32>
    %351 = arith.mulf %347, %347 : vector<64x64xf32>
    %cst_209 = arith.constant dense<0.000000e+00> : vector<64xf32>
    %352 = vector.multi_reduction <add>, %351, %cst_209 [0] : vector<64x64xf32> to vector<64xf32>
    %353 = vector.shape_cast %352 : vector<64xf32> to vector<1x64xf32>
    %354 = arith.addf %331, %353 : vector<1x64xf32>
    %355 = vector.shape_cast %347 : vector<64x64xf32> to vector<8x8x64xf32>
    %356 = arith.truncf %355 : vector<8x8x64xf32> to vector<8x8x64xbf16>
    %c0_210 = arith.constant 0 : index
    %c6_211 = arith.constant 6 : index
    %c0_212 = arith.constant 0 : index
    %c0_213 = arith.constant 0 : index
    %c0_214 = arith.constant 0 : index
    %357 = vector.load %arg6[%c0_210, %c6_211, %c0_212, %c0_213, %c0_214] : memref<1x8x8x8x64xbf16, #tpu.memory_space<vmem>>, vector<1x1x8x8x64xbf16>
    %358 = vector.shape_cast %357 : vector<1x1x8x8x64xbf16> to vector<8x8x64xbf16>
    %359 = vector.shape_cast %356 : vector<8x8x64xbf16> to vector<1x1x8x8x64xbf16>
    tpu.vector_store %arg6[%c0_210, %c6_211, %c0_212, %c0_213, %c0_214], %359 {strides = array<i32>} : memref<1x8x8x8x64xbf16, #tpu.memory_space<vmem>>, vector<1x1x8x8x64xbf16>,
    %c448_215 = arith.constant 448 : index
    %c0_216 = arith.constant 0 : index
    %360 = vector.load %arg9[%c448_215, %c0_216] : memref<640x192xf32, #tpu.memory_space<vmem>>, vector<64x192xf32>
    %c512_217 = arith.constant 512 : index
    %c0_218 = arith.constant 0 : index
    %361 = vector.load %arg9[%c512_217, %c0_218] : memref<640x192xf32, #tpu.memory_space<vmem>>, vector<64x192xf32>
    %c576 = arith.constant 576 : index
    %c0_219 = arith.constant 0 : index
    %362 = vector.load %arg9[%c576, %c0_219] : memref<640x192xf32, #tpu.memory_space<vmem>>, vector<64x192xf32>
    %363 = vector.extract_strided_slice %360 {offsets = [0, 0], sizes = [64, 64], strides = [1, 1]} : vector<64x192xf32> to vector<64x64xf32>
    %364 = vector.extract_strided_slice %361 {offsets = [0, 64], sizes = [64, 64], strides = [1, 1]} : vector<64x192xf32> to vector<64x64xf32>
    %365 = arith.addf %363, %364 : vector<64x64xf32>
    %366 = vector.extract_strided_slice %362 {offsets = [0, 128], sizes = [64, 64], strides = [1, 1]} : vector<64x192xf32> to vector<64x64xf32>
    %367 = arith.addf %365, %366 : vector<64x64xf32>
    %368 = vector.shape_cast %5 : vector<64xf32> to vector<1x64xf32>
    %369 = vector.broadcast %368 : vector<1x64xf32> to vector<64x64xf32>
    %370 = arith.addf %367, %369 : vector<64x64xf32>
    %cst_220 = arith.constant dense<0.000000e+00> : vector<64xf32>
    %371 = vector.multi_reduction <add>, %370, %cst_220 [0] : vector<64x64xf32> to vector<64xf32>
    %372 = vector.shape_cast %371 : vector<64xf32> to vector<1x64xf32>
    %373 = arith.addf %350, %372 : vector<1x64xf32>
    %374 = arith.mulf %370, %370 : vector<64x64xf32>
    %cst_221 = arith.constant dense<0.000000e+00> : vector<64xf32>
    %375 = vector.multi_reduction <add>, %374, %cst_221 [0] : vector<64x64xf32> to vector<64xf32>
    %376 = vector.shape_cast %375 : vector<64xf32> to vector<1x64xf32>
    %377 = arith.addf %354, %376 : vector<1x64xf32>
    %378 = vector.shape_cast %370 : vector<64x64xf32> to vector<8x8x64xf32>
    %379 = arith.truncf %378 : vector<8x8x64xf32> to vector<8x8x64xbf16>
    %c0_222 = arith.constant 0 : index
    %c7_223 = arith.constant 7 : index
    %c0_224 = arith.constant 0 : index
    %c0_225 = arith.constant 0 : index
    %c0_226 = arith.constant 0 : index
    %380 = vector.load %arg6[%c0_222, %c7_223, %c0_224, %c0_225, %c0_226] : memref<1x8x8x8x64xbf16, #tpu.memory_space<vmem>>, vector<1x1x8x8x64xbf16>
    %381 = vector.shape_cast %380 : vector<1x1x8x8x64xbf16> to vector<8x8x64xbf16>
    %382 = vector.shape_cast %379 : vector<8x8x64xbf16> to vector<1x1x8x8x64xbf16>
    tpu.vector_store %arg6[%c0_222, %c7_223, %c0_224, %c0_225, %c0_226], %382 {strides = array<i32>} : memref<1x8x8x8x64xbf16, #tpu.memory_space<vmem>>, vector<1x1x8x8x64xbf16>,
    %c0_227 = arith.constant 0 : index
    %c0_228 = arith.constant 0 : index
    %c0_229 = arith.constant 0 : index
    %383 = vector.load %arg7[%c0_227, %c0_228, %c0_229] : memref<1x2x64xf32, #tpu.memory_space<vmem>>, vector<1x1x64xf32>
    %384 = vector.shape_cast %383 : vector<1x1x64xf32> to vector<1x64xf32>
    %385 = vector.shape_cast %373 : vector<1x64xf32> to vector<1x1x64xf32>
    tpu.vector_store %arg7[%c0_227, %c0_228, %c0_229], %385 {strides = array<i32>} : memref<1x2x64xf32, #tpu.memory_space<vmem>>, vector<1x1x64xf32>,
    %c0_230 = arith.constant 0 : index
    %c1_231 = arith.constant 1 : index
    %c0_232 = arith.constant 0 : index
    %386 = vector.load %arg7[%c0_230, %c1_231, %c0_232] : memref<1x2x64xf32, #tpu.memory_space<vmem>>, vector<1x1x64xf32>
    %387 = vector.shape_cast %386 : vector<1x1x64xf32> to vector<1x64xf32>
    %388 = vector.shape_cast %377 : vector<1x64xf32> to vector<1x1x64xf32>
    tpu.vector_store %arg7[%c0_230, %c1_231, %c0_232], %388 {strides = array<i32>} : memref<1x2x64xf32, #tpu.memory_space<vmem>>, vector<1x1x64xf32>,
    return
  }
  func.func @transform_0(%arg0: i32) -> (i32, i32, i32, i32, i32) {
    %c0_i32 = arith.constant 0 : i32
    %c0_i32_0 = arith.constant 0 : i32
    %c0_i32_1 = arith.constant 0 : i32
    %c0_i32_2 = arith.constant 0 : i32
    %c0_i32_3 = arith.constant 0 : i32
    return %arg0, %c0_i32, %c0_i32_0, %c0_i32_1, %c0_i32_2 : i32, i32, i32, i32, i32
  }
  func.func @transform_1(%arg0: i32) -> (i32, i32) {
    %c0_i32 = arith.constant 0 : i32
    %c0_i32_0 = arith.constant 0 : i32
    %c0_i32_1 = arith.constant 0 : i32
    return %c0_i32, %c0_i32_0 : i32, i32
  }
  func.func @transform_2(%arg0: i32) -> (i32, i32) {
    %c0_i32 = arith.constant 0 : i32
    %c0_i32_0 = arith.constant 0 : i32
    %c0_i32_1 = arith.constant 0 : i32
    return %c0_i32, %c0_i32_0 : i32, i32
  }
  func.func @transform_3(%arg0: i32) -> (i32, i32, i32) {
    %c0_i32 = arith.constant 0 : i32
    %c0_i32_0 = arith.constant 0 : i32
    %c0_i32_1 = arith.constant 0 : i32
    %c0_i32_2 = arith.constant 0 : i32
    return %c0_i32, %c0_i32_0, %c0_i32_1 : i32, i32, i32
  }
  func.func @transform_4(%arg0: i32) -> (i32, i32) {
    %c0_i32 = arith.constant 0 : i32
    %c0_i32_0 = arith.constant 0 : i32
    %c0_i32_1 = arith.constant 0 : i32
    return %c0_i32, %c0_i32_0 : i32, i32
  }
  func.func @transform_5(%arg0: i32) -> (i32, i32, i32, i32, i32) {
    %c0_i32 = arith.constant 0 : i32
    %c0_i32_0 = arith.constant 0 : i32
    %c0_i32_1 = arith.constant 0 : i32
    %c0_i32_2 = arith.constant 0 : i32
    %c0_i32_3 = arith.constant 0 : i32
    return %arg0, %c0_i32, %c0_i32_0, %c0_i32_1, %c0_i32_2 : i32, i32, i32, i32, i32
  }
  func.func @transform_6(%arg0: i32) -> (i32, i32, i32) {
    %c0_i32 = arith.constant 0 : i32
    %c0_i32_0 = arith.constant 0 : i32
    %c0_i32_1 = arith.constant 0 : i32
    return %arg0, %c0_i32, %c0_i32_0 : i32, i32, i32
  }
}

</mosaic_0001>

<llo_original>
// kernel: tpu_custom_call.1
$region0: #{tpu_custom_call.1}
  #allocation0 [shape = 'u32[]', space=smem, size = 0x4, offset = 0x4, fixed_abs, tag = 'smem constant byte address 0x4 - core index']
  #allocation1 [shape = 'u32[144,128]{1,0:T(1,128)}', space=vmem, size = 0x12000, scoped, tag = 'internal scratch']
  #allocation2 [shape = 'bf16[10,10,8,192]{3,2,1,0:T(8,128)(2,1)}', space=vmem, size = 0x64000, scoped, tag = 'scratch operand']
  #allocation3 [shape = 'f32[640,192]{1,0:T(8,128)}', space=vmem, size = 0xa0000, scoped, tag = 'scratch operand']
  %s0 = inlined_call_operand.hbm [shape: f32[2,8,8,8,64], index: 0, kind: input, shape index: {}]
  %s1 = inlined_call_operand.vmem [shape: f32[1,64], index: 1, kind: input, shape index: {}]
  %s2 = inlined_call_operand.vmem [shape: f32[1,64], index: 2, kind: input, shape index: {}]
  %s3 = inlined_call_operand.hbm [shape: bf16[3,192,192], index: 3, kind: input, shape index: {}]
  %s4 = inlined_call_operand.vmem [shape: f32[1,64], index: 4, kind: input, shape index: {}]
  %s5 = inlined_call_operand.hbm [shape: bf16[2,8,8,8,64], index: 5, kind: output, shape index: {0}]
  %s6 = inlined_call_operand.hbm [shape: f32[2,2,64], index: 6, kind: output, shape index: {1}]
  %7 = xla_tuple %s5, %s6
  %s8 = sld [smem:[#allocation0]]
  $region69: #{tpu_custom_call.1} parent=0
    _
  %s10 = ssub.s32 1, %s8
  %s11 = scalar_select 0, %s10, %s8
  $region1: #{tpu_custom_call.1} parent=0
    #allocation4 [shape = 'u8[524288]{0}', space=vmem, size = 0x80000, scoped, tag = 'input window, operand 0']
    #allocation5 [shape = 's32[2]{0}', space=sflag, size = 0x8, scoped, tag = 'scoped memory for tpu_custom_call.1']
    #allocation6 [shape = 's32[2]{0}', space=sflag, size = 0x8, scoped, tag = 'scoped memory for tpu_custom_call.1']
    #allocation7 [shape = 'u8[294912]{0}', space=vmem, size = 0x48000, scoped, tag = 'input window, operand 3, single buffered']
    #allocation8 [shape = 's32[1]{0}', space=sflag, size = 0x4, scoped, tag = 'scoped memory for tpu_custom_call.1']
    #allocation9 [shape = 'u8[262144]{0}', space=vmem, size = 0x40000, scoped, tag = 'output window, operand 0']
    #allocation10 [shape = 'u8[2048]{0}', space=vmem, size = 0x800, scoped, tag = 'output window, operand 1']
    #allocation11 [shape = 's32[2]{0}', space=sflag, size = 0x8, scoped, tag = 'scoped memory for tpu_custom_call.1']
    %12 = vsyncpa [#allocation5], 0
    %s13 = scalar_lea.sflag [#allocation5], 1
    %14 = vsyncpa %s13, 0
    %15 = vsyncpa [#allocation8], 0
    %16 = vsyncpa [#allocation6], 0
    %s17 = scalar_lea.sflag [#allocation6], 1
    %18 = vsyncpa %s17, 0
    %19 = vsyncpa [#allocation11], 0
    %s20 = scalar_lea.sflag [#allocation11], 1
    %21 = vsyncpa %s20, 0
    loop: start=0, step=1, limit=4
    $region2: #{tpu_custom_call.1} parent=1 // loop_pre_header
      _
    $region3: #{tpu_custom_call.1} parent=1 // loop_header
      %s23 = sphi 0, %s27
      %p24 = scmp.ge.s32.totalorder %s23, 4
      %s33 = sphi 0, %s35
      %s36 = sphi 0, %s33
      %s37 = sphi 0, %s36
      %s53 = sphi 0, %s37
      %s57 = sphi 0, %s57
      %s59 = sphi 0, %s57
      %s60 = sphi 0, %s59
      %s74 = sphi 0, %s60
      %s78 = sphi 0, %s78
      %s80 = sphi 0, %s78
      %s81 = sphi 0, %s80
      %s95 = sphi 0, %s81
      %s99 = sphi 0, %s99
      %s101 = sphi 0, %s99
      %s102 = sphi 0, %s101
      %s116 = sphi 0, %s102
      %s120 = sphi 0, %s120
      %s122 = sphi 0, %s120
      %s123 = sphi 0, %s122
      %s137 = sphi 0, %s123
      %s143 = sphi 0, %s145
      %s146 = sphi 0, %s143
      %s147 = sphi 0, %s146
      %s163 = sphi 0, %s147
      %s169 = sphi 0, %s171
      %s172 = sphi 0, %s169
      %s173 = sphi 0, %s172
      %s189 = sphi 0, %s173
    $region4: #{tpu_custom_call.1} parent=1 // loop_header_branch
      %26 = sbr.rel (%p24) target = $region8
    $region5: #{tpu_custom_call.1} parent=1 // loop_body
      %s28 = ssub.s32 %s23, 1
      %s29 = ssub.s32 %s23, 2
      %s30 = sadd.s32 %s23, 1
      %s31 = ssub.s32 %s23, %s30
      %p32 = scmp.eq.s32.totalorder %s31, 0
      %s34 = sadd.s32 %s33, 1
      %s35 = scalar_select %p32, %s33, %s34
      %p38 = pneg %p32
      %p39 = scmp.eq.s32.totalorder %s23, 1
      %p40 = por %p38, %p39
      %p41 = scmp.ne.s32.totalorder %s33, %s36
      %p42 = scmp.eq.s32.totalorder %s23, 0
      %p43 = por %p41, %p42
      %p44 = scmp.ne.s32.totalorder %s33, %s36
      %p45 = scmp.eq.s32.totalorder %s28, 1
      %p46 = por %p44, %p45
      %p47 = scmp.ne.s32.totalorder %s36, %s37
      %p48 = scmp.eq.s32.totalorder %s28, 0
      %p49 = por %p47, %p48
      %p50 = scmp.ne.s32.totalorder %s36, %s37
      %p51 = scmp.eq.s32.totalorder %s29, 1
      %p52 = por %p50, %p51
      %p54 = scmp.ne.s32.totalorder %s37, %s53
      %p55 = scmp.eq.s32.totalorder %s29, 0
      %p56 = por %p54, %p55
      %s58 = sadd.s32 %s57, 1
      %p61 = scmp.eq.s32.totalorder %s23, 1
      %p62 = scmp.ne.s32.totalorder %s57, %s59
      %p63 = scmp.eq.s32.totalorder %s23, 0
      %p64 = por %p62, %p63
      %p65 = scmp.ne.s32.totalorder %s57, %s59
      %p66 = scmp.eq.s32.totalorder %s28, 1
      %p67 = por %p65, %p66
      %p68 = scmp.ne.s32.totalorder %s59, %s60
      %p69 = scmp.eq.s32.totalorder %s28, 0
      %p70 = por %p68, %p69
      %p71 = scmp.ne.s32.totalorder %s59, %s60
      %p72 = scmp.eq.s32.totalorder %s29, 1
      %p73 = por %p71, %p72
      %p75 = scmp.ne.s32.totalorder %s60, %s74
      %p76 = scmp.eq.s32.totalorder %s29, 0
      %p77 = por %p75, %p76
      %s79 = sadd.s32 %s78, 1
      %p82 = scmp.eq.s32.totalorder %s23, 1
      %p83 = scmp.ne.s32.totalorder %s78, %s80
      %p84 = scmp.eq.s32.totalorder %s23, 0
      %p85 = por %p83, %p84
      %p86 = scmp.ne.s32.totalorder %s78, %s80
      %p87 = scmp.eq.s32.totalorder %s28, 1
      %p88 = por %p86, %p87
      %p89 = scmp.ne.s32.totalorder %s80, %s81
      %p90 = scmp.eq.s32.totalorder %s28, 0
      %p91 = por %p89, %p90
      %p92 = scmp.ne.s32.totalorder %s80, %s81
      %p93 = scmp.eq.s32.totalorder %s29, 1
      %p94 = por %p92, %p93
      %p96 = scmp.ne.s32.totalorder %s81, %s95
      %p97 = scmp.eq.s32.totalorder %s29, 0
      %p98 = por %p96, %p97
      %s100 = sadd.s32 %s99, 1
      %p103 = scmp.eq.s32.totalorder %s23, 1
      %p104 = scmp.ne.s32.totalorder %s99, %s101
      %p105 = scmp.eq.s32.totalorder %s23, 0
      %p106 = por %p104, %p105
      %p107 = scmp.ne.s32.totalorder %s99, %s101
      %p108 = scmp.eq.s32.totalorder %s28, 1
      %p109 = por %p107, %p108
      %p110 = scmp.ne.s32.totalorder %s101, %s102
      %p111 = scmp.eq.s32.totalorder %s28, 0
      %p112 = por %p110, %p111
      %p113 = scmp.ne.s32.totalorder %s101, %s102
      %p114 = scmp.eq.s32.totalorder %s29, 1
      %p115 = por %p113, %p114
      %p117 = scmp.ne.s32.totalorder %s102, %s116
      %p118 = scmp.eq.s32.totalorder %s29, 0
      %p119 = por %p117, %p118
      %s121 = sadd.s32 %s120, 1
      %p124 = scmp.eq.s32.totalorder %s23, 1
      %p125 = scmp.ne.s32.totalorder %s120, %s122
      %p126 = scmp.eq.s32.totalorder %s23, 0
      %p127 = por %p125, %p126
      %p128 = scmp.ne.s32.totalorder %s120, %s122
      %p129 = scmp.eq.s32.totalorder %s28, 1
      %p130 = por %p128, %p129
      %p131 = scmp.ne.s32.totalorder %s122, %s123
      %p132 = scmp.eq.s32.totalorder %s28, 0
      %p133 = por %p131, %p132
      %p134 = scmp.ne.s32.totalorder %s122, %s123
      %p135 = scmp.eq.s32.totalorder %s29, 1
      %p136 = por %p134, %p135
      %p138 = scmp.ne.s32.totalorder %s123, %s137
      %p139 = scmp.eq.s32.totalorder %s29, 0
      %p140 = por %p138, %p139
      %s141 = ssub.s32 %s23, %s30
      %p142 = scmp.eq.s32.totalorder %s141, 0
      %s144 = sadd.s32 %s143, 1
      %s145 = scalar_select %p142, %s143, %s144
      %p148 = pneg %p142
      %p149 = scmp.eq.s32.totalorder %s23, 1
      %p150 = por %p148, %p149
      %p151 = scmp.ne.s32.totalorder %s143, %s146
      %p152 = scmp.eq.s32.totalorder %s23, 0
      %p153 = por %p151, %p152
      %p154 = scmp.ne.s32.totalorder %s143, %s146
      %p155 = scmp.eq.s32.totalorder %s28, 1
      %p156 = por %p154, %p155
      %p157 = scmp.ne.s32.totalorder %s146, %s147
      %p158 = scmp.eq.s32.totalorder %s28, 0
      %p159 = por %p157, %p158
      %p160 = scmp.ne.s32.totalorder %s146, %s147
      %p161 = scmp.eq.s32.totalorder %s29, 1
      %p162 = por %p160, %p161
      %p164 = scmp.ne.s32.totalorder %s147, %s163
      %p165 = scmp.eq.s32.totalorder %s29, 0
      %p166 = por %p164, %p165
      %s167 = ssub.s32 %s23, %s30
      %p168 = scmp.eq.s32.totalorder %s167, 0
      %s170 = sadd.s32 %s169, 1
      %s171 = scalar_select %p168, %s169, %s170
      %p174 = pneg %p168
      %p175 = scmp.eq.s32.totalorder %s23, 1
      %p176 = por %p174, %p175
      %p177 = scmp.ne.s32.totalorder %s169, %s172
      %p178 = scmp.eq.s32.totalorder %s23, 0
      %p179 = por %p177, %p178
      %p180 = scmp.ne.s32.totalorder %s169, %s172
      %p181 = scmp.eq.s32.totalorder %s28, 1
      %p182 = por %p180, %p181
      %p183 = scmp.ne.s32.totalorder %s172, %s173
      %p184 = scmp.eq.s32.totalorder %s28, 0
      %p185 = por %p183, %p184
      %p186 = scmp.ne.s32.totalorder %s172, %s173
      %p187 = scmp.eq.s32.totalorder %s29, 1
      %p188 = por %p186, %p187
      %p190 = scmp.ne.s32.totalorder %s173, %s189
      %p191 = scmp.eq.s32.totalorder %s29, 0
      %p192 = por %p190, %p191
      %p193 = scmp.le.s32.totalorder 1, %s23
      %p194 = scmp.lt.s32.totalorder %s23, 3
      %p195 = pnand %p193, %p194
      %p196 = pneg %p195
      // Predicated region
      $region9: #{tpu_custom_call.1} parent=5 // pred_check
        _
      $region10: #{tpu_custom_call.1} parent=5 // pred_check_branch
        %198 = sbr.rel (%p195) target = $region12
      $region11: #{tpu_custom_call.1} parent=5 // pred_region
        %s199 = ssub.s32 %s23, 1
        // Predicated region
        $region13: #{tpu_custom_call.1} parent=11 // pred_check
          %p200 = pneg %p70
        $region14: #{tpu_custom_call.1} parent=11 // pred_check_branch
          %202 = sbr.rel (%p200) target = $region16
        $region15: #{tpu_custom_call.1} parent=11 // pred_region
          _
        $region16: #{tpu_custom_call.1} parent=11 // pred_fallthru
          _
        // Predicated region
        $region17: #{tpu_custom_call.1} parent=11 // pred_check
          %p203 = pneg %p91
        $region18: #{tpu_custom_call.1} parent=11 // pred_check_branch
          %205 = sbr.rel (%p203) target = $region20
        $region19: #{tpu_custom_call.1} parent=11 // pred_region
          _
        $region20: #{tpu_custom_call.1} parent=11 // pred_fallthru
          _
        // Predicated region
        $region21: #{tpu_custom_call.1} parent=11 // pred_check
          %p206 = pneg %p112
        $region22: #{tpu_custom_call.1} parent=11 // pred_check_branch
          %208 = sbr.rel (%p206) target = $region24
        $region23: #{tpu_custom_call.1} parent=11 // pred_region
          %s210 = ssub.s32 9216, 9216
          %211 = vsyncadd [#allocation8], %s210
          %s212 = sshll.u32 [#allocation7], 4
          %s213 = int_to_ptr.vmem [resolvable:$true] %s212
          %218 = dma.hbm_to_vmem [thread:$0]  %s3, 9216, %s213, [#allocation8], 128, 128, 8
        $region24: #{tpu_custom_call.1} parent=11 // pred_fallthru
          _
        // Predicated region
        $region25: #{tpu_custom_call.1} parent=11 // pred_check
          %p219 = pneg %p133
        $region26: #{tpu_custom_call.1} parent=11 // pred_check_branch
          %221 = sbr.rel (%p219) target = $region28
        $region27: #{tpu_custom_call.1} parent=11 // pred_region
          _
        $region28: #{tpu_custom_call.1} parent=11 // pred_fallthru
          _
      $region12: #{tpu_custom_call.1} parent=5 // pred_fallthru
        _
      %p222 = scmp.lt.s32.totalorder %s23, 2
      // Predicated region
      $region29: #{tpu_custom_call.1} parent=5 // pred_check
        %p223 = pneg %p222
      $region30: #{tpu_custom_call.1} parent=5 // pred_check_branch
        %225 = sbr.rel (%p223) target = $region32
      $region31: #{tpu_custom_call.1} parent=5 // pred_region
        // Predicated region
        $region33: #{tpu_custom_call.1} parent=31 // pred_check
          %p226 = pneg %p43
        $region34: #{tpu_custom_call.1} parent=31 // pred_check_branch
          %228 = sbr.rel (%p226) target = $region36
        $region35: #{tpu_custom_call.1} parent=31 // pred_region
          %s229 = sand.u32 %s33, 1
          %s230 = scalar_lea.sflag [#allocation5], %s229
          %s231 = sand.u32 %s33, 1
          %s232 = smul.addr %s231, 512
          %s233 = scalar_lea.vmem [#allocation4], %s232
          %s235 = ssub.s32 8192, 8192
          %236 = vsyncadd %s230, %s235
          %s237 = smul.addr %s23, 64
          %s238 = smul.addr %s237, 128
          %s239 = scalar_lea.hbm %s0, %s238
          %s240 = sshll.u32 %s233, 4
          %s241 = int_to_ptr.vmem [resolvable:$true] %s240
          %246 = dma.hbm_to_vmem [thread:$0]  %s239, 8192, %s241, %s230, 128, 128, 8
        $region36: #{tpu_custom_call.1} parent=31 // pred_fallthru
          _
      $region32: #{tpu_custom_call.1} parent=5 // pred_fallthru
        _
      %p247 = scmp.le.s32.totalorder 1, %s23
      %p248 = scmp.lt.s32.totalorder %s23, 3
      %p249 = pnand %p247, %p248
      %p250 = pneg %p249
      // Predicated region
      $region37: #{tpu_custom_call.1} parent=5 // pred_check
        _
      $region38: #{tpu_custom_call.1} parent=5 // pred_check_branch
        %252 = sbr.rel (%p249) target = $region40
      $region39: #{tpu_custom_call.1} parent=5 // pred_region
        %s253 = ssub.s32 %s23, 1
        %s254 = sand.u32 %s36, 1
        %s255 = scalar_lea.sflag [#allocation5], %s254
        %s256 = sand.u32 %s36, 1
        %s257 = smul.addr %s256, 512
        %s258 = scalar_lea.vmem [#allocation4], %s257
        // Predicated region
        $region41: #{tpu_custom_call.1} parent=39 // pred_check
          %p259 = pneg %p49
        $region42: #{tpu_custom_call.1} parent=39 // pred_check_branch
          %261 = sbr.rel (%p259) target = $region44
        $region43: #{tpu_custom_call.1} parent=39 // pred_region
          %262 = dma.done %s255, 8192
        $region44: #{tpu_custom_call.1} parent=39 // pred_fallthru
          _
        // Predicated region
        $region45: #{tpu_custom_call.1} parent=39 // pred_check
          %p263 = pneg %p112
        $region46: #{tpu_custom_call.1} parent=39 // pred_check_branch
          %265 = sbr.rel (%p263) target = $region48
        $region47: #{tpu_custom_call.1} parent=39 // pred_region
          %266 = dma.done [#allocation8], 9216
        $region48: #{tpu_custom_call.1} parent=39 // pred_fallthru
          _
        %s267 = sand.u32 %s36, 1
        %s268 = scalar_lea.sflag [#allocation5], %s267
        %s269 = sand.u32 %s36, 1
        %s270 = smul.addr %s269, 512
        %s271 = scalar_lea.vmem [#allocation4], %s270
        %p272 = pneg %p49
        %p273 = pneg %p46
        %p274 = pneg %p70
        %p275 = pneg %p67
        %p276 = pneg %p91
        %p277 = pneg %p88
        %p278 = pneg %p112
        %p279 = pneg %p109
        %p280 = pneg %p133
        %p281 = pneg %p130
        %p282 = pneg %p159
        %p283 = pneg %p156
        %s284 = sand.u32 %s146, 1
        %s285 = scalar_lea.sflag [#allocation6], %s284
        %s286 = sand.u32 %s146, 1
        %s287 = smul.addr %s286, 256
        %s288 = scalar_lea.vmem [#allocation9], %s287
        %p289 = pneg %p185
        %p290 = pneg %p182
        %s291 = sand.u32 %s172, 1
        %s292 = scalar_lea.sflag [#allocation11], %s291
        %s293 = sand.u32 %s172, 1
        %s294 = smul.addr %s293, 2
        %s295 = scalar_lea.vmem [#allocation10], %s294
        %v297 = vld [vmem:[%s1] sm:$0x1]
        %v298 = vld [vmem:[%s2] sm:$0x1]
        %v299 = vld [vmem:[%s4] sm:$0x1]
        %vm300 = vcmask 1043456
        %vm301 = vcmask 523268
        %vm302 = vmor %vm301, %vm300
        %303 = vst.msk [vmem:[#allocation2] sm:$0xff] %vm302, 0
        %304 = vst.msk [vmem:[#allocation2 + $0x8] sm:$0xff] %vm302, 0
        %305 = vst.msk [vmem:[#allocation2 + $0x10] sm:$0xff] %vm302, 0
        %306 = vst.msk [vmem:[#allocation2 + $0x18] sm:$0xff] %vm302, 0
        %307 = vst.msk [vmem:[#allocation2 + $0x20] sm:$0xff] %vm302, 0
        %308 = vst.msk [vmem:[#allocation2 + $0x28] sm:$0xff] %vm302, 0
        %309 = vst.msk [vmem:[#allocation2 + $0x30] sm:$0xff] %vm302, 0
        %310 = vst.msk [vmem:[#allocation2 + $0x38] sm:$0xff] %vm302, 0
        %311 = vst.msk [vmem:[#allocation2 + $0x40] sm:$0xff] %vm302, 0
        %312 = vst.msk [vmem:[#allocation2 + $0x48] sm:$0xff] %vm302, 0
        %s313 = scalar_lea.vmem [#allocation2], 720
        %314 = vst.msk [vmem:[%s313] sm:$0xff] %vm302, 0
        %315 = vst.msk [vmem:[%s313 + $0x8] sm:$0xff] %vm302, 0
        %316 = vst.msk [vmem:[%s313 + $0x10] sm:$0xff] %vm302, 0
        %317 = vst.msk [vmem:[%s313 + $0x18] sm:$0xff] %vm302, 0
        %318 = vst.msk [vmem:[%s313 + $0x20] sm:$0xff] %vm302, 0
        %319 = vst.msk [vmem:[%s313 + $0x28] sm:$0xff] %vm302, 0
        %320 = vst.msk [vmem:[%s313 + $0x30] sm:$0xff] %vm302, 0
        %321 = vst.msk [vmem:[%s313 + $0x38] sm:$0xff] %vm302, 0
        %322 = vst.msk [vmem:[%s313 + $0x40] sm:$0xff] %vm302, 0
        %323 = vst.msk [vmem:[%s313 + $0x48] sm:$0xff] %vm302, 0
        %s324 = scalar_lea.vmem [#allocation2], 80
        %325 = vst.msk [vmem:[%s324] sm:$0xff] %vm302, 0
        %326 = vst.msk [vmem:[%s324 + $0x50] sm:$0xff] %vm302, 0
        %327 = vst.msk [vmem:[%s324 + $0xa0] sm:$0xff] %vm302, 0
        %328 = vst.msk [vmem:[%s324 + $0xf0] sm:$0xff] %vm302, 0
        %329 = vst.msk [vmem:[%s324 + $0x140] sm:$0xff] %vm302, 0
        %330 = vst.msk [vmem:[%s324 + $0x190] sm:$0xff] %vm302, 0
        %331 = vst.msk [vmem:[%s324 + $0x1e0] sm:$0xff] %vm302, 0
        %332 = vst.msk [vmem:[%s324 + $0x230] sm:$0xff] %vm302, 0
        %s333 = scalar_lea.vmem [#allocation2], 152
        %334 = vst.msk [vmem:[%s333] sm:$0xff] %vm302, 0
        %335 = vst.msk [vmem:[%s333 + $0x50] sm:$0xff] %vm302, 0
        %336 = vst.msk [vmem:[%s333 + $0xa0] sm:$0xff] %vm302, 0
        %337 = vst.msk [vmem:[%s333 + $0xf0] sm:$0xff] %vm302, 0
        %338 = vst.msk [vmem:[%s333 + $0x140] sm:$0xff] %vm302, 0
        %339 = vst.msk [vmem:[%s333 + $0x190] sm:$0xff] %vm302, 0
        %340 = vst.msk [vmem:[%s333 + $0x1e0] sm:$0xff] %vm302, 0
        %341 = vst.msk [vmem:[%s333 + $0x230] sm:$0xff] %vm302, 0
        %v342 = vld [vmem:[%s258] sm:$0xff]
        %v343 = vld [vmem:[%s258 + $0x8] sm:$0xff]
        %v344 = vld [vmem:[%s258 + $0x10] sm:$0xff]
        %v345 = vld [vmem:[%s258 + $0x18] sm:$0xff]
        %v346 = vld [vmem:[%s258 + $0x20] sm:$0xff]
        %v347 = vld [vmem:[%s258 + $0x28] sm:$0xff]
        %v348 = vld [vmem:[%s258 + $0x30] sm:$0xff]
        %v349 = vld [vmem:[%s258 + $0x38] sm:$0xff]
        %v351 = vlaneseq
        %v352 = vshrl.u32 %v351, 7
        %v353 = vsub.s32 0, %v352
        %v354 = vrot.slane %v297, %v353
        %v356 = vmul.f32 %v342, %v354
        %v357 = vmul.f32 %v343, %v354
        %v358 = vmul.f32 %v344, %v354
        %v359 = vmul.f32 %v345, %v354
        %v360 = vmul.f32 %v346, %v354
        %v361 = vmul.f32 %v347, %v354
        %v362 = vmul.f32 %v348, %v354
        %v363 = vmul.f32 %v349, %v354
        %v365 = vlaneseq
        %v366 = vshrl.u32 %v365, 7
        %v367 = vsub.s32 0, %v366
        %v368 = vrot.slane %v298, %v367
        %v370 = vadd.f32 %v356, %v368
        %v371 = vadd.f32 %v357, %v368
        %v372 = vadd.f32 %v358, %v368
        %v373 = vadd.f32 %v359, %v368
        %v374 = vadd.f32 %v360, %v368
        %v375 = vadd.f32 %v361, %v368
        %v376 = vadd.f32 %v362, %v368
        %v377 = vadd.f32 %v363, %v368
        %v378 = vmax.f32 %v370, 0.0
        %v379 = vmax.f32 %v371, 0.0
        %v380 = vmax.f32 %v372, 0.0
        %v381 = vmax.f32 %v373, 0.0
        %v382 = vmax.f32 %v374, 0.0
        %v383 = vmax.f32 %v375, 0.0
        %v384 = vmax.f32 %v376, 0.0
        %v385 = vmax.f32 %v377, 0.0
        %v386 = vpack.c.bf16 %v378, %v378
        %v387 = vpack.c.bf16 %v379, %v379
        %v388 = vpack.c.bf16 %v380, %v380
        %v389 = vpack.c.bf16 %v381, %v381
        %v390 = vpack.c.bf16 %v382, %v382
        %v391 = vpack.c.bf16 %v383, %v383
        %v392 = vpack.c.bf16 %v384, %v384
        %v393 = vpack.c.bf16 %v385, %v385
        %v395 = vshrl.u32 %v386, 16
        %v397 = vrot.slane %v395, 7
        %v398 = vshll.u32 %v386, 16
        %v400 = vor.u32 %v397, %v398
        %v402 = vshrl.u32 %v387, 16
        %v404 = vrot.slane %v402, 7
        %v405 = vshll.u32 %v387, 16
        %v407 = vor.u32 %v404, %v405
        %v409 = vshrl.u32 %v388, 16
        %v411 = vrot.slane %v409, 7
        %v412 = vshll.u32 %v388, 16
        %v414 = vor.u32 %v411, %v412
        %v416 = vshrl.u32 %v389, 16
        %v418 = vrot.slane %v416, 7
        %v419 = vshll.u32 %v389, 16
        %v421 = vor.u32 %v418, %v419
        %v423 = vshrl.u32 %v390, 16
        %v425 = vrot.slane %v423, 7
        %v426 = vshll.u32 %v390, 16
        %v428 = vor.u32 %v425, %v426
        %v430 = vshrl.u32 %v391, 16
        %v432 = vrot.slane %v430, 7
        %v433 = vshll.u32 %v391, 16
        %v435 = vor.u32 %v432, %v433
        %v437 = vshrl.u32 %v392, 16
        %v439 = vrot.slane %v437, 7
        %v440 = vshll.u32 %v392, 16
        %v442 = vor.u32 %v439, %v440
        %v444 = vshrl.u32 %v393, 16
        %v446 = vrot.slane %v444, 7
        %v447 = vshll.u32 %v393, 16
        %v449 = vor.u32 %v446, %v447
        %vm458 = vcmask 1040384
        %vm459 = vsmask.f32 256
        %vm460 = vmand %vm458, %vm459
        %v461 = vsel %vm460, 0, %v400
        %v462 = vsel %vm460, 0, %v407
        %v463 = vsel %vm460, 0, %v414
        %v464 = vsel %vm460, 0, %v421
        %v465 = vsel %vm460, 0, %v428
        %v466 = vsel %vm460, 0, %v435
        %v467 = vsel %vm460, 0, %v442
        %v468 = vsel %vm460, 0, %v449
        %v469 = vrot.slane %v398, 1
        %v470 = vor.u32 %v395, %v469
        %v471 = vrot.slane %v405, 1
        %v472 = vor.u32 %v402, %v471
        %v473 = vrot.slane %v412, 1
        %v474 = vor.u32 %v409, %v473
        %v475 = vrot.slane %v419, 1
        %v476 = vor.u32 %v416, %v475
        %v477 = vrot.slane %v426, 1
        %v478 = vor.u32 %v423, %v477
        %v479 = vrot.slane %v433, 1
        %v480 = vor.u32 %v430, %v479
        %v481 = vrot.slane %v440, 1
        %v482 = vor.u32 %v437, %v481
        %v483 = vrot.slane %v447, 1
        %v484 = vor.u32 %v444, %v483
        %vm493 = vcmask 1043456
        %vm494 = vsmask.f32 3328
        %vm495 = vmand %vm493, %vm494
        %v496 = vsel %vm495, %v470, 0
        %v497 = vsel %vm495, %v472, 0
        %v498 = vsel %vm495, %v474, 0
        %v499 = vsel %vm495, %v476, 0
        %v500 = vsel %vm495, %v478, 0
        %v501 = vsel %vm495, %v480, 0
        %v502 = vsel %vm495, %v482, 0
        %v503 = vsel %vm495, %v484, 0
        %512 = vrot.lane.b32.xlu0 %v386, 64
        %v513 = vpop.permute.xlu0 %512
        %514 = vrot.lane.b32.xlu0 %v387, 64
        %v515 = vpop.permute.xlu0 %514
        %516 = vrot.lane.b32.xlu0 %v388, 64
        %v517 = vpop.permute.xlu0 %516
        %518 = vrot.lane.b32.xlu0 %v389, 64
        %v519 = vpop.permute.xlu0 %518
        %520 = vrot.lane.b32.xlu0 %v390, 64
        %v521 = vpop.permute.xlu0 %520
        %522 = vrot.lane.b32.xlu0 %v391, 64
        %v523 = vpop.permute.xlu0 %522
        %524 = vrot.lane.b32.xlu0 %v392, 64
        %v525 = vpop.permute.xlu0 %524
        %526 = vrot.lane.b32.xlu0 %v393, 64
        %v527 = vpop.permute.xlu0 %526
        %vm528 = vcmask 523264
        %v531 = vsel %vm528, %v461, %v513
        %v534 = vsel %vm528, %v462, %v515
        %v537 = vsel %vm528, %v463, %v517
        %v540 = vsel %vm528, %v464, %v519
        %v543 = vsel %vm528, %v465, %v521
        %v546 = vsel %vm528, %v466, %v523
        %v549 = vsel %vm528, %v467, %v525
        %v552 = vsel %vm528, %v468, %v527
        %v569 = vunpack.c.l.b16 %v531
        %v570 = vunpack.c.l.b16 %v496
        %v571 = vunpack.c.l.b16 %v534
        %v572 = vunpack.c.l.b16 %v497
        %v573 = vunpack.c.l.b16 %v537
        %v574 = vunpack.c.l.b16 %v498
        %v575 = vunpack.c.l.b16 %v540
        %v576 = vunpack.c.l.b16 %v499
        %v577 = vunpack.c.l.b16 %v543
        %v578 = vunpack.c.l.b16 %v500
        %v579 = vunpack.c.l.b16 %v546
        %v580 = vunpack.c.l.b16 %v501
        %v581 = vunpack.c.l.b16 %v549
        %v582 = vunpack.c.l.b16 %v502
        %v583 = vunpack.c.l.b16 %v552
        %v584 = vunpack.c.l.b16 %v503
        %v585 = vpack.c.b16 %v570, %v569
        %v586 = vpack.c.b16 %v572, %v571
        %v587 = vpack.c.b16 %v574, %v573
        %v588 = vpack.c.b16 %v576, %v575
        %v589 = vpack.c.b16 %v578, %v577
        %v590 = vpack.c.b16 %v580, %v579
        %v591 = vpack.c.b16 %v582, %v581
        %v592 = vpack.c.b16 %v584, %v583
        %s601 = scalar_lea.vmem [#allocation2], 88
        %602 = vst.msk [vmem:[%s601] sm:$0xff] %vm302, %v585
        %603 = vst.msk [vmem:[%s601 + $0x8] sm:$0xff] %vm302, %v586
        %604 = vst.msk [vmem:[%s601 + $0x10] sm:$0xff] %vm302, %v587
        %605 = vst.msk [vmem:[%s601 + $0x18] sm:$0xff] %vm302, %v588
        %606 = vst.msk [vmem:[%s601 + $0x20] sm:$0xff] %vm302, %v589
        %607 = vst.msk [vmem:[%s601 + $0x28] sm:$0xff] %vm302, %v590
        %608 = vst.msk [vmem:[%s601 + $0x30] sm:$0xff] %vm302, %v591
        %609 = vst.msk [vmem:[%s601 + $0x38] sm:$0xff] %vm302, %v592
        %s610 = scalar_lea.vmem %s258, 64 [#allocation4]
        %v611 = vld [vmem:[%s610] sm:$0xff]
        %v612 = vld [vmem:[%s610 + $0x8] sm:$0xff]
        %v613 = vld [vmem:[%s610 + $0x10] sm:$0xff]
        %v614 = vld [vmem:[%s610 + $0x18] sm:$0xff]
        %v615 = vld [vmem:[%s610 + $0x20] sm:$0xff]
        %v616 = vld [vmem:[%s610 + $0x28] sm:$0xff]
        %v617 = vld [vmem:[%s610 + $0x30] sm:$0xff]
        %v618 = vld [vmem:[%s610 + $0x38] sm:$0xff]
        %v619 = vmul.f32 %v611, %v354
        %v620 = vmul.f32 %v612, %v354
        %v621 = vmul.f32 %v613, %v354
        %v622 = vmul.f32 %v614, %v354
        %v623 = vmul.f32 %v615, %v354
        %v624 = vmul.f32 %v616, %v354
        %v625 = vmul.f32 %v617, %v354
        %v626 = vmul.f32 %v618, %v354
        %v627 = vadd.f32 %v619, %v368
        %v628 = vadd.f32 %v620, %v368
        %v629 = vadd.f32 %v621, %v368
        %v630 = vadd.f32 %v622, %v368
        %v631 = vadd.f32 %v623, %v368
        %v632 = vadd.f32 %v624, %v368
        %v633 = vadd.f32 %v625, %v368
        %v634 = vadd.f32 %v626, %v368
        %v635 = vmax.f32 %v627, 0.0
        %v636 = vmax.f32 %v628, 0.0
        %v637 = vmax.f32 %v629, 0.0
        %v638 = vmax.f32 %v630, 0.0
        %v639 = vmax.f32 %v631, 0.0
        %v640 = vmax.f32 %v632, 0.0
        %v641 = vmax.f32 %v633, 0.0
        %v642 = vmax.f32 %v634, 0.0
        %v643 = vpack.c.bf16 %v635, %v635
        %v644 = vpack.c.bf16 %v636, %v636
        %v645 = vpack.c.bf16 %v637, %v637
        %v646 = vpack.c.bf16 %v638, %v638
        %v647 = vpack.c.bf16 %v639, %v639
        %v648 = vpack.c.bf16 %v640, %v640
        %v649 = vpack.c.bf16 %v641, %v641
        %v650 = vpack.c.bf16 %v642, %v642
        %v652 = vshrl.u32 %v643, 16
        %v654 = vrot.slane %v652, 7
        %v655 = vshll.u32 %v643, 16
        %v657 = vor.u32 %v654, %v655
        %v659 = vshrl.u32 %v644, 16
        %v661 = vrot.slane %v659, 7
        %v662 = vshll.u32 %v644, 16
        %v664 = vor.u32 %v661, %v662
        %v666 = vshrl.u32 %v645, 16
        %v668 = vrot.slane %v666, 7
        %v669 = vshll.u32 %v645, 16
        %v671 = vor.u32 %v668, %v669
        %v673 = vshrl.u32 %v646, 16
        %v675 = vrot.slane %v673, 7
        %v676 = vshll.u32 %v646, 16
        %v678 = vor.u32 %v675, %v676
        %v680 = vshrl.u32 %v647, 16
        %v682 = vrot.slane %v680, 7
        %v683 = vshll.u32 %v647, 16
        %v685 = vor.u32 %v682, %v683
        %v687 = vshrl.u32 %v648, 16
        %v689 = vrot.slane %v687, 7
        %v690 = vshll.u32 %v648, 16
        %v692 = vor.u32 %v689, %v690
        %v694 = vshrl.u32 %v649, 16
        %v696 = vrot.slane %v694, 7
        %v697 = vshll.u32 %v649, 16
        %v699 = vor.u32 %v696, %v697
        %v701 = vshrl.u32 %v650, 16
        %v703 = vrot.slane %v701, 7
        %v704 = vshll.u32 %v650, 16
        %v706 = vor.u32 %v703, %v704
        %v715 = vsel %vm460, 0, %v657
        %v716 = vsel %vm460, 0, %v664
        %v717 = vsel %vm460, 0, %v671
        %v718 = vsel %vm460, 0, %v678
        %v719 = vsel %vm460, 0, %v685
        %v720 = vsel %vm460, 0, %v692
        %v721 = vsel %vm460, 0, %v699
        %v722 = vsel %vm460, 0, %v706
        %v723 = vrot.slane %v655, 1
        %v724 = vor.u32 %v652, %v723
        %v725 = vrot.slane %v662, 1
        %v726 = vor.u32 %v659, %v725
        %v727 = vrot.slane %v669, 1
        %v728 = vor.u32 %v666, %v727
        %v729 = vrot.slane %v676, 1
        %v730 = vor.u32 %v673, %v729
        %v731 = vrot.slane %v683, 1
        %v732 = vor.u32 %v680, %v731
        %v733 = vrot.slane %v690, 1
        %v734 = vor.u32 %v687, %v733
        %v735 = vrot.slane %v697, 1
        %v736 = vor.u32 %v694, %v735
        %v737 = vrot.slane %v704, 1
        %v738 = vor.u32 %v701, %v737
        %v747 = vsel %vm495, %v724, 0
        %v748 = vsel %vm495, %v726, 0
        %v749 = vsel %vm495, %v728, 0
        %v750 = vsel %vm495, %v730, 0
        %v751 = vsel %vm495, %v732, 0
        %v752 = vsel %vm495, %v734, 0
        %v753 = vsel %vm495, %v736, 0
        %v754 = vsel %vm495, %v738, 0
        %763 = vrot.lane.b32.xlu0 %v643, 64
        %v764 = vpop.permute.xlu0 %763
        %765 = vrot.lane.b32.xlu0 %v644, 64
        %v766 = vpop.permute.xlu0 %765
        %767 = vrot.lane.b32.xlu0 %v645, 64
        %v768 = vpop.permute.xlu0 %767
        %769 = vrot.lane.b32.xlu0 %v646, 64
        %v770 = vpop.permute.xlu0 %769
        %771 = vrot.lane.b32.xlu0 %v647, 64
        %v772 = vpop.permute.xlu0 %771
        %773 = vrot.lane.b32.xlu0 %v648, 64
        %v774 = vpop.permute.xlu0 %773
        %775 = vrot.lane.b32.xlu0 %v649, 64
        %v776 = vpop.permute.xlu0 %775
        %777 = vrot.lane.b32.xlu0 %v650, 64
        %v778 = vpop.permute.xlu0 %777
        %v781 = vsel %vm528, %v715, %v764
        %v784 = vsel %vm528, %v716, %v766
        %v787 = vsel %vm528, %v717, %v768
        %v790 = vsel %vm528, %v718, %v770
        %v793 = vsel %vm528, %v719, %v772
        %v796 = vsel %vm528, %v720, %v774
        %v799 = vsel %vm528, %v721, %v776
        %v802 = vsel %vm528, %v722, %v778
        %v819 = vunpack.c.l.b16 %v781
        %v820 = vunpack.c.l.b16 %v747
        %v821 = vunpack.c.l.b16 %v784
        %v822 = vunpack.c.l.b16 %v748
        %v823 = vunpack.c.l.b16 %v787
        %v824 = vunpack.c.l.b16 %v749
        %v825 = vunpack.c.l.b16 %v790
        %v826 = vunpack.c.l.b16 %v750
        %v827 = vunpack.c.l.b16 %v793
        %v828 = vunpack.c.l.b16 %v751
        %v829 = vunpack.c.l.b16 %v796
        %v830 = vunpack.c.l.b16 %v752
        %v831 = vunpack.c.l.b16 %v799
        %v832 = vunpack.c.l.b16 %v753
        %v833 = vunpack.c.l.b16 %v802
        %v834 = vunpack.c.l.b16 %v754
        %v835 = vpack.c.b16 %v820, %v819
        %v836 = vpack.c.b16 %v822, %v821
        %v837 = vpack.c.b16 %v824, %v823
        %v838 = vpack.c.b16 %v826, %v825
        %v839 = vpack.c.b16 %v828, %v827
        %v840 = vpack.c.b16 %v830, %v829
        %v841 = vpack.c.b16 %v832, %v831
        %v842 = vpack.c.b16 %v834, %v833
        %s851 = scalar_lea.vmem [#allocation2], 168
        %852 = vst.msk [vmem:[%s851] sm:$0xff] %vm302, %v835
        %853 = vst.msk [vmem:[%s851 + $0x8] sm:$0xff] %vm302, %v836
        %854 = vst.msk [vmem:[%s851 + $0x10] sm:$0xff] %vm302, %v837
        %855 = vst.msk [vmem:[%s851 + $0x18] sm:$0xff] %vm302, %v838
        %856 = vst.msk [vmem:[%s851 + $0x20] sm:$0xff] %vm302, %v839
        %857 = vst.msk [vmem:[%s851 + $0x28] sm:$0xff] %vm302, %v840
        %858 = vst.msk [vmem:[%s851 + $0x30] sm:$0xff] %vm302, %v841
        %859 = vst.msk [vmem:[%s851 + $0x38] sm:$0xff] %vm302, %v842
        %s860 = scalar_lea.vmem %s258, 128 [#allocation4]
        %v861 = vld [vmem:[%s860] sm:$0xff]
        %v862 = vld [vmem:[%s860 + $0x8] sm:$0xff]
        %v863 = vld [vmem:[%s860 + $0x10] sm:$0xff]
        %v864 = vld [vmem:[%s860 + $0x18] sm:$0xff]
        %v865 = vld [vmem:[%s860 + $0x20] sm:$0xff]
        %v866 = vld [vmem:[%s860 + $0x28] sm:$0xff]
        %v867 = vld [vmem:[%s860 + $0x30] sm:$0xff]
        %v868 = vld [vmem:[%s860 + $0x38] sm:$0xff]
        %v869 = vmul.f32 %v861, %v354
        %v870 = vmul.f32 %v862, %v354
        %v871 = vmul.f32 %v863, %v354
        %v872 = vmul.f32 %v864, %v354
        %v873 = vmul.f32 %v865, %v354
        %v874 = vmul.f32 %v866, %v354
        %v875 = vmul.f32 %v867, %v354
        %v876 = vmul.f32 %v868, %v354
        %v877 = vadd.f32 %v869, %v368
        %v878 = vadd.f32 %v870, %v368
        %v879 = vadd.f32 %v871, %v368
        %v880 = vadd.f32 %v872, %v368
        %v881 = vadd.f32 %v873, %v368
        %v882 = vadd.f32 %v874, %v368
        %v883 = vadd.f32 %v875, %v368
        %v884 = vadd.f32 %v876, %v368
        %v885 = vmax.f32 %v877, 0.0
        %v886 = vmax.f32 %v878, 0.0
        %v887 = vmax.f32 %v879, 0.0
        %v888 = vmax.f32 %v880, 0.0
        %v889 = vmax.f32 %v881, 0.0
        %v890 = vmax.f32 %v882, 0.0
        %v891 = vmax.f32 %v883, 0.0
        %v892 = vmax.f32 %v884, 0.0
        %v893 = vpack.c.bf16 %v885, %v885
        %v894 = vpack.c.bf16 %v886, %v886
        %v895 = vpack.c.bf16 %v887, %v887
        %v896 = vpack.c.bf16 %v888, %v888
        %v897 = vpack.c.bf16 %v889, %v889
        %v898 = vpack.c.bf16 %v890, %v890
        %v899 = vpack.c.bf16 %v891, %v891
        %v900 = vpack.c.bf16 %v892, %v892
        %v902 = vshrl.u32 %v893, 16
        %v904 = vrot.slane %v902, 7
        %v905 = vshll.u32 %v893, 16
        %v907 = vor.u32 %v904, %v905
        %v909 = vshrl.u32 %v894, 16
        %v911 = vrot.slane %v909, 7
        %v912 = vshll.u32 %v894, 16
        %v914 = vor.u32 %v911, %v912
        %v916 = vshrl.u32 %v895, 16
        %v918 = vrot.slane %v916, 7
        %v919 = vshll.u32 %v895, 16
        %v921 = vor.u32 %v918, %v919
        %v923 = vshrl.u32 %v896, 16
        %v925 = vrot.slane %v923, 7
        %v926 = vshll.u32 %v896, 16
        %v928 = vor.u32 %v925, %v926
        %v930 = vshrl.u32 %v897, 16
        %v932 = vrot.slane %v930, 7
        %v933 = vshll.u32 %v897, 16
        %v935 = vor.u32 %v932, %v933
        %v937 = vshrl.u32 %v898, 16
        %v939 = vrot.slane %v937, 7
        %v940 = vshll.u32 %v898, 16
        %v942 = vor.u32 %v939, %v940
        %v944 = vshrl.u32 %v899, 16
        %v946 = vrot.slane %v944, 7
        %v947 = vshll.u32 %v899, 16
        %v949 = vor.u32 %v946, %v947
        %v951 = vshrl.u32 %v900, 16
        %v953 = vrot.slane %v951, 7
        %v954 = vshll.u32 %v900, 16
        %v956 = vor.u32 %v953, %v954
        %v965 = vsel %vm460, 0, %v907
        %v966 = vsel %vm460, 0, %v914
        %v967 = vsel %vm460, 0, %v921
        %v968 = vsel %vm460, 0, %v928
        %v969 = vsel %vm460, 0, %v935
        %v970 = vsel %vm460, 0, %v942
        %v971 = vsel %vm460, 0, %v949
        %v972 = vsel %vm460, 0, %v956
        %v973 = vrot.slane %v905, 1
        %v974 = vor.u32 %v902, %v973
        %v975 = vrot.slane %v912, 1
        %v976 = vor.u32 %v909, %v975
        %v977 = vrot.slane %v919, 1
        %v978 = vor.u32 %v916, %v977
        %v979 = vrot.slane %v926, 1
        %v980 = vor.u32 %v923, %v979
        %v981 = vrot.slane %v933, 1
        %v982 = vor.u32 %v930, %v981
        %v983 = vrot.slane %v940, 1
        %v984 = vor.u32 %v937, %v983
        %v985 = vrot.slane %v947, 1
        %v986 = vor.u32 %v944, %v985
        %v987 = vrot.slane %v954, 1
        %v988 = vor.u32 %v951, %v987
        %v997 = vsel %vm495, %v974, 0
        %v998 = vsel %vm495, %v976, 0
        %v999 = vsel %vm495, %v978, 0
        %v1000 = vsel %vm495, %v980, 0
        %v1001 = vsel %vm495, %v982, 0
        %v1002 = vsel %vm495, %v984, 0
        %v1003 = vsel %vm495, %v986, 0
        %v1004 = vsel %vm495, %v988, 0
        %1013 = vrot.lane.b32.xlu0 %v893, 64
        %v1014 = vpop.permute.xlu0 %1013
        %1015 = vrot.lane.b32.xlu0 %v894, 64
        %v1016 = vpop.permute.xlu0 %1015
        %1017 = vrot.lane.b32.xlu0 %v895, 64
        %v1018 = vpop.permute.xlu0 %1017
        %1019 = vrot.lane.b32.xlu0 %v896, 64
        %v1020 = vpop.permute.xlu0 %1019
        %1021 = vrot.lane.b32.xlu0 %v897, 64
        %v1022 = vpop.permute.xlu0 %1021
        %1023 = vrot.lane.b32.xlu0 %v898, 64
        %v1024 = vpop.permute.xlu0 %1023
        %1025 = vrot.lane.b32.xlu0 %v899, 64
        %v1026 = vpop.permute.xlu0 %1025
        %1027 = vrot.lane.b32.xlu0 %v900, 64
        %v1028 = vpop.permute.xlu0 %1027
        %v1031 = vsel %vm528, %v965, %v1014
        %v1034 = vsel %vm528, %v966, %v1016
        %v1037 = vsel %vm528, %v967, %v1018
        %v1040 = vsel %vm528, %v968, %v1020
        %v1043 = vsel %vm528, %v969, %v1022
        %v1046 = vsel %vm528, %v970, %v1024
        %v1049 = vsel %vm528, %v971, %v1026
        %v1052 = vsel %vm528, %v972, %v1028
        %v1069 = vunpack.c.l.b16 %v1031
        %v1070 = vunpack.c.l.b16 %v997
        %v1071 = vunpack.c.l.b16 %v1034
        %v1072 = vunpack.c.l.b16 %v998
        %v1073 = vunpack.c.l.b16 %v1037
        %v1074 = vunpack.c.l.b16 %v999
        %v1075 = vunpack.c.l.b16 %v1040
        %v1076 = vunpack.c.l.b16 %v1000
        %v1077 = vunpack.c.l.b16 %v1043
        %v1078 = vunpack.c.l.b16 %v1001
        %v1079 = vunpack.c.l.b16 %v1046
        %v1080 = vunpack.c.l.b16 %v1002
        %v1081 = vunpack.c.l.b16 %v1049
        %v1082 = vunpack.c.l.b16 %v1003
        %v1083 = vunpack.c.l.b16 %v1052
        %v1084 = vunpack.c.l.b16 %v1004
        %v1085 = vpack.c.b16 %v1070, %v1069
        %v1086 = vpack.c.b16 %v1072, %v1071
        %v1087 = vpack.c.b16 %v1074, %v1073
        %v1088 = vpack.c.b16 %v1076, %v1075
        %v1089 = vpack.c.b16 %v1078, %v1077
        %v1090 = vpack.c.b16 %v1080, %v1079
        %v1091 = vpack.c.b16 %v1082, %v1081
        %v1092 = vpack.c.b16 %v1084, %v1083
        %s1101 = scalar_lea.vmem [#allocation2], 248
        %1102 = vst.msk [vmem:[%s1101] sm:$0xff] %vm302, %v1085
        %1103 = vst.msk [vmem:[%s1101 + $0x8] sm:$0xff] %vm302, %v1086
        %1104 = vst.msk [vmem:[%s1101 + $0x10] sm:$0xff] %vm302, %v1087
        %1105 = vst.msk [vmem:[%s1101 + $0x18] sm:$0xff] %vm302, %v1088
        %1106 = vst.msk [vmem:[%s1101 + $0x20] sm:$0xff] %vm302, %v1089
        %1107 = vst.msk [vmem:[%s1101 + $0x28] sm:$0xff] %vm302, %v1090
        %1108 = vst.msk [vmem:[%s1101 + $0x30] sm:$0xff] %vm302, %v1091
        %1109 = vst.msk [vmem:[%s1101 + $0x38] sm:$0xff] %vm302, %v1092
        %s1110 = scalar_lea.vmem %s258, 192 [#allocation4]
        %v1111 = vld [vmem:[%s1110] sm:$0xff]
        %v1112 = vld [vmem:[%s1110 + $0x8] sm:$0xff]
        %v1113 = vld [vmem:[%s1110 + $0x10] sm:$0xff]
        %v1114 = vld [vmem:[%s1110 + $0x18] sm:$0xff]
        %v1115 = vld [vmem:[%s1110 + $0x20] sm:$0xff]
        %v1116 = vld [vmem:[%s1110 + $0x28] sm:$0xff]
        %v1117 = vld [vmem:[%s1110 + $0x30] sm:$0xff]
        %v1118 = vld [vmem:[%s1110 + $0x38] sm:$0xff]
        %v1119 = vmul.f32 %v1111, %v354
        %v1120 = vmul.f32 %v1112, %v354
        %v1121 = vmul.f32 %v1113, %v354
        %v1122 = vmul.f32 %v1114, %v354
        %v1123 = vmul.f32 %v1115, %v354
        %v1124 = vmul.f32 %v1116, %v354
        %v1125 = vmul.f32 %v1117, %v354
        %v1126 = vmul.f32 %v1118, %v354
        %v1127 = vadd.f32 %v1119, %v368
        %v1128 = vadd.f32 %v1120, %v368
        %v1129 = vadd.f32 %v1121, %v368
        %v1130 = vadd.f32 %v1122, %v368
        %v1131 = vadd.f32 %v1123, %v368
        %v1132 = vadd.f32 %v1124, %v368
        %v1133 = vadd.f32 %v1125, %v368
        %v1134 = vadd.f32 %v1126, %v368
        %v1135 = vmax.f32 %v1127, 0.0
        %v1136 = vmax.f32 %v1128, 0.0
        %v1137 = vmax.f32 %v1129, 0.0
        %v1138 = vmax.f32 %v1130, 0.0
        %v1139 = vmax.f32 %v1131, 0.0
        %v1140 = vmax.f32 %v1132, 0.0
        %v1141 = vmax.f32 %v1133, 0.0
        %v1142 = vmax.f32 %v1134, 0.0
        %v1143 = vpack.c.bf16 %v1135, %v1135
        %v1144 = vpack.c.bf16 %v1136, %v1136
        %v1145 = vpack.c.bf16 %v1137, %v1137
        %v1146 = vpack.c.bf16 %v1138, %v1138
        %v1147 = vpack.c.bf16 %v1139, %v1139
        %v1148 = vpack.c.bf16 %v1140, %v1140
        %v1149 = vpack.c.bf16 %v1141, %v1141
        %v1150 = vpack.c.bf16 %v1142, %v1142
        %v1152 = vshrl.u32 %v1143, 16
        %v1154 = vrot.slane %v1152, 7
        %v1155 = vshll.u32 %v1143, 16
        %v1157 = vor.u32 %v1154, %v1155
        %v1159 = vshrl.u32 %v1144, 16
        %v1161 = vrot.slane %v1159, 7
        %v1162 = vshll.u32 %v1144, 16
        %v1164 = vor.u32 %v1161, %v1162
        %v1166 = vshrl.u32 %v1145, 16
        %v1168 = vrot.slane %v1166, 7
        %v1169 = vshll.u32 %v1145, 16
        %v1171 = vor.u32 %v1168, %v1169
        %v1173 = vshrl.u32 %v1146, 16
        %v1175 = vrot.slane %v1173, 7
        %v1176 = vshll.u32 %v1146, 16
        %v1178 = vor.u32 %v1175, %v1176
        %v1180 = vshrl.u32 %v1147, 16
        %v1182 = vrot.slane %v1180, 7
        %v1183 = vshll.u32 %v1147, 16
        %v1185 = vor.u32 %v1182, %v1183
        %v1187 = vshrl.u32 %v1148, 16
        %v1189 = vrot.slane %v1187, 7
        %v1190 = vshll.u32 %v1148, 16
        %v1192 = vor.u32 %v1189, %v1190
        %v1194 = vshrl.u32 %v1149, 16
        %v1196 = vrot.slane %v1194, 7
        %v1197 = vshll.u32 %v1149, 16
        %v1199 = vor.u32 %v1196, %v1197
        %v1201 = vshrl.u32 %v1150, 16
        %v1203 = vrot.slane %v1201, 7
        %v1204 = vshll.u32 %v1150, 16
        %v1206 = vor.u32 %v1203, %v1204
        %v1215 = vsel %vm460, 0, %v1157
        %v1216 = vsel %vm460, 0, %v1164
        %v1217 = vsel %vm460, 0, %v1171
        %v1218 = vsel %vm460, 0, %v1178
        %v1219 = vsel %vm460, 0, %v1185
        %v1220 = vsel %vm460, 0, %v1192
        %v1221 = vsel %vm460, 0, %v1199
        %v1222 = vsel %vm460, 0, %v1206
        %v1223 = vrot.slane %v1155, 1
        %v1224 = vor.u32 %v1152, %v1223
        %v1225 = vrot.slane %v1162, 1
        %v1226 = vor.u32 %v1159, %v1225
        %v1227 = vrot.slane %v1169, 1
        %v1228 = vor.u32 %v1166, %v1227
        %v1229 = vrot.slane %v1176, 1
        %v1230 = vor.u32 %v1173, %v1229
        %v1231 = vrot.slane %v1183, 1
        %v1232 = vor.u32 %v1180, %v1231
        %v1233 = vrot.slane %v1190, 1
        %v1234 = vor.u32 %v1187, %v1233
        %v1235 = vrot.slane %v1197, 1
        %v1236 = vor.u32 %v1194, %v1235
        %v1237 = vrot.slane %v1204, 1
        %v1238 = vor.u32 %v1201, %v1237
        %v1247 = vsel %vm495, %v1224, 0
        %v1248 = vsel %vm495, %v1226, 0
        %v1249 = vsel %vm495, %v1228, 0
        %v1250 = vsel %vm495, %v1230, 0
        %v1251 = vsel %vm495, %v1232, 0
        %v1252 = vsel %vm495, %v1234, 0
        %v1253 = vsel %vm495, %v1236, 0
        %v1254 = vsel %vm495, %v1238, 0
        %1263 = vrot.lane.b32.xlu0 %v1143, 64
        %v1264 = vpop.permute.xlu0 %1263
        %1265 = vrot.lane.b32.xlu0 %v1144, 64
        %v1266 = vpop.permute.xlu0 %1265
        %1267 = vrot.lane.b32.xlu0 %v1145, 64
        %v1268 = vpop.permute.xlu0 %1267
        %1269 = vrot.lane.b32.xlu0 %v1146, 64
        %v1270 = vpop.permute.xlu0 %1269
        %1271 = vrot.lane.b32.xlu0 %v1147, 64
        %v1272 = vpop.permute.xlu0 %1271
        %1273 = vrot.lane.b32.xlu0 %v1148, 64
        %v1274 = vpop.permute.xlu0 %1273
        %1275 = vrot.lane.b32.xlu0 %v1149, 64
        %v1276 = vpop.permute.xlu0 %1275
        %1277 = vrot.lane.b32.xlu0 %v1150, 64
        %v1278 = vpop.permute.xlu0 %1277
        %v1281 = vsel %vm528, %v1215, %v1264
        %v1284 = vsel %vm528, %v1216, %v1266
        %v1287 = vsel %vm528, %v1217, %v1268
        %v1290 = vsel %vm528, %v1218, %v1270
        %v1293 = vsel %vm528, %v1219, %v1272
        %v1296 = vsel %vm528, %v1220, %v1274
        %v1299 = vsel %vm528, %v1221, %v1276
        %v1302 = vsel %vm528, %v1222, %v1278
        %v1319 = vunpack.c.l.b16 %v1281
        %v1320 = vunpack.c.l.b16 %v1247
        %v1321 = vunpack.c.l.b16 %v1284
        %v1322 = vunpack.c.l.b16 %v1248
        %v1323 = vunpack.c.l.b16 %v1287
        %v1324 = vunpack.c.l.b16 %v1249
        %v1325 = vunpack.c.l.b16 %v1290
        %v1326 = vunpack.c.l.b16 %v1250
        %v1327 = vunpack.c.l.b16 %v1293
        %v1328 = vunpack.c.l.b16 %v1251
        %v1329 = vunpack.c.l.b16 %v1296
        %v1330 = vunpack.c.l.b16 %v1252
        %v1331 = vunpack.c.l.b16 %v1299
        %v1332 = vunpack.c.l.b16 %v1253
        %v1333 = vunpack.c.l.b16 %v1302
        %v1334 = vunpack.c.l.b16 %v1254
        %v1335 = vpack.c.b16 %v1320, %v1319
        %v1336 = vpack.c.b16 %v1322, %v1321
        %v1337 = vpack.c.b16 %v1324, %v1323
        %v1338 = vpack.c.b16 %v1326, %v1325
        %v1339 = vpack.c.b16 %v1328, %v1327
        %v1340 = vpack.c.b16 %v1330, %v1329
        %v1341 = vpack.c.b16 %v1332, %v1331
        %v1342 = vpack.c.b16 %v1334, %v1333
        %s1351 = scalar_lea.vmem [#allocation2], 328
        %1352 = vst.msk [vmem:[%s1351] sm:$0xff] %vm302, %v1335
        %1353 = vst.msk [vmem:[%s1351 + $0x8] sm:$0xff] %vm302, %v1336
        %1354 = vst.msk [vmem:[%s1351 + $0x10] sm:$0xff] %vm302, %v1337
        %1355 = vst.msk [vmem:[%s1351 + $0x18] sm:$0xff] %vm302, %v1338
        %1356 = vst.msk [vmem:[%s1351 + $0x20] sm:$0xff] %vm302, %v1339
        %1357 = vst.msk [vmem:[%s1351 + $0x28] sm:$0xff] %vm302, %v1340
        %1358 = vst.msk [vmem:[%s1351 + $0x30] sm:$0xff] %vm302, %v1341
        %1359 = vst.msk [vmem:[%s1351 + $0x38] sm:$0xff] %vm302, %v1342
        %s1360 = scalar_lea.vmem %s258, 256 [#allocation4]
        %v1361 = vld [vmem:[%s1360] sm:$0xff]
        %v1362 = vld [vmem:[%s1360 + $0x8] sm:$0xff]
        %v1363 = vld [vmem:[%s1360 + $0x10] sm:$0xff]
        %v1364 = vld [vmem:[%s1360 + $0x18] sm:$0xff]
        %v1365 = vld [vmem:[%s1360 + $0x20] sm:$0xff]
        %v1366 = vld [vmem:[%s1360 + $0x28] sm:$0xff]
        %v1367 = vld [vmem:[%s1360 + $0x30] sm:$0xff]
        %v1368 = vld [vmem:[%s1360 + $0x38] sm:$0xff]
        %v1369 = vmul.f32 %v1361, %v354
        %v1370 = vmul.f32 %v1362, %v354
        %v1371 = vmul.f32 %v1363, %v354
        %v1372 = vmul.f32 %v1364, %v354
        %v1373 = vmul.f32 %v1365, %v354
        %v1374 = vmul.f32 %v1366, %v354
        %v1375 = vmul.f32 %v1367, %v354
        %v1376 = vmul.f32 %v1368, %v354
        %v1377 = vadd.f32 %v1369, %v368
        %v1378 = vadd.f32 %v1370, %v368
        %v1379 = vadd.f32 %v1371, %v368
        %v1380 = vadd.f32 %v1372, %v368
        %v1381 = vadd.f32 %v1373, %v368
        %v1382 = vadd.f32 %v1374, %v368
        %v1383 = vadd.f32 %v1375, %v368
        %v1384 = vadd.f32 %v1376, %v368
        %v1385 = vmax.f32 %v1377, 0.0
        %v1386 = vmax.f32 %v1378, 0.0
        %v1387 = vmax.f32 %v1379, 0.0
        %v1388 = vmax.f32 %v1380, 0.0
        %v1389 = vmax.f32 %v1381, 0.0
        %v1390 = vmax.f32 %v1382, 0.0
        %v1391 = vmax.f32 %v1383, 0.0
        %v1392 = vmax.f32 %v1384, 0.0
        %v1393 = vpack.c.bf16 %v1385, %v1385
        %v1394 = vpack.c.bf16 %v1386, %v1386
        %v1395 = vpack.c.bf16 %v1387, %v1387
        %v1396 = vpack.c.bf16 %v1388, %v1388
        %v1397 = vpack.c.bf16 %v1389, %v1389
        %v1398 = vpack.c.bf16 %v1390, %v1390
        %v1399 = vpack.c.bf16 %v1391, %v1391
        %v1400 = vpack.c.bf16 %v1392, %v1392
        %v1402 = vshrl.u32 %v1393, 16
        %v1404 = vrot.slane %v1402, 7
        %v1405 = vshll.u32 %v1393, 16
        %v1407 = vor.u32 %v1404, %v1405
        %v1409 = vshrl.u32 %v1394, 16
        %v1411 = vrot.slane %v1409, 7
        %v1412 = vshll.u32 %v1394, 16
        %v1414 = vor.u32 %v1411, %v1412
        %v1416 = vshrl.u32 %v1395, 16
        %v1418 = vrot.slane %v1416, 7
        %v1419 = vshll.u32 %v1395, 16
        %v1421 = vor.u32 %v1418, %v1419
        %v1423 = vshrl.u32 %v1396, 16
        %v1425 = vrot.slane %v1423, 7
        %v1426 = vshll.u32 %v1396, 16
        %v1428 = vor.u32 %v1425, %v1426
        %v1430 = vshrl.u32 %v1397, 16
        %v1432 = vrot.slane %v1430, 7
        %v1433 = vshll.u32 %v1397, 16
        %v1435 = vor.u32 %v1432, %v1433
        %v1437 = vshrl.u32 %v1398, 16
        %v1439 = vrot.slane %v1437, 7
        %v1440 = vshll.u32 %v1398, 16
        %v1442 = vor.u32 %v1439, %v1440
        %v1444 = vshrl.u32 %v1399, 16
        %v1446 = vrot.slane %v1444, 7
        %v1447 = vshll.u32 %v1399, 16
        %v1449 = vor.u32 %v1446, %v1447
        %v1451 = vshrl.u32 %v1400, 16
        %v1453 = vrot.slane %v1451, 7
        %v1454 = vshll.u32 %v1400, 16
        %v1456 = vor.u32 %v1453, %v1454
        %v1465 = vsel %vm460, 0, %v1407
        %v1466 = vsel %vm460, 0, %v1414
        %v1467 = vsel %vm460, 0, %v1421
        %v1468 = vsel %vm460, 0, %v1428
        %v1469 = vsel %vm460, 0, %v1435
        %v1470 = vsel %vm460, 0, %v1442
        %v1471 = vsel %vm460, 0, %v1449
        %v1472 = vsel %vm460, 0, %v1456
        %v1473 = vrot.slane %v1405, 1
        %v1474 = vor.u32 %v1402, %v1473
        %v1475 = vrot.slane %v1412, 1
        %v1476 = vor.u32 %v1409, %v1475
        %v1477 = vrot.slane %v1419, 1
        %v1478 = vor.u32 %v1416, %v1477
        %v1479 = vrot.slane %v1426, 1
        %v1480 = vor.u32 %v1423, %v1479
        %v1481 = vrot.slane %v1433, 1
        %v1482 = vor.u32 %v1430, %v1481
        %v1483 = vrot.slane %v1440, 1
        %v1484 = vor.u32 %v1437, %v1483
        %v1485 = vrot.slane %v1447, 1
        %v1486 = vor.u32 %v1444, %v1485
        %v1487 = vrot.slane %v1454, 1
        %v1488 = vor.u32 %v1451, %v1487
        %v1497 = vsel %vm495, %v1474, 0
        %v1498 = vsel %vm495, %v1476, 0
        %v1499 = vsel %vm495, %v1478, 0
        %v1500 = vsel %vm495, %v1480, 0
        %v1501 = vsel %vm495, %v1482, 0
        %v1502 = vsel %vm495, %v1484, 0
        %v1503 = vsel %vm495, %v1486, 0
        %v1504 = vsel %vm495, %v1488, 0
        %1513 = vrot.lane.b32.xlu0 %v1393, 64
        %v1514 = vpop.permute.xlu0 %1513
        %1515 = vrot.lane.b32.xlu0 %v1394, 64
        %v1516 = vpop.permute.xlu0 %1515
        %1517 = vrot.lane.b32.xlu0 %v1395, 64
        %v1518 = vpop.permute.xlu0 %1517
        %1519 = vrot.lane.b32.xlu0 %v1396, 64
        %v1520 = vpop.permute.xlu0 %1519
        %1521 = vrot.lane.b32.xlu0 %v1397, 64
        %v1522 = vpop.permute.xlu0 %1521
        %1523 = vrot.lane.b32.xlu0 %v1398, 64
        %v1524 = vpop.permute.xlu0 %1523
        %1525 = vrot.lane.b32.xlu0 %v1399, 64
        %v1526 = vpop.permute.xlu0 %1525
        %1527 = vrot.lane.b32.xlu0 %v1400, 64
        %v1528 = vpop.permute.xlu0 %1527
        %v1531 = vsel %vm528, %v1465, %v1514
        %v1534 = vsel %vm528, %v1466, %v1516
        %v1537 = vsel %vm528, %v1467, %v1518
        %v1540 = vsel %vm528, %v1468, %v1520
        %v1543 = vsel %vm528, %v1469, %v1522
        %v1546 = vsel %vm528, %v1470, %v1524
        %v1549 = vsel %vm528, %v1471, %v1526
        %v1552 = vsel %vm528, %v1472, %v1528
        %v1569 = vunpack.c.l.b16 %v1531
        %v1570 = vunpack.c.l.b16 %v1497
        %v1571 = vunpack.c.l.b16 %v1534
        %v1572 = vunpack.c.l.b16 %v1498
        %v1573 = vunpack.c.l.b16 %v1537
        %v1574 = vunpack.c.l.b16 %v1499
        %v1575 = vunpack.c.l.b16 %v1540
        %v1576 = vunpack.c.l.b16 %v1500
        %v1577 = vunpack.c.l.b16 %v1543
        %v1578 = vunpack.c.l.b16 %v1501
        %v1579 = vunpack.c.l.b16 %v1546
        %v1580 = vunpack.c.l.b16 %v1502
        %v1581 = vunpack.c.l.b16 %v1549
        %v1582 = vunpack.c.l.b16 %v1503
        %v1583 = vunpack.c.l.b16 %v1552
        %v1584 = vunpack.c.l.b16 %v1504
        %v1585 = vpack.c.b16 %v1570, %v1569
        %v1586 = vpack.c.b16 %v1572, %v1571
        %v1587 = vpack.c.b16 %v1574, %v1573
        %v1588 = vpack.c.b16 %v1576, %v1575
        %v1589 = vpack.c.b16 %v1578, %v1577
        %v1590 = vpack.c.b16 %v1580, %v1579
        %v1591 = vpack.c.b16 %v1582, %v1581
        %v1592 = vpack.c.b16 %v1584, %v1583
        %s1601 = scalar_lea.vmem [#allocation2], 408
        %1602 = vst.msk [vmem:[%s1601] sm:$0xff] %vm302, %v1585
        %1603 = vst.msk [vmem:[%s1601 + $0x8] sm:$0xff] %vm302, %v1586
        %1604 = vst.msk [vmem:[%s1601 + $0x10] sm:$0xff] %vm302, %v1587
        %1605 = vst.msk [vmem:[%s1601 + $0x18] sm:$0xff] %vm302, %v1588
        %1606 = vst.msk [vmem:[%s1601 + $0x20] sm:$0xff] %vm302, %v1589
        %1607 = vst.msk [vmem:[%s1601 + $0x28] sm:$0xff] %vm302, %v1590
        %1608 = vst.msk [vmem:[%s1601 + $0x30] sm:$0xff] %vm302, %v1591
        %1609 = vst.msk [vmem:[%s1601 + $0x38] sm:$0xff] %vm302, %v1592
        %s1610 = scalar_lea.vmem %s258, 320 [#allocation4]
        %v1611 = vld [vmem:[%s1610] sm:$0xff]
        %v1612 = vld [vmem:[%s1610 + $0x8] sm:$0xff]
        %v1613 = vld [vmem:[%s1610 + $0x10] sm:$0xff]
        %v1614 = vld [vmem:[%s1610 + $0x18] sm:$0xff]
        %v1615 = vld [vmem:[%s1610 + $0x20] sm:$0xff]
        %v1616 = vld [vmem:[%s1610 + $0x28] sm:$0xff]
        %v1617 = vld [vmem:[%s1610 + $0x30] sm:$0xff]
        %v1618 = vld [vmem:[%s1610 + $0x38] sm:$0xff]
        %v1619 = vmul.f32 %v1611, %v354
        %v1620 = vmul.f32 %v1612, %v354
        %v1621 = vmul.f32 %v1613, %v354
        %v1622 = vmul.f32 %v1614, %v354
        %v1623 = vmul.f32 %v1615, %v354
        %v1624 = vmul.f32 %v1616, %v354
        %v1625 = vmul.f32 %v1617, %v354
        %v1626 = vmul.f32 %v1618, %v354
        %v1627 = vadd.f32 %v1619, %v368
        %v1628 = vadd.f32 %v1620, %v368
        %v1629 = vadd.f32 %v1621, %v368
        %v1630 = vadd.f32 %v1622, %v368
        %v1631 = vadd.f32 %v1623, %v368
        %v1632 = vadd.f32 %v1624, %v368
        %v1633 = vadd.f32 %v1625, %v368
        %v1634 = vadd.f32 %v1626, %v368
        %v1635 = vmax.f32 %v1627, 0.0
        %v1636 = vmax.f32 %v1628, 0.0
        %v1637 = vmax.f32 %v1629, 0.0
        %v1638 = vmax.f32 %v1630, 0.0
        %v1639 = vmax.f32 %v1631, 0.0
        %v1640 = vmax.f32 %v1632, 0.0
        %v1641 = vmax.f32 %v1633, 0.0
        %v1642 = vmax.f32 %v1634, 0.0
        %v1643 = vpack.c.bf16 %v1635, %v1635
        %v1644 = vpack.c.bf16 %v1636, %v1636
        %v1645 = vpack.c.bf16 %v1637, %v1637
        %v1646 = vpack.c.bf16 %v1638, %v1638
        %v1647 = vpack.c.bf16 %v1639, %v1639
        %v1648 = vpack.c.bf16 %v1640, %v1640
        %v1649 = vpack.c.bf16 %v1641, %v1641
        %v1650 = vpack.c.bf16 %v1642, %v1642
        %v1652 = vshrl.u32 %v1643, 16
        %v1654 = vrot.slane %v1652, 7
        %v1655 = vshll.u32 %v1643, 16
        %v1657 = vor.u32 %v1654, %v1655
        %v1659 = vshrl.u32 %v1644, 16
        %v1661 = vrot.slane %v1659, 7
        %v1662 = vshll.u32 %v1644, 16
        %v1664 = vor.u32 %v1661, %v1662
        %v1666 = vshrl.u32 %v1645, 16
        %v1668 = vrot.slane %v1666, 7
        %v1669 = vshll.u32 %v1645, 16
        %v1671 = vor.u32 %v1668, %v1669
        %v1673 = vshrl.u32 %v1646, 16
        %v1675 = vrot.slane %v1673, 7
        %v1676 = vshll.u32 %v1646, 16
        %v1678 = vor.u32 %v1675, %v1676
        %v1680 = vshrl.u32 %v1647, 16
        %v1682 = vrot.slane %v1680, 7
        %v1683 = vshll.u32 %v1647, 16
        %v1685 = vor.u32 %v1682, %v1683
        %v1687 = vshrl.u32 %v1648, 16
        %v1689 = vrot.slane %v1687, 7
        %v1690 = vshll.u32 %v1648, 16
        %v1692 = vor.u32 %v1689, %v1690
        %v1694 = vshrl.u32 %v1649, 16
        %v1696 = vrot.slane %v1694, 7
        %v1697 = vshll.u32 %v1649, 16
        %v1699 = vor.u32 %v1696, %v1697
        %v1701 = vshrl.u32 %v1650, 16
        %v1703 = vrot.slane %v1701, 7
        %v1704 = vshll.u32 %v1650, 16
        %v1706 = vor.u32 %v1703, %v1704
        %v1715 = vsel %vm460, 0, %v1657
        %v1716 = vsel %vm460, 0, %v1664
        %v1717 = vsel %vm460, 0, %v1671
        %v1718 = vsel %vm460, 0, %v1678
        %v1719 = vsel %vm460, 0, %v1685
        %v1720 = vsel %vm460, 0, %v1692
        %v1721 = vsel %vm460, 0, %v1699
        %v1722 = vsel %vm460, 0, %v1706
        %v1723 = vrot.slane %v1655, 1
        %v1724 = vor.u32 %v1652, %v1723
        %v1725 = vrot.slane %v1662, 1
        %v1726 = vor.u32 %v1659, %v1725
        %v1727 = vrot.slane %v1669, 1
        %v1728 = vor.u32 %v1666, %v1727
        %v1729 = vrot.slane %v1676, 1
        %v1730 = vor.u32 %v1673, %v1729
        %v1731 = vrot.slane %v1683, 1
        %v1732 = vor.u32 %v1680, %v1731
        %v1733 = vrot.slane %v1690, 1
        %v1734 = vor.u32 %v1687, %v1733
        %v1735 = vrot.slane %v1697, 1
        %v1736 = vor.u32 %v1694, %v1735
        %v1737 = vrot.slane %v1704, 1
        %v1738 = vor.u32 %v1701, %v1737
        %v1747 = vsel %vm495, %v1724, 0
        %v1748 = vsel %vm495, %v1726, 0
        %v1749 = vsel %vm495, %v1728, 0
        %v1750 = vsel %vm495, %v1730, 0
        %v1751 = vsel %vm495, %v1732, 0
        %v1752 = vsel %vm495, %v1734, 0
        %v1753 = vsel %vm495, %v1736, 0
        %v1754 = vsel %vm495, %v1738, 0
        %1763 = vrot.lane.b32.xlu0 %v1643, 64
        %v1764 = vpop.permute.xlu0 %1763
        %1765 = vrot.lane.b32.xlu0 %v1644, 64
        %v1766 = vpop.permute.xlu0 %1765
        %1767 = vrot.lane.b32.xlu0 %v1645, 64
        %v1768 = vpop.permute.xlu0 %1767
        %1769 = vrot.lane.b32.xlu0 %v1646, 64
        %v1770 = vpop.permute.xlu0 %1769
        %1771 = vrot.lane.b32.xlu0 %v1647, 64
        %v1772 = vpop.permute.xlu0 %1771
        %1773 = vrot.lane.b32.xlu0 %v1648, 64
        %v1774 = vpop.permute.xlu0 %1773
        %1775 = vrot.lane.b32.xlu0 %v1649, 64
        %v1776 = vpop.permute.xlu0 %1775
        %1777 = vrot.lane.b32.xlu0 %v1650, 64
        %v1778 = vpop.permute.xlu0 %1777
        %v1781 = vsel %vm528, %v1715, %v1764
        %v1784 = vsel %vm528, %v1716, %v1766
        %v1787 = vsel %vm528, %v1717, %v1768
        %v1790 = vsel %vm528, %v1718, %v1770
        %v1793 = vsel %vm528, %v1719, %v1772
        %v1796 = vsel %vm528, %v1720, %v1774
        %v1799 = vsel %vm528, %v1721, %v1776
        %v1802 = vsel %vm528, %v1722, %v1778
        %v1819 = vunpack.c.l.b16 %v1781
        %v1820 = vunpack.c.l.b16 %v1747
        %v1821 = vunpack.c.l.b16 %v1784
        %v1822 = vunpack.c.l.b16 %v1748
        %v1823 = vunpack.c.l.b16 %v1787
        %v1824 = vunpack.c.l.b16 %v1749
        %v1825 = vunpack.c.l.b16 %v1790
        %v1826 = vunpack.c.l.b16 %v1750
        %v1827 = vunpack.c.l.b16 %v1793
        %v1828 = vunpack.c.l.b16 %v1751
        %v1829 = vunpack.c.l.b16 %v1796
        %v1830 = vunpack.c.l.b16 %v1752
        %v1831 = vunpack.c.l.b16 %v1799
        %v1832 = vunpack.c.l.b16 %v1753
        %v1833 = vunpack.c.l.b16 %v1802
        %v1834 = vunpack.c.l.b16 %v1754
        %v1835 = vpack.c.b16 %v1820, %v1819
        %v1836 = vpack.c.b16 %v1822, %v1821
        %v1837 = vpack.c.b16 %v1824, %v1823
        %v1838 = vpack.c.b16 %v1826, %v1825
        %v1839 = vpack.c.b16 %v1828, %v1827
        %v1840 = vpack.c.b16 %v1830, %v1829
        %v1841 = vpack.c.b16 %v1832, %v1831
        %v1842 = vpack.c.b16 %v1834, %v1833
        %s1851 = scalar_lea.vmem [#allocation2], 488
        %1852 = vst.msk [vmem:[%s1851] sm:$0xff] %vm302, %v1835
        %1853 = vst.msk [vmem:[%s1851 + $0x8] sm:$0xff] %vm302, %v1836
        %1854 = vst.msk [vmem:[%s1851 + $0x10] sm:$0xff] %vm302, %v1837
        %1855 = vst.msk [vmem:[%s1851 + $0x18] sm:$0xff] %vm302, %v1838
        %1856 = vst.msk [vmem:[%s1851 + $0x20] sm:$0xff] %vm302, %v1839
        %1857 = vst.msk [vmem:[%s1851 + $0x28] sm:$0xff] %vm302, %v1840
        %1858 = vst.msk [vmem:[%s1851 + $0x30] sm:$0xff] %vm302, %v1841
        %1859 = vst.msk [vmem:[%s1851 + $0x38] sm:$0xff] %vm302, %v1842
        %s1860 = scalar_lea.vmem %s258, 384 [#allocation4]
        %v1861 = vld [vmem:[%s1860] sm:$0xff]
        %v1862 = vld [vmem:[%s1860 + $0x8] sm:$0xff]
        %v1863 = vld [vmem:[%s1860 + $0x10] sm:$0xff]
        %v1864 = vld [vmem:[%s1860 + $0x18] sm:$0xff]
        %v1865 = vld [vmem:[%s1860 + $0x20] sm:$0xff]
        %v1866 = vld [vmem:[%s1860 + $0x28] sm:$0xff]
        %v1867 = vld [vmem:[%s1860 + $0x30] sm:$0xff]
        %v1868 = vld [vmem:[%s1860 + $0x38] sm:$0xff]
        %v1869 = vmul.f32 %v1861, %v354
        %v1870 = vmul.f32 %v1862, %v354
        %v1871 = vmul.f32 %v1863, %v354
        %v1872 = vmul.f32 %v1864, %v354
        %v1873 = vmul.f32 %v1865, %v354
        %v1874 = vmul.f32 %v1866, %v354
        %v1875 = vmul.f32 %v1867, %v354
        %v1876 = vmul.f32 %v1868, %v354
        %v1877 = vadd.f32 %v1869, %v368
        %v1878 = vadd.f32 %v1870, %v368
        %v1879 = vadd.f32 %v1871, %v368
        %v1880 = vadd.f32 %v1872, %v368
        %v1881 = vadd.f32 %v1873, %v368
        %v1882 = vadd.f32 %v1874, %v368
        %v1883 = vadd.f32 %v1875, %v368
        %v1884 = vadd.f32 %v1876, %v368
        %v1885 = vmax.f32 %v1877, 0.0
        %v1886 = vmax.f32 %v1878, 0.0
        %v1887 = vmax.f32 %v1879, 0.0
        %v1888 = vmax.f32 %v1880, 0.0
        %v1889 = vmax.f32 %v1881, 0.0
        %v1890 = vmax.f32 %v1882, 0.0
        %v1891 = vmax.f32 %v1883, 0.0
        %v1892 = vmax.f32 %v1884, 0.0
        %v1893 = vpack.c.bf16 %v1885, %v1885
        %v1894 = vpack.c.bf16 %v1886, %v1886
        %v1895 = vpack.c.bf16 %v1887, %v1887
        %v1896 = vpack.c.bf16 %v1888, %v1888
        %v1897 = vpack.c.bf16 %v1889, %v1889
        %v1898 = vpack.c.bf16 %v1890, %v1890
        %v1899 = vpack.c.bf16 %v1891, %v1891
        %v1900 = vpack.c.bf16 %v1892, %v1892
        %v1902 = vshrl.u32 %v1893, 16
        %v1904 = vrot.slane %v1902, 7
        %v1905 = vshll.u32 %v1893, 16
        %v1907 = vor.u32 %v1904, %v1905
        %v1909 = vshrl.u32 %v1894, 16
        %v1911 = vrot.slane %v1909, 7
        %v1912 = vshll.u32 %v1894, 16
        %v1914 = vor.u32 %v1911, %v1912
        %v1916 = vshrl.u32 %v1895, 16
        %v1918 = vrot.slane %v1916, 7
        %v1919 = vshll.u32 %v1895, 16
        %v1921 = vor.u32 %v1918, %v1919
        %v1923 = vshrl.u32 %v1896, 16
        %v1925 = vrot.slane %v1923, 7
        %v1926 = vshll.u32 %v1896, 16
        %v1928 = vor.u32 %v1925, %v1926
        %v1930 = vshrl.u32 %v1897, 16
        %v1932 = vrot.slane %v1930, 7
        %v1933 = vshll.u32 %v1897, 16
        %v1935 = vor.u32 %v1932, %v1933
        %v1937 = vshrl.u32 %v1898, 16
        %v1939 = vrot.slane %v1937, 7
        %v1940 = vshll.u32 %v1898, 16
        %v1942 = vor.u32 %v1939, %v1940
        %v1944 = vshrl.u32 %v1899, 16
        %v1946 = vrot.slane %v1944, 7
        %v1947 = vshll.u32 %v1899, 16
        %v1949 = vor.u32 %v1946, %v1947
        %v1951 = vshrl.u32 %v1900, 16
        %v1953 = vrot.slane %v1951, 7
        %v1954 = vshll.u32 %v1900, 16
        %v1956 = vor.u32 %v1953, %v1954
        %v1965 = vsel %vm460, 0, %v1907
        %v1966 = vsel %vm460, 0, %v1914
        %v1967 = vsel %vm460, 0, %v1921
        %v1968 = vsel %vm460, 0, %v1928
        %v1969 = vsel %vm460, 0, %v1935
        %v1970 = vsel %vm460, 0, %v1942
        %v1971 = vsel %vm460, 0, %v1949
        %v1972 = vsel %vm460, 0, %v1956
        %v1973 = vrot.slane %v1905, 1
        %v1974 = vor.u32 %v1902, %v1973
        %v1975 = vrot.slane %v1912, 1
        %v1976 = vor.u32 %v1909, %v1975
        %v1977 = vrot.slane %v1919, 1
        %v1978 = vor.u32 %v1916, %v1977
        %v1979 = vrot.slane %v1926, 1
        %v1980 = vor.u32 %v1923, %v1979
        %v1981 = vrot.slane %v1933, 1
        %v1982 = vor.u32 %v1930, %v1981
        %v1983 = vrot.slane %v1940, 1
        %v1984 = vor.u32 %v1937, %v1983
        %v1985 = vrot.slane %v1947, 1
        %v1986 = vor.u32 %v1944, %v1985
        %v1987 = vrot.slane %v1954, 1
        %v1988 = vor.u32 %v1951, %v1987
        %v1997 = vsel %vm495, %v1974, 0
        %v1998 = vsel %vm495, %v1976, 0
        %v1999 = vsel %vm495, %v1978, 0
        %v2000 = vsel %vm495, %v1980, 0
        %v2001 = vsel %vm495, %v1982, 0
        %v2002 = vsel %vm495, %v1984, 0
        %v2003 = vsel %vm495, %v1986, 0
        %v2004 = vsel %vm495, %v1988, 0
        %2013 = vrot.lane.b32.xlu0 %v1893, 64
        %v2014 = vpop.permute.xlu0 %2013
        %2015 = vrot.lane.b32.xlu0 %v1894, 64
        %v2016 = vpop.permute.xlu0 %2015
        %2017 = vrot.lane.b32.xlu0 %v1895, 64
        %v2018 = vpop.permute.xlu0 %2017
        %2019 = vrot.lane.b32.xlu0 %v1896, 64
        %v2020 = vpop.permute.xlu0 %2019
        %2021 = vrot.lane.b32.xlu0 %v1897, 64
        %v2022 = vpop.permute.xlu0 %2021
        %2023 = vrot.lane.b32.xlu0 %v1898, 64
        %v2024 = vpop.permute.xlu0 %2023
        %2025 = vrot.lane.b32.xlu0 %v1899, 64
        %v2026 = vpop.permute.xlu0 %2025
        %2027 = vrot.lane.b32.xlu0 %v1900, 64
        %v2028 = vpop.permute.xlu0 %2027
        %v2031 = vsel %vm528, %v1965, %v2014
        %v2034 = vsel %vm528, %v1966, %v2016
        %v2037 = vsel %vm528, %v1967, %v2018
        %v2040 = vsel %vm528, %v1968, %v2020
        %v2043 = vsel %vm528, %v1969, %v2022
        %v2046 = vsel %vm528, %v1970, %v2024
        %v2049 = vsel %vm528, %v1971, %v2026
        %v2052 = vsel %vm528, %v1972, %v2028
        %v2069 = vunpack.c.l.b16 %v2031
        %v2070 = vunpack.c.l.b16 %v1997
        %v2071 = vunpack.c.l.b16 %v2034
        %v2072 = vunpack.c.l.b16 %v1998
        %v2073 = vunpack.c.l.b16 %v2037
        %v2074 = vunpack.c.l.b16 %v1999
        %v2075 = vunpack.c.l.b16 %v2040
        %v2076 = vunpack.c.l.b16 %v2000
        %v2077 = vunpack.c.l.b16 %v2043
        %v2078 = vunpack.c.l.b16 %v2001
        %v2079 = vunpack.c.l.b16 %v2046
        %v2080 = vunpack.c.l.b16 %v2002
        %v2081 = vunpack.c.l.b16 %v2049
        %v2082 = vunpack.c.l.b16 %v2003
        %v2083 = vunpack.c.l.b16 %v2052
        %v2084 = vunpack.c.l.b16 %v2004
        %v2085 = vpack.c.b16 %v2070, %v2069
        %v2086 = vpack.c.b16 %v2072, %v2071
        %v2087 = vpack.c.b16 %v2074, %v2073
        %v2088 = vpack.c.b16 %v2076, %v2075
        %v2089 = vpack.c.b16 %v2078, %v2077
        %v2090 = vpack.c.b16 %v2080, %v2079
        %v2091 = vpack.c.b16 %v2082, %v2081
        %v2092 = vpack.c.b16 %v2084, %v2083
        %s2101 = scalar_lea.vmem [#allocation2], 568
        %2102 = vst.msk [vmem:[%s2101] sm:$0xff] %vm302, %v2085
        %2103 = vst.msk [vmem:[%s2101 + $0x8] sm:$0xff] %vm302, %v2086
        %2104 = vst.msk [vmem:[%s2101 + $0x10] sm:$0xff] %vm302, %v2087
        %2105 = vst.msk [vmem:[%s2101 + $0x18] sm:$0xff] %vm302, %v2088
        %2106 = vst.msk [vmem:[%s2101 + $0x20] sm:$0xff] %vm302, %v2089
        %2107 = vst.msk [vmem:[%s2101 + $0x28] sm:$0xff] %vm302, %v2090
        %2108 = vst.msk [vmem:[%s2101 + $0x30] sm:$0xff] %vm302, %v2091
        %2109 = vst.msk [vmem:[%s2101 + $0x38] sm:$0xff] %vm302, %v2092
        %s2110 = scalar_lea.vmem %s258, 448 [#allocation4]
        %v2111 = vld [vmem:[%s2110] sm:$0xff]
        %v2112 = vld [vmem:[%s2110 + $0x8] sm:$0xff]
        %v2113 = vld [vmem:[%s2110 + $0x10] sm:$0xff]
        %v2114 = vld [vmem:[%s2110 + $0x18] sm:$0xff]
        %v2115 = vld [vmem:[%s2110 + $0x20] sm:$0xff]
        %v2116 = vld [vmem:[%s2110 + $0x28] sm:$0xff]
        %v2117 = vld [vmem:[%s2110 + $0x30] sm:$0xff]
        %v2118 = vld [vmem:[%s2110 + $0x38] sm:$0xff]
        %v2119 = vmul.f32 %v2111, %v354
        %v2120 = vmul.f32 %v2112, %v354
        %v2121 = vmul.f32 %v2113, %v354
        %v2122 = vmul.f32 %v2114, %v354
        %v2123 = vmul.f32 %v2115, %v354
        %v2124 = vmul.f32 %v2116, %v354
        %v2125 = vmul.f32 %v2117, %v354
        %v2126 = vmul.f32 %v2118, %v354
        %v2127 = vadd.f32 %v2119, %v368
        %v2128 = vadd.f32 %v2120, %v368
        %v2129 = vadd.f32 %v2121, %v368
        %v2130 = vadd.f32 %v2122, %v368
        %v2131 = vadd.f32 %v2123, %v368
        %v2132 = vadd.f32 %v2124, %v368
        %v2133 = vadd.f32 %v2125, %v368
        %v2134 = vadd.f32 %v2126, %v368
        %v2135 = vmax.f32 %v2127, 0.0
        %v2136 = vmax.f32 %v2128, 0.0
        %v2137 = vmax.f32 %v2129, 0.0
        %v2138 = vmax.f32 %v2130, 0.0
        %v2139 = vmax.f32 %v2131, 0.0
        %v2140 = vmax.f32 %v2132, 0.0
        %v2141 = vmax.f32 %v2133, 0.0
        %v2142 = vmax.f32 %v2134, 0.0
        %v2143 = vpack.c.bf16 %v2135, %v2135
        %v2144 = vpack.c.bf16 %v2136, %v2136
        %v2145 = vpack.c.bf16 %v2137, %v2137
        %v2146 = vpack.c.bf16 %v2138, %v2138
        %v2147 = vpack.c.bf16 %v2139, %v2139
        %v2148 = vpack.c.bf16 %v2140, %v2140
        %v2149 = vpack.c.bf16 %v2141, %v2141
        %v2150 = vpack.c.bf16 %v2142, %v2142
        %v2152 = vshrl.u32 %v2143, 16
        %v2154 = vrot.slane %v2152, 7
        %v2155 = vshll.u32 %v2143, 16
        %v2157 = vor.u32 %v2154, %v2155
        %v2159 = vshrl.u32 %v2144, 16
        %v2161 = vrot.slane %v2159, 7
        %v2162 = vshll.u32 %v2144, 16
        %v2164 = vor.u32 %v2161, %v2162
        %v2166 = vshrl.u32 %v2145, 16
        %v2168 = vrot.slane %v2166, 7
        %v2169 = vshll.u32 %v2145, 16
        %v2171 = vor.u32 %v2168, %v2169
        %v2173 = vshrl.u32 %v2146, 16
        %v2175 = vrot.slane %v2173, 7
        %v2176 = vshll.u32 %v2146, 16
        %v2178 = vor.u32 %v2175, %v2176
        %v2180 = vshrl.u32 %v2147, 16
        %v2182 = vrot.slane %v2180, 7
        %v2183 = vshll.u32 %v2147, 16
        %v2185 = vor.u32 %v2182, %v2183
        %v2187 = vshrl.u32 %v2148, 16
        %v2189 = vrot.slane %v2187, 7
        %v2190 = vshll.u32 %v2148, 16
        %v2192 = vor.u32 %v2189, %v2190
        %v2194 = vshrl.u32 %v2149, 16
        %v2196 = vrot.slane %v2194, 7
        %v2197 = vshll.u32 %v2149, 16
        %v2199 = vor.u32 %v2196, %v2197
        %v2201 = vshrl.u32 %v2150, 16
        %v2203 = vrot.slane %v2201, 7
        %v2204 = vshll.u32 %v2150, 16
        %v2206 = vor.u32 %v2203, %v2204
        %v2215 = vsel %vm460, 0, %v2157
        %v2216 = vsel %vm460, 0, %v2164
        %v2217 = vsel %vm460, 0, %v2171
        %v2218 = vsel %vm460, 0, %v2178
        %v2219 = vsel %vm460, 0, %v2185
        %v2220 = vsel %vm460, 0, %v2192
        %v2221 = vsel %vm460, 0, %v2199
        %v2222 = vsel %vm460, 0, %v2206
        %v2223 = vrot.slane %v2155, 1
        %v2224 = vor.u32 %v2152, %v2223
        %v2225 = vrot.slane %v2162, 1
        %v2226 = vor.u32 %v2159, %v2225
        %v2227 = vrot.slane %v2169, 1
        %v2228 = vor.u32 %v2166, %v2227
        %v2229 = vrot.slane %v2176, 1
        %v2230 = vor.u32 %v2173, %v2229
        %v2231 = vrot.slane %v2183, 1
        %v2232 = vor.u32 %v2180, %v2231
        %v2233 = vrot.slane %v2190, 1
        %v2234 = vor.u32 %v2187, %v2233
        %v2235 = vrot.slane %v2197, 1
        %v2236 = vor.u32 %v2194, %v2235
        %v2237 = vrot.slane %v2204, 1
        %v2238 = vor.u32 %v2201, %v2237
        %v2247 = vsel %vm495, %v2224, 0
        %v2248 = vsel %vm495, %v2226, 0
        %v2249 = vsel %vm495, %v2228, 0
        %v2250 = vsel %vm495, %v2230, 0
        %v2251 = vsel %vm495, %v2232, 0
        %v2252 = vsel %vm495, %v2234, 0
        %v2253 = vsel %vm495, %v2236, 0
        %v2254 = vsel %vm495, %v2238, 0
        %2263 = vrot.lane.b32.xlu0 %v2143, 64
        %v2264 = vpop.permute.xlu0 %2263
        %2265 = vrot.lane.b32.xlu0 %v2144, 64
        %v2266 = vpop.permute.xlu0 %2265
        %2267 = vrot.lane.b32.xlu0 %v2145, 64
        %v2268 = vpop.permute.xlu0 %2267
        %2269 = vrot.lane.b32.xlu0 %v2146, 64
        %v2270 = vpop.permute.xlu0 %2269
        %2271 = vrot.lane.b32.xlu0 %v2147, 64
        %v2272 = vpop.permute.xlu0 %2271
        %2273 = vrot.lane.b32.xlu0 %v2148, 64
        %v2274 = vpop.permute.xlu0 %2273
        %2275 = vrot.lane.b32.xlu0 %v2149, 64
        %v2276 = vpop.permute.xlu0 %2275
        %2277 = vrot.lane.b32.xlu0 %v2150, 64
        %v2278 = vpop.permute.xlu0 %2277
        %v2281 = vsel %vm528, %v2215, %v2264
        %v2284 = vsel %vm528, %v2216, %v2266
        %v2287 = vsel %vm528, %v2217, %v2268
        %v2290 = vsel %vm528, %v2218, %v2270
        %v2293 = vsel %vm528, %v2219, %v2272
        %v2296 = vsel %vm528, %v2220, %v2274
        %v2299 = vsel %vm528, %v2221, %v2276
        %v2302 = vsel %vm528, %v2222, %v2278
        %v2319 = vunpack.c.l.b16 %v2281
        %v2320 = vunpack.c.l.b16 %v2247
        %v2321 = vunpack.c.l.b16 %v2284
        %v2322 = vunpack.c.l.b16 %v2248
        %v2323 = vunpack.c.l.b16 %v2287
        %v2324 = vunpack.c.l.b16 %v2249
        %v2325 = vunpack.c.l.b16 %v2290
        %v2326 = vunpack.c.l.b16 %v2250
        %v2327 = vunpack.c.l.b16 %v2293
        %v2328 = vunpack.c.l.b16 %v2251
        %v2329 = vunpack.c.l.b16 %v2296
        %v2330 = vunpack.c.l.b16 %v2252
        %v2331 = vunpack.c.l.b16 %v2299
        %v2332 = vunpack.c.l.b16 %v2253
        %v2333 = vunpack.c.l.b16 %v2302
        %v2334 = vunpack.c.l.b16 %v2254
        %v2335 = vpack.c.b16 %v2320, %v2319
        %v2336 = vpack.c.b16 %v2322, %v2321
        %v2337 = vpack.c.b16 %v2324, %v2323
        %v2338 = vpack.c.b16 %v2326, %v2325
        %v2339 = vpack.c.b16 %v2328, %v2327
        %v2340 = vpack.c.b16 %v2330, %v2329
        %v2341 = vpack.c.b16 %v2332, %v2331
        %v2342 = vpack.c.b16 %v2334, %v2333
        %s2351 = scalar_lea.vmem [#allocation2], 648
        %2352 = vst.msk [vmem:[%s2351] sm:$0xff] %vm302, %v2335
        %2353 = vst.msk [vmem:[%s2351 + $0x8] sm:$0xff] %vm302, %v2336
        %2354 = vst.msk [vmem:[%s2351 + $0x10] sm:$0xff] %vm302, %v2337
        %2355 = vst.msk [vmem:[%s2351 + $0x18] sm:$0xff] %vm302, %v2338
        %2356 = vst.msk [vmem:[%s2351 + $0x20] sm:$0xff] %vm302, %v2339
        %2357 = vst.msk [vmem:[%s2351 + $0x28] sm:$0xff] %vm302, %v2340
        %2358 = vst.msk [vmem:[%s2351 + $0x30] sm:$0xff] %vm302, %v2341
        %2359 = vst.msk [vmem:[%s2351 + $0x38] sm:$0xff] %vm302, %v2342
        %v2360 = vld [vmem:[#allocation2] sm:$0xff]
        %v2361 = vld [vmem:[#allocation2 + $0x8] sm:$0xff]
        %v2362 = vld [vmem:[#allocation2 + $0x10] sm:$0xff]
        %v2363 = vld [vmem:[#allocation2 + $0x18] sm:$0xff]
        %v2364 = vld [vmem:[#allocation2 + $0x20] sm:$0xff]
        %v2365 = vld [vmem:[#allocation2 + $0x28] sm:$0xff]
        %v2366 = vld [vmem:[#allocation2 + $0x30] sm:$0xff]
        %v2367 = vld [vmem:[#allocation2 + $0x38] sm:$0xff]
        %v2368 = vld [vmem:[#allocation2 + $0x50] sm:$0xff]
        %v2369 = vld [vmem:[#allocation2 + $0x58] sm:$0xff]
        %v2370 = vld [vmem:[#allocation2 + $0x60] sm:$0xff]
        %v2371 = vld [vmem:[#allocation2 + $0x68] sm:$0xff]
        %v2372 = vld [vmem:[#allocation2 + $0x70] sm:$0xff]
        %v2373 = vld [vmem:[#allocation2 + $0x78] sm:$0xff]
        %v2374 = vld [vmem:[#allocation2 + $0x80] sm:$0xff]
        %v2375 = vld [vmem:[#allocation2 + $0x88] sm:$0xff]
        %v2376 = vld [vmem:[#allocation2 + $0xa0] sm:$0xff]
        %v2377 = vld [vmem:[#allocation2 + $0xa8] sm:$0xff]
        %v2378 = vld [vmem:[#allocation2 + $0xb0] sm:$0xff]
        %v2379 = vld [vmem:[#allocation2 + $0xb8] sm:$0xff]
        %v2380 = vld [vmem:[#allocation2 + $0xc0] sm:$0xff]
        %v2381 = vld [vmem:[#allocation2 + $0xc8] sm:$0xff]
        %v2382 = vld [vmem:[#allocation2 + $0xd0] sm:$0xff]
        %v2383 = vld [vmem:[#allocation2 + $0xd8] sm:$0xff]
        %v2384 = vld [vmem:[#allocation2 + $0xf0] sm:$0xff]
        %v2385 = vld [vmem:[#allocation2 + $0xf8] sm:$0xff]
        %v2386 = vld [vmem:[#allocation2 + $0x100] sm:$0xff]
        %v2387 = vld [vmem:[#allocation2 + $0x108] sm:$0xff]
        %v2388 = vld [vmem:[#allocation2 + $0x110] sm:$0xff]
        %v2389 = vld [vmem:[#allocation2 + $0x118] sm:$0xff]
        %v2390 = vld [vmem:[#allocation2 + $0x120] sm:$0xff]
        %v2391 = vld [vmem:[#allocation2 + $0x128] sm:$0xff]
        %v2392 = vld [vmem:[#allocation2 + $0x140] sm:$0xff]
        %v2393 = vld [vmem:[#allocation2 + $0x148] sm:$0xff]
        %v2394 = vld [vmem:[#allocation2 + $0x150] sm:$0xff]
        %v2395 = vld [vmem:[#allocation2 + $0x158] sm:$0xff]
        %v2396 = vld [vmem:[#allocation2 + $0x160] sm:$0xff]
        %v2397 = vld [vmem:[#allocation2 + $0x168] sm:$0xff]
        %v2398 = vld [vmem:[#allocation2 + $0x170] sm:$0xff]
        %v2399 = vld [vmem:[#allocation2 + $0x178] sm:$0xff]
        %v2400 = vld [vmem:[#allocation2 + $0x190] sm:$0xff]
        %v2401 = vld [vmem:[#allocation2 + $0x198] sm:$0xff]
        %v2402 = vld [vmem:[#allocation2 + $0x1a0] sm:$0xff]
        %v2403 = vld [vmem:[#allocation2 + $0x1a8] sm:$0xff]
        %v2404 = vld [vmem:[#allocation2 + $0x1b0] sm:$0xff]
        %v2405 = vld [vmem:[#allocation2 + $0x1b8] sm:$0xff]
        %v2406 = vld [vmem:[#allocation2 + $0x1c0] sm:$0xff]
        %v2407 = vld [vmem:[#allocation2 + $0x1c8] sm:$0xff]
        %v2408 = vld [vmem:[#allocation2 + $0x1e0] sm:$0xff]
        %v2409 = vld [vmem:[#allocation2 + $0x1e8] sm:$0xff]
        %v2410 = vld [vmem:[#allocation2 + $0x1f0] sm:$0xff]
        %v2411 = vld [vmem:[#allocation2 + $0x1f8] sm:$0xff]
        %v2412 = vld [vmem:[#allocation2 + $0x200] sm:$0xff]
        %v2413 = vld [vmem:[#allocation2 + $0x208] sm:$0xff]
        %v2414 = vld [vmem:[#allocation2 + $0x210] sm:$0xff]
        %v2415 = vld [vmem:[#allocation2 + $0x218] sm:$0xff]
        %v2416 = vld [vmem:[#allocation2 + $0x230] sm:$0xff]
        %v2417 = vld [vmem:[#allocation2 + $0x238] sm:$0xff]
        %v2418 = vld [vmem:[#allocation2 + $0x240] sm:$0xff]
        %v2419 = vld [vmem:[#allocation2 + $0x248] sm:$0xff]
        %v2420 = vld [vmem:[#allocation2 + $0x250] sm:$0xff]
        %v2421 = vld [vmem:[#allocation2 + $0x258] sm:$0xff]
        %v2422 = vld [vmem:[#allocation2 + $0x260] sm:$0xff]
        %v2423 = vld [vmem:[#allocation2 + $0x268] sm:$0xff]
        %v2424 = vld [vmem:[#allocation2 + $0x280] sm:$0xff]
        %v2425 = vld [vmem:[#allocation2 + $0x288] sm:$0xff]
        %v2426 = vld [vmem:[#allocation2 + $0x290] sm:$0xff]
        %v2427 = vld [vmem:[#allocation2 + $0x298] sm:$0xff]
        %v2428 = vld [vmem:[#allocation2 + $0x2a0] sm:$0xff]
        %v2429 = vld [vmem:[#allocation2 + $0x2a8] sm:$0xff]
        %v2430 = vld [vmem:[#allocation2 + $0x2b0] sm:$0xff]
        %v2431 = vld [vmem:[#allocation2 + $0x2b8] sm:$0xff]
        %v2432 = vld [vmem:[#allocation2 + $0x2d0] sm:$0xff]
        %v2433 = vld [vmem:[#allocation2 + $0x2d8] sm:$0xff]
        %v2434 = vld [vmem:[#allocation2 + $0x2e0] sm:$0xff]
        %v2435 = vld [vmem:[#allocation2 + $0x2e8] sm:$0xff]
        %v2436 = vld [vmem:[#allocation2 + $0x2f0] sm:$0xff]
        %v2437 = vld [vmem:[#allocation2 + $0x2f8] sm:$0xff]
        %v2438 = vld [vmem:[#allocation2 + $0x300] sm:$0xff]
        %v2439 = vld [vmem:[#allocation2 + $0x308] sm:$0xff]
        %v2440 = vld [vmem:[#allocation7] sm:$0xff]
        %v2441 = vld [vmem:[#allocation7 + $0x8] sm:$0xff]
        %v2442 = vld [vmem:[#allocation7 + $0x10] sm:$0xff]
        %v2443 = vld [vmem:[#allocation7 + $0x18] sm:$0xff]
        %v2444 = vld [vmem:[#allocation7 + $0x20] sm:$0xff]
        %v2445 = vld [vmem:[#allocation7 + $0x28] sm:$0xff]
        %v2446 = vld [vmem:[#allocation7 + $0x30] sm:$0xff]
        %v2447 = vld [vmem:[#allocation7 + $0x38] sm:$0xff]
        %v2448 = vld [vmem:[#allocation7 + $0x40] sm:$0xff]
        %v2449 = vld [vmem:[#allocation7 + $0x48] sm:$0xff]
        %v2450 = vld [vmem:[#allocation7 + $0x50] sm:$0xff]
        %v2451 = vld [vmem:[#allocation7 + $0x58] sm:$0xff]
        %v2452 = vld [vmem:[#allocation7 + $0x60] sm:$0xff]
        %v2453 = vld [vmem:[#allocation7 + $0x68] sm:$0xff]
        %v2454 = vld [vmem:[#allocation7 + $0x70] sm:$0xff]
        %v2455 = vld [vmem:[#allocation7 + $0x78] sm:$0xff]
        %v2456 = vld [vmem:[#allocation7 + $0x80] sm:$0xff]
        %v2457 = vld [vmem:[#allocation7 + $0x88] sm:$0xff]
        %v2458 = vld [vmem:[#allocation7 + $0x90] sm:$0xff]
        %v2459 = vld [vmem:[#allocation7 + $0x98] sm:$0xff]
        %v2460 = vld [vmem:[#allocation7 + $0xa0] sm:$0xff]
        %v2461 = vld [vmem:[#allocation7 + $0xa8] sm:$0xff]
        %v2462 = vld [vmem:[#allocation7 + $0xb0] sm:$0xff]
        %v2463 = vld [vmem:[#allocation7 + $0xb8] sm:$0xff]
        %v2544 = vunpack.c.l.b16 %v2360
        %v2545 = vunpack.c.h.b16 %v2360
        %v2546 = vunpack.c.l.b16 %v2361
        %v2547 = vunpack.c.h.b16 %v2361
        %v2548 = vunpack.c.l.b16 %v2362
        %v2549 = vunpack.c.h.b16 %v2362
        %v2550 = vunpack.c.l.b16 %v2363
        %v2551 = vunpack.c.h.b16 %v2363
        %v2552 = vunpack.c.l.b16 %v2364
        %v2553 = vunpack.c.h.b16 %v2364
        %v2554 = vunpack.c.l.b16 %v2365
        %v2555 = vunpack.c.h.b16 %v2365
        %v2556 = vunpack.c.l.b16 %v2366
        %v2557 = vunpack.c.h.b16 %v2366
        %v2558 = vunpack.c.l.b16 %v2367
        %v2559 = vunpack.c.h.b16 %v2367
        %v2560 = vunpack.c.l.b16 %v2368
        %v2561 = vunpack.c.h.b16 %v2368
        %v2562 = vunpack.c.l.b16 %v2369
        %v2563 = vunpack.c.h.b16 %v2369
        %v2564 = vunpack.c.l.b16 %v2370
        %v2565 = vunpack.c.h.b16 %v2370
        %v2566 = vunpack.c.l.b16 %v2371
        %v2567 = vunpack.c.h.b16 %v2371
        %v2568 = vunpack.c.l.b16 %v2372
        %v2569 = vunpack.c.h.b16 %v2372
        %v2570 = vunpack.c.l.b16 %v2373
        %v2571 = vunpack.c.h.b16 %v2373
        %v2572 = vunpack.c.l.b16 %v2374
        %v2573 = vunpack.c.h.b16 %v2374
        %v2574 = vunpack.c.l.b16 %v2375
        %v2575 = vunpack.c.h.b16 %v2375
        %v2576 = vunpack.c.l.b16 %v2376
        %v2577 = vunpack.c.h.b16 %v2376
        %v2578 = vunpack.c.l.b16 %v2377
        %v2579 = vunpack.c.h.b16 %v2377
        %v2580 = vunpack.c.l.b16 %v2378
        %v2581 = vunpack.c.h.b16 %v2378
        %v2582 = vunpack.c.l.b16 %v2379
        %v2583 = vunpack.c.h.b16 %v2379
        %v2584 = vunpack.c.l.b16 %v2380
        %v2585 = vunpack.c.h.b16 %v2380
        %v2586 = vunpack.c.l.b16 %v2381
        %v2587 = vunpack.c.h.b16 %v2381
        %v2588 = vunpack.c.l.b16 %v2382
        %v2589 = vunpack.c.h.b16 %v2382
        %v2590 = vunpack.c.l.b16 %v2383
        %v2591 = vunpack.c.h.b16 %v2383
        %v2592 = vunpack.c.l.b16 %v2384
        %v2593 = vunpack.c.h.b16 %v2384
        %v2594 = vunpack.c.l.b16 %v2385
        %v2595 = vunpack.c.h.b16 %v2385
        %v2596 = vunpack.c.l.b16 %v2386
        %v2597 = vunpack.c.h.b16 %v2386
        %v2598 = vunpack.c.l.b16 %v2387
        %v2599 = vunpack.c.h.b16 %v2387
        %v2600 = vunpack.c.l.b16 %v2388
        %v2601 = vunpack.c.h.b16 %v2388
        %v2602 = vunpack.c.l.b16 %v2389
        %v2603 = vunpack.c.h.b16 %v2389
        %v2604 = vunpack.c.l.b16 %v2390
        %v2605 = vunpack.c.h.b16 %v2390
        %v2606 = vunpack.c.l.b16 %v2391
        %v2607 = vunpack.c.h.b16 %v2391
        %v2608 = vunpack.c.l.b16 %v2392
        %v2609 = vunpack.c.h.b16 %v2392
        %v2610 = vunpack.c.l.b16 %v2393
        %v2611 = vunpack.c.h.b16 %v2393
        %v2612 = vunpack.c.l.b16 %v2394
        %v2613 = vunpack.c.h.b16 %v2394
        %v2614 = vunpack.c.l.b16 %v2395
        %v2615 = vunpack.c.h.b16 %v2395
        %v2616 = vunpack.c.l.b16 %v2396
        %v2617 = vunpack.c.h.b16 %v2396
        %v2618 = vunpack.c.l.b16 %v2397
        %v2619 = vunpack.c.h.b16 %v2397
        %v2620 = vunpack.c.l.b16 %v2398
        %v2621 = vunpack.c.h.b16 %v2398
        %v2622 = vunpack.c.l.b16 %v2399
        %v2623 = vunpack.c.h.b16 %v2399
        %v2624 = vunpack.c.l.b16 %v2400
        %v2625 = vunpack.c.h.b16 %v2400
        %v2626 = vunpack.c.l.b16 %v2401
        %v2627 = vunpack.c.h.b16 %v2401
        %v2628 = vunpack.c.l.b16 %v2402
        %v2629 = vunpack.c.h.b16 %v2402
        %v2630 = vunpack.c.l.b16 %v2403
        %v2631 = vunpack.c.h.b16 %v2403
        %v2632 = vunpack.c.l.b16 %v2404
        %v2633 = vunpack.c.h.b16 %v2404
        %v2634 = vunpack.c.l.b16 %v2405
        %v2635 = vunpack.c.h.b16 %v2405
        %v2636 = vunpack.c.l.b16 %v2406
        %v2637 = vunpack.c.h.b16 %v2406
        %v2638 = vunpack.c.l.b16 %v2407
        %v2639 = vunpack.c.h.b16 %v2407
        %v2640 = vunpack.c.l.b16 %v2408
        %v2641 = vunpack.c.h.b16 %v2408
        %v2642 = vunpack.c.l.b16 %v2409
        %v2643 = vunpack.c.h.b16 %v2409
        %v2644 = vunpack.c.l.b16 %v2410
        %v2645 = vunpack.c.h.b16 %v2410
        %v2646 = vunpack.c.l.b16 %v2411
        %v2647 = vunpack.c.h.b16 %v2411
        %v2648 = vunpack.c.l.b16 %v2412
        %v2649 = vunpack.c.h.b16 %v2412
        %v2650 = vunpack.c.l.b16 %v2413
        %v2651 = vunpack.c.h.b16 %v2413
        %v2652 = vunpack.c.l.b16 %v2414
        %v2653 = vunpack.c.h.b16 %v2414
        %v2654 = vunpack.c.l.b16 %v2415
        %v2655 = vunpack.c.h.b16 %v2415
        %v2656 = vunpack.c.l.b16 %v2416
        %v2657 = vunpack.c.h.b16 %v2416
        %v2658 = vunpack.c.l.b16 %v2417
        %v2659 = vunpack.c.h.b16 %v2417
        %v2660 = vunpack.c.l.b16 %v2418
        %v2661 = vunpack.c.h.b16 %v2418
        %v2662 = vunpack.c.l.b16 %v2419
        %v2663 = vunpack.c.h.b16 %v2419
        %v2664 = vunpack.c.l.b16 %v2420
        %v2665 = vunpack.c.h.b16 %v2420
        %v2666 = vunpack.c.l.b16 %v2421
        %v2667 = vunpack.c.h.b16 %v2421
        %v2668 = vunpack.c.l.b16 %v2422
        %v2669 = vunpack.c.h.b16 %v2422
        %v2670 = vunpack.c.l.b16 %v2423
        %v2671 = vunpack.c.h.b16 %v2423
        %v2672 = vunpack.c.l.b16 %v2424
        %v2673 = vunpack.c.h.b16 %v2424
        %v2674 = vunpack.c.l.b16 %v2425
        %v2675 = vunpack.c.h.b16 %v2425
        %v2676 = vunpack.c.l.b16 %v2426
        %v2677 = vunpack.c.h.b16 %v2426
        %v2678 = vunpack.c.l.b16 %v2427
        %v2679 = vunpack.c.h.b16 %v2427
        %v2680 = vunpack.c.l.b16 %v2428
        %v2681 = vunpack.c.h.b16 %v2428
        %v2682 = vunpack.c.l.b16 %v2429
        %v2683 = vunpack.c.h.b16 %v2429
        %v2684 = vunpack.c.l.b16 %v2430
        %v2685 = vunpack.c.h.b16 %v2430
        %v2686 = vunpack.c.l.b16 %v2431
        %v2687 = vunpack.c.h.b16 %v2431
        %v2688 = vunpack.c.l.b16 %v2432
        %v2689 = vunpack.c.h.b16 %v2432
        %v2690 = vunpack.c.l.b16 %v2433
        %v2691 = vunpack.c.h.b16 %v2433
        %v2692 = vunpack.c.l.b16 %v2434
        %v2693 = vunpack.c.h.b16 %v2434
        %v2694 = vunpack.c.l.b16 %v2435
        %v2695 = vunpack.c.h.b16 %v2435
        %v2696 = vunpack.c.l.b16 %v2436
        %v2697 = vunpack.c.h.b16 %v2436
        %v2698 = vunpack.c.l.b16 %v2437
        %v2699 = vunpack.c.h.b16 %v2437
        %v2700 = vunpack.c.l.b16 %v2438
        %v2701 = vunpack.c.h.b16 %v2438
        %v2702 = vunpack.c.l.b16 %v2439
        %v2703 = vunpack.c.h.b16 %v2439
        %v2704 = vpack.c.b16 %v2546, %v2544
        %v2705 = vpack.c.b16 %v2547, %v2545
        %v2706 = vpack.c.b16 %v2550, %v2548
        %v2707 = vpack.c.b16 %v2551, %v2549
        %v2708 = vpack.c.b16 %v2554, %v2552
        %v2709 = vpack.c.b16 %v2555, %v2553
        %v2710 = vpack.c.b16 %v2558, %v2556
        %v2711 = vpack.c.b16 %v2559, %v2557
        %v2712 = vpack.c.b16 %v2562, %v2560
        %v2713 = vpack.c.b16 %v2563, %v2561
        %v2714 = vpack.c.b16 %v2566, %v2564
        %v2715 = vpack.c.b16 %v2567, %v2565
        %v2716 = vpack.c.b16 %v2570, %v2568
        %v2717 = vpack.c.b16 %v2571, %v2569
        %v2718 = vpack.c.b16 %v2574, %v2572
        %v2719 = vpack.c.b16 %v2575, %v2573
        %v2720 = vpack.c.b16 %v2578, %v2576
        %v2721 = vpack.c.b16 %v2579, %v2577
        %v2722 = vpack.c.b16 %v2582, %v2580
        %v2723 = vpack.c.b16 %v2583, %v2581
        %v2724 = vpack.c.b16 %v2586, %v2584
        %v2725 = vpack.c.b16 %v2587, %v2585
        %v2726 = vpack.c.b16 %v2590, %v2588
        %v2727 = vpack.c.b16 %v2591, %v2589
        %v2728 = vpack.c.b16 %v2594, %v2592
        %v2729 = vpack.c.b16 %v2595, %v2593
        %v2730 = vpack.c.b16 %v2598, %v2596
        %v2731 = vpack.c.b16 %v2599, %v2597
        %v2732 = vpack.c.b16 %v2602, %v2600
        %v2733 = vpack.c.b16 %v2603, %v2601
        %v2734 = vpack.c.b16 %v2606, %v2604
        %v2735 = vpack.c.b16 %v2607, %v2605
        %v2736 = vpack.c.b16 %v2610, %v2608
        %v2737 = vpack.c.b16 %v2611, %v2609
        %v2738 = vpack.c.b16 %v2614, %v2612
        %v2739 = vpack.c.b16 %v2615, %v2613
        %v2740 = vpack.c.b16 %v2618, %v2616
        %v2741 = vpack.c.b16 %v2619, %v2617
        %v2742 = vpack.c.b16 %v2622, %v2620
        %v2743 = vpack.c.b16 %v2623, %v2621
        %v2744 = vpack.c.b16 %v2626, %v2624
        %v2745 = vpack.c.b16 %v2627, %v2625
        %v2746 = vpack.c.b16 %v2630, %v2628
        %v2747 = vpack.c.b16 %v2631, %v2629
        %v2748 = vpack.c.b16 %v2634, %v2632
        %v2749 = vpack.c.b16 %v2635, %v2633
        %v2750 = vpack.c.b16 %v2638, %v2636
        %v2751 = vpack.c.b16 %v2639, %v2637
        %v2752 = vpack.c.b16 %v2642, %v2640
        %v2753 = vpack.c.b16 %v2643, %v2641
        %v2754 = vpack.c.b16 %v2646, %v2644
        %v2755 = vpack.c.b16 %v2647, %v2645
        %v2756 = vpack.c.b16 %v2650, %v2648
        %v2757 = vpack.c.b16 %v2651, %v2649
        %v2758 = vpack.c.b16 %v2654, %v2652
        %v2759 = vpack.c.b16 %v2655, %v2653
        %v2760 = vpack.c.b16 %v2658, %v2656
        %v2761 = vpack.c.b16 %v2659, %v2657
        %v2762 = vpack.c.b16 %v2662, %v2660
        %v2763 = vpack.c.b16 %v2663, %v2661
        %v2764 = vpack.c.b16 %v2666, %v2664
        %v2765 = vpack.c.b16 %v2667, %v2665
        %v2766 = vpack.c.b16 %v2670, %v2668
        %v2767 = vpack.c.b16 %v2671, %v2669
        %v2768 = vpack.c.b16 %v2674, %v2672
        %v2769 = vpack.c.b16 %v2675, %v2673
        %v2770 = vpack.c.b16 %v2678, %v2676
        %v2771 = vpack.c.b16 %v2679, %v2677
        %v2772 = vpack.c.b16 %v2682, %v2680
        %v2773 = vpack.c.b16 %v2683, %v2681
        %v2774 = vpack.c.b16 %v2686, %v2684
        %v2775 = vpack.c.b16 %v2687, %v2685
        %v2776 = vpack.c.b16 %v2690, %v2688
        %v2777 = vpack.c.b16 %v2691, %v2689
        %v2778 = vpack.c.b16 %v2694, %v2692
        %v2779 = vpack.c.b16 %v2695, %v2693
        %v2780 = vpack.c.b16 %v2698, %v2696
        %v2781 = vpack.c.b16 %v2699, %v2697
        %v2782 = vpack.c.b16 %v2702, %v2700
        %v2783 = vpack.c.b16 %v2703, %v2701
        %v2848 = vunpack.c.l.b16 %v2440
        %v2849 = vunpack.c.h.b16 %v2440
        %v2850 = vunpack.c.l.b16 %v2441
        %v2851 = vunpack.c.h.b16 %v2441
        %v2852 = vunpack.c.l.b16 %v2442
        %v2853 = vunpack.c.h.b16 %v2442
        %v2854 = vunpack.c.l.b16 %v2443
        %v2855 = vunpack.c.h.b16 %v2443
        %v2856 = vunpack.c.l.b16 %v2444
        %v2857 = vunpack.c.h.b16 %v2444
        %v2858 = vunpack.c.l.b16 %v2445
        %v2859 = vunpack.c.h.b16 %v2445
        %v2860 = vunpack.c.l.b16 %v2446
        %v2861 = vunpack.c.h.b16 %v2446
        %v2862 = vunpack.c.l.b16 %v2447
        %v2863 = vunpack.c.h.b16 %v2447
        %v2864 = vunpack.c.l.b16 %v2448
        %v2865 = vunpack.c.h.b16 %v2448
        %v2866 = vunpack.c.l.b16 %v2449
        %v2867 = vunpack.c.h.b16 %v2449
        %v2868 = vunpack.c.l.b16 %v2450
        %v2869 = vunpack.c.h.b16 %v2450
        %v2870 = vunpack.c.l.b16 %v2451
        %v2871 = vunpack.c.h.b16 %v2451
        %v2872 = vunpack.c.l.b16 %v2452
        %v2873 = vunpack.c.h.b16 %v2452
        %v2874 = vunpack.c.l.b16 %v2453
        %v2875 = vunpack.c.h.b16 %v2453
        %v2876 = vunpack.c.l.b16 %v2454
        %v2877 = vunpack.c.h.b16 %v2454
        %v2878 = vunpack.c.l.b16 %v2455
        %v2879 = vunpack.c.h.b16 %v2455
        %v2880 = vunpack.c.l.b16 %v2456
        %v2881 = vunpack.c.h.b16 %v2456
        %v2882 = vunpack.c.l.b16 %v2457
        %v2883 = vunpack.c.h.b16 %v2457
        %v2884 = vunpack.c.l.b16 %v2458
        %v2885 = vunpack.c.h.b16 %v2458
        %v2886 = vunpack.c.l.b16 %v2459
        %v2887 = vunpack.c.h.b16 %v2459
        %v2888 = vunpack.c.l.b16 %v2460
        %v2889 = vunpack.c.h.b16 %v2460
        %v2890 = vunpack.c.l.b16 %v2461
        %v2891 = vunpack.c.h.b16 %v2461
        %v2892 = vunpack.c.l.b16 %v2462
        %v2893 = vunpack.c.h.b16 %v2462
        %v2894 = vunpack.c.l.b16 %v2463
        %v2895 = vunpack.c.h.b16 %v2463
        %v2896 = vpack.c.b16 %v2850, %v2848
        %v2897 = vpack.c.b16 %v2851, %v2849
        %v2898 = vpack.c.b16 %v2854, %v2852
        %v2899 = vpack.c.b16 %v2855, %v2853
        %v2900 = vpack.c.b16 %v2858, %v2856
        %v2901 = vpack.c.b16 %v2859, %v2857
        %v2902 = vpack.c.b16 %v2862, %v2860
        %v2903 = vpack.c.b16 %v2863, %v2861
        %v2904 = vpack.c.b16 %v2866, %v2864
        %v2905 = vpack.c.b16 %v2867, %v2865
        %v2906 = vpack.c.b16 %v2870, %v2868
        %v2907 = vpack.c.b16 %v2871, %v2869
        %v2908 = vpack.c.b16 %v2874, %v2872
        %v2909 = vpack.c.b16 %v2875, %v2873
        %v2910 = vpack.c.b16 %v2878, %v2876
        %v2911 = vpack.c.b16 %v2879, %v2877
        %v2912 = vpack.c.b16 %v2882, %v2880
        %v2913 = vpack.c.b16 %v2883, %v2881
        %v2914 = vpack.c.b16 %v2886, %v2884
        %v2915 = vpack.c.b16 %v2887, %v2885
        %v2916 = vpack.c.b16 %v2890, %v2888
        %v2917 = vpack.c.b16 %v2891, %v2889
        %v2918 = vpack.c.b16 %v2894, %v2892
        %v2919 = vpack.c.b16 %v2895, %v2893
        %v2945 = vsel %vm528, %v2705, 0
        %v2948 = vsel %vm528, %v2707, 0
        %v2951 = vsel %vm528, %v2709, 0
        %v2954 = vsel %vm528, %v2711, 0
        %v2957 = vsel %vm528, %v2713, 0
        %v2960 = vsel %vm528, %v2715, 0
        %v2963 = vsel %vm528, %v2717, 0
        %v2966 = vsel %vm528, %v2719, 0
        %v2969 = vsel %vm528, %v2721, 0
        %v2972 = vsel %vm528, %v2723, 0
        %v2975 = vsel %vm528, %v2725, 0
        %v2978 = vsel %vm528, %v2727, 0
        %v2981 = vsel %vm528, %v2729, 0
        %v2984 = vsel %vm528, %v2731, 0
        %v2987 = vsel %vm528, %v2733, 0
        %v2990 = vsel %vm528, %v2735, 0
        %v2993 = vsel %vm528, %v2737, 0
        %v2996 = vsel %vm528, %v2739, 0
        %v2999 = vsel %vm528, %v2741, 0
        %v3002 = vsel %vm528, %v2743, 0
        %v3005 = vsel %vm528, %v2745, 0
        %v3008 = vsel %vm528, %v2747, 0
        %v3011 = vsel %vm528, %v2749, 0
        %v3014 = vsel %vm528, %v2751, 0
        %v3017 = vsel %vm528, %v2753, 0
        %v3020 = vsel %vm528, %v2755, 0
        %v3023 = vsel %vm528, %v2757, 0
        %v3026 = vsel %vm528, %v2759, 0
        %v3029 = vsel %vm528, %v2761, 0
        %v3032 = vsel %vm528, %v2763, 0
        %v3035 = vsel %vm528, %v2765, 0
        %v3038 = vsel %vm528, %v2767, 0
        %v3041 = vsel %vm528, %v2769, 0
        %v3044 = vsel %vm528, %v2771, 0
        %v3047 = vsel %vm528, %v2773, 0
        %v3050 = vsel %vm528, %v2775, 0
        %v3053 = vsel %vm528, %v2777, 0
        %v3056 = vsel %vm528, %v2779, 0
        %v3059 = vsel %vm528, %v2781, 0
        %v3062 = vsel %vm528, %v2783, 0
        %3064 = vmatprep.subr.bf16.mxu0 %v2897
        %3065 = vmatpush1.bf16.msra.mxu0 %v2896
        %3066 = vmatprep.subr.bf16.mxu0 %v2899
        %3067 = vmatpush1.bf16.msra.mxu0 %v2898
        %3068 = vmatprep.subr.bf16.mxu0 %v2901
        %3069 = vmatpush1.bf16.msra.mxu0 %v2900
        %3070 = vmatprep.subr.bf16.mxu0 %v2903
        %3071 = vmatpush1.bf16.msra.mxu0 %v2902
        %3072 = vmatprep.subr.bf16.mxu0 %v2905
        %3073 = vmatpush1.bf16.msra.mxu0 %v2904
        %3074 = vmatprep.subr.bf16.mxu0 %v2907
        %3075 = vmatpush1.bf16.msra.mxu0 %v2906
        %3076 = vmatprep.subr.bf16.mxu0 %v2909
        %3077 = vmatpush1.bf16.msra.mxu0 %v2908
        %3078 = vmatprep.subr.bf16.mxu0 %v2911
        %3079 = vmatpush1.bf16.msra.mxu0 %v2910
        %3080 = vmatprep.subr.bf16.mxu0 %v2913
        %3081 = vmatpush1.bf16.msra.mxu0 %v2912
        %3082 = vmatprep.subr.bf16.mxu0 %v2915
        %3083 = vmatpush1.bf16.msra.mxu0 %v2914
        %3084 = vmatprep.subr.bf16.mxu0 %v2917
        %3085 = vmatpush1.bf16.msra.mxu0 %v2916
        %3086 = vmatprep.subr.bf16.mxu0 %v2919
        %3087 = vmatpush1.bf16.msra.mxu0 %v2918
        %3088 = vmatprep.subr.bf16.mxu0 0
        %3089 = vmatpush1.bf16.msra.mxu0 0
        %3090 = vmatprep.subr.bf16.mxu0 0
        %3091 = vmatpush1.bf16.msra.mxu0 0
        %3092 = vmatprep.subr.bf16.mxu0 0
        %3093 = vmatpush1.bf16.msra.mxu0 0
        %3094 = vmatprep.subr.bf16.mxu0 0
        %3095 = vmatpush1.bf16.msra.mxu0 0
        %3096 = vmatprep.mubr.bf16.mxu0 %v2945
        %3097 = vmatmul.mubr.bf16.gmra.mrb[0].mxu0 %v2704
        %v3098 = vpop.f32.mrb[0].mxu0
        %v3099 = vadd.f32 0.0, %v3098
        %v3100 = vpop.f32.mrb[0].mxu0
        %v3101 = vadd.f32 0.0, %v3100
        %v3102 = vpop.f32.mrb[0].mxu0
        %v3103 = vadd.f32 0.0, %v3102
        %v3104 = vpop.f32.mrb[0].mxu0
        %v3105 = vadd.f32 0.0, %v3104
        %3106 = vmatprep.mubr.bf16.mxu0 %v2948
        %3107 = vmatmul.mubr.bf16.gmra.mrb[0].mxu0 %v2706
        %v3108 = vpop.f32.mrb[0].mxu0
        %v3109 = vadd.f32 0.0, %v3108
        %v3110 = vpop.f32.mrb[0].mxu0
        %v3111 = vadd.f32 0.0, %v3110
        %v3112 = vpop.f32.mrb[0].mxu0
        %v3113 = vadd.f32 0.0, %v3112
        %v3114 = vpop.f32.mrb[0].mxu0
        %v3115 = vadd.f32 0.0, %v3114
        %3116 = vmatprep.mubr.bf16.mxu0 %v2951
        %3117 = vmatmul.mubr.bf16.gmra.mrb[0].mxu0 %v2708
        %v3118 = vpop.f32.mrb[0].mxu0
        %v3119 = vadd.f32 0.0, %v3118
        %v3120 = vpop.f32.mrb[0].mxu0
        %v3121 = vadd.f32 0.0, %v3120
        %v3122 = vpop.f32.mrb[0].mxu0
        %v3123 = vadd.f32 0.0, %v3122
        %v3124 = vpop.f32.mrb[0].mxu0
        %v3125 = vadd.f32 0.0, %v3124
        %3126 = vmatprep.mubr.bf16.mxu0 %v2954
        %3127 = vmatmul.mubr.bf16.gmra.mrb[0].mxu0 %v2710
        %v3128 = vpop.f32.mrb[0].mxu0
        %v3129 = vadd.f32 0.0, %v3128
        %v3130 = vpop.f32.mrb[0].mxu0
        %v3131 = vadd.f32 0.0, %v3130
        %v3132 = vpop.f32.mrb[0].mxu0
        %v3133 = vadd.f32 0.0, %v3132
        %v3134 = vpop.f32.mrb[0].mxu0
        %v3135 = vadd.f32 0.0, %v3134
        %3136 = vmatprep.mubr.bf16.mxu0 %v2957
        %3137 = vmatmul.mubr.bf16.gmra.mrb[0].mxu0 %v2712
        %v3138 = vpop.f32.mrb[0].mxu0
        %v3139 = vadd.f32 0.0, %v3138
        %v3140 = vpop.f32.mrb[0].mxu0
        %v3141 = vadd.f32 0.0, %v3140
        %v3142 = vpop.f32.mrb[0].mxu0
        %v3143 = vadd.f32 0.0, %v3142
        %v3144 = vpop.f32.mrb[0].mxu0
        %v3145 = vadd.f32 0.0, %v3144
        %3146 = vmatprep.mubr.bf16.mxu0 %v2960
        %3147 = vmatmul.mubr.bf16.gmra.mrb[0].mxu0 %v2714
        %v3148 = vpop.f32.mrb[0].mxu0
        %v3149 = vadd.f32 0.0, %v3148
        %v3150 = vpop.f32.mrb[0].mxu0
        %v3151 = vadd.f32 0.0, %v3150
        %v3152 = vpop.f32.mrb[0].mxu0
        %v3153 = vadd.f32 0.0, %v3152
        %v3154 = vpop.f32.mrb[0].mxu0
        %v3155 = vadd.f32 0.0, %v3154
        %3156 = vmatprep.mubr.bf16.mxu0 %v2963
        %3157 = vmatmul.mubr.bf16.gmra.mrb[0].mxu0 %v2716
        %v3158 = vpop.f32.mrb[0].mxu0
        %v3159 = vadd.f32 0.0, %v3158
        %v3160 = vpop.f32.mrb[0].mxu0
        %v3161 = vadd.f32 0.0, %v3160
        %v3162 = vpop.f32.mrb[0].mxu0
        %v3163 = vadd.f32 0.0, %v3162
        %v3164 = vpop.f32.mrb[0].mxu0
        %v3165 = vadd.f32 0.0, %v3164
        %3166 = vmatprep.mubr.bf16.mxu0 %v2966
        %3167 = vmatmul.mubr.bf16.gmra.mrb[0].mxu0 %v2718
        %v3168 = vpop.f32.mrb[0].mxu0
        %v3169 = vadd.f32 0.0, %v3168
        %v3170 = vpop.f32.mrb[0].mxu0
        %v3171 = vadd.f32 0.0, %v3170
        %v3172 = vpop.f32.mrb[0].mxu0
        %v3173 = vadd.f32 0.0, %v3172
        %v3174 = vpop.f32.mrb[0].mxu0
        %v3175 = vadd.f32 0.0, %v3174
        %3176 = vmatprep.mubr.bf16.mxu0 %v2969
        %3177 = vmatmul.mubr.bf16.gmra.mrb[0].mxu0 %v2720
        %v3178 = vpop.f32.mrb[0].mxu0
        %v3179 = vadd.f32 0.0, %v3178
        %v3180 = vpop.f32.mrb[0].mxu0
        %v3181 = vadd.f32 0.0, %v3180
        %v3182 = vpop.f32.mrb[0].mxu0
        %v3183 = vadd.f32 0.0, %v3182
        %v3184 = vpop.f32.mrb[0].mxu0
        %v3185 = vadd.f32 0.0, %v3184
        %3186 = vmatprep.mubr.bf16.mxu0 %v2972
        %3187 = vmatmul.mubr.bf16.gmra.mrb[0].mxu0 %v2722
        %v3188 = vpop.f32.mrb[0].mxu0
        %v3189 = vadd.f32 0.0, %v3188
        %v3190 = vpop.f32.mrb[0].mxu0
        %v3191 = vadd.f32 0.0, %v3190
        %v3192 = vpop.f32.mrb[0].mxu0
        %v3193 = vadd.f32 0.0, %v3192
        %v3194 = vpop.f32.mrb[0].mxu0
        %v3195 = vadd.f32 0.0, %v3194
        %3196 = vmatprep.mubr.bf16.mxu0 %v2975
        %3197 = vmatmul.mubr.bf16.gmra.mrb[0].mxu0 %v2724
        %v3198 = vpop.f32.mrb[0].mxu0
        %v3199 = vadd.f32 0.0, %v3198
        %v3200 = vpop.f32.mrb[0].mxu0
        %v3201 = vadd.f32 0.0, %v3200
        %v3202 = vpop.f32.mrb[0].mxu0
        %v3203 = vadd.f32 0.0, %v3202
        %v3204 = vpop.f32.mrb[0].mxu0
        %v3205 = vadd.f32 0.0, %v3204
        %3206 = vmatprep.mubr.bf16.mxu0 %v2978
        %3207 = vmatmul.mubr.bf16.gmra.mrb[0].mxu0 %v2726
        %v3208 = vpop.f32.mrb[0].mxu0
        %v3209 = vadd.f32 0.0, %v3208
        %v3210 = vpop.f32.mrb[0].mxu0
        %v3211 = vadd.f32 0.0, %v3210
        %v3212 = vpop.f32.mrb[0].mxu0
        %v3213 = vadd.f32 0.0, %v3212
        %v3214 = vpop.f32.mrb[0].mxu0
        %v3215 = vadd.f32 0.0, %v3214
        %3216 = vmatprep.mubr.bf16.mxu0 %v2981
        %3217 = vmatmul.mubr.bf16.gmra.mrb[0].mxu0 %v2728
        %v3218 = vpop.f32.mrb[0].mxu0
        %v3219 = vadd.f32 0.0, %v3218
        %v3220 = vpop.f32.mrb[0].mxu0
        %v3221 = vadd.f32 0.0, %v3220
        %v3222 = vpop.f32.mrb[0].mxu0
        %v3223 = vadd.f32 0.0, %v3222
        %v3224 = vpop.f32.mrb[0].mxu0
        %v3225 = vadd.f32 0.0, %v3224
        %3226 = vmatprep.mubr.bf16.mxu0 %v2984
        %3227 = vmatmul.mubr.bf16.gmra.mrb[0].mxu0 %v2730
        %v3228 = vpop.f32.mrb[0].mxu0
        %v3229 = vadd.f32 0.0, %v3228
        %v3230 = vpop.f32.mrb[0].mxu0
        %v3231 = vadd.f32 0.0, %v3230
        %v3232 = vpop.f32.mrb[0].mxu0
        %v3233 = vadd.f32 0.0, %v3232
        %v3234 = vpop.f32.mrb[0].mxu0
        %v3235 = vadd.f32 0.0, %v3234
        %3236 = vmatprep.mubr.bf16.mxu0 %v2987
        %3237 = vmatmul.mubr.bf16.gmra.mrb[0].mxu0 %v2732
        %v3238 = vpop.f32.mrb[0].mxu0
        %v3239 = vadd.f32 0.0, %v3238
        %v3240 = vpop.f32.mrb[0].mxu0
        %v3241 = vadd.f32 0.0, %v3240
        %v3242 = vpop.f32.mrb[0].mxu0
        %v3243 = vadd.f32 0.0, %v3242
        %v3244 = vpop.f32.mrb[0].mxu0
        %v3245 = vadd.f32 0.0, %v3244
        %3246 = vmatprep.mubr.bf16.mxu0 %v2990
        %3247 = vmatmul.mubr.bf16.gmra.mrb[0].mxu0 %v2734
        %v3248 = vpop.f32.mrb[0].mxu0
        %v3249 = vadd.f32 0.0, %v3248
        %v3250 = vpop.f32.mrb[0].mxu0
        %v3251 = vadd.f32 0.0, %v3250
        %v3252 = vpop.f32.mrb[0].mxu0
        %v3253 = vadd.f32 0.0, %v3252
        %v3254 = vpop.f32.mrb[0].mxu0
        %v3255 = vadd.f32 0.0, %v3254
        %3256 = vmatprep.mubr.bf16.mxu0 %v2993
        %3257 = vmatmul.mubr.bf16.gmra.mrb[0].mxu0 %v2736
        %v3258 = vpop.f32.mrb[0].mxu0
        %v3259 = vadd.f32 0.0, %v3258
        %v3260 = vpop.f32.mrb[0].mxu0
        %v3261 = vadd.f32 0.0, %v3260
        %v3262 = vpop.f32.mrb[0].mxu0
        %v3263 = vadd.f32 0.0, %v3262
        %v3264 = vpop.f32.mrb[0].mxu0
        %v3265 = vadd.f32 0.0, %v3264
        %3266 = vmatprep.mubr.bf16.mxu0 %v2996
        %3267 = vmatmul.mubr.bf16.gmra.mrb[0].mxu0 %v2738
        %v3268 = vpop.f32.mrb[0].mxu0
        %v3269 = vadd.f32 0.0, %v3268
        %v3270 = vpop.f32.mrb[0].mxu0
        %v3271 = vadd.f32 0.0, %v3270
        %v3272 = vpop.f32.mrb[0].mxu0
        %v3273 = vadd.f32 0.0, %v3272
        %v3274 = vpop.f32.mrb[0].mxu0
        %v3275 = vadd.f32 0.0, %v3274
        %3276 = vmatprep.mubr.bf16.mxu0 %v2999
        %3277 = vmatmul.mubr.bf16.gmra.mrb[0].mxu0 %v2740
        %v3278 = vpop.f32.mrb[0].mxu0
        %v3279 = vadd.f32 0.0, %v3278
        %v3280 = vpop.f32.mrb[0].mxu0
        %v3281 = vadd.f32 0.0, %v3280
        %v3282 = vpop.f32.mrb[0].mxu0
        %v3283 = vadd.f32 0.0, %v3282
        %v3284 = vpop.f32.mrb[0].mxu0
        %v3285 = vadd.f32 0.0, %v3284
        %3286 = vmatprep.mubr.bf16.mxu0 %v3002
        %3287 = vmatmul.mubr.bf16.gmra.mrb[0].mxu0 %v2742
        %v3288 = vpop.f32.mrb[0].mxu0
        %v3289 = vadd.f32 0.0, %v3288
        %v3290 = vpop.f32.mrb[0].mxu0
        %v3291 = vadd.f32 0.0, %v3290
        %v3292 = vpop.f32.mrb[0].mxu0
        %v3293 = vadd.f32 0.0, %v3292
        %v3294 = vpop.f32.mrb[0].mxu0
        %v3295 = vadd.f32 0.0, %v3294
        %3296 = vmatprep.mubr.bf16.mxu0 %v3005
        %3297 = vmatmul.mubr.bf16.gmra.mrb[0].mxu0 %v2744
        %v3298 = vpop.f32.mrb[0].mxu0
        %v3299 = vadd.f32 0.0, %v3298
        %v3300 = vpop.f32.mrb[0].mxu0
        %v3301 = vadd.f32 0.0, %v3300
        %v3302 = vpop.f32.mrb[0].mxu0
        %v3303 = vadd.f32 0.0, %v3302
        %v3304 = vpop.f32.mrb[0].mxu0
        %v3305 = vadd.f32 0.0, %v3304
        %3306 = vmatprep.mubr.bf16.mxu0 %v3008
        %3307 = vmatmul.mubr.bf16.gmra.mrb[0].mxu0 %v2746
        %v3308 = vpop.f32.mrb[0].mxu0
        %v3309 = vadd.f32 0.0, %v3308
        %v3310 = vpop.f32.mrb[0].mxu0
        %v3311 = vadd.f32 0.0, %v3310
        %v3312 = vpop.f32.mrb[0].mxu0
        %v3313 = vadd.f32 0.0, %v3312
        %v3314 = vpop.f32.mrb[0].mxu0
        %v3315 = vadd.f32 0.0, %v3314
        %3316 = vmatprep.mubr.bf16.mxu0 %v3011
        %3317 = vmatmul.mubr.bf16.gmra.mrb[0].mxu0 %v2748
        %v3318 = vpop.f32.mrb[0].mxu0
        %v3319 = vadd.f32 0.0, %v3318
        %v3320 = vpop.f32.mrb[0].mxu0
        %v3321 = vadd.f32 0.0, %v3320
        %v3322 = vpop.f32.mrb[0].mxu0
        %v3323 = vadd.f32 0.0, %v3322
        %v3324 = vpop.f32.mrb[0].mxu0
        %v3325 = vadd.f32 0.0, %v3324
        %3326 = vmatprep.mubr.bf16.mxu0 %v3014
        %3327 = vmatmul.mubr.bf16.gmra.mrb[0].mxu0 %v2750
        %v3328 = vpop.f32.mrb[0].mxu0
        %v3329 = vadd.f32 0.0, %v3328
        %v3330 = vpop.f32.mrb[0].mxu0
        %v3331 = vadd.f32 0.0, %v3330
        %v3332 = vpop.f32.mrb[0].mxu0
        %v3333 = vadd.f32 0.0, %v3332
        %v3334 = vpop.f32.mrb[0].mxu0
        %v3335 = vadd.f32 0.0, %v3334
        %3336 = vmatprep.mubr.bf16.mxu0 %v3017
        %3337 = vmatmul.mubr.bf16.gmra.mrb[0].mxu0 %v2752
        %v3338 = vpop.f32.mrb[0].mxu0
        %v3339 = vadd.f32 0.0, %v3338
        %v3340 = vpop.f32.mrb[0].mxu0
        %v3341 = vadd.f32 0.0, %v3340
        %v3342 = vpop.f32.mrb[0].mxu0
        %v3343 = vadd.f32 0.0, %v3342
        %v3344 = vpop.f32.mrb[0].mxu0
        %v3345 = vadd.f32 0.0, %v3344
        %3346 = vmatprep.mubr.bf16.mxu0 %v3020
        %3347 = vmatmul.mubr.bf16.gmra.mrb[0].mxu0 %v2754
        %v3348 = vpop.f32.mrb[0].mxu0
        %v3349 = vadd.f32 0.0, %v3348
        %v3350 = vpop.f32.mrb[0].mxu0
        %v3351 = vadd.f32 0.0, %v3350
        %v3352 = vpop.f32.mrb[0].mxu0
        %v3353 = vadd.f32 0.0, %v3352
        %v3354 = vpop.f32.mrb[0].mxu0
        %v3355 = vadd.f32 0.0, %v3354
        %3356 = vmatprep.mubr.bf16.mxu0 %v3023
        %3357 = vmatmul.mubr.bf16.gmra.mrb[0].mxu0 %v2756
        %v3358 = vpop.f32.mrb[0].mxu0
        %v3359 = vadd.f32 0.0, %v3358
        %v3360 = vpop.f32.mrb[0].mxu0
        %v3361 = vadd.f32 0.0, %v3360
        %v3362 = vpop.f32.mrb[0].mxu0
        %v3363 = vadd.f32 0.0, %v3362
        %v3364 = vpop.f32.mrb[0].mxu0
        %v3365 = vadd.f32 0.0, %v3364
        %3366 = vmatprep.mubr.bf16.mxu0 %v3026
        %3367 = vmatmul.mubr.bf16.gmra.mrb[0].mxu0 %v2758
        %v3368 = vpop.f32.mrb[0].mxu0
        %v3369 = vadd.f32 0.0, %v3368
        %v3370 = vpop.f32.mrb[0].mxu0
        %v3371 = vadd.f32 0.0, %v3370
        %v3372 = vpop.f32.mrb[0].mxu0
        %v3373 = vadd.f32 0.0, %v3372
        %v3374 = vpop.f32.mrb[0].mxu0
        %v3375 = vadd.f32 0.0, %v3374
        %3376 = vmatprep.mubr.bf16.mxu0 %v3029
        %3377 = vmatmul.mubr.bf16.gmra.mrb[0].mxu0 %v2760
        %v3378 = vpop.f32.mrb[0].mxu0
        %v3379 = vadd.f32 0.0, %v3378
        %v3380 = vpop.f32.mrb[0].mxu0
        %v3381 = vadd.f32 0.0, %v3380
        %v3382 = vpop.f32.mrb[0].mxu0
        %v3383 = vadd.f32 0.0, %v3382
        %v3384 = vpop.f32.mrb[0].mxu0
        %v3385 = vadd.f32 0.0, %v3384
        %3386 = vmatprep.mubr.bf16.mxu0 %v3032
        %3387 = vmatmul.mubr.bf16.gmra.mrb[0].mxu0 %v2762
        %v3388 = vpop.f32.mrb[0].mxu0
        %v3389 = vadd.f32 0.0, %v3388
        %v3390 = vpop.f32.mrb[0].mxu0
        %v3391 = vadd.f32 0.0, %v3390
        %v3392 = vpop.f32.mrb[0].mxu0
        %v3393 = vadd.f32 0.0, %v3392
        %v3394 = vpop.f32.mrb[0].mxu0
        %v3395 = vadd.f32 0.0, %v3394
        %3396 = vmatprep.mubr.bf16.mxu0 %v3035
        %3397 = vmatmul.mubr.bf16.gmra.mrb[0].mxu0 %v2764
        %v3398 = vpop.f32.mrb[0].mxu0
        %v3399 = vadd.f32 0.0, %v3398
        %v3400 = vpop.f32.mrb[0].mxu0
        %v3401 = vadd.f32 0.0, %v3400
        %v3402 = vpop.f32.mrb[0].mxu0
        %v3403 = vadd.f32 0.0, %v3402
        %v3404 = vpop.f32.mrb[0].mxu0
        %v3405 = vadd.f32 0.0, %v3404
        %3406 = vmatprep.mubr.bf16.mxu0 %v3038
        %3407 = vmatmul.mubr.bf16.gmra.mrb[0].mxu0 %v2766
        %v3408 = vpop.f32.mrb[0].mxu0
        %v3409 = vadd.f32 0.0, %v3408
        %v3410 = vpop.f32.mrb[0].mxu0
        %v3411 = vadd.f32 0.0, %v3410
        %v3412 = vpop.f32.mrb[0].mxu0
        %v3413 = vadd.f32 0.0, %v3412
        %v3414 = vpop.f32.mrb[0].mxu0
        %v3415 = vadd.f32 0.0, %v3414
        %3416 = vmatprep.mubr.bf16.mxu0 %v3041
        %3417 = vmatmul.mubr.bf16.gmra.mrb[0].mxu0 %v2768
        %v3418 = vpop.f32.mrb[0].mxu0
        %v3419 = vadd.f32 0.0, %v3418
        %v3420 = vpop.f32.mrb[0].mxu0
        %v3421 = vadd.f32 0.0, %v3420
        %v3422 = vpop.f32.mrb[0].mxu0
        %v3423 = vadd.f32 0.0, %v3422
        %v3424 = vpop.f32.mrb[0].mxu0
        %v3425 = vadd.f32 0.0, %v3424
        %3426 = vmatprep.mubr.bf16.mxu0 %v3044
        %3427 = vmatmul.mubr.bf16.gmra.mrb[0].mxu0 %v2770
        %v3428 = vpop.f32.mrb[0].mxu0
        %v3429 = vadd.f32 0.0, %v3428
        %v3430 = vpop.f32.mrb[0].mxu0
        %v3431 = vadd.f32 0.0, %v3430
        %v3432 = vpop.f32.mrb[0].mxu0
        %v3433 = vadd.f32 0.0, %v3432
        %v3434 = vpop.f32.mrb[0].mxu0
        %v3435 = vadd.f32 0.0, %v3434
        %3436 = vmatprep.mubr.bf16.mxu0 %v3047
        %3437 = vmatmul.mubr.bf16.gmra.mrb[0].mxu0 %v2772
        %v3438 = vpop.f32.mrb[0].mxu0
        %v3439 = vadd.f32 0.0, %v3438
        %v3440 = vpop.f32.mrb[0].mxu0
        %v3441 = vadd.f32 0.0, %v3440
        %v3442 = vpop.f32.mrb[0].mxu0
        %v3443 = vadd.f32 0.0, %v3442
        %v3444 = vpop.f32.mrb[0].mxu0
        %v3445 = vadd.f32 0.0, %v3444
        %3446 = vmatprep.mubr.bf16.mxu0 %v3050
        %3447 = vmatmul.mubr.bf16.gmra.mrb[0].mxu0 %v2774
        %v3448 = vpop.f32.mrb[0].mxu0
        %v3449 = vadd.f32 0.0, %v3448
        %v3450 = vpop.f32.mrb[0].mxu0
        %v3451 = vadd.f32 0.0, %v3450
        %v3452 = vpop.f32.mrb[0].mxu0
        %v3453 = vadd.f32 0.0, %v3452
        %v3454 = vpop.f32.mrb[0].mxu0
        %v3455 = vadd.f32 0.0, %v3454
        %3456 = vmatprep.mubr.bf16.mxu0 %v3053
        %3457 = vmatmul.mubr.bf16.gmra.mrb[0].mxu0 %v2776
        %v3458 = vpop.f32.mrb[0].mxu0
        %v3459 = vadd.f32 0.0, %v3458
        %v3460 = vpop.f32.mrb[0].mxu0
        %v3461 = vadd.f32 0.0, %v3460
        %v3462 = vpop.f32.mrb[0].mxu0
        %v3463 = vadd.f32 0.0, %v3462
        %v3464 = vpop.f32.mrb[0].mxu0
        %v3465 = vadd.f32 0.0, %v3464
        %3466 = vmatprep.mubr.bf16.mxu0 %v3056
        %3467 = vmatmul.mubr.bf16.gmra.mrb[0].mxu0 %v2778
        %v3468 = vpop.f32.mrb[0].mxu0
        %v3469 = vadd.f32 0.0, %v3468
        %v3470 = vpop.f32.mrb[0].mxu0
        %v3471 = vadd.f32 0.0, %v3470
        %v3472 = vpop.f32.mrb[0].mxu0
        %v3473 = vadd.f32 0.0, %v3472
        %v3474 = vpop.f32.mrb[0].mxu0
        %v3475 = vadd.f32 0.0, %v3474
        %3476 = vmatprep.mubr.bf16.mxu0 %v3059
        %3477 = vmatmul.mubr.bf16.gmra.mrb[0].mxu0 %v2780
        %v3478 = vpop.f32.mrb[0].mxu0
        %v3479 = vadd.f32 0.0, %v3478
        %v3480 = vpop.f32.mrb[0].mxu0
        %v3481 = vadd.f32 0.0, %v3480
        %v3482 = vpop.f32.mrb[0].mxu0
        %v3483 = vadd.f32 0.0, %v3482
        %v3484 = vpop.f32.mrb[0].mxu0
        %v3485 = vadd.f32 0.0, %v3484
        %3486 = vmatprep.mubr.bf16.mxu0 %v3062
        %3487 = vmatmul.mubr.bf16.gmra.mrb[0].mxu0 %v2782
        %v3488 = vpop.f32.mrb[0].mxu0
        %v3489 = vadd.f32 0.0, %v3488
        %v3490 = vpop.f32.mrb[0].mxu0
        %v3491 = vadd.f32 0.0, %v3490
        %v3492 = vpop.f32.mrb[0].mxu0
        %v3493 = vadd.f32 0.0, %v3492
        %v3494 = vpop.f32.mrb[0].mxu0
        %v3495 = vadd.f32 0.0, %v3494
        %3496 = vdwg.mxu0
        %3497 = vst [vmem:[#allocation3] sm:$0xff] %v3099
        %3498 = vst.msk [vmem:[#allocation3 + $0x8] sm:$0xff] %vm528, %v3101
        %3499 = vst [vmem:[#allocation3 + $0x10] sm:$0xff] %v3103
        %3500 = vst.msk [vmem:[#allocation3 + $0x18] sm:$0xff] %vm528, %v3105
        %3501 = vst [vmem:[#allocation3 + $0x20] sm:$0xff] %v3109
        %3502 = vst.msk [vmem:[#allocation3 + $0x28] sm:$0xff] %vm528, %v3111
        %3503 = vst [vmem:[#allocation3 + $0x30] sm:$0xff] %v3113
        %3504 = vst.msk [vmem:[#allocation3 + $0x38] sm:$0xff] %vm528, %v3115
        %3505 = vst [vmem:[#allocation3 + $0x40] sm:$0xff] %v3119
        %3506 = vst.msk [vmem:[#allocation3 + $0x48] sm:$0xff] %vm528, %v3121
        %3507 = vst [vmem:[#allocation3 + $0x50] sm:$0xff] %v3123
        %3508 = vst.msk [vmem:[#allocation3 + $0x58] sm:$0xff] %vm528, %v3125
        %3509 = vst [vmem:[#allocation3 + $0x60] sm:$0xff] %v3129
        %3510 = vst.msk [vmem:[#allocation3 + $0x68] sm:$0xff] %vm528, %v3131
        %3511 = vst [vmem:[#allocation3 + $0x70] sm:$0xff] %v3133
        %3512 = vst.msk [vmem:[#allocation3 + $0x78] sm:$0xff] %vm528, %v3135
        %3513 = vst [vmem:[#allocation3 + $0x80] sm:$0xff] %v3139
        %3514 = vst.msk [vmem:[#allocation3 + $0x88] sm:$0xff] %vm528, %v3141
        %3515 = vst [vmem:[#allocation3 + $0x90] sm:$0xff] %v3143
        %3516 = vst.msk [vmem:[#allocation3 + $0x98] sm:$0xff] %vm528, %v3145
        %3517 = vst [vmem:[#allocation3 + $0xa0] sm:$0xff] %v3149
        %3518 = vst.msk [vmem:[#allocation3 + $0xa8] sm:$0xff] %vm528, %v3151
        %3519 = vst [vmem:[#allocation3 + $0xb0] sm:$0xff] %v3153
        %3520 = vst.msk [vmem:[#allocation3 + $0xb8] sm:$0xff] %vm528, %v3155
        %3521 = vst [vmem:[#allocation3 + $0xc0] sm:$0xff] %v3159
        %3522 = vst.msk [vmem:[#allocation3 + $0xc8] sm:$0xff] %vm528, %v3161
        %3523 = vst [vmem:[#allocation3 + $0xd0] sm:$0xff] %v3163
        %3524 = vst.msk [vmem:[#allocation3 + $0xd8] sm:$0xff] %vm528, %v3165
        %3525 = vst [vmem:[#allocation3 + $0xe0] sm:$0xff] %v3169
        %3526 = vst.msk [vmem:[#allocation3 + $0xe8] sm:$0xff] %vm528, %v3171
        %3527 = vst [vmem:[#allocation3 + $0xf0] sm:$0xff] %v3173
        %3528 = vst.msk [vmem:[#allocation3 + $0xf8] sm:$0xff] %vm528, %v3175
        %3529 = vst [vmem:[#allocation3 + $0x100] sm:$0xff] %v3179
        %3530 = vst.msk [vmem:[#allocation3 + $0x108] sm:$0xff] %vm528, %v3181
        %3531 = vst [vmem:[#allocation3 + $0x110] sm:$0xff] %v3183
        %3532 = vst.msk [vmem:[#allocation3 + $0x118] sm:$0xff] %vm528, %v3185
        %3533 = vst [vmem:[#allocation3 + $0x120] sm:$0xff] %v3189
        %3534 = vst.msk [vmem:[#allocation3 + $0x128] sm:$0xff] %vm528, %v3191
        %3535 = vst [vmem:[#allocation3 + $0x130] sm:$0xff] %v3193
        %3536 = vst.msk [vmem:[#allocation3 + $0x138] sm:$0xff] %vm528, %v3195
        %3537 = vst [vmem:[#allocation3 + $0x140] sm:$0xff] %v3199
        %3538 = vst.msk [vmem:[#allocation3 + $0x148] sm:$0xff] %vm528, %v3201
        %3539 = vst [vmem:[#allocation3 + $0x150] sm:$0xff] %v3203
        %3540 = vst.msk [vmem:[#allocation3 + $0x158] sm:$0xff] %vm528, %v3205
        %3541 = vst [vmem:[#allocation3 + $0x160] sm:$0xff] %v3209
        %3542 = vst.msk [vmem:[#allocation3 + $0x168] sm:$0xff] %vm528, %v3211
        %3543 = vst [vmem:[#allocation3 + $0x170] sm:$0xff] %v3213
        %3544 = vst.msk [vmem:[#allocation3 + $0x178] sm:$0xff] %vm528, %v3215
        %3545 = vst [vmem:[#allocation3 + $0x180] sm:$0xff] %v3219
        %3546 = vst.msk [vmem:[#allocation3 + $0x188] sm:$0xff] %vm528, %v3221
        %3547 = vst [vmem:[#allocation3 + $0x190] sm:$0xff] %v3223
        %3548 = vst.msk [vmem:[#allocation3 + $0x198] sm:$0xff] %vm528, %v3225
        %3549 = vst [vmem:[#allocation3 + $0x1a0] sm:$0xff] %v3229
        %3550 = vst.msk [vmem:[#allocation3 + $0x1a8] sm:$0xff] %vm528, %v3231
        %3551 = vst [vmem:[#allocation3 + $0x1b0] sm:$0xff] %v3233
        %3552 = vst.msk [vmem:[#allocation3 + $0x1b8] sm:$0xff] %vm528, %v3235
        %3553 = vst [vmem:[#allocation3 + $0x1c0] sm:$0xff] %v3239
        %3554 = vst.msk [vmem:[#allocation3 + $0x1c8] sm:$0xff] %vm528, %v3241
        %3555 = vst [vmem:[#allocation3 + $0x1d0] sm:$0xff] %v3243
        %3556 = vst.msk [vmem:[#allocation3 + $0x1d8] sm:$0xff] %vm528, %v3245
        %3557 = vst [vmem:[#allocation3 + $0x1e0] sm:$0xff] %v3249
        %3558 = vst.msk [vmem:[#allocation3 + $0x1e8] sm:$0xff] %vm528, %v3251
        %3559 = vst [vmem:[#allocation3 + $0x1f0] sm:$0xff] %v3253
        %3560 = vst.msk [vmem:[#allocation3 + $0x1f8] sm:$0xff] %vm528, %v3255
        %3561 = vst [vmem:[#allocation3 + $0x200] sm:$0xff] %v3259
        %3562 = vst.msk [vmem:[#allocation3 + $0x208] sm:$0xff] %vm528, %v3261
        %3563 = vst [vmem:[#allocation3 + $0x210] sm:$0xff] %v3263
        %3564 = vst.msk [vmem:[#allocation3 + $0x218] sm:$0xff] %vm528, %v3265
        %3565 = vst [vmem:[#allocation3 + $0x220] sm:$0xff] %v3269
        %3566 = vst.msk [vmem:[#allocation3 + $0x228] sm:$0xff] %vm528, %v3271
        %3567 = vst [vmem:[#allocation3 + $0x230] sm:$0xff] %v3273
        %3568 = vst.msk [vmem:[#allocation3 + $0x238] sm:$0xff] %vm528, %v3275
        %3569 = vst [vmem:[#allocation3 + $0x240] sm:$0xff] %v3279
        %3570 = vst.msk [vmem:[#allocation3 + $0x248] sm:$0xff] %vm528, %v3281
        %3571 = vst [vmem:[#allocation3 + $0x250] sm:$0xff] %v3283
        %3572 = vst.msk [vmem:[#allocation3 + $0x258] sm:$0xff] %vm528, %v3285
        %3573 = vst [vmem:[#allocation3 + $0x260] sm:$0xff] %v3289
        %3574 = vst.msk [vmem:[#allocation3 + $0x268] sm:$0xff] %vm528, %v3291
        %3575 = vst [vmem:[#allocation3 + $0x270] sm:$0xff] %v3293
        %3576 = vst.msk [vmem:[#allocation3 + $0x278] sm:$0xff] %vm528, %v3295
        %3577 = vst [vmem:[#allocation3 + $0x280] sm:$0xff] %v3299
        %3578 = vst.msk [vmem:[#allocation3 + $0x288] sm:$0xff] %vm528, %v3301
        %3579 = vst [vmem:[#allocation3 + $0x290] sm:$0xff] %v3303
        %3580 = vst.msk [vmem:[#allocation3 + $0x298] sm:$0xff] %vm528, %v3305
        %3581 = vst [vmem:[#allocation3 + $0x2a0] sm:$0xff] %v3309
        %3582 = vst.msk [vmem:[#allocation3 + $0x2a8] sm:$0xff] %vm528, %v3311
        %3583 = vst [vmem:[#allocation3 + $0x2b0] sm:$0xff] %v3313
        %3584 = vst.msk [vmem:[#allocation3 + $0x2b8] sm:$0xff] %vm528, %v3315
        %3585 = vst [vmem:[#allocation3 + $0x2c0] sm:$0xff] %v3319
        %3586 = vst.msk [vmem:[#allocation3 + $0x2c8] sm:$0xff] %vm528, %v3321
        %3587 = vst [vmem:[#allocation3 + $0x2d0] sm:$0xff] %v3323
        %3588 = vst.msk [vmem:[#allocation3 + $0x2d8] sm:$0xff] %vm528, %v3325
        %3589 = vst [vmem:[#allocation3 + $0x2e0] sm:$0xff] %v3329
        %3590 = vst.msk [vmem:[#allocation3 + $0x2e8] sm:$0xff] %vm528, %v3331
        %3591 = vst [vmem:[#allocation3 + $0x2f0] sm:$0xff] %v3333
        %3592 = vst.msk [vmem:[#allocation3 + $0x2f8] sm:$0xff] %vm528, %v3335
        %3593 = vst [vmem:[#allocation3 + $0x300] sm:$0xff] %v3339
        %3594 = vst.msk [vmem:[#allocation3 + $0x308] sm:$0xff] %vm528, %v3341
        %3595 = vst [vmem:[#allocation3 + $0x310] sm:$0xff] %v3343
        %3596 = vst.msk [vmem:[#allocation3 + $0x318] sm:$0xff] %vm528, %v3345
        %3597 = vst [vmem:[#allocation3 + $0x320] sm:$0xff] %v3349
        %3598 = vst.msk [vmem:[#allocation3 + $0x328] sm:$0xff] %vm528, %v3351
        %3599 = vst [vmem:[#allocation3 + $0x330] sm:$0xff] %v3353
        %3600 = vst.msk [vmem:[#allocation3 + $0x338] sm:$0xff] %vm528, %v3355
        %3601 = vst [vmem:[#allocation3 + $0x340] sm:$0xff] %v3359
        %3602 = vst.msk [vmem:[#allocation3 + $0x348] sm:$0xff] %vm528, %v3361
        %3603 = vst [vmem:[#allocation3 + $0x350] sm:$0xff] %v3363
        %3604 = vst.msk [vmem:[#allocation3 + $0x358] sm:$0xff] %vm528, %v3365
        %3605 = vst [vmem:[#allocation3 + $0x360] sm:$0xff] %v3369
        %3606 = vst.msk [vmem:[#allocation3 + $0x368] sm:$0xff] %vm528, %v3371
        %3607 = vst [vmem:[#allocation3 + $0x370] sm:$0xff] %v3373
        %3608 = vst.msk [vmem:[#allocation3 + $0x378] sm:$0xff] %vm528, %v3375
        %3609 = vst [vmem:[#allocation3 + $0x380] sm:$0xff] %v3379
        %3610 = vst.msk [vmem:[#allocation3 + $0x388] sm:$0xff] %vm528, %v3381
        %3611 = vst [vmem:[#allocation3 + $0x390] sm:$0xff] %v3383
        %3612 = vst.msk [vmem:[#allocation3 + $0x398] sm:$0xff] %vm528, %v3385
        %3613 = vst [vmem:[#allocation3 + $0x3a0] sm:$0xff] %v3389
        %3614 = vst.msk [vmem:[#allocation3 + $0x3a8] sm:$0xff] %vm528, %v3391
        %3615 = vst [vmem:[#allocation3 + $0x3b0] sm:$0xff] %v3393
        %3616 = vst.msk [vmem:[#allocation3 + $0x3b8] sm:$0xff] %vm528, %v3395
        %3617 = vst [vmem:[#allocation3 + $0x3c0] sm:$0xff] %v3399
        %3618 = vst.msk [vmem:[#allocation3 + $0x3c8] sm:$0xff] %vm528, %v3401
        %3619 = vst [vmem:[#allocation3 + $0x3d0] sm:$0xff] %v3403
        %3620 = vst.msk [vmem:[#allocation3 + $0x3d8] sm:$0xff] %vm528, %v3405
        %3621 = vst [vmem:[#allocation3 + $0x3e0] sm:$0xff] %v3409
        %3622 = vst.msk [vmem:[#allocation3 + $0x3e8] sm:$0xff] %vm528, %v3411
        %3623 = vst [vmem:[#allocation3 + $0x3f0] sm:$0xff] %v3413
        %3624 = vst.msk [vmem:[#allocation3 + $0x3f8] sm:$0xff] %vm528, %v3415
        %3625 = vst [vmem:[#allocation3 + $0x400] sm:$0xff] %v3419
        %3626 = vst.msk [vmem:[#allocation3 + $0x408] sm:$0xff] %vm528, %v3421
        %3627 = vst [vmem:[#allocation3 + $0x410] sm:$0xff] %v3423
        %3628 = vst.msk [vmem:[#allocation3 + $0x418] sm:$0xff] %vm528, %v3425
        %3629 = vst [vmem:[#allocation3 + $0x420] sm:$0xff] %v3429
        %3630 = vst.msk [vmem:[#allocation3 + $0x428] sm:$0xff] %vm528, %v3431
        %3631 = vst [vmem:[#allocation3 + $0x430] sm:$0xff] %v3433
        %3632 = vst.msk [vmem:[#allocation3 + $0x438] sm:$0xff] %vm528, %v3435
        %3633 = vst [vmem:[#allocation3 + $0x440] sm:$0xff] %v3439
        %3634 = vst.msk [vmem:[#allocation3 + $0x448] sm:$0xff] %vm528, %v3441
        %3635 = vst [vmem:[#allocation3 + $0x450] sm:$0xff] %v3443
        %3636 = vst.msk [vmem:[#allocation3 + $0x458] sm:$0xff] %vm528, %v3445
        %3637 = vst [vmem:[#allocation3 + $0x460] sm:$0xff] %v3449
        %3638 = vst.msk [vmem:[#allocation3 + $0x468] sm:$0xff] %vm528, %v3451
        %3639 = vst [vmem:[#allocation3 + $0x470] sm:$0xff] %v3453
        %3640 = vst.msk [vmem:[#allocation3 + $0x478] sm:$0xff] %vm528, %v3455
        %3641 = vst [vmem:[#allocation3 + $0x480] sm:$0xff] %v3459
        %3642 = vst.msk [vmem:[#allocation3 + $0x488] sm:$0xff] %vm528, %v3461
        %3643 = vst [vmem:[#allocation3 + $0x490] sm:$0xff] %v3463
        %3644 = vst.msk [vmem:[#allocation3 + $0x498] sm:$0xff] %vm528, %v3465
        %3645 = vst [vmem:[#allocation3 + $0x4a0] sm:$0xff] %v3469
        %3646 = vst.msk [vmem:[#allocation3 + $0x4a8] sm:$0xff] %vm528, %v3471
        %3647 = vst [vmem:[#allocation3 + $0x4b0] sm:$0xff] %v3473
        %3648 = vst.msk [vmem:[#allocation3 + $0x4b8] sm:$0xff] %vm528, %v3475
        %3649 = vst [vmem:[#allocation3 + $0x4c0] sm:$0xff] %v3479
        %3650 = vst.msk [vmem:[#allocation3 + $0x4c8] sm:$0xff] %vm528, %v3481
        %3651 = vst [vmem:[#allocation3 + $0x4d0] sm:$0xff] %v3483
        %3652 = vst.msk [vmem:[#allocation3 + $0x4d8] sm:$0xff] %vm528, %v3485
        %3653 = vst [vmem:[#allocation3 + $0x4e0] sm:$0xff] %v3489
        %3654 = vst.msk [vmem:[#allocation3 + $0x4e8] sm:$0xff] %vm528, %v3491
        %3655 = vst [vmem:[#allocation3 + $0x4f0] sm:$0xff] %v3493
        %3656 = vst.msk [vmem:[#allocation3 + $0x4f8] sm:$0xff] %vm528, %v3495
        %s3657 = scalar_lea.vmem [#allocation2], 8
        %v3658 = vld [vmem:[%s3657] sm:$0xff]
        %v3659 = vld [vmem:[%s3657 + $0x8] sm:$0xff]
        %v3660 = vld [vmem:[%s3657 + $0x10] sm:$0xff]
        %v3661 = vld [vmem:[%s3657 + $0x18] sm:$0xff]
        %v3662 = vld [vmem:[%s3657 + $0x20] sm:$0xff]
        %v3663 = vld [vmem:[%s3657 + $0x28] sm:$0xff]
        %v3664 = vld [vmem:[%s3657 + $0x30] sm:$0xff]
        %v3665 = vld [vmem:[%s3657 + $0x38] sm:$0xff]
        %v3666 = vld [vmem:[%s3657 + $0x50] sm:$0xff]
        %v3667 = vld [vmem:[%s3657 + $0x58] sm:$0xff]
        %v3668 = vld [vmem:[%s3657 + $0x60] sm:$0xff]
        %v3669 = vld [vmem:[%s3657 + $0x68] sm:$0xff]
        %v3670 = vld [vmem:[%s3657 + $0x70] sm:$0xff]
        %v3671 = vld [vmem:[%s3657 + $0x78] sm:$0xff]
        %v3672 = vld [vmem:[%s3657 + $0x80] sm:$0xff]
        %v3673 = vld [vmem:[%s3657 + $0x88] sm:$0xff]
        %v3674 = vld [vmem:[%s3657 + $0xa0] sm:$0xff]
        %v3675 = vld [vmem:[%s3657 + $0xa8] sm:$0xff]
        %v3676 = vld [vmem:[%s3657 + $0xb0] sm:$0xff]
        %v3677 = vld [vmem:[%s3657 + $0xb8] sm:$0xff]
        %v3678 = vld [vmem:[%s3657 + $0xc0] sm:$0xff]
        %v3679 = vld [vmem:[%s3657 + $0xc8] sm:$0xff]
        %v3680 = vld [vmem:[%s3657 + $0xd0] sm:$0xff]
        %v3681 = vld [vmem:[%s3657 + $0xd8] sm:$0xff]
        %v3682 = vld [vmem:[%s3657 + $0xf0] sm:$0xff]
        %v3683 = vld [vmem:[%s3657 + $0xf8] sm:$0xff]
        %v3684 = vld [vmem:[%s3657 + $0x100] sm:$0xff]
        %v3685 = vld [vmem:[%s3657 + $0x108] sm:$0xff]
        %v3686 = vld [vmem:[%s3657 + $0x110] sm:$0xff]
        %v3687 = vld [vmem:[%s3657 + $0x118] sm:$0xff]
        %v3688 = vld [vmem:[%s3657 + $0x120] sm:$0xff]
        %v3689 = vld [vmem:[%s3657 + $0x128] sm:$0xff]
        %v3690 = vld [vmem:[%s3657 + $0x140] sm:$0xff]
        %v3691 = vld [vmem:[%s3657 + $0x148] sm:$0xff]
        %v3692 = vld [vmem:[%s3657 + $0x150] sm:$0xff]
        %v3693 = vld [vmem:[%s3657 + $0x158] sm:$0xff]
        %v3694 = vld [vmem:[%s3657 + $0x160] sm:$0xff]
        %v3695 = vld [vmem:[%s3657 + $0x168] sm:$0xff]
        %v3696 = vld [vmem:[%s3657 + $0x170] sm:$0xff]
        %v3697 = vld [vmem:[%s3657 + $0x178] sm:$0xff]
        %v3698 = vld [vmem:[%s3657 + $0x190] sm:$0xff]
        %v3699 = vld [vmem:[%s3657 + $0x198] sm:$0xff]
        %v3700 = vld [vmem:[%s3657 + $0x1a0] sm:$0xff]
        %v3701 = vld [vmem:[%s3657 + $0x1a8] sm:$0xff]
        %v3702 = vld [vmem:[%s3657 + $0x1b0] sm:$0xff]
        %v3703 = vld [vmem:[%s3657 + $0x1b8] sm:$0xff]
        %v3704 = vld [vmem:[%s3657 + $0x1c0] sm:$0xff]
        %v3705 = vld [vmem:[%s3657 + $0x1c8] sm:$0xff]
        %v3706 = vld [vmem:[%s3657 + $0x1e0] sm:$0xff]
        %v3707 = vld [vmem:[%s3657 + $0x1e8] sm:$0xff]
        %v3708 = vld [vmem:[%s3657 + $0x1f0] sm:$0xff]
        %v3709 = vld [vmem:[%s3657 + $0x1f8] sm:$0xff]
        %v3710 = vld [vmem:[%s3657 + $0x200] sm:$0xff]
        %v3711 = vld [vmem:[%s3657 + $0x208] sm:$0xff]
        %v3712 = vld [vmem:[%s3657 + $0x210] sm:$0xff]
        %v3713 = vld [vmem:[%s3657 + $0x218] sm:$0xff]
        %v3714 = vld [vmem:[%s3657 + $0x230] sm:$0xff]
        %v3715 = vld [vmem:[%s3657 + $0x238] sm:$0xff]
        %v3716 = vld [vmem:[%s3657 + $0x240] sm:$0xff]
        %v3717 = vld [vmem:[%s3657 + $0x248] sm:$0xff]
        %v3718 = vld [vmem:[%s3657 + $0x250] sm:$0xff]
        %v3719 = vld [vmem:[%s3657 + $0x258] sm:$0xff]
        %v3720 = vld [vmem:[%s3657 + $0x260] sm:$0xff]
        %v3721 = vld [vmem:[%s3657 + $0x268] sm:$0xff]
        %v3722 = vld [vmem:[%s3657 + $0x280] sm:$0xff]
        %v3723 = vld [vmem:[%s3657 + $0x288] sm:$0xff]
        %v3724 = vld [vmem:[%s3657 + $0x290] sm:$0xff]
        %v3725 = vld [vmem:[%s3657 + $0x298] sm:$0xff]
        %v3726 = vld [vmem:[%s3657 + $0x2a0] sm:$0xff]
        %v3727 = vld [vmem:[%s3657 + $0x2a8] sm:$0xff]
        %v3728 = vld [vmem:[%s3657 + $0x2b0] sm:$0xff]
        %v3729 = vld [vmem:[%s3657 + $0x2b8] sm:$0xff]
        %v3730 = vld [vmem:[%s3657 + $0x2d0] sm:$0xff]
        %v3731 = vld [vmem:[%s3657 + $0x2d8] sm:$0xff]
        %v3732 = vld [vmem:[%s3657 + $0x2e0] sm:$0xff]
        %v3733 = vld [vmem:[%s3657 + $0x2e8] sm:$0xff]
        %v3734 = vld [vmem:[%s3657 + $0x2f0] sm:$0xff]
        %v3735 = vld [vmem:[%s3657 + $0x2f8] sm:$0xff]
        %v3736 = vld [vmem:[%s3657 + $0x300] sm:$0xff]
        %v3737 = vld [vmem:[%s3657 + $0x308] sm:$0xff]
        %s3738 = scalar_lea.vmem [#allocation7], 192
        %v3739 = vld [vmem:[%s3738] sm:$0xff]
        %v3740 = vld [vmem:[%s3738 + $0x8] sm:$0xff]
        %v3741 = vld [vmem:[%s3738 + $0x10] sm:$0xff]
        %v3742 = vld [vmem:[%s3738 + $0x18] sm:$0xff]
        %v3743 = vld [vmem:[%s3738 + $0x20] sm:$0xff]
        %v3744 = vld [vmem:[%s3738 + $0x28] sm:$0xff]
        %v3745 = vld [vmem:[%s3738 + $0x30] sm:$0xff]
        %v3746 = vld [vmem:[%s3738 + $0x38] sm:$0xff]
        %v3747 = vld [vmem:[%s3738 + $0x40] sm:$0xff]
        %v3748 = vld [vmem:[%s3738 + $0x48] sm:$0xff]
        %v3749 = vld [vmem:[%s3738 + $0x50] sm:$0xff]
        %v3750 = vld [vmem:[%s3738 + $0x58] sm:$0xff]
        %v3751 = vld [vmem:[%s3738 + $0x60] sm:$0xff]
        %v3752 = vld [vmem:[%s3738 + $0x68] sm:$0xff]
        %v3753 = vld [vmem:[%s3738 + $0x70] sm:$0xff]
        %v3754 = vld [vmem:[%s3738 + $0x78] sm:$0xff]
        %v3755 = vld [vmem:[%s3738 + $0x80] sm:$0xff]
        %v3756 = vld [vmem:[%s3738 + $0x88] sm:$0xff]
        %v3757 = vld [vmem:[%s3738 + $0x90] sm:$0xff]
        %v3758 = vld [vmem:[%s3738 + $0x98] sm:$0xff]
        %v3759 = vld [vmem:[%s3738 + $0xa0] sm:$0xff]
        %v3760 = vld [vmem:[%s3738 + $0xa8] sm:$0xff]
        %v3761 = vld [vmem:[%s3738 + $0xb0] sm:$0xff]
        %v3762 = vld [vmem:[%s3738 + $0xb8] sm:$0xff]
        %v3843 = vunpack.c.l.b16 %v3658
        %v3844 = vunpack.c.h.b16 %v3658
        %v3845 = vunpack.c.l.b16 %v3659
        %v3846 = vunpack.c.h.b16 %v3659
        %v3847 = vunpack.c.l.b16 %v3660
        %v3848 = vunpack.c.h.b16 %v3660
        %v3849 = vunpack.c.l.b16 %v3661
        %v3850 = vunpack.c.h.b16 %v3661
        %v3851 = vunpack.c.l.b16 %v3662
        %v3852 = vunpack.c.h.b16 %v3662
        %v3853 = vunpack.c.l.b16 %v3663
        %v3854 = vunpack.c.h.b16 %v3663
        %v3855 = vunpack.c.l.b16 %v3664
        %v3856 = vunpack.c.h.b16 %v3664
        %v3857 = vunpack.c.l.b16 %v3665
        %v3858 = vunpack.c.h.b16 %v3665
        %v3859 = vunpack.c.l.b16 %v3666
        %v3860 = vunpack.c.h.b16 %v3666
        %v3861 = vunpack.c.l.b16 %v3667
        %v3862 = vunpack.c.h.b16 %v3667
        %v3863 = vunpack.c.l.b16 %v3668
        %v3864 = vunpack.c.h.b16 %v3668
        %v3865 = vunpack.c.l.b16 %v3669
        %v3866 = vunpack.c.h.b16 %v3669
        %v3867 = vunpack.c.l.b16 %v3670
        %v3868 = vunpack.c.h.b16 %v3670
        %v3869 = vunpack.c.l.b16 %v3671
        %v3870 = vunpack.c.h.b16 %v3671
        %v3871 = vunpack.c.l.b16 %v3672
        %v3872 = vunpack.c.h.b16 %v3672
        %v3873 = vunpack.c.l.b16 %v3673
        %v3874 = vunpack.c.h.b16 %v3673
        %v3875 = vunpack.c.l.b16 %v3674
        %v3876 = vunpack.c.h.b16 %v3674
        %v3877 = vunpack.c.l.b16 %v3675
        %v3878 = vunpack.c.h.b16 %v3675
        %v3879 = vunpack.c.l.b16 %v3676
        %v3880 = vunpack.c.h.b16 %v3676
        %v3881 = vunpack.c.l.b16 %v3677
        %v3882 = vunpack.c.h.b16 %v3677
        %v3883 = vunpack.c.l.b16 %v3678
        %v3884 = vunpack.c.h.b16 %v3678
        %v3885 = vunpack.c.l.b16 %v3679
        %v3886 = vunpack.c.h.b16 %v3679
        %v3887 = vunpack.c.l.b16 %v3680
        %v3888 = vunpack.c.h.b16 %v3680
        %v3889 = vunpack.c.l.b16 %v3681
        %v3890 = vunpack.c.h.b16 %v3681
        %v3891 = vunpack.c.l.b16 %v3682
        %v3892 = vunpack.c.h.b16 %v3682
        %v3893 = vunpack.c.l.b16 %v3683
        %v3894 = vunpack.c.h.b16 %v3683
        %v3895 = vunpack.c.l.b16 %v3684
        %v3896 = vunpack.c.h.b16 %v3684
        %v3897 = vunpack.c.l.b16 %v3685
        %v3898 = vunpack.c.h.b16 %v3685
        %v3899 = vunpack.c.l.b16 %v3686
        %v3900 = vunpack.c.h.b16 %v3686
        %v3901 = vunpack.c.l.b16 %v3687
        %v3902 = vunpack.c.h.b16 %v3687
        %v3903 = vunpack.c.l.b16 %v3688
        %v3904 = vunpack.c.h.b16 %v3688
        %v3905 = vunpack.c.l.b16 %v3689
        %v3906 = vunpack.c.h.b16 %v3689
        %v3907 = vunpack.c.l.b16 %v3690
        %v3908 = vunpack.c.h.b16 %v3690
        %v3909 = vunpack.c.l.b16 %v3691
        %v3910 = vunpack.c.h.b16 %v3691
        %v3911 = vunpack.c.l.b16 %v3692
        %v3912 = vunpack.c.h.b16 %v3692
        %v3913 = vunpack.c.l.b16 %v3693
        %v3914 = vunpack.c.h.b16 %v3693
        %v3915 = vunpack.c.l.b16 %v3694
        %v3916 = vunpack.c.h.b16 %v3694
        %v3917 = vunpack.c.l.b16 %v3695
        %v3918 = vunpack.c.h.b16 %v3695
        %v3919 = vunpack.c.l.b16 %v3696
        %v3920 = vunpack.c.h.b16 %v3696
        %v3921 = vunpack.c.l.b16 %v3697
        %v3922 = vunpack.c.h.b16 %v3697
        %v3923 = vunpack.c.l.b16 %v3698
        %v3924 = vunpack.c.h.b16 %v3698
        %v3925 = vunpack.c.l.b16 %v3699
        %v3926 = vunpack.c.h.b16 %v3699
        %v3927 = vunpack.c.l.b16 %v3700
        %v3928 = vunpack.c.h.b16 %v3700
        %v3929 = vunpack.c.l.b16 %v3701
        %v3930 = vunpack.c.h.b16 %v3701
        %v3931 = vunpack.c.l.b16 %v3702
        %v3932 = vunpack.c.h.b16 %v3702
        %v3933 = vunpack.c.l.b16 %v3703
        %v3934 = vunpack.c.h.b16 %v3703
        %v3935 = vunpack.c.l.b16 %v3704
        %v3936 = vunpack.c.h.b16 %v3704
        %v3937 = vunpack.c.l.b16 %v3705
        %v3938 = vunpack.c.h.b16 %v3705
        %v3939 = vunpack.c.l.b16 %v3706
        %v3940 = vunpack.c.h.b16 %v3706
        %v3941 = vunpack.c.l.b16 %v3707
        %v3942 = vunpack.c.h.b16 %v3707
        %v3943 = vunpack.c.l.b16 %v3708
        %v3944 = vunpack.c.h.b16 %v3708
        %v3945 = vunpack.c.l.b16 %v3709
        %v3946 = vunpack.c.h.b16 %v3709
        %v3947 = vunpack.c.l.b16 %v3710
        %v3948 = vunpack.c.h.b16 %v3710
        %v3949 = vunpack.c.l.b16 %v3711
        %v3950 = vunpack.c.h.b16 %v3711
        %v3951 = vunpack.c.l.b16 %v3712
        %v3952 = vunpack.c.h.b16 %v3712
        %v3953 = vunpack.c.l.b16 %v3713
        %v3954 = vunpack.c.h.b16 %v3713
        %v3955 = vunpack.c.l.b16 %v3714
        %v3956 = vunpack.c.h.b16 %v3714
        %v3957 = vunpack.c.l.b16 %v3715
        %v3958 = vunpack.c.h.b16 %v3715
        %v3959 = vunpack.c.l.b16 %v3716
        %v3960 = vunpack.c.h.b16 %v3716
        %v3961 = vunpack.c.l.b16 %v3717
        %v3962 = vunpack.c.h.b16 %v3717
        %v3963 = vunpack.c.l.b16 %v3718
        %v3964 = vunpack.c.h.b16 %v3718
        %v3965 = vunpack.c.l.b16 %v3719
        %v3966 = vunpack.c.h.b16 %v3719
        %v3967 = vunpack.c.l.b16 %v3720
        %v3968 = vunpack.c.h.b16 %v3720
        %v3969 = vunpack.c.l.b16 %v3721
        %v3970 = vunpack.c.h.b16 %v3721
        %v3971 = vunpack.c.l.b16 %v3722
        %v3972 = vunpack.c.h.b16 %v3722
        %v3973 = vunpack.c.l.b16 %v3723
        %v3974 = vunpack.c.h.b16 %v3723
        %v3975 = vunpack.c.l.b16 %v3724
        %v3976 = vunpack.c.h.b16 %v3724
        %v3977 = vunpack.c.l.b16 %v3725
        %v3978 = vunpack.c.h.b16 %v3725
        %v3979 = vunpack.c.l.b16 %v3726
        %v3980 = vunpack.c.h.b16 %v3726
        %v3981 = vunpack.c.l.b16 %v3727
        %v3982 = vunpack.c.h.b16 %v3727
        %v3983 = vunpack.c.l.b16 %v3728
        %v3984 = vunpack.c.h.b16 %v3728
        %v3985 = vunpack.c.l.b16 %v3729
        %v3986 = vunpack.c.h.b16 %v3729
        %v3987 = vunpack.c.l.b16 %v3730
        %v3988 = vunpack.c.h.b16 %v3730
        %v3989 = vunpack.c.l.b16 %v3731
        %v3990 = vunpack.c.h.b16 %v3731
        %v3991 = vunpack.c.l.b16 %v3732
        %v3992 = vunpack.c.h.b16 %v3732
        %v3993 = vunpack.c.l.b16 %v3733
        %v3994 = vunpack.c.h.b16 %v3733
        %v3995 = vunpack.c.l.b16 %v3734
        %v3996 = vunpack.c.h.b16 %v3734
        %v3997 = vunpack.c.l.b16 %v3735
        %v3998 = vunpack.c.h.b16 %v3735
        %v3999 = vunpack.c.l.b16 %v3736
        %v4000 = vunpack.c.h.b16 %v3736
        %v4001 = vunpack.c.l.b16 %v3737
        %v4002 = vunpack.c.h.b16 %v3737
        %v4003 = vpack.c.b16 %v3845, %v3843
        %v4004 = vpack.c.b16 %v3846, %v3844
        %v4005 = vpack.c.b16 %v3849, %v3847
        %v4006 = vpack.c.b16 %v3850, %v3848
        %v4007 = vpack.c.b16 %v3853, %v3851
        %v4008 = vpack.c.b16 %v3854, %v3852
        %v4009 = vpack.c.b16 %v3857, %v3855
        %v4010 = vpack.c.b16 %v3858, %v3856
        %v4011 = vpack.c.b16 %v3861, %v3859
        %v4012 = vpack.c.b16 %v3862, %v3860
        %v4013 = vpack.c.b16 %v3865, %v3863
        %v4014 = vpack.c.b16 %v3866, %v3864
        %v4015 = vpack.c.b16 %v3869, %v3867
        %v4016 = vpack.c.b16 %v3870, %v3868
        %v4017 = vpack.c.b16 %v3873, %v3871
        %v4018 = vpack.c.b16 %v3874, %v3872
        %v4019 = vpack.c.b16 %v3877, %v3875
        %v4020 = vpack.c.b16 %v3878, %v3876
        %v4021 = vpack.c.b16 %v3881, %v3879
        %v4022 = vpack.c.b16 %v3882, %v3880
        %v4023 = vpack.c.b16 %v3885, %v3883
        %v4024 = vpack.c.b16 %v3886, %v3884
        %v4025 = vpack.c.b16 %v3889, %v3887
        %v4026 = vpack.c.b16 %v3890, %v3888
        %v4027 = vpack.c.b16 %v3893, %v3891
        %v4028 = vpack.c.b16 %v3894, %v3892
        %v4029 = vpack.c.b16 %v3897, %v3895
        %v4030 = vpack.c.b16 %v3898, %v3896
        %v4031 = vpack.c.b16 %v3901, %v3899
        %v4032 = vpack.c.b16 %v3902, %v3900
        %v4033 = vpack.c.b16 %v3905, %v3903
        %v4034 = vpack.c.b16 %v3906, %v3904
        %v4035 = vpack.c.b16 %v3909, %v3907
        %v4036 = vpack.c.b16 %v3910, %v3908
        %v4037 = vpack.c.b16 %v3913, %v3911
        %v4038 = vpack.c.b16 %v3914, %v3912
        %v4039 = vpack.c.b16 %v3917, %v3915
        %v4040 = vpack.c.b16 %v3918, %v3916
        %v4041 = vpack.c.b16 %v3921, %v3919
        %v4042 = vpack.c.b16 %v3922, %v3920
        %v4043 = vpack.c.b16 %v3925, %v3923
        %v4044 = vpack.c.b16 %v3926, %v3924
        %v4045 = vpack.c.b16 %v3929, %v3927
        %v4046 = vpack.c.b16 %v3930, %v3928
        %v4047 = vpack.c.b16 %v3933, %v3931
        %v4048 = vpack.c.b16 %v3934, %v3932
        %v4049 = vpack.c.b16 %v3937, %v3935
        %v4050 = vpack.c.b16 %v3938, %v3936
        %v4051 = vpack.c.b16 %v3941, %v3939
        %v4052 = vpack.c.b16 %v3942, %v3940
        %v4053 = vpack.c.b16 %v3945, %v3943
        %v4054 = vpack.c.b16 %v3946, %v3944
        %v4055 = vpack.c.b16 %v3949, %v3947
        %v4056 = vpack.c.b16 %v3950, %v3948
        %v4057 = vpack.c.b16 %v3953, %v3951
        %v4058 = vpack.c.b16 %v3954, %v3952
        %v4059 = vpack.c.b16 %v3957, %v3955
        %v4060 = vpack.c.b16 %v3958, %v3956
        %v4061 = vpack.c.b16 %v3961, %v3959
        %v4062 = vpack.c.b16 %v3962, %v3960
        %v4063 = vpack.c.b16 %v3965, %v3963
        %v4064 = vpack.c.b16 %v3966, %v3964
        %v4065 = vpack.c.b16 %v3969, %v3967
        %v4066 = vpack.c.b16 %v3970, %v3968
        %v4067 = vpack.c.b16 %v3973, %v3971
        %v4068 = vpack.c.b16 %v3974, %v3972
        %v4069 = vpack.c.b16 %v3977, %v3975
        %v4070 = vpack.c.b16 %v3978, %v3976
        %v4071 = vpack.c.b16 %v3981, %v3979
        %v4072 = vpack.c.b16 %v3982, %v3980
        %v4073 = vpack.c.b16 %v3985, %v3983
        %v4074 = vpack.c.b16 %v3986, %v3984
        %v4075 = vpack.c.b16 %v3989, %v3987
        %v4076 = vpack.c.b16 %v3990, %v3988
        %v4077 = vpack.c.b16 %v3993, %v3991
        %v4078 = vpack.c.b16 %v3994, %v3992
        %v4079 = vpack.c.b16 %v3997, %v3995
        %v4080 = vpack.c.b16 %v3998, %v3996
        %v4081 = vpack.c.b16 %v4001, %v3999
        %v4082 = vpack.c.b16 %v4002, %v4000
        %v4147 = vunpack.c.l.b16 %v3739
        %v4148 = vunpack.c.h.b16 %v3739
        %v4149 = vunpack.c.l.b16 %v3740
        %v4150 = vunpack.c.h.b16 %v3740
        %v4151 = vunpack.c.l.b16 %v3741
        %v4152 = vunpack.c.h.b16 %v3741
        %v4153 = vunpack.c.l.b16 %v3742
        %v4154 = vunpack.c.h.b16 %v3742
        %v4155 = vunpack.c.l.b16 %v3743
        %v4156 = vunpack.c.h.b16 %v3743
        %v4157 = vunpack.c.l.b16 %v3744
        %v4158 = vunpack.c.h.b16 %v3744
        %v4159 = vunpack.c.l.b16 %v3745
        %v4160 = vunpack.c.h.b16 %v3745
        %v4161 = vunpack.c.l.b16 %v3746
        %v4162 = vunpack.c.h.b16 %v3746
        %v4163 = vunpack.c.l.b16 %v3747
        %v4164 = vunpack.c.h.b16 %v3747
        %v4165 = vunpack.c.l.b16 %v3748
        %v4166 = vunpack.c.h.b16 %v3748
        %v4167 = vunpack.c.l.b16 %v3749
        %v4168 = vunpack.c.h.b16 %v3749
        %v4169 = vunpack.c.l.b16 %v3750
        %v4170 = vunpack.c.h.b16 %v3750
        %v4171 = vunpack.c.l.b16 %v3751
        %v4172 = vunpack.c.h.b16 %v3751
        %v4173 = vunpack.c.l.b16 %v3752
        %v4174 = vunpack.c.h.b16 %v3752
        %v4175 = vunpack.c.l.b16 %v3753
        %v4176 = vunpack.c.h.b16 %v3753
        %v4177 = vunpack.c.l.b16 %v3754
        %v4178 = vunpack.c.h.b16 %v3754
        %v4179 = vunpack.c.l.b16 %v3755
        %v4180 = vunpack.c.h.b16 %v3755
        %v4181 = vunpack.c.l.b16 %v3756
        %v4182 = vunpack.c.h.b16 %v3756
        %v4183 = vunpack.c.l.b16 %v3757
        %v4184 = vunpack.c.h.b16 %v3757
        %v4185 = vunpack.c.l.b16 %v3758
        %v4186 = vunpack.c.h.b16 %v3758
        %v4187 = vunpack.c.l.b16 %v3759
        %v4188 = vunpack.c.h.b16 %v3759
        %v4189 = vunpack.c.l.b16 %v3760
        %v4190 = vunpack.c.h.b16 %v3760
        %v4191 = vunpack.c.l.b16 %v3761
        %v4192 = vunpack.c.h.b16 %v3761
        %v4193 = vunpack.c.l.b16 %v3762
        %v4194 = vunpack.c.h.b16 %v3762
        %v4195 = vpack.c.b16 %v4149, %v4147
        %v4196 = vpack.c.b16 %v4150, %v4148
        %v4197 = vpack.c.b16 %v4153, %v4151
        %v4198 = vpack.c.b16 %v4154, %v4152
        %v4199 = vpack.c.b16 %v4157, %v4155
        %v4200 = vpack.c.b16 %v4158, %v4156
        %v4201 = vpack.c.b16 %v4161, %v4159
        %v4202 = vpack.c.b16 %v4162, %v4160
        %v4203 = vpack.c.b16 %v4165, %v4163
        %v4204 = vpack.c.b16 %v4166, %v4164
        %v4205 = vpack.c.b16 %v4169, %v4167
        %v4206 = vpack.c.b16 %v4170, %v4168
        %v4207 = vpack.c.b16 %v4173, %v4171
        %v4208 = vpack.c.b16 %v4174, %v4172
        %v4209 = vpack.c.b16 %v4177, %v4175
        %v4210 = vpack.c.b16 %v4178, %v4176
        %v4211 = vpack.c.b16 %v4181, %v4179
        %v4212 = vpack.c.b16 %v4182, %v4180
        %v4213 = vpack.c.b16 %v4185, %v4183
        %v4214 = vpack.c.b16 %v4186, %v4184
        %v4215 = vpack.c.b16 %v4189, %v4187
        %v4216 = vpack.c.b16 %v4190, %v4188
        %v4217 = vpack.c.b16 %v4193, %v4191
        %v4218 = vpack.c.b16 %v4194, %v4192
        %v4244 = vsel %vm528, %v4004, 0
        %v4247 = vsel %vm528, %v4006, 0
        %v4250 = vsel %vm528, %v4008, 0
        %v4253 = vsel %vm528, %v4010, 0
        %v4256 = vsel %vm528, %v4012, 0
        %v4259 = vsel %vm528, %v4014, 0
        %v4262 = vsel %vm528, %v4016, 0
        %v4265 = vsel %vm528, %v4018, 0
        %v4268 = vsel %vm528, %v4020, 0
        %v4271 = vsel %vm528, %v4022, 0
        %v4274 = vsel %vm528, %v4024, 0
        %v4277 = vsel %vm528, %v4026, 0
        %v4280 = vsel %vm528, %v4028, 0
        %v4283 = vsel %vm528, %v4030, 0
        %v4286 = vsel %vm528, %v4032, 0
        %v4289 = vsel %vm528, %v4034, 0
        %v4292 = vsel %vm528, %v4036, 0
        %v4295 = vsel %vm528, %v4038, 0
        %v4298 = vsel %vm528, %v4040, 0
        %v4301 = vsel %vm528, %v4042, 0
        %v4304 = vsel %vm528, %v4044, 0
        %v4307 = vsel %vm528, %v4046, 0
        %v4310 = vsel %vm528, %v4048, 0
        %v4313 = vsel %vm528, %v4050, 0
        %v4316 = vsel %vm528, %v4052, 0
        %v4319 = vsel %vm528, %v4054, 0
        %v4322 = vsel %vm528, %v4056, 0
        %v4325 = vsel %vm528, %v4058, 0
        %v4328 = vsel %vm528, %v4060, 0
        %v4331 = vsel %vm528, %v4062, 0
        %v4334 = vsel %vm528, %v4064, 0
        %v4337 = vsel %vm528, %v4066, 0
        %v4340 = vsel %vm528, %v4068, 0
        %v4343 = vsel %vm528, %v4070, 0
        %v4346 = vsel %vm528, %v4072, 0
        %v4349 = vsel %vm528, %v4074, 0
        %v4352 = vsel %vm528, %v4076, 0
        %v4355 = vsel %vm528, %v4078, 0
        %v4358 = vsel %vm528, %v4080, 0
        %v4361 = vsel %vm528, %v4082, 0
        %4363 = vmatprep.subr.bf16.mxu0 %v4196
        %4364 = vmatpush1.bf16.msra.mxu0 %v4195
        %4365 = vmatprep.subr.bf16.mxu0 %v4198
        %4366 = vmatpush1.bf16.msra.mxu0 %v4197
        %4367 = vmatprep.subr.bf16.mxu0 %v4200
        %4368 = vmatpush1.bf16.msra.mxu0 %v4199
        %4369 = vmatprep.subr.bf16.mxu0 %v4202
        %4370 = vmatpush1.bf16.msra.mxu0 %v4201
        %4371 = vmatprep.subr.bf16.mxu0 %v4204
        %4372 = vmatpush1.bf16.msra.mxu0 %v4203
        %4373 = vmatprep.subr.bf16.mxu0 %v4206
        %4374 = vmatpush1.bf16.msra.mxu0 %v4205
        %4375 = vmatprep.subr.bf16.mxu0 %v4208
        %4376 = vmatpush1.bf16.msra.mxu0 %v4207
        %4377 = vmatprep.subr.bf16.mxu0 %v4210
        %4378 = vmatpush1.bf16.msra.mxu0 %v4209
        %4379 = vmatprep.subr.bf16.mxu0 %v4212
        %4380 = vmatpush1.bf16.msra.mxu0 %v4211
        %4381 = vmatprep.subr.bf16.mxu0 %v4214
        %4382 = vmatpush1.bf16.msra.mxu0 %v4213
        %4383 = vmatprep.subr.bf16.mxu0 %v4216
        %4384 = vmatpush1.bf16.msra.mxu0 %v4215
        %4385 = vmatprep.subr.bf16.mxu0 %v4218
        %4386 = vmatpush1.bf16.msra.mxu0 %v4217
        %4387 = vmatprep.subr.bf16.mxu0 0
        %4388 = vmatpush1.bf16.msra.mxu0 0
        %4389 = vmatprep.subr.bf16.mxu0 0
        %4390 = vmatpush1.bf16.msra.mxu0 0
        %4391 = vmatprep.subr.bf16.mxu0 0
        %4392 = vmatpush1.bf16.msra.mxu0 0
        %4393 = vmatprep.subr.bf16.mxu0 0
        %4394 = vmatpush1.bf16.msra.mxu0 0
        %4395 = vmatprep.mubr.bf16.mxu0 %v4244
        %4396 = vmatmul.mubr.bf16.gmra.mrb[0].mxu0 %v4003
        %v4397 = vpop.f32.mrb[0].mxu0
        %v4398 = vadd.f32 0.0, %v4397
        %v4399 = vpop.f32.mrb[0].mxu0
        %v4400 = vadd.f32 0.0, %v4399
        %v4401 = vpop.f32.mrb[0].mxu0
        %v4402 = vadd.f32 0.0, %v4401
        %v4403 = vpop.f32.mrb[0].mxu0
        %v4404 = vadd.f32 0.0, %v4403
        %4405 = vmatprep.mubr.bf16.mxu0 %v4247
        %4406 = vmatmul.mubr.bf16.gmra.mrb[0].mxu0 %v4005
        %v4407 = vpop.f32.mrb[0].mxu0
        %v4408 = vadd.f32 0.0, %v4407
        %v4409 = vpop.f32.mrb[0].mxu0
        %v4410 = vadd.f32 0.0, %v4409
        %v4411 = vpop.f32.mrb[0].mxu0
        %v4412 = vadd.f32 0.0, %v4411
        %v4413 = vpop.f32.mrb[0].mxu0
        %v4414 = vadd.f32 0.0, %v4413
        %4415 = vmatprep.mubr.bf16.mxu0 %v4250
        %4416 = vmatmul.mubr.bf16.gmra.mrb[0].mxu0 %v4007
        %v4417 = vpop.f32.mrb[0].mxu0
        %v4418 = vadd.f32 0.0, %v4417
        %v4419 = vpop.f32.mrb[0].mxu0
        %v4420 = vadd.f32 0.0, %v4419
        %v4421 = vpop.f32.mrb[0].mxu0
        %v4422 = vadd.f32 0.0, %v4421
        %v4423 = vpop.f32.mrb[0].mxu0
        %v4424 = vadd.f32 0.0, %v4423
        %4425 = vmatprep.mubr.bf16.mxu0 %v4253
        %4426 = vmatmul.mubr.bf16.gmra.mrb[0].mxu0 %v4009
        %v4427 = vpop.f32.mrb[0].mxu0
        %v4428 = vadd.f32 0.0, %v4427
        %v4429 = vpop.f32.mrb[0].mxu0
        %v4430 = vadd.f32 0.0, %v4429
        %v4431 = vpop.f32.mrb[0].mxu0
        %v4432 = vadd.f32 0.0, %v4431
        %v4433 = vpop.f32.mrb[0].mxu0
        %v4434 = vadd.f32 0.0, %v4433
        %4435 = vmatprep.mubr.bf16.mxu0 %v4256
        %4436 = vmatmul.mubr.bf16.gmra.mrb[0].mxu0 %v4011
        %v4437 = vpop.f32.mrb[0].mxu0
        %v4438 = vadd.f32 0.0, %v4437
        %v4439 = vpop.f32.mrb[0].mxu0
        %v4440 = vadd.f32 0.0, %v4439
        %v4441 = vpop.f32.mrb[0].mxu0
        %v4442 = vadd.f32 0.0, %v4441
        %v4443 = vpop.f32.mrb[0].mxu0
        %v4444 = vadd.f32 0.0, %v4443
        %4445 = vmatprep.mubr.bf16.mxu0 %v4259
        %4446 = vmatmul.mubr.bf16.gmra.mrb[0].mxu0 %v4013
        %v4447 = vpop.f32.mrb[0].mxu0
        %v4448 = vadd.f32 0.0, %v4447
        %v4449 = vpop.f32.mrb[0].mxu0
        %v4450 = vadd.f32 0.0, %v4449
        %v4451 = vpop.f32.mrb[0].mxu0
        %v4452 = vadd.f32 0.0, %v4451
        %v4453 = vpop.f32.mrb[0].mxu0
        %v4454 = vadd.f32 0.0, %v4453
        %4455 = vmatprep.mubr.bf16.mxu0 %v4262
        %4456 = vmatmul.mubr.bf16.gmra.mrb[0].mxu0 %v4015
        %v4457 = vpop.f32.mrb[0].mxu0
        %v4458 = vadd.f32 0.0, %v4457
        %v4459 = vpop.f32.mrb[0].mxu0
        %v4460 = vadd.f32 0.0, %v4459
        %v4461 = vpop.f32.mrb[0].mxu0
        %v4462 = vadd.f32 0.0, %v4461
        %v4463 = vpop.f32.mrb[0].mxu0
        %v4464 = vadd.f32 0.0, %v4463
        %4465 = vmatprep.mubr.bf16.mxu0 %v4265
        %4466 = vmatmul.mubr.bf16.gmra.mrb[0].mxu0 %v4017
        %v4467 = vpop.f32.mrb[0].mxu0
        %v4468 = vadd.f32 0.0, %v4467
        %v4469 = vpop.f32.mrb[0].mxu0
        %v4470 = vadd.f32 0.0, %v4469
        %v4471 = vpop.f32.mrb[0].mxu0
        %v4472 = vadd.f32 0.0, %v4471
        %v4473 = vpop.f32.mrb[0].mxu0
        %v4474 = vadd.f32 0.0, %v4473
        %4475 = vmatprep.mubr.bf16.mxu0 %v4268
        %4476 = vmatmul.mubr.bf16.gmra.mrb[0].mxu0 %v4019
        %v4477 = vpop.f32.mrb[0].mxu0
        %v4478 = vadd.f32 0.0, %v4477
        %v4479 = vpop.f32.mrb[0].mxu0
        %v4480 = vadd.f32 0.0, %v4479
        %v4481 = vpop.f32.mrb[0].mxu0
        %v4482 = vadd.f32 0.0, %v4481
        %v4483 = vpop.f32.mrb[0].mxu0
        %v4484 = vadd.f32 0.0, %v4483
        %4485 = vmatprep.mubr.bf16.mxu0 %v4271
        %4486 = vmatmul.mubr.bf16.gmra.mrb[0].mxu0 %v4021
        %v4487 = vpop.f32.mrb[0].mxu0
        %v4488 = vadd.f32 0.0, %v4487
        %v4489 = vpop.f32.mrb[0].mxu0
        %v4490 = vadd.f32 0.0, %v4489
        %v4491 = vpop.f32.mrb[0].mxu0
        %v4492 = vadd.f32 0.0, %v4491
        %v4493 = vpop.f32.mrb[0].mxu0
        %v4494 = vadd.f32 0.0, %v4493
        %4495 = vmatprep.mubr.bf16.mxu0 %v4274
        %4496 = vmatmul.mubr.bf16.gmra.mrb[0].mxu0 %v4023
        %v4497 = vpop.f32.mrb[0].mxu0
        %v4498 = vadd.f32 0.0, %v4497
        %v4499 = vpop.f32.mrb[0].mxu0
        %v4500 = vadd.f32 0.0, %v4499
        %v4501 = vpop.f32.mrb[0].mxu0
        %v4502 = vadd.f32 0.0, %v4501
        %v4503 = vpop.f32.mrb[0].mxu0
        %v4504 = vadd.f32 0.0, %v4503
        %4505 = vmatprep.mubr.bf16.mxu0 %v4277
        %4506 = vmatmul.mubr.bf16.gmra.mrb[0].mxu0 %v4025
        %v4507 = vpop.f32.mrb[0].mxu0
        %v4508 = vadd.f32 0.0, %v4507
        %v4509 = vpop.f32.mrb[0].mxu0
        %v4510 = vadd.f32 0.0, %v4509
        %v4511 = vpop.f32.mrb[0].mxu0
        %v4512 = vadd.f32 0.0, %v4511
        %v4513 = vpop.f32.mrb[0].mxu0
        %v4514 = vadd.f32 0.0, %v4513
        %4515 = vmatprep.mubr.bf16.mxu0 %v4280
        %4516 = vmatmul.mubr.bf16.gmra.mrb[0].mxu0 %v4027
        %v4517 = vpop.f32.mrb[0].mxu0
        %v4518 = vadd.f32 0.0, %v4517
        %v4519 = vpop.f32.mrb[0].mxu0
        %v4520 = vadd.f32 0.0, %v4519
        %v4521 = vpop.f32.mrb[0].mxu0
        %v4522 = vadd.f32 0.0, %v4521
        %v4523 = vpop.f32.mrb[0].mxu0
        %v4524 = vadd.f32 0.0, %v4523
        %4525 = vmatprep.mubr.bf16.mxu0 %v4283
        %4526 = vmatmul.mubr.bf16.gmra.mrb[0].mxu0 %v4029
        %v4527 = vpop.f32.mrb[0].mxu0
        %v4528 = vadd.f32 0.0, %v4527
        %v4529 = vpop.f32.mrb[0].mxu0
        %v4530 = vadd.f32 0.0, %v4529
        %v4531 = vpop.f32.mrb[0].mxu0
        %v4532 = vadd.f32 0.0, %v4531
        %v4533 = vpop.f32.mrb[0].mxu0
        %v4534 = vadd.f32 0.0, %v4533
        %4535 = vmatprep.mubr.bf16.mxu0 %v4286
        %4536 = vmatmul.mubr.bf16.gmra.mrb[0].mxu0 %v4031
        %v4537 = vpop.f32.mrb[0].mxu0
        %v4538 = vadd.f32 0.0, %v4537
        %v4539 = vpop.f32.mrb[0].mxu0
        %v4540 = vadd.f32 0.0, %v4539
        %v4541 = vpop.f32.mrb[0].mxu0
        %v4542 = vadd.f32 0.0, %v4541
        %v4543 = vpop.f32.mrb[0].mxu0
        %v4544 = vadd.f32 0.0, %v4543
        %4545 = vmatprep.mubr.bf16.mxu0 %v4289
        %4546 = vmatmul.mubr.bf16.gmra.mrb[0].mxu0 %v4033
        %v4547 = vpop.f32.mrb[0].mxu0
        %v4548 = vadd.f32 0.0, %v4547
        %v4549 = vpop.f32.mrb[0].mxu0
        %v4550 = vadd.f32 0.0, %v4549
        %v4551 = vpop.f32.mrb[0].mxu0
        %v4552 = vadd.f32 0.0, %v4551
        %v4553 = vpop.f32.mrb[0].mxu0
        %v4554 = vadd.f32 0.0, %v4553
        %4555 = vmatprep.mubr.bf16.mxu0 %v4292
        %4556 = vmatmul.mubr.bf16.gmra.mrb[0].mxu0 %v4035
        %v4557 = vpop.f32.mrb[0].mxu0
        %v4558 = vadd.f32 0.0, %v4557
        %v4559 = vpop.f32.mrb[0].mxu0
        %v4560 = vadd.f32 0.0, %v4559
        %v4561 = vpop.f32.mrb[0].mxu0
        %v4562 = vadd.f32 0.0, %v4561
        %v4563 = vpop.f32.mrb[0].mxu0
        %v4564 = vadd.f32 0.0, %v4563
        %4565 = vmatprep.mubr.bf16.mxu0 %v4295
        %4566 = vmatmul.mubr.bf16.gmra.mrb[0].mxu0 %v4037
        %v4567 = vpop.f32.mrb[0].mxu0
        %v4568 = vadd.f32 0.0, %v4567
        %v4569 = vpop.f32.mrb[0].mxu0
        %v4570 = vadd.f32 0.0, %v4569
        %v4571 = vpop.f32.mrb[0].mxu0
        %v4572 = vadd.f32 0.0, %v4571
        %v4573 = vpop.f32.mrb[0].mxu0
        %v4574 = vadd.f32 0.0, %v4573
        %4575 = vmatprep.mubr.bf16.mxu0 %v4298
        %4576 = vmatmul.mubr.bf16.gmra.mrb[0].mxu0 %v4039
        %v4577 = vpop.f32.mrb[0].mxu0
        %v4578 = vadd.f32 0.0, %v4577
        %v4579 = vpop.f32.mrb[0].mxu0
        %v4580 = vadd.f32 0.0, %v4579
        %v4581 = vpop.f32.mrb[0].mxu0
        %v4582 = vadd.f32 0.0, %v4581
        %v4583 = vpop.f32.mrb[0].mxu0
        %v4584 = vadd.f32 0.0, %v4583
        %4585 = vmatprep.mubr.bf16.mxu0 %v4301
        %4586 = vmatmul.mubr.bf16.gmra.mrb[0].mxu0 %v4041
        %v4587 = vpop.f32.mrb[0].mxu0
        %v4588 = vadd.f32 0.0, %v4587
        %v4589 = vpop.f32.mrb[0].mxu0
        %v4590 = vadd.f32 0.0, %v4589
        %v4591 = vpop.f32.mrb[0].mxu0
        %v4592 = vadd.f32 0.0, %v4591
        %v4593 = vpop.f32.mrb[0].mxu0
        %v4594 = vadd.f32 0.0, %v4593
        %4595 = vmatprep.mubr.bf16.mxu0 %v4304
        %4596 = vmatmul.mubr.bf16.gmra.mrb[0].mxu0 %v4043
        %v4597 = vpop.f32.mrb[0].mxu0
        %v4598 = vadd.f32 0.0, %v4597
        %v4599 = vpop.f32.mrb[0].mxu0
        %v4600 = vadd.f32 0.0, %v4599
        %v4601 = vpop.f32.mrb[0].mxu0
        %v4602 = vadd.f32 0.0, %v4601
        %v4603 = vpop.f32.mrb[0].mxu0
        %v4604 = vadd.f32 0.0, %v4603
        %4605 = vmatprep.mubr.bf16.mxu0 %v4307
        %4606 = vmatmul.mubr.bf16.gmra.mrb[0].mxu0 %v4045
        %v4607 = vpop.f32.mrb[0].mxu0
        %v4608 = vadd.f32 0.0, %v4607
        %v4609 = vpop.f32.mrb[0].mxu0
        %v4610 = vadd.f32 0.0, %v4609
        %v4611 = vpop.f32.mrb[0].mxu0
        %v4612 = vadd.f32 0.0, %v4611
        %v4613 = vpop.f32.mrb[0].mxu0
        %v4614 = vadd.f32 0.0, %v4613
        %4615 = vmatprep.mubr.bf16.mxu0 %v4310
        %4616 = vmatmul.mubr.bf16.gmra.mrb[0].mxu0 %v4047
        %v4617 = vpop.f32.mrb[0].mxu0
        %v4618 = vadd.f32 0.0, %v4617
        %v4619 = vpop.f32.mrb[0].mxu0
        %v4620 = vadd.f32 0.0, %v4619
        %v4621 = vpop.f32.mrb[0].mxu0
        %v4622 = vadd.f32 0.0, %v4621
        %v4623 = vpop.f32.mrb[0].mxu0
        %v4624 = vadd.f32 0.0, %v4623
        %4625 = vmatprep.mubr.bf16.mxu0 %v4313
        %4626 = vmatmul.mubr.bf16.gmra.mrb[0].mxu0 %v4049
        %v4627 = vpop.f32.mrb[0].mxu0
        %v4628 = vadd.f32 0.0, %v4627
        %v4629 = vpop.f32.mrb[0].mxu0
        %v4630 = vadd.f32 0.0, %v4629
        %v4631 = vpop.f32.mrb[0].mxu0
        %v4632 = vadd.f32 0.0, %v4631
        %v4633 = vpop.f32.mrb[0].mxu0
        %v4634 = vadd.f32 0.0, %v4633
        %4635 = vmatprep.mubr.bf16.mxu0 %v4316
        %4636 = vmatmul.mubr.bf16.gmra.mrb[0].mxu0 %v4051
        %v4637 = vpop.f32.mrb[0].mxu0
        %v4638 = vadd.f32 0.0, %v4637
        %v4639 = vpop.f32.mrb[0].mxu0
        %v4640 = vadd.f32 0.0, %v4639
        %v4641 = vpop.f32.mrb[0].mxu0
        %v4642 = vadd.f32 0.0, %v4641
        %v4643 = vpop.f32.mrb[0].mxu0
        %v4644 = vadd.f32 0.0, %v4643
        %4645 = vmatprep.mubr.bf16.mxu0 %v4319
        %4646 = vmatmul.mubr.bf16.gmra.mrb[0].mxu0 %v4053
        %v4647 = vpop.f32.mrb[0].mxu0
        %v4648 = vadd.f32 0.0, %v4647
        %v4649 = vpop.f32.mrb[0].mxu0
        %v4650 = vadd.f32 0.0, %v4649
        %v4651 = vpop.f32.mrb[0].mxu0
        %v4652 = vadd.f32 0.0, %v4651
        %v4653 = vpop.f32.mrb[0].mxu0
        %v4654 = vadd.f32 0.0, %v4653
        %4655 = vmatprep.mubr.bf16.mxu0 %v4322
        %4656 = vmatmul.mubr.bf16.gmra.mrb[0].mxu0 %v4055
        %v4657 = vpop.f32.mrb[0].mxu0
        %v4658 = vadd.f32 0.0, %v4657
        %v4659 = vpop.f32.mrb[0].mxu0
        %v4660 = vadd.f32 0.0, %v4659
        %v4661 = vpop.f32.mrb[0].mxu0
        %v4662 = vadd.f32 0.0, %v4661
        %v4663 = vpop.f32.mrb[0].mxu0
        %v4664 = vadd.f32 0.0, %v4663
        %4665 = vmatprep.mubr.bf16.mxu0 %v4325
        %4666 = vmatmul.mubr.bf16.gmra.mrb[0].mxu0 %v4057
        %v4667 = vpop.f32.mrb[0].mxu0
        %v4668 = vadd.f32 0.0, %v4667
        %v4669 = vpop.f32.mrb[0].mxu0
        %v4670 = vadd.f32 0.0, %v4669
        %v4671 = vpop.f32.mrb[0].mxu0
        %v4672 = vadd.f32 0.0, %v4671
        %v4673 = vpop.f32.mrb[0].mxu0
        %v4674 = vadd.f32 0.0, %v4673
        %4675 = vmatprep.mubr.bf16.mxu0 %v4328
        %4676 = vmatmul.mubr.bf16.gmra.mrb[0].mxu0 %v4059
        %v4677 = vpop.f32.mrb[0].mxu0
        %v4678 = vadd.f32 0.0, %v4677
        %v4679 = vpop.f32.mrb[0].mxu0
        %v4680 = vadd.f32 0.0, %v4679
        %v4681 = vpop.f32.mrb[0].mxu0
        %v4682 = vadd.f32 0.0, %v4681
        %v4683 = vpop.f32.mrb[0].mxu0
        %v4684 = vadd.f32 0.0, %v4683
        %4685 = vmatprep.mubr.bf16.mxu0 %v4331
        %4686 = vmatmul.mubr.bf16.gmra.mrb[0].mxu0 %v4061
        %v4687 = vpop.f32.mrb[0].mxu0
        %v4688 = vadd.f32 0.0, %v4687
        %v4689 = vpop.f32.mrb[0].mxu0
        %v4690 = vadd.f32 0.0, %v4689
        %v4691 = vpop.f32.mrb[0].mxu0
        %v4692 = vadd.f32 0.0, %v4691
        %v4693 = vpop.f32.mrb[0].mxu0
        %v4694 = vadd.f32 0.0, %v4693
        %4695 = vmatprep.mubr.bf16.mxu0 %v4334
        %4696 = vmatmul.mubr.bf16.gmra.mrb[0].mxu0 %v4063
        %v4697 = vpop.f32.mrb[0].mxu0
        %v4698 = vadd.f32 0.0, %v4697
        %v4699 = vpop.f32.mrb[0].mxu0
        %v4700 = vadd.f32 0.0, %v4699
        %v4701 = vpop.f32.mrb[0].mxu0
        %v4702 = vadd.f32 0.0, %v4701
        %v4703 = vpop.f32.mrb[0].mxu0
        %v4704 = vadd.f32 0.0, %v4703
        %4705 = vmatprep.mubr.bf16.mxu0 %v4337
        %4706 = vmatmul.mubr.bf16.gmra.mrb[0].mxu0 %v4065
        %v4707 = vpop.f32.mrb[0].mxu0
        %v4708 = vadd.f32 0.0, %v4707
        %v4709 = vpop.f32.mrb[0].mxu0
        %v4710 = vadd.f32 0.0, %v4709
        %v4711 = vpop.f32.mrb[0].mxu0
        %v4712 = vadd.f32 0.0, %v4711
        %v4713 = vpop.f32.mrb[0].mxu0
        %v4714 = vadd.f32 0.0, %v4713
        %4715 = vmatprep.mubr.bf16.mxu0 %v4340
        %4716 = vmatmul.mubr.bf16.gmra.mrb[0].mxu0 %v4067
        %v4717 = vpop.f32.mrb[0].mxu0
        %v4718 = vadd.f32 0.0, %v4717
        %v4719 = vpop.f32.mrb[0].mxu0
        %v4720 = vadd.f32 0.0, %v4719
        %v4721 = vpop.f32.mrb[0].mxu0
        %v4722 = vadd.f32 0.0, %v4721
        %v4723 = vpop.f32.mrb[0].mxu0
        %v4724 = vadd.f32 0.0, %v4723
        %4725 = vmatprep.mubr.bf16.mxu0 %v4343
        %4726 = vmatmul.mubr.bf16.gmra.mrb[0].mxu0 %v4069
        %v4727 = vpop.f32.mrb[0].mxu0
        %v4728 = vadd.f32 0.0, %v4727
        %v4729 = vpop.f32.mrb[0].mxu0
        %v4730 = vadd.f32 0.0, %v4729
        %v4731 = vpop.f32.mrb[0].mxu0
        %v4732 = vadd.f32 0.0, %v4731
        %v4733 = vpop.f32.mrb[0].mxu0
        %v4734 = vadd.f32 0.0, %v4733
        %4735 = vmatprep.mubr.bf16.mxu0 %v4346
        %4736 = vmatmul.mubr.bf16.gmra.mrb[0].mxu0 %v4071
        %v4737 = vpop.f32.mrb[0].mxu0
        %v4738 = vadd.f32 0.0, %v4737
        %v4739 = vpop.f32.mrb[0].mxu0
        %v4740 = vadd.f32 0.0, %v4739
        %v4741 = vpop.f32.mrb[0].mxu0
        %v4742 = vadd.f32 0.0, %v4741
        %v4743 = vpop.f32.mrb[0].mxu0
        %v4744 = vadd.f32 0.0, %v4743
        %4745 = vmatprep.mubr.bf16.mxu0 %v4349
        %4746 = vmatmul.mubr.bf16.gmra.mrb[0].mxu0 %v4073
        %v4747 = vpop.f32.mrb[0].mxu0
        %v4748 = vadd.f32 0.0, %v4747
        %v4749 = vpop.f32.mrb[0].mxu0
        %v4750 = vadd.f32 0.0, %v4749
        %v4751 = vpop.f32.mrb[0].mxu0
        %v4752 = vadd.f32 0.0, %v4751
        %v4753 = vpop.f32.mrb[0].mxu0
        %v4754 = vadd.f32 0.0, %v4753
        %4755 = vmatprep.mubr.bf16.mxu0 %v4352
        %4756 = vmatmul.mubr.bf16.gmra.mrb[0].mxu0 %v4075
        %v4757 = vpop.f32.mrb[0].mxu0
        %v4758 = vadd.f32 0.0, %v4757
        %v4759 = vpop.f32.mrb[0].mxu0
        %v4760 = vadd.f32 0.0, %v4759
        %v4761 = vpop.f32.mrb[0].mxu0
        %v4762 = vadd.f32 0.0, %v4761
        %v4763 = vpop.f32.mrb[0].mxu0
        %v4764 = vadd.f32 0.0, %v4763
        %4765 = vmatprep.mubr.bf16.mxu0 %v4355
        %4766 = vmatmul.mubr.bf16.gmra.mrb[0].mxu0 %v4077
        %v4767 = vpop.f32.mrb[0].mxu0
        %v4768 = vadd.f32 0.0, %v4767
        %v4769 = vpop.f32.mrb[0].mxu0
        %v4770 = vadd.f32 0.0, %v4769
        %v4771 = vpop.f32.mrb[0].mxu0
        %v4772 = vadd.f32 0.0, %v4771
        %v4773 = vpop.f32.mrb[0].mxu0
        %v4774 = vadd.f32 0.0, %v4773
        %4775 = vmatprep.mubr.bf16.mxu0 %v4358
        %4776 = vmatmul.mubr.bf16.gmra.mrb[0].mxu0 %v4079
        %v4777 = vpop.f32.mrb[0].mxu0
        %v4778 = vadd.f32 0.0, %v4777
        %v4779 = vpop.f32.mrb[0].mxu0
        %v4780 = vadd.f32 0.0, %v4779
        %v4781 = vpop.f32.mrb[0].mxu0
        %v4782 = vadd.f32 0.0, %v4781
        %v4783 = vpop.f32.mrb[0].mxu0
        %v4784 = vadd.f32 0.0, %v4783
        %4785 = vmatprep.mubr.bf16.mxu0 %v4361
        %4786 = vmatmul.mubr.bf16.gmra.mrb[0].mxu0 %v4081
        %v4787 = vpop.f32.mrb[0].mxu0
        %v4788 = vadd.f32 0.0, %v4787
        %v4789 = vpop.f32.mrb[0].mxu0
        %v4790 = vadd.f32 0.0, %v4789
        %v4791 = vpop.f32.mrb[0].mxu0
        %v4792 = vadd.f32 0.0, %v4791
        %v4793 = vpop.f32.mrb[0].mxu0
        %v4794 = vadd.f32 0.0, %v4793
        %4795 = vdwg.mxu0
        %v4796 = vld [vmem:[#allocation3] sm:$0xff]
        %v4797 = vld [vmem:[#allocation3 + $0x8] sm:$0xff]
        %v4798 = vld [vmem:[#allocation3 + $0x10] sm:$0xff]
        %v4799 = vld [vmem:[#allocation3 + $0x18] sm:$0xff]
        %v4800 = vld [vmem:[#allocation3 + $0x20] sm:$0xff]
        %v4801 = vld [vmem:[#allocation3 + $0x28] sm:$0xff]
        %v4802 = vld [vmem:[#allocation3 + $0x30] sm:$0xff]
        %v4803 = vld [vmem:[#allocation3 + $0x38] sm:$0xff]
        %v4804 = vld [vmem:[#allocation3 + $0x40] sm:$0xff]
        %v4805 = vld [vmem:[#allocation3 + $0x48] sm:$0xff]
        %v4806 = vld [vmem:[#allocation3 + $0x50] sm:$0xff]
        %v4807 = vld [vmem:[#allocation3 + $0x58] sm:$0xff]
        %v4808 = vld [vmem:[#allocation3 + $0x60] sm:$0xff]
        %v4809 = vld [vmem:[#allocation3 + $0x68] sm:$0xff]
        %v4810 = vld [vmem:[#allocation3 + $0x70] sm:$0xff]
        %v4811 = vld [vmem:[#allocation3 + $0x78] sm:$0xff]
        %v4812 = vld [vmem:[#allocation3 + $0x80] sm:$0xff]
        %v4813 = vld [vmem:[#allocation3 + $0x88] sm:$0xff]
        %v4814 = vld [vmem:[#allocation3 + $0x90] sm:$0xff]
        %v4815 = vld [vmem:[#allocation3 + $0x98] sm:$0xff]
        %v4816 = vld [vmem:[#allocation3 + $0xa0] sm:$0xff]
        %v4817 = vld [vmem:[#allocation3 + $0xa8] sm:$0xff]
        %v4818 = vld [vmem:[#allocation3 + $0xb0] sm:$0xff]
        %v4819 = vld [vmem:[#allocation3 + $0xb8] sm:$0xff]
        %v4820 = vld [vmem:[#allocation3 + $0xc0] sm:$0xff]
        %v4821 = vld [vmem:[#allocation3 + $0xc8] sm:$0xff]
        %v4822 = vld [vmem:[#allocation3 + $0xd0] sm:$0xff]
        %v4823 = vld [vmem:[#allocation3 + $0xd8] sm:$0xff]
        %v4824 = vld [vmem:[#allocation3 + $0xe0] sm:$0xff]
        %v4825 = vld [vmem:[#allocation3 + $0xe8] sm:$0xff]
        %v4826 = vld [vmem:[#allocation3 + $0xf0] sm:$0xff]
        %v4827 = vld [vmem:[#allocation3 + $0xf8] sm:$0xff]
        %v4828 = vld [vmem:[#allocation3 + $0x100] sm:$0xff]
        %v4829 = vld [vmem:[#allocation3 + $0x108] sm:$0xff]
        %v4830 = vld [vmem:[#allocation3 + $0x110] sm:$0xff]
        %v4831 = vld [vmem:[#allocation3 + $0x118] sm:$0xff]
        %v4832 = vld [vmem:[#allocation3 + $0x120] sm:$0xff]
        %v4833 = vld [vmem:[#allocation3 + $0x128] sm:$0xff]
        %v4834 = vld [vmem:[#allocation3 + $0x130] sm:$0xff]
        %v4835 = vld [vmem:[#allocation3 + $0x138] sm:$0xff]
        %v4836 = vld [vmem:[#allocation3 + $0x140] sm:$0xff]
        %v4837 = vld [vmem:[#allocation3 + $0x148] sm:$0xff]
        %v4838 = vld [vmem:[#allocation3 + $0x150] sm:$0xff]
        %v4839 = vld [vmem:[#allocation3 + $0x158] sm:$0xff]
        %v4840 = vld [vmem:[#allocation3 + $0x160] sm:$0xff]
        %v4841 = vld [vmem:[#allocation3 + $0x168] sm:$0xff]
        %v4842 = vld [vmem:[#allocation3 + $0x170] sm:$0xff]
        %v4843 = vld [vmem:[#allocation3 + $0x178] sm:$0xff]
        %v4844 = vld [vmem:[#allocation3 + $0x180] sm:$0xff]
        %v4845 = vld [vmem:[#allocation3 + $0x188] sm:$0xff]
        %v4846 = vld [vmem:[#allocation3 + $0x190] sm:$0xff]
        %v4847 = vld [vmem:[#allocation3 + $0x198] sm:$0xff]
        %v4848 = vld [vmem:[#allocation3 + $0x1a0] sm:$0xff]
        %v4849 = vld [vmem:[#allocation3 + $0x1a8] sm:$0xff]
        %v4850 = vld [vmem:[#allocation3 + $0x1b0] sm:$0xff]
        %v4851 = vld [vmem:[#allocation3 + $0x1b8] sm:$0xff]
        %v4852 = vld [vmem:[#allocation3 + $0x1c0] sm:$0xff]
        %v4853 = vld [vmem:[#allocation3 + $0x1c8] sm:$0xff]
        %v4854 = vld [vmem:[#allocation3 + $0x1d0] sm:$0xff]
        %v4855 = vld [vmem:[#allocation3 + $0x1d8] sm:$0xff]
        %v4856 = vld [vmem:[#allocation3 + $0x1e0] sm:$0xff]
        %v4857 = vld [vmem:[#allocation3 + $0x1e8] sm:$0xff]
        %v4858 = vld [vmem:[#allocation3 + $0x1f0] sm:$0xff]
        %v4859 = vld [vmem:[#allocation3 + $0x1f8] sm:$0xff]
        %v4860 = vld [vmem:[#allocation3 + $0x200] sm:$0xff]
        %v4861 = vld [vmem:[#allocation3 + $0x208] sm:$0xff]
        %v4862 = vld [vmem:[#allocation3 + $0x210] sm:$0xff]
        %v4863 = vld [vmem:[#allocation3 + $0x218] sm:$0xff]
        %v4864 = vld [vmem:[#allocation3 + $0x220] sm:$0xff]
        %v4865 = vld [vmem:[#allocation3 + $0x228] sm:$0xff]
        %v4866 = vld [vmem:[#allocation3 + $0x230] sm:$0xff]
        %v4867 = vld [vmem:[#allocation3 + $0x238] sm:$0xff]
        %v4868 = vld [vmem:[#allocation3 + $0x240] sm:$0xff]
        %v4869 = vld [vmem:[#allocation3 + $0x248] sm:$0xff]
        %v4870 = vld [vmem:[#allocation3 + $0x250] sm:$0xff]
        %v4871 = vld [vmem:[#allocation3 + $0x258] sm:$0xff]
        %v4872 = vld [vmem:[#allocation3 + $0x260] sm:$0xff]
        %v4873 = vld [vmem:[#allocation3 + $0x268] sm:$0xff]
        %v4874 = vld [vmem:[#allocation3 + $0x270] sm:$0xff]
        %v4875 = vld [vmem:[#allocation3 + $0x278] sm:$0xff]
        %v4876 = vld [vmem:[#allocation3 + $0x280] sm:$0xff]
        %v4877 = vld [vmem:[#allocation3 + $0x288] sm:$0xff]
        %v4878 = vld [vmem:[#allocation3 + $0x290] sm:$0xff]
        %v4879 = vld [vmem:[#allocation3 + $0x298] sm:$0xff]
        %v4880 = vld [vmem:[#allocation3 + $0x2a0] sm:$0xff]
        %v4881 = vld [vmem:[#allocation3 + $0x2a8] sm:$0xff]
        %v4882 = vld [vmem:[#allocation3 + $0x2b0] sm:$0xff]
        %v4883 = vld [vmem:[#allocation3 + $0x2b8] sm:$0xff]
        %v4884 = vld [vmem:[#allocation3 + $0x2c0] sm:$0xff]
        %v4885 = vld [vmem:[#allocation3 + $0x2c8] sm:$0xff]
        %v4886 = vld [vmem:[#allocation3 + $0x2d0] sm:$0xff]
        %v4887 = vld [vmem:[#allocation3 + $0x2d8] sm:$0xff]
        %v4888 = vld [vmem:[#allocation3 + $0x2e0] sm:$0xff]
        %v4889 = vld [vmem:[#allocation3 + $0x2e8] sm:$0xff]
        %v4890 = vld [vmem:[#allocation3 + $0x2f0] sm:$0xff]
        %v4891 = vld [vmem:[#allocation3 + $0x2f8] sm:$0xff]
        %v4892 = vld [vmem:[#allocation3 + $0x300] sm:$0xff]
        %v4893 = vld [vmem:[#allocation3 + $0x308] sm:$0xff]
        %v4894 = vld [vmem:[#allocation3 + $0x310] sm:$0xff]
        %v4895 = vld [vmem:[#allocation3 + $0x318] sm:$0xff]
        %v4896 = vld [vmem:[#allocation3 + $0x320] sm:$0xff]
        %v4897 = vld [vmem:[#allocation3 + $0x328] sm:$0xff]
        %v4898 = vld [vmem:[#allocation3 + $0x330] sm:$0xff]
        %v4899 = vld [vmem:[#allocation3 + $0x338] sm:$0xff]
        %v4900 = vld [vmem:[#allocation3 + $0x340] sm:$0xff]
        %v4901 = vld [vmem:[#allocation3 + $0x348] sm:$0xff]
        %v4902 = vld [vmem:[#allocation3 + $0x350] sm:$0xff]
        %v4903 = vld [vmem:[#allocation3 + $0x358] sm:$0xff]
        %v4904 = vld [vmem:[#allocation3 + $0x360] sm:$0xff]
        %v4905 = vld [vmem:[#allocation3 + $0x368] sm:$0xff]
        %v4906 = vld [vmem:[#allocation3 + $0x370] sm:$0xff]
        %v4907 = vld [vmem:[#allocation3 + $0x378] sm:$0xff]
        %v4908 = vld [vmem:[#allocation3 + $0x380] sm:$0xff]
        %v4909 = vld [vmem:[#allocation3 + $0x388] sm:$0xff]
        %v4910 = vld [vmem:[#allocation3 + $0x390] sm:$0xff]
        %v4911 = vld [vmem:[#allocation3 + $0x398] sm:$0xff]
        %v4912 = vld [vmem:[#allocation3 + $0x3a0] sm:$0xff]
        %v4913 = vld [vmem:[#allocation3 + $0x3a8] sm:$0xff]
        %v4914 = vld [vmem:[#allocation3 + $0x3b0] sm:$0xff]
        %v4915 = vld [vmem:[#allocation3 + $0x3b8] sm:$0xff]
        %v4916 = vld [vmem:[#allocation3 + $0x3c0] sm:$0xff]
        %v4917 = vld [vmem:[#allocation3 + $0x3c8] sm:$0xff]
        %v4918 = vld [vmem:[#allocation3 + $0x3d0] sm:$0xff]
        %v4919 = vld [vmem:[#allocation3 + $0x3d8] sm:$0xff]
        %v4920 = vld [vmem:[#allocation3 + $0x3e0] sm:$0xff]
        %v4921 = vld [vmem:[#allocation3 + $0x3e8] sm:$0xff]
        %v4922 = vld [vmem:[#allocation3 + $0x3f0] sm:$0xff]
        %v4923 = vld [vmem:[#allocation3 + $0x3f8] sm:$0xff]
        %v4924 = vld [vmem:[#allocation3 + $0x400] sm:$0xff]
        %v4925 = vld [vmem:[#allocation3 + $0x408] sm:$0xff]
        %v4926 = vld [vmem:[#allocation3 + $0x410] sm:$0xff]
        %v4927 = vld [vmem:[#allocation3 + $0x418] sm:$0xff]
        %v4928 = vld [vmem:[#allocation3 + $0x420] sm:$0xff]
        %v4929 = vld [vmem:[#allocation3 + $0x428] sm:$0xff]
        %v4930 = vld [vmem:[#allocation3 + $0x430] sm:$0xff]
        %v4931 = vld [vmem:[#allocation3 + $0x438] sm:$0xff]
        %v4932 = vld [vmem:[#allocation3 + $0x440] sm:$0xff]
        %v4933 = vld [vmem:[#allocation3 + $0x448] sm:$0xff]
        %v4934 = vld [vmem:[#allocation3 + $0x450] sm:$0xff]
        %v4935 = vld [vmem:[#allocation3 + $0x458] sm:$0xff]
        %v4936 = vld [vmem:[#allocation3 + $0x460] sm:$0xff]
        %v4937 = vld [vmem:[#allocation3 + $0x468] sm:$0xff]
        %v4938 = vld [vmem:[#allocation3 + $0x470] sm:$0xff]
        %v4939 = vld [vmem:[#allocation3 + $0x478] sm:$0xff]
        %v4940 = vld [vmem:[#allocation3 + $0x480] sm:$0xff]
        %v4941 = vld [vmem:[#allocation3 + $0x488] sm:$0xff]
        %v4942 = vld [vmem:[#allocation3 + $0x490] sm:$0xff]
        %v4943 = vld [vmem:[#allocation3 + $0x498] sm:$0xff]
        %v4944 = vld [vmem:[#allocation3 + $0x4a0] sm:$0xff]
        %v4945 = vld [vmem:[#allocation3 + $0x4a8] sm:$0xff]
        %v4946 = vld [vmem:[#allocation3 + $0x4b0] sm:$0xff]
        %v4947 = vld [vmem:[#allocation3 + $0x4b8] sm:$0xff]
        %v4948 = vld [vmem:[#allocation3 + $0x4c0] sm:$0xff]
        %v4949 = vld [vmem:[#allocation3 + $0x4c8] sm:$0xff]
        %v4950 = vld [vmem:[#allocation3 + $0x4d0] sm:$0xff]
        %v4951 = vld [vmem:[#allocation3 + $0x4d8] sm:$0xff]
        %v4952 = vld [vmem:[#allocation3 + $0x4e0] sm:$0xff]
        %v4953 = vld [vmem:[#allocation3 + $0x4e8] sm:$0xff]
        %v4954 = vld [vmem:[#allocation3 + $0x4f0] sm:$0xff]
        %v4955 = vld [vmem:[#allocation3 + $0x4f8] sm:$0xff]
        %v4956 = vadd.f32 %v4796, %v4398
        %v4957 = vadd.f32 %v4797, %v4400
        %v4958 = vadd.f32 %v4798, %v4402
        %v4959 = vadd.f32 %v4799, %v4404
        %v4960 = vadd.f32 %v4800, %v4408
        %v4961 = vadd.f32 %v4801, %v4410
        %v4962 = vadd.f32 %v4802, %v4412
        %v4963 = vadd.f32 %v4803, %v4414
        %v4964 = vadd.f32 %v4804, %v4418
        %v4965 = vadd.f32 %v4805, %v4420
        %v4966 = vadd.f32 %v4806, %v4422
        %v4967 = vadd.f32 %v4807, %v4424
        %v4968 = vadd.f32 %v4808, %v4428
        %v4969 = vadd.f32 %v4809, %v4430
        %v4970 = vadd.f32 %v4810, %v4432
        %v4971 = vadd.f32 %v4811, %v4434
        %v4972 = vadd.f32 %v4812, %v4438
        %v4973 = vadd.f32 %v4813, %v4440
        %v4974 = vadd.f32 %v4814, %v4442
        %v4975 = vadd.f32 %v4815, %v4444
        %v4976 = vadd.f32 %v4816, %v4448
        %v4977 = vadd.f32 %v4817, %v4450
        %v4978 = vadd.f32 %v4818, %v4452
        %v4979 = vadd.f32 %v4819, %v4454
        %v4980 = vadd.f32 %v4820, %v4458
        %v4981 = vadd.f32 %v4821, %v4460
        %v4982 = vadd.f32 %v4822, %v4462
        %v4983 = vadd.f32 %v4823, %v4464
        %v4984 = vadd.f32 %v4824, %v4468
        %v4985 = vadd.f32 %v4825, %v4470
        %v4986 = vadd.f32 %v4826, %v4472
        %v4987 = vadd.f32 %v4827, %v4474
        %v4988 = vadd.f32 %v4828, %v4478
        %v4989 = vadd.f32 %v4829, %v4480
        %v4990 = vadd.f32 %v4830, %v4482
        %v4991 = vadd.f32 %v4831, %v4484
        %v4992 = vadd.f32 %v4832, %v4488
        %v4993 = vadd.f32 %v4833, %v4490
        %v4994 = vadd.f32 %v4834, %v4492
        %v4995 = vadd.f32 %v4835, %v4494
        %v4996 = vadd.f32 %v4836, %v4498
        %v4997 = vadd.f32 %v4837, %v4500
        %v4998 = vadd.f32 %v4838, %v4502
        %v4999 = vadd.f32 %v4839, %v4504
        %v5000 = vadd.f32 %v4840, %v4508
        %v5001 = vadd.f32 %v4841, %v4510
        %v5002 = vadd.f32 %v4842, %v4512
        %v5003 = vadd.f32 %v4843, %v4514
        %v5004 = vadd.f32 %v4844, %v4518
        %v5005 = vadd.f32 %v4845, %v4520
        %v5006 = vadd.f32 %v4846, %v4522
        %v5007 = vadd.f32 %v4847, %v4524
        %v5008 = vadd.f32 %v4848, %v4528
        %v5009 = vadd.f32 %v4849, %v4530
        %v5010 = vadd.f32 %v4850, %v4532
        %v5011 = vadd.f32 %v4851, %v4534
        %v5012 = vadd.f32 %v4852, %v4538
        %v5013 = vadd.f32 %v4853, %v4540
        %v5014 = vadd.f32 %v4854, %v4542
        %v5015 = vadd.f32 %v4855, %v4544
        %v5016 = vadd.f32 %v4856, %v4548
        %v5017 = vadd.f32 %v4857, %v4550
        %v5018 = vadd.f32 %v4858, %v4552
        %v5019 = vadd.f32 %v4859, %v4554
        %v5020 = vadd.f32 %v4860, %v4558
        %v5021 = vadd.f32 %v4861, %v4560
        %v5022 = vadd.f32 %v4862, %v4562
        %v5023 = vadd.f32 %v4863, %v4564
        %v5024 = vadd.f32 %v4864, %v4568
        %v5025 = vadd.f32 %v4865, %v4570
        %v5026 = vadd.f32 %v4866, %v4572
        %v5027 = vadd.f32 %v4867, %v4574
        %v5028 = vadd.f32 %v4868, %v4578
        %v5029 = vadd.f32 %v4869, %v4580
        %v5030 = vadd.f32 %v4870, %v4582
        %v5031 = vadd.f32 %v4871, %v4584
        %v5032 = vadd.f32 %v4872, %v4588
        %v5033 = vadd.f32 %v4873, %v4590
        %v5034 = vadd.f32 %v4874, %v4592
        %v5035 = vadd.f32 %v4875, %v4594
        %v5036 = vadd.f32 %v4876, %v4598
        %v5037 = vadd.f32 %v4877, %v4600
        %v5038 = vadd.f32 %v4878, %v4602
        %v5039 = vadd.f32 %v4879, %v4604
        %v5040 = vadd.f32 %v4880, %v4608
        %v5041 = vadd.f32 %v4881, %v4610
        %v5042 = vadd.f32 %v4882, %v4612
        %v5043 = vadd.f32 %v4883, %v4614
        %v5044 = vadd.f32 %v4884, %v4618
        %v5045 = vadd.f32 %v4885, %v4620
        %v5046 = vadd.f32 %v4886, %v4622
        %v5047 = vadd.f32 %v4887, %v4624
        %v5048 = vadd.f32 %v4888, %v4628
        %v5049 = vadd.f32 %v4889, %v4630
        %v5050 = vadd.f32 %v4890, %v4632
        %v5051 = vadd.f32 %v4891, %v4634
        %v5052 = vadd.f32 %v4892, %v4638
        %v5053 = vadd.f32 %v4893, %v4640
        %v5054 = vadd.f32 %v4894, %v4642
        %v5055 = vadd.f32 %v4895, %v4644
        %v5056 = vadd.f32 %v4896, %v4648
        %v5057 = vadd.f32 %v4897, %v4650
        %v5058 = vadd.f32 %v4898, %v4652
        %v5059 = vadd.f32 %v4899, %v4654
        %v5060 = vadd.f32 %v4900, %v4658
        %v5061 = vadd.f32 %v4901, %v4660
        %v5062 = vadd.f32 %v4902, %v4662
        %v5063 = vadd.f32 %v4903, %v4664
        %v5064 = vadd.f32 %v4904, %v4668
        %v5065 = vadd.f32 %v4905, %v4670
        %v5066 = vadd.f32 %v4906, %v4672
        %v5067 = vadd.f32 %v4907, %v4674
        %v5068 = vadd.f32 %v4908, %v4678
        %v5069 = vadd.f32 %v4909, %v4680
        %v5070 = vadd.f32 %v4910, %v4682
        %v5071 = vadd.f32 %v4911, %v4684
        %v5072 = vadd.f32 %v4912, %v4688
        %v5073 = vadd.f32 %v4913, %v4690
        %v5074 = vadd.f32 %v4914, %v4692
        %v5075 = vadd.f32 %v4915, %v4694
        %v5076 = vadd.f32 %v4916, %v4698
        %v5077 = vadd.f32 %v4917, %v4700
        %v5078 = vadd.f32 %v4918, %v4702
        %v5079 = vadd.f32 %v4919, %v4704
        %v5080 = vadd.f32 %v4920, %v4708
        %v5081 = vadd.f32 %v4921, %v4710
        %v5082 = vadd.f32 %v4922, %v4712
        %v5083 = vadd.f32 %v4923, %v4714
        %v5084 = vadd.f32 %v4924, %v4718
        %v5085 = vadd.f32 %v4925, %v4720
        %v5086 = vadd.f32 %v4926, %v4722
        %v5087 = vadd.f32 %v4927, %v4724
        %v5088 = vadd.f32 %v4928, %v4728
        %v5089 = vadd.f32 %v4929, %v4730
        %v5090 = vadd.f32 %v4930, %v4732
        %v5091 = vadd.f32 %v4931, %v4734
        %v5092 = vadd.f32 %v4932, %v4738
        %v5093 = vadd.f32 %v4933, %v4740
        %v5094 = vadd.f32 %v4934, %v4742
        %v5095 = vadd.f32 %v4935, %v4744
        %v5096 = vadd.f32 %v4936, %v4748
        %v5097 = vadd.f32 %v4937, %v4750
        %v5098 = vadd.f32 %v4938, %v4752
        %v5099 = vadd.f32 %v4939, %v4754
        %v5100 = vadd.f32 %v4940, %v4758
        %v5101 = vadd.f32 %v4941, %v4760
        %v5102 = vadd.f32 %v4942, %v4762
        %v5103 = vadd.f32 %v4943, %v4764
        %v5104 = vadd.f32 %v4944, %v4768
        %v5105 = vadd.f32 %v4945, %v4770
        %v5106 = vadd.f32 %v4946, %v4772
        %v5107 = vadd.f32 %v4947, %v4774
        %v5108 = vadd.f32 %v4948, %v4778
        %v5109 = vadd.f32 %v4949, %v4780
        %v5110 = vadd.f32 %v4950, %v4782
        %v5111 = vadd.f32 %v4951, %v4784
        %v5112 = vadd.f32 %v4952, %v4788
        %v5113 = vadd.f32 %v4953, %v4790
        %v5114 = vadd.f32 %v4954, %v4792
        %v5115 = vadd.f32 %v4955, %v4794
        %5116 = vst [vmem:[#allocation3] sm:$0xff] %v4956
        %5117 = vst.msk [vmem:[#allocation3 + $0x8] sm:$0xff] %vm528, %v4957
        %5118 = vst [vmem:[#allocation3 + $0x10] sm:$0xff] %v4958
        %5119 = vst.msk [vmem:[#allocation3 + $0x18] sm:$0xff] %vm528, %v4959
        %5120 = vst [vmem:[#allocation3 + $0x20] sm:$0xff] %v4960
        %5121 = vst.msk [vmem:[#allocation3 + $0x28] sm:$0xff] %vm528, %v4961
        %5122 = vst [vmem:[#allocation3 + $0x30] sm:$0xff] %v4962
        %5123 = vst.msk [vmem:[#allocation3 + $0x38] sm:$0xff] %vm528, %v4963
        %5124 = vst [vmem:[#allocation3 + $0x40] sm:$0xff] %v4964
        %5125 = vst.msk [vmem:[#allocation3 + $0x48] sm:$0xff] %vm528, %v4965
        %5126 = vst [vmem:[#allocation3 + $0x50] sm:$0xff] %v4966
        %5127 = vst.msk [vmem:[#allocation3 + $0x58] sm:$0xff] %vm528, %v4967
        %5128 = vst [vmem:[#allocation3 + $0x60] sm:$0xff] %v4968
        %5129 = vst.msk [vmem:[#allocation3 + $0x68] sm:$0xff] %vm528, %v4969
        %5130 = vst [vmem:[#allocation3 + $0x70] sm:$0xff] %v4970
        %5131 = vst.msk [vmem:[#allocation3 + $0x78] sm:$0xff] %vm528, %v4971
        %5132 = vst [vmem:[#allocation3 + $0x80] sm:$0xff] %v4972
        %5133 = vst.msk [vmem:[#allocation3 + $0x88] sm:$0xff] %vm528, %v4973
        %5134 = vst [vmem:[#allocation3 + $0x90] sm:$0xff] %v4974
        %5135 = vst.msk [vmem:[#allocation3 + $0x98] sm:$0xff] %vm528, %v4975
        %5136 = vst [vmem:[#allocation3 + $0xa0] sm:$0xff] %v4976
        %5137 = vst.msk [vmem:[#allocation3 + $0xa8] sm:$0xff] %vm528, %v4977
        %5138 = vst [vmem:[#allocation3 + $0xb0] sm:$0xff] %v4978
        %5139 = vst.msk [vmem:[#allocation3 + $0xb8] sm:$0xff] %vm528, %v4979
        %5140 = vst [vmem:[#allocation3 + $0xc0] sm:$0xff] %v4980
        %5141 = vst.msk [vmem:[#allocation3 + $0xc8] sm:$0xff] %vm528, %v4981
        %5142 = vst [vmem:[#allocation3 + $0xd0] sm:$0xff] %v4982
        %5143 = vst.msk [vmem:[#allocation3 + $0xd8] sm:$0xff] %vm528, %v4983
        %5144 = vst [vmem:[#allocation3 + $0xe0] sm:$0xff] %v4984
        %5145 = vst.msk [vmem:[#allocation3 + $0xe8] sm:$0xff] %vm528, %v4985
        %5146 = vst [vmem:[#allocation3 + $0xf0] sm:$0xff] %v4986
        %5147 = vst.msk [vmem:[#allocation3 + $0xf8] sm:$0xff] %vm528, %v4987
        %5148 = vst [vmem:[#allocation3 + $0x100] sm:$0xff] %v4988
        %5149 = vst.msk [vmem:[#allocation3 + $0x108] sm:$0xff] %vm528, %v4989
        %5150 = vst [vmem:[#allocation3 + $0x110] sm:$0xff] %v4990
        %5151 = vst.msk [vmem:[#allocation3 + $0x118] sm:$0xff] %vm528, %v4991
        %5152 = vst [vmem:[#allocation3 + $0x120] sm:$0xff] %v4992
        %5153 = vst.msk [vmem:[#allocation3 + $0x128] sm:$0xff] %vm528, %v4993
        %5154 = vst [vmem:[#allocation3 + $0x130] sm:$0xff] %v4994
        %5155 = vst.msk [vmem:[#allocation3 + $0x138] sm:$0xff] %vm528, %v4995
        %5156 = vst [vmem:[#allocation3 + $0x140] sm:$0xff] %v4996
        %5157 = vst.msk [vmem:[#allocation3 + $0x148] sm:$0xff] %vm528, %v4997
        %5158 = vst [vmem:[#allocation3 + $0x150] sm:$0xff] %v4998
        %5159 = vst.msk [vmem:[#allocation3 + $0x158] sm:$0xff] %vm528, %v4999
        %5160 = vst [vmem:[#allocation3 + $0x160] sm:$0xff] %v5000
        %5161 = vst.msk [vmem:[#allocation3 + $0x168] sm:$0xff] %vm528, %v5001
        %5162 = vst [vmem:[#allocation3 + $0x170] sm:$0xff] %v5002
        %5163 = vst.msk [vmem:[#allocation3 + $0x178] sm:$0xff] %vm528, %v5003
        %5164 = vst [vmem:[#allocation3 + $0x180] sm:$0xff] %v5004
        %5165 = vst.msk [vmem:[#allocation3 + $0x188] sm:$0xff] %vm528, %v5005
        %5166 = vst [vmem:[#allocation3 + $0x190] sm:$0xff] %v5006
        %5167 = vst.msk [vmem:[#allocation3 + $0x198] sm:$0xff] %vm528, %v5007
        %5168 = vst [vmem:[#allocation3 + $0x1a0] sm:$0xff] %v5008
        %5169 = vst.msk [vmem:[#allocation3 + $0x1a8] sm:$0xff] %vm528, %v5009
        %5170 = vst [vmem:[#allocation3 + $0x1b0] sm:$0xff] %v5010
        %5171 = vst.msk [vmem:[#allocation3 + $0x1b8] sm:$0xff] %vm528, %v5011
        %5172 = vst [vmem:[#allocation3 + $0x1c0] sm:$0xff] %v5012
        %5173 = vst.msk [vmem:[#allocation3 + $0x1c8] sm:$0xff] %vm528, %v5013
        %5174 = vst [vmem:[#allocation3 + $0x1d0] sm:$0xff] %v5014
        %5175 = vst.msk [vmem:[#allocation3 + $0x1d8] sm:$0xff] %vm528, %v5015
        %5176 = vst [vmem:[#allocation3 + $0x1e0] sm:$0xff] %v5016
        %5177 = vst.msk [vmem:[#allocation3 + $0x1e8] sm:$0xff] %vm528, %v5017
        %5178 = vst [vmem:[#allocation3 + $0x1f0] sm:$0xff] %v5018
        %5179 = vst.msk [vmem:[#allocation3 + $0x1f8] sm:$0xff] %vm528, %v5019
        %5180 = vst [vmem:[#allocation3 + $0x200] sm:$0xff] %v5020
        %5181 = vst.msk [vmem:[#allocation3 + $0x208] sm:$0xff] %vm528, %v5021
        %5182 = vst [vmem:[#allocation3 + $0x210] sm:$0xff] %v5022
        %5183 = vst.msk [vmem:[#allocation3 + $0x218] sm:$0xff] %vm528, %v5023
        %5184 = vst [vmem:[#allocation3 + $0x220] sm:$0xff] %v5024
        %5185 = vst.msk [vmem:[#allocation3 + $0x228] sm:$0xff] %vm528, %v5025
        %5186 = vst [vmem:[#allocation3 + $0x230] sm:$0xff] %v5026
        %5187 = vst.msk [vmem:[#allocation3 + $0x238] sm:$0xff] %vm528, %v5027
        %5188 = vst [vmem:[#allocation3 + $0x240] sm:$0xff] %v5028
        %5189 = vst.msk [vmem:[#allocation3 + $0x248] sm:$0xff] %vm528, %v5029
        %5190 = vst [vmem:[#allocation3 + $0x250] sm:$0xff] %v5030
        %5191 = vst.msk [vmem:[#allocation3 + $0x258] sm:$0xff] %vm528, %v5031
        %5192 = vst [vmem:[#allocation3 + $0x260] sm:$0xff] %v5032
        %5193 = vst.msk [vmem:[#allocation3 + $0x268] sm:$0xff] %vm528, %v5033
        %5194 = vst [vmem:[#allocation3 + $0x270] sm:$0xff] %v5034
        %5195 = vst.msk [vmem:[#allocation3 + $0x278] sm:$0xff] %vm528, %v5035
        %5196 = vst [vmem:[#allocation3 + $0x280] sm:$0xff] %v5036
        %5197 = vst.msk [vmem:[#allocation3 + $0x288] sm:$0xff] %vm528, %v5037
        %5198 = vst [vmem:[#allocation3 + $0x290] sm:$0xff] %v5038
        %5199 = vst.msk [vmem:[#allocation3 + $0x298] sm:$0xff] %vm528, %v5039
        %5200 = vst [vmem:[#allocation3 + $0x2a0] sm:$0xff] %v5040
        %5201 = vst.msk [vmem:[#allocation3 + $0x2a8] sm:$0xff] %vm528, %v5041
        %5202 = vst [vmem:[#allocation3 + $0x2b0] sm:$0xff] %v5042
        %5203 = vst.msk [vmem:[#allocation3 + $0x2b8] sm:$0xff] %vm528, %v5043
        %5204 = vst [vmem:[#allocation3 + $0x2c0] sm:$0xff] %v5044
        %5205 = vst.msk [vmem:[#allocation3 + $0x2c8] sm:$0xff] %vm528, %v5045
        %5206 = vst [vmem:[#allocation3 + $0x2d0] sm:$0xff] %v5046
        %5207 = vst.msk [vmem:[#allocation3 + $0x2d8] sm:$0xff] %vm528, %v5047
        %5208 = vst [vmem:[#allocation3 + $0x2e0] sm:$0xff] %v5048
        %5209 = vst.msk [vmem:[#allocation3 + $0x2e8] sm:$0xff] %vm528, %v5049
        %5210 = vst [vmem:[#allocation3 + $0x2f0] sm:$0xff] %v5050
        %5211 = vst.msk [vmem:[#allocation3 + $0x2f8] sm:$0xff] %vm528, %v5051
        %5212 = vst [vmem:[#allocation3 + $0x300] sm:$0xff] %v5052
        %5213 = vst.msk [vmem:[#allocation3 + $0x308] sm:$0xff] %vm528, %v5053
        %5214 = vst [vmem:[#allocation3 + $0x310] sm:$0xff] %v5054
        %5215 = vst.msk [vmem:[#allocation3 + $0x318] sm:$0xff] %vm528, %v5055
        %5216 = vst [vmem:[#allocation3 + $0x320] sm:$0xff] %v5056
        %5217 = vst.msk [vmem:[#allocation3 + $0x328] sm:$0xff] %vm528, %v5057
        %5218 = vst [vmem:[#allocation3 + $0x330] sm:$0xff] %v5058
        %5219 = vst.msk [vmem:[#allocation3 + $0x338] sm:$0xff] %vm528, %v5059
        %5220 = vst [vmem:[#allocation3 + $0x340] sm:$0xff] %v5060
        %5221 = vst.msk [vmem:[#allocation3 + $0x348] sm:$0xff] %vm528, %v5061
        %5222 = vst [vmem:[#allocation3 + $0x350] sm:$0xff] %v5062
        %5223 = vst.msk [vmem:[#allocation3 + $0x358] sm:$0xff] %vm528, %v5063
        %5224 = vst [vmem:[#allocation3 + $0x360] sm:$0xff] %v5064
        %5225 = vst.msk [vmem:[#allocation3 + $0x368] sm:$0xff] %vm528, %v5065
        %5226 = vst [vmem:[#allocation3 + $0x370] sm:$0xff] %v5066
        %5227 = vst.msk [vmem:[#allocation3 + $0x378] sm:$0xff] %vm528, %v5067
        %5228 = vst [vmem:[#allocation3 + $0x380] sm:$0xff] %v5068
        %5229 = vst.msk [vmem:[#allocation3 + $0x388] sm:$0xff] %vm528, %v5069
        %5230 = vst [vmem:[#allocation3 + $0x390] sm:$0xff] %v5070
        %5231 = vst.msk [vmem:[#allocation3 + $0x398] sm:$0xff] %vm528, %v5071
        %5232 = vst [vmem:[#allocation3 + $0x3a0] sm:$0xff] %v5072
        %5233 = vst.msk [vmem:[#allocation3 + $0x3a8] sm:$0xff] %vm528, %v5073
        %5234 = vst [vmem:[#allocation3 + $0x3b0] sm:$0xff] %v5074
        %5235 = vst.msk [vmem:[#allocation3 + $0x3b8] sm:$0xff] %vm528, %v5075
        %5236 = vst [vmem:[#allocation3 + $0x3c0] sm:$0xff] %v5076
        %5237 = vst.msk [vmem:[#allocation3 + $0x3c8] sm:$0xff] %vm528, %v5077
        %5238 = vst [vmem:[#allocation3 + $0x3d0] sm:$0xff] %v5078
        %5239 = vst.msk [vmem:[#allocation3 + $0x3d8] sm:$0xff] %vm528, %v5079
        %5240 = vst [vmem:[#allocation3 + $0x3e0] sm:$0xff] %v5080
        %5241 = vst.msk [vmem:[#allocation3 + $0x3e8] sm:$0xff] %vm528, %v5081
        %5242 = vst [vmem:[#allocation3 + $0x3f0] sm:$0xff] %v5082
        %5243 = vst.msk [vmem:[#allocation3 + $0x3f8] sm:$0xff] %vm528, %v5083
        %5244 = vst [vmem:[#allocation3 + $0x400] sm:$0xff] %v5084
        %5245 = vst.msk [vmem:[#allocation3 + $0x408] sm:$0xff] %vm528, %v5085
        %5246 = vst [vmem:[#allocation3 + $0x410] sm:$0xff] %v5086
        %5247 = vst.msk [vmem:[#allocation3 + $0x418] sm:$0xff] %vm528, %v5087
        %5248 = vst [vmem:[#allocation3 + $0x420] sm:$0xff] %v5088
        %5249 = vst.msk [vmem:[#allocation3 + $0x428] sm:$0xff] %vm528, %v5089
        %5250 = vst [vmem:[#allocation3 + $0x430] sm:$0xff] %v5090
        %5251 = vst.msk [vmem:[#allocation3 + $0x438] sm:$0xff] %vm528, %v5091
        %5252 = vst [vmem:[#allocation3 + $0x440] sm:$0xff] %v5092
        %5253 = vst.msk [vmem:[#allocation3 + $0x448] sm:$0xff] %vm528, %v5093
        %5254 = vst [vmem:[#allocation3 + $0x450] sm:$0xff] %v5094
        %5255 = vst.msk [vmem:[#allocation3 + $0x458] sm:$0xff] %vm528, %v5095
        %5256 = vst [vmem:[#allocation3 + $0x460] sm:$0xff] %v5096
        %5257 = vst.msk [vmem:[#allocation3 + $0x468] sm:$0xff] %vm528, %v5097
        %5258 = vst [vmem:[#allocation3 + $0x470] sm:$0xff] %v5098
        %5259 = vst.msk [vmem:[#allocation3 + $0x478] sm:$0xff] %vm528, %v5099
        %5260 = vst [vmem:[#allocation3 + $0x480] sm:$0xff] %v5100
        %5261 = vst.msk [vmem:[#allocation3 + $0x488] sm:$0xff] %vm528, %v5101
        %5262 = vst [vmem:[#allocation3 + $0x490] sm:$0xff] %v5102
        %5263 = vst.msk [vmem:[#allocation3 + $0x498] sm:$0xff] %vm528, %v5103
        %5264 = vst [vmem:[#allocation3 + $0x4a0] sm:$0xff] %v5104
        %5265 = vst.msk [vmem:[#allocation3 + $0x4a8] sm:$0xff] %vm528, %v5105
        %5266 = vst [vmem:[#allocation3 + $0x4b0] sm:$0xff] %v5106
        %5267 = vst.msk [vmem:[#allocation3 + $0x4b8] sm:$0xff] %vm528, %v5107
        %5268 = vst [vmem:[#allocation3 + $0x4c0] sm:$0xff] %v5108
        %5269 = vst.msk [vmem:[#allocation3 + $0x4c8] sm:$0xff] %vm528, %v5109
        %5270 = vst [vmem:[#allocation3 + $0x4d0] sm:$0xff] %v5110
        %5271 = vst.msk [vmem:[#allocation3 + $0x4d8] sm:$0xff] %vm528, %v5111
        %5272 = vst [vmem:[#allocation3 + $0x4e0] sm:$0xff] %v5112
        %5273 = vst.msk [vmem:[#allocation3 + $0x4e8] sm:$0xff] %vm528, %v5113
        %5274 = vst [vmem:[#allocation3 + $0x4f0] sm:$0xff] %v5114
        %5275 = vst.msk [vmem:[#allocation3 + $0x4f8] sm:$0xff] %vm528, %v5115
        %s5276 = scalar_lea.vmem [#allocation2], 16
        %v5277 = vld [vmem:[%s5276] sm:$0xff]
        %v5278 = vld [vmem:[%s5276 + $0x8] sm:$0xff]
        %v5279 = vld [vmem:[%s5276 + $0x10] sm:$0xff]
        %v5280 = vld [vmem:[%s5276 + $0x18] sm:$0xff]
        %v5281 = vld [vmem:[%s5276 + $0x20] sm:$0xff]
        %v5282 = vld [vmem:[%s5276 + $0x28] sm:$0xff]
        %v5283 = vld [vmem:[%s5276 + $0x30] sm:$0xff]
        %v5284 = vld [vmem:[%s5276 + $0x38] sm:$0xff]
        %v5285 = vld [vmem:[%s5276 + $0x50] sm:$0xff]
        %v5286 = vld [vmem:[%s5276 + $0x58] sm:$0xff]
        %v5287 = vld [vmem:[%s5276 + $0x60] sm:$0xff]
        %v5288 = vld [vmem:[%s5276 + $0x68] sm:$0xff]
        %v5289 = vld [vmem:[%s5276 + $0x70] sm:$0xff]
        %v5290 = vld [vmem:[%s5276 + $0x78] sm:$0xff]
        %v5291 = vld [vmem:[%s5276 + $0x80] sm:$0xff]
        %v5292 = vld [vmem:[%s5276 + $0x88] sm:$0xff]
        %v5293 = vld [vmem:[%s5276 + $0xa0] sm:$0xff]
        %v5294 = vld [vmem:[%s5276 + $0xa8] sm:$0xff]
        %v5295 = vld [vmem:[%s5276 + $0xb0] sm:$0xff]
        %v5296 = vld [vmem:[%s5276 + $0xb8] sm:$0xff]
        %v5297 = vld [vmem:[%s5276 + $0xc0] sm:$0xff]
        %v5298 = vld [vmem:[%s5276 + $0xc8] sm:$0xff]
        %v5299 = vld [vmem:[%s5276 + $0xd0] sm:$0xff]
        %v5300 = vld [vmem:[%s5276 + $0xd8] sm:$0xff]
        %v5301 = vld [vmem:[%s5276 + $0xf0] sm:$0xff]
        %v5302 = vld [vmem:[%s5276 + $0xf8] sm:$0xff]
        %v5303 = vld [vmem:[%s5276 + $0x100] sm:$0xff]
        %v5304 = vld [vmem:[%s5276 + $0x108] sm:$0xff]
        %v5305 = vld [vmem:[%s5276 + $0x110] sm:$0xff]
        %v5306 = vld [vmem:[%s5276 + $0x118] sm:$0xff]
        %v5307 = vld [vmem:[%s5276 + $0x120] sm:$0xff]
        %v5308 = vld [vmem:[%s5276 + $0x128] sm:$0xff]
        %v5309 = vld [vmem:[%s5276 + $0x140] sm:$0xff]
        %v5310 = vld [vmem:[%s5276 + $0x148] sm:$0xff]
        %v5311 = vld [vmem:[%s5276 + $0x150] sm:$0xff]
        %v5312 = vld [vmem:[%s5276 + $0x158] sm:$0xff]
        %v5313 = vld [vmem:[%s5276 + $0x160] sm:$0xff]
        %v5314 = vld [vmem:[%s5276 + $0x168] sm:$0xff]
        %v5315 = vld [vmem:[%s5276 + $0x170] sm:$0xff]
        %v5316 = vld [vmem:[%s5276 + $0x178] sm:$0xff]
        %v5317 = vld [vmem:[%s5276 + $0x190] sm:$0xff]
        %v5318 = vld [vmem:[%s5276 + $0x198] sm:$0xff]
        %v5319 = vld [vmem:[%s5276 + $0x1a0] sm:$0xff]
        %v5320 = vld [vmem:[%s5276 + $0x1a8] sm:$0xff]
        %v5321 = vld [vmem:[%s5276 + $0x1b0] sm:$0xff]
        %v5322 = vld [vmem:[%s5276 + $0x1b8] sm:$0xff]
        %v5323 = vld [vmem:[%s5276 + $0x1c0] sm:$0xff]
        %v5324 = vld [vmem:[%s5276 + $0x1c8] sm:$0xff]
        %v5325 = vld [vmem:[%s5276 + $0x1e0] sm:$0xff]
        %v5326 = vld [vmem:[%s5276 + $0x1e8] sm:$0xff]
        %v5327 = vld [vmem:[%s5276 + $0x1f0] sm:$0xff]
        %v5328 = vld [vmem:[%s5276 + $0x1f8] sm:$0xff]
        %v5329 = vld [vmem:[%s5276 + $0x200] sm:$0xff]
        %v5330 = vld [vmem:[%s5276 + $0x208] sm:$0xff]
        %v5331 = vld [vmem:[%s5276 + $0x210] sm:$0xff]
        %v5332 = vld [vmem:[%s5276 + $0x218] sm:$0xff]
        %v5333 = vld [vmem:[%s5276 + $0x230] sm:$0xff]
        %v5334 = vld [vmem:[%s5276 + $0x238] sm:$0xff]
        %v5335 = vld [vmem:[%s5276 + $0x240] sm:$0xff]
        %v5336 = vld [vmem:[%s5276 + $0x248] sm:$0xff]
        %v5337 = vld [vmem:[%s5276 + $0x250] sm:$0xff]
        %v5338 = vld [vmem:[%s5276 + $0x258] sm:$0xff]
        %v5339 = vld [vmem:[%s5276 + $0x260] sm:$0xff]
        %v5340 = vld [vmem:[%s5276 + $0x268] sm:$0xff]
        %v5341 = vld [vmem:[%s5276 + $0x280] sm:$0xff]
        %v5342 = vld [vmem:[%s5276 + $0x288] sm:$0xff]
        %v5343 = vld [vmem:[%s5276 + $0x290] sm:$0xff]
        %v5344 = vld [vmem:[%s5276 + $0x298] sm:$0xff]
        %v5345 = vld [vmem:[%s5276 + $0x2a0] sm:$0xff]
        %v5346 = vld [vmem:[%s5276 + $0x2a8] sm:$0xff]
        %v5347 = vld [vmem:[%s5276 + $0x2b0] sm:$0xff]
        %v5348 = vld [vmem:[%s5276 + $0x2b8] sm:$0xff]
        %v5349 = vld [vmem:[%s5276 + $0x2d0] sm:$0xff]
        %v5350 = vld [vmem:[%s5276 + $0x2d8] sm:$0xff]
        %v5351 = vld [vmem:[%s5276 + $0x2e0] sm:$0xff]
        %v5352 = vld [vmem:[%s5276 + $0x2e8] sm:$0xff]
        %v5353 = vld [vmem:[%s5276 + $0x2f0] sm:$0xff]
        %v5354 = vld [vmem:[%s5276 + $0x2f8] sm:$0xff]
        %v5355 = vld [vmem:[%s5276 + $0x300] sm:$0xff]
        %v5356 = vld [vmem:[%s5276 + $0x308] sm:$0xff]
        %s5357 = scalar_lea.vmem [#allocation7], 384
        %v5358 = vld [vmem:[%s5357] sm:$0xff]
        %v5359 = vld [vmem:[%s5357 + $0x8] sm:$0xff]
        %v5360 = vld [vmem:[%s5357 + $0x10] sm:$0xff]
        %v5361 = vld [vmem:[%s5357 + $0x18] sm:$0xff]
        %v5362 = vld [vmem:[%s5357 + $0x20] sm:$0xff]
        %v5363 = vld [vmem:[%s5357 + $0x28] sm:$0xff]
        %v5364 = vld [vmem:[%s5357 + $0x30] sm:$0xff]
        %v5365 = vld [vmem:[%s5357 + $0x38] sm:$0xff]
        %v5366 = vld [vmem:[%s5357 + $0x40] sm:$0xff]
        %v5367 = vld [vmem:[%s5357 + $0x48] sm:$0xff]
        %v5368 = vld [vmem:[%s5357 + $0x50] sm:$0xff]
        %v5369 = vld [vmem:[%s5357 + $0x58] sm:$0xff]
        %v5370 = vld [vmem:[%s5357 + $0x60] sm:$0xff]
        %v5371 = vld [vmem:[%s5357 + $0x68] sm:$0xff]
        %v5372 = vld [vmem:[%s5357 + $0x70] sm:$0xff]
        %v5373 = vld [vmem:[%s5357 + $0x78] sm:$0xff]
        %v5374 = vld [vmem:[%s5357 + $0x80] sm:$0xff]
        %v5375 = vld [vmem:[%s5357 + $0x88] sm:$0xff]
        %v5376 = vld [vmem:[%s5357 + $0x90] sm:$0xff]
        %v5377 = vld [vmem:[%s5357 + $0x98] sm:$0xff]
        %v5378 = vld [vmem:[%s5357 + $0xa0] sm:$0xff]
        %v5379 = vld [vmem:[%s5357 + $0xa8] sm:$0xff]
        %v5380 = vld [vmem:[%s5357 + $0xb0] sm:$0xff]
        %v5381 = vld [vmem:[%s5357 + $0xb8] sm:$0xff]
        %v5462 = vunpack.c.l.b16 %v5277
        %v5463 = vunpack.c.h.b16 %v5277
        %v5464 = vunpack.c.l.b16 %v5278
        %v5465 = vunpack.c.h.b16 %v5278
        %v5466 = vunpack.c.l.b16 %v5279
        %v5467 = vunpack.c.h.b16 %v5279
        %v5468 = vunpack.c.l.b16 %v5280
        %v5469 = vunpack.c.h.b16 %v5280
        %v5470 = vunpack.c.l.b16 %v5281
        %v5471 = vunpack.c.h.b16 %v5281
        %v5472 = vunpack.c.l.b16 %v5282
        %v5473 = vunpack.c.h.b16 %v5282
        %v5474 = vunpack.c.l.b16 %v5283
        %v5475 = vunpack.c.h.b16 %v5283
        %v5476 = vunpack.c.l.b16 %v5284
        %v5477 = vunpack.c.h.b16 %v5284
        %v5478 = vunpack.c.l.b16 %v5285
        %v5479 = vunpack.c.h.b16 %v5285
        %v5480 = vunpack.c.l.b16 %v5286
        %v5481 = vunpack.c.h.b16 %v5286
        %v5482 = vunpack.c.l.b16 %v5287
        %v5483 = vunpack.c.h.b16 %v5287
        %v5484 = vunpack.c.l.b16 %v5288
        %v5485 = vunpack.c.h.b16 %v5288
        %v5486 = vunpack.c.l.b16 %v5289
        %v5487 = vunpack.c.h.b16 %v5289
        %v5488 = vunpack.c.l.b16 %v5290
        %v5489 = vunpack.c.h.b16 %v5290
        %v5490 = vunpack.c.l.b16 %v5291
        %v5491 = vunpack.c.h.b16 %v5291
        %v5492 = vunpack.c.l.b16 %v5292
        %v5493 = vunpack.c.h.b16 %v5292
        %v5494 = vunpack.c.l.b16 %v5293
        %v5495 = vunpack.c.h.b16 %v5293
        %v5496 = vunpack.c.l.b16 %v5294
        %v5497 = vunpack.c.h.b16 %v5294
        %v5498 = vunpack.c.l.b16 %v5295
        %v5499 = vunpack.c.h.b16 %v5295
        %v5500 = vunpack.c.l.b16 %v5296
        %v5501 = vunpack.c.h.b16 %v5296
        %v5502 = vunpack.c.l.b16 %v5297
        %v5503 = vunpack.c.h.b16 %v5297
        %v5504 = vunpack.c.l.b16 %v5298
        %v5505 = vunpack.c.h.b16 %v5298
        %v5506 = vunpack.c.l.b16 %v5299
        %v5507 = vunpack.c.h.b16 %v5299
        %v5508 = vunpack.c.l.b16 %v5300
        %v5509 = vunpack.c.h.b16 %v5300
        %v5510 = vunpack.c.l.b16 %v5301
        %v5511 = vunpack.c.h.b16 %v5301
        %v5512 = vunpack.c.l.b16 %v5302
        %v5513 = vunpack.c.h.b16 %v5302
        %v5514 = vunpack.c.l.b16 %v5303
        %v5515 = vunpack.c.h.b16 %v5303
        %v5516 = vunpack.c.l.b16 %v5304
        %v5517 = vunpack.c.h.b16 %v5304
        %v5518 = vunpack.c.l.b16 %v5305
        %v5519 = vunpack.c.h.b16 %v5305
        %v5520 = vunpack.c.l.b16 %v5306
        %v5521 = vunpack.c.h.b16 %v5306
        %v5522 = vunpack.c.l.b16 %v5307
        %v5523 = vunpack.c.h.b16 %v5307
        %v5524 = vunpack.c.l.b16 %v5308
        %v5525 = vunpack.c.h.b16 %v5308
        %v5526 = vunpack.c.l.b16 %v5309
        %v5527 = vunpack.c.h.b16 %v5309
        %v5528 = vunpack.c.l.b16 %v5310
        %v5529 = vunpack.c.h.b16 %v5310
        %v5530 = vunpack.c.l.b16 %v5311
        %v5531 = vunpack.c.h.b16 %v5311
        %v5532 = vunpack.c.l.b16 %v5312
        %v5533 = vunpack.c.h.b16 %v5312
        %v5534 = vunpack.c.l.b16 %v5313
        %v5535 = vunpack.c.h.b16 %v5313
        %v5536 = vunpack.c.l.b16 %v5314
        %v5537 = vunpack.c.h.b16 %v5314
        %v5538 = vunpack.c.l.b16 %v5315
        %v5539 = vunpack.c.h.b16 %v5315
        %v5540 = vunpack.c.l.b16 %v5316
        %v5541 = vunpack.c.h.b16 %v5316
        %v5542 = vunpack.c.l.b16 %v5317
        %v5543 = vunpack.c.h.b16 %v5317
        %v5544 = vunpack.c.l.b16 %v5318
        %v5545 = vunpack.c.h.b16 %v5318
        %v5546 = vunpack.c.l.b16 %v5319
        %v5547 = vunpack.c.h.b16 %v5319
        %v5548 = vunpack.c.l.b16 %v5320
        %v5549 = vunpack.c.h.b16 %v5320
        %v5550 = vunpack.c.l.b16 %v5321
        %v5551 = vunpack.c.h.b16 %v5321
        %v5552 = vunpack.c.l.b16 %v5322
        %v5553 = vunpack.c.h.b16 %v5322
        %v5554 = vunpack.c.l.b16 %v5323
        %v5555 = vunpack.c.h.b16 %v5323
        %v5556 = vunpack.c.l.b16 %v5324
        %v5557 = vunpack.c.h.b16 %v5324
        %v5558 = vunpack.c.l.b16 %v5325
        %v5559 = vunpack.c.h.b16 %v5325
        %v5560 = vunpack.c.l.b16 %v5326
        %v5561 = vunpack.c.h.b16 %v5326
        %v5562 = vunpack.c.l.b16 %v5327
        %v5563 = vunpack.c.h.b16 %v5327
        %v5564 = vunpack.c.l.b16 %v5328
        %v5565 = vunpack.c.h.b16 %v5328
        %v5566 = vunpack.c.l.b16 %v5329
        %v5567 = vunpack.c.h.b16 %v5329
        %v5568 = vunpack.c.l.b16 %v5330
        %v5569 = vunpack.c.h.b16 %v5330
        %v5570 = vunpack.c.l.b16 %v5331
        %v5571 = vunpack.c.h.b16 %v5331
        %v5572 = vunpack.c.l.b16 %v5332
        %v5573 = vunpack.c.h.b16 %v5332
        %v5574 = vunpack.c.l.b16 %v5333
        %v5575 = vunpack.c.h.b16 %v5333
        %v5576 = vunpack.c.l.b16 %v5334
        %v5577 = vunpack.c.h.b16 %v5334
        %v5578 = vunpack.c.l.b16 %v5335
        %v5579 = vunpack.c.h.b16 %v5335
        %v5580 = vunpack.c.l.b16 %v5336
        %v5581 = vunpack.c.h.b16 %v5336
        %v5582 = vunpack.c.l.b16 %v5337
        %v5583 = vunpack.c.h.b16 %v5337
        %v5584 = vunpack.c.l.b16 %v5338
        %v5585 = vunpack.c.h.b16 %v5338
        %v5586 = vunpack.c.l.b16 %v5339
        %v5587 = vunpack.c.h.b16 %v5339
        %v5588 = vunpack.c.l.b16 %v5340
        %v5589 = vunpack.c.h.b16 %v5340
        %v5590 = vunpack.c.l.b16 %v5341
        %v5591 = vunpack.c.h.b16 %v5341
        %v5592 = vunpack.c.l.b16 %v5342
        %v5593 = vunpack.c.h.b16 %v5342
        %v5594 = vunpack.c.l.b16 %v5343
        %v5595 = vunpack.c.h.b16 %v5343
        %v5596 = vunpack.c.l.b16 %v5344
        %v5597 = vunpack.c.h.b16 %v5344
        %v5598 = vunpack.c.l.b16 %v5345
        %v5599 = vunpack.c.h.b16 %v5345
        %v5600 = vunpack.c.l.b16 %v5346
        %v5601 = vunpack.c.h.b16 %v5346
        %v5602 = vunpack.c.l.b16 %v5347
        %v5603 = vunpack.c.h.b16 %v5347
        %v5604 = vunpack.c.l.b16 %v5348
        %v5605 = vunpack.c.h.b16 %v5348
        %v5606 = vunpack.c.l.b16 %v5349
        %v5607 = vunpack.c.h.b16 %v5349
        %v5608 = vunpack.c.l.b16 %v5350
        %v5609 = vunpack.c.h.b16 %v5350
        %v5610 = vunpack.c.l.b16 %v5351
        %v5611 = vunpack.c.h.b16 %v5351
        %v5612 = vunpack.c.l.b16 %v5352
        %v5613 = vunpack.c.h.b16 %v5352
        %v5614 = vunpack.c.l.b16 %v5353
        %v5615 = vunpack.c.h.b16 %v5353
        %v5616 = vunpack.c.l.b16 %v5354
        %v5617 = vunpack.c.h.b16 %v5354
        %v5618 = vunpack.c.l.b16 %v5355
        %v5619 = vunpack.c.h.b16 %v5355
        %v5620 = vunpack.c.l.b16 %v5356
        %v5621 = vunpack.c.h.b16 %v5356
        %v5622 = vpack.c.b16 %v5464, %v5462
        %v5623 = vpack.c.b16 %v5465, %v5463
        %v5624 = vpack.c.b16 %v5468, %v5466
        %v5625 = vpack.c.b16 %v5469, %v5467
        %v5626 = vpack.c.b16 %v5472, %v5470
        %v5627 = vpack.c.b16 %v5473, %v5471
        %v5628 = vpack.c.b16 %v5476, %v5474
        %v5629 = vpack.c.b16 %v5477, %v5475
        %v5630 = vpack.c.b16 %v5480, %v5478
        %v5631 = vpack.c.b16 %v5481, %v5479
        %v5632 = vpack.c.b16 %v5484, %v5482
        %v5633 = vpack.c.b16 %v5485, %v5483
        %v5634 = vpack.c.b16 %v5488, %v5486
        %v5635 = vpack.c.b16 %v5489, %v5487
        %v5636 = vpack.c.b16 %v5492, %v5490
        %v5637 = vpack.c.b16 %v5493, %v5491
        %v5638 = vpack.c.b16 %v5496, %v5494
        %v5639 = vpack.c.b16 %v5497, %v5495
        %v5640 = vpack.c.b16 %v5500, %v5498
        %v5641 = vpack.c.b16 %v5501, %v5499
        %v5642 = vpack.c.b16 %v5504, %v5502
        %v5643 = vpack.c.b16 %v5505, %v5503
        %v5644 = vpack.c.b16 %v5508, %v5506
        %v5645 = vpack.c.b16 %v5509, %v5507
        %v5646 = vpack.c.b16 %v5512, %v5510
        %v5647 = vpack.c.b16 %v5513, %v5511
        %v5648 = vpack.c.b16 %v5516, %v5514
        %v5649 = vpack.c.b16 %v5517, %v5515
        %v5650 = vpack.c.b16 %v5520, %v5518
        %v5651 = vpack.c.b16 %v5521, %v5519
        %v5652 = vpack.c.b16 %v5524, %v5522
        %v5653 = vpack.c.b16 %v5525, %v5523
        %v5654 = vpack.c.b16 %v5528, %v5526
        %v5655 = vpack.c.b16 %v5529, %v5527
        %v5656 = vpack.c.b16 %v5532, %v5530
        %v5657 = vpack.c.b16 %v5533, %v5531
        %v5658 = vpack.c.b16 %v5536, %v5534
        %v5659 = vpack.c.b16 %v5537, %v5535
        %v5660 = vpack.c.b16 %v5540, %v5538
        %v5661 = vpack.c.b16 %v5541, %v5539
        %v5662 = vpack.c.b16 %v5544, %v5542
        %v5663 = vpack.c.b16 %v5545, %v5543
        %v5664 = vpack.c.b16 %v5548, %v5546
        %v5665 = vpack.c.b16 %v5549, %v5547
        %v5666 = vpack.c.b16 %v5552, %v5550
        %v5667 = vpack.c.b16 %v5553, %v5551
        %v5668 = vpack.c.b16 %v5556, %v5554
        %v5669 = vpack.c.b16 %v5557, %v5555
        %v5670 = vpack.c.b16 %v5560, %v5558
        %v5671 = vpack.c.b16 %v5561, %v5559
        %v5672 = vpack.c.b16 %v5564, %v5562
        %v5673 = vpack.c.b16 %v5565, %v5563
        %v5674 = vpack.c.b16 %v5568, %v5566
        %v5675 = vpack.c.b16 %v5569, %v5567
        %v5676 = vpack.c.b16 %v5572, %v5570
        %v5677 = vpack.c.b16 %v5573, %v5571
        %v5678 = vpack.c.b16 %v5576, %v5574
        %v5679 = vpack.c.b16 %v5577, %v5575
        %v5680 = vpack.c.b16 %v5580, %v5578
        %v5681 = vpack.c.b16 %v5581, %v5579
        %v5682 = vpack.c.b16 %v5584, %v5582
        %v5683 = vpack.c.b16 %v5585, %v5583
        %v5684 = vpack.c.b16 %v5588, %v5586
        %v5685 = vpack.c.b16 %v5589, %v5587
        %v5686 = vpack.c.b16 %v5592, %v5590
        %v5687 = vpack.c.b16 %v5593, %v5591
        %v5688 = vpack.c.b16 %v5596, %v5594
        %v5689 = vpack.c.b16 %v5597, %v5595
        %v5690 = vpack.c.b16 %v5600, %v5598
        %v5691 = vpack.c.b16 %v5601, %v5599
        %v5692 = vpack.c.b16 %v5604, %v5602
        %v5693 = vpack.c.b16 %v5605, %v5603
        %v5694 = vpack.c.b16 %v5608, %v5606
        %v5695 = vpack.c.b16 %v5609, %v5607
        %v5696 = vpack.c.b16 %v5612, %v5610
        %v5697 = vpack.c.b16 %v5613, %v5611
        %v5698 = vpack.c.b16 %v5616, %v5614
        %v5699 = vpack.c.b16 %v5617, %v5615
        %v5700 = vpack.c.b16 %v5620, %v5618
        %v5701 = vpack.c.b16 %v5621, %v5619
        %v5766 = vunpack.c.l.b16 %v5358
        %v5767 = vunpack.c.h.b16 %v5358
        %v5768 = vunpack.c.l.b16 %v5359
        %v5769 = vunpack.c.h.b16 %v5359
        %v5770 = vunpack.c.l.b16 %v5360
        %v5771 = vunpack.c.h.b16 %v5360
        %v5772 = vunpack.c.l.b16 %v5361
        %v5773 = vunpack.c.h.b16 %v5361
        %v5774 = vunpack.c.l.b16 %v5362
        %v5775 = vunpack.c.h.b16 %v5362
        %v5776 = vunpack.c.l.b16 %v5363
        %v5777 = vunpack.c.h.b16 %v5363
        %v5778 = vunpack.c.l.b16 %v5364
        %v5779 = vunpack.c.h.b16 %v5364
        %v5780 = vunpack.c.l.b16 %v5365
        %v5781 = vunpack.c.h.b16 %v5365
        %v5782 = vunpack.c.l.b16 %v5366
        %v5783 = vunpack.c.h.b16 %v5366
        %v5784 = vunpack.c.l.b16 %v5367
        %v5785 = vunpack.c.h.b16 %v5367
        %v5786 = vunpack.c.l.b16 %v5368
        %v5787 = vunpack.c.h.b16 %v5368
        %v5788 = vunpack.c.l.b16 %v5369
        %v5789 = vunpack.c.h.b16 %v5369
        %v5790 = vunpack.c.l.b16 %v5370
        %v5791 = vunpack.c.h.b16 %v5370
        %v5792 = vunpack.c.l.b16 %v5371
        %v5793 = vunpack.c.h.b16 %v5371
        %v5794 = vunpack.c.l.b16 %v5372
        %v5795 = vunpack.c.h.b16 %v5372
        %v5796 = vunpack.c.l.b16 %v5373
        %v5797 = vunpack.c.h.b16 %v5373
        %v5798 = vunpack.c.l.b16 %v5374
        %v5799 = vunpack.c.h.b16 %v5374
        %v5800 = vunpack.c.l.b16 %v5375
        %v5801 = vunpack.c.h.b16 %v5375
        %v5802 = vunpack.c.l.b16 %v5376
        %v5803 = vunpack.c.h.b16 %v5376
        %v5804 = vunpack.c.l.b16 %v5377
        %v5805 = vunpack.c.h.b16 %v5377
        %v5806 = vunpack.c.l.b16 %v5378
        %v5807 = vunpack.c.h.b16 %v5378
        %v5808 = vunpack.c.l.b16 %v5379
        %v5809 = vunpack.c.h.b16 %v5379
        %v5810 = vunpack.c.l.b16 %v5380
        %v5811 = vunpack.c.h.b16 %v5380
        %v5812 = vunpack.c.l.b16 %v5381
        %v5813 = vunpack.c.h.b16 %v5381
        %v5814 = vpack.c.b16 %v5768, %v5766
        %v5815 = vpack.c.b16 %v5769, %v5767
        %v5816 = vpack.c.b16 %v5772, %v5770
        %v5817 = vpack.c.b16 %v5773, %v5771
        %v5818 = vpack.c.b16 %v5776, %v5774
        %v5819 = vpack.c.b16 %v5777, %v5775
        %v5820 = vpack.c.b16 %v5780, %v5778
        %v5821 = vpack.c.b16 %v5781, %v5779
        %v5822 = vpack.c.b16 %v5784, %v5782
        %v5823 = vpack.c.b16 %v5785, %v5783
        %v5824 = vpack.c.b16 %v5788, %v5786
        %v5825 = vpack.c.b16 %v5789, %v5787
        %v5826 = vpack.c.b16 %v5792, %v5790
        %v5827 = vpack.c.b16 %v5793, %v5791
        %v5828 = vpack.c.b16 %v5796, %v5794
        %v5829 = vpack.c.b16 %v5797, %v5795
        %v5830 = vpack.c.b16 %v5800, %v5798
        %v5831 = vpack.c.b16 %v5801, %v5799
        %v5832 = vpack.c.b16 %v5804, %v5802
        %v5833 = vpack.c.b16 %v5805, %v5803
        %v5834 = vpack.c.b16 %v5808, %v5806
        %v5835 = vpack.c.b16 %v5809, %v5807
        %v5836 = vpack.c.b16 %v5812, %v5810
        %v5837 = vpack.c.b16 %v5813, %v5811
        %v5863 = vsel %vm528, %v5623, 0
        %v5866 = vsel %vm528, %v5625, 0
        %v5869 = vsel %vm528, %v5627, 0
        %v5872 = vsel %vm528, %v5629, 0
        %v5875 = vsel %vm528, %v5631, 0
        %v5878 = vsel %vm528, %v5633, 0
        %v5881 = vsel %vm528, %v5635, 0
        %v5884 = vsel %vm528, %v5637, 0
        %v5887 = vsel %vm528, %v5639, 0
        %v5890 = vsel %vm528, %v5641, 0
        %v5893 = vsel %vm528, %v5643, 0
        %v5896 = vsel %vm528, %v5645, 0
        %v5899 = vsel %vm528, %v5647, 0
        %v5902 = vsel %vm528, %v5649, 0
        %v5905 = vsel %vm528, %v5651, 0
        %v5908 = vsel %vm528, %v5653, 0
        %v5911 = vsel %vm528, %v5655, 0
        %v5914 = vsel %vm528, %v5657, 0
        %v5917 = vsel %vm528, %v5659, 0
        %v5920 = vsel %vm528, %v5661, 0
        %v5923 = vsel %vm528, %v5663, 0
        %v5926 = vsel %vm528, %v5665, 0
        %v5929 = vsel %vm528, %v5667, 0
        %v5932 = vsel %vm528, %v5669, 0
        %v5935 = vsel %vm528, %v5671, 0
        %v5938 = vsel %vm528, %v5673, 0
        %v5941 = vsel %vm528, %v5675, 0
        %v5944 = vsel %vm528, %v5677, 0
        %v5947 = vsel %vm528, %v5679, 0
        %v5950 = vsel %vm528, %v5681, 0
        %v5953 = vsel %vm528, %v5683, 0
        %v5956 = vsel %vm528, %v5685, 0
        %v5959 = vsel %vm528, %v5687, 0
        %v5962 = vsel %vm528, %v5689, 0
        %v5965 = vsel %vm528, %v5691, 0
        %v5968 = vsel %vm528, %v5693, 0
        %v5971 = vsel %vm528, %v5695, 0
        %v5974 = vsel %vm528, %v5697, 0
        %v5977 = vsel %vm528, %v5699, 0
        %v5980 = vsel %vm528, %v5701, 0
        %5982 = vmatprep.subr.bf16.mxu0 %v5815
        %5983 = vmatpush1.bf16.msra.mxu0 %v5814
        %5984 = vmatprep.subr.bf16.mxu0 %v5817
        %5985 = vmatpush1.bf16.msra.mxu0 %v5816
        %5986 = vmatprep.subr.bf16.mxu0 %v5819
        %5987 = vmatpush1.bf16.msra.mxu0 %v5818
        %5988 = vmatprep.subr.bf16.mxu0 %v5821
        %5989 = vmatpush1.bf16.msra.mxu0 %v5820
        %5990 = vmatprep.subr.bf16.mxu0 %v5823
        %5991 = vmatpush1.bf16.msra.mxu0 %v5822
        %5992 = vmatprep.subr.bf16.mxu0 %v5825
        %5993 = vmatpush1.bf16.msra.mxu0 %v5824
        %5994 = vmatprep.subr.bf16.mxu0 %v5827
        %5995 = vmatpush1.bf16.msra.mxu0 %v5826
        %5996 = vmatprep.subr.bf16.mxu0 %v5829
        %5997 = vmatpush1.bf16.msra.mxu0 %v5828
        %5998 = vmatprep.subr.bf16.mxu0 %v5831
        %5999 = vmatpush1.bf16.msra.mxu0 %v5830
        %6000 = vmatprep.subr.bf16.mxu0 %v5833
        %6001 = vmatpush1.bf16.msra.mxu0 %v5832
        %6002 = vmatprep.subr.bf16.mxu0 %v5835
        %6003 = vmatpush1.bf16.msra.mxu0 %v5834
        %6004 = vmatprep.subr.bf16.mxu0 %v5837
        %6005 = vmatpush1.bf16.msra.mxu0 %v5836
        %6006 = vmatprep.subr.bf16.mxu0 0
        %6007 = vmatpush1.bf16.msra.mxu0 0
        %6008 = vmatprep.subr.bf16.mxu0 0
        %6009 = vmatpush1.bf16.msra.mxu0 0
        %6010 = vmatprep.subr.bf16.mxu0 0
        %6011 = vmatpush1.bf16.msra.mxu0 0
        %6012 = vmatprep.subr.bf16.mxu0 0
        %6013 = vmatpush1.bf16.msra.mxu0 0
        %6014 = vmatprep.mubr.bf16.mxu0 %v5863
        %6015 = vmatmul.mubr.bf16.gmra.mrb[0].mxu0 %v5622
        %v6016 = vpop.f32.mrb[0].mxu0
        %v6017 = vadd.f32 0.0, %v6016
        %v6018 = vpop.f32.mrb[0].mxu0
        %v6019 = vadd.f32 0.0, %v6018
        %v6020 = vpop.f32.mrb[0].mxu0
        %v6021 = vadd.f32 0.0, %v6020
        %v6022 = vpop.f32.mrb[0].mxu0
        %v6023 = vadd.f32 0.0, %v6022
        %6024 = vmatprep.mubr.bf16.mxu0 %v5866
        %6025 = vmatmul.mubr.bf16.gmra.mrb[0].mxu0 %v5624
        %v6026 = vpop.f32.mrb[0].mxu0
        %v6027 = vadd.f32 0.0, %v6026
        %v6028 = vpop.f32.mrb[0].mxu0
        %v6029 = vadd.f32 0.0, %v6028
        %v6030 = vpop.f32.mrb[0].mxu0
        %v6031 = vadd.f32 0.0, %v6030
        %v6032 = vpop.f32.mrb[0].mxu0
        %v6033 = vadd.f32 0.0, %v6032
        %6034 = vmatprep.mubr.bf16.mxu0 %v5869
        %6035 = vmatmul.mubr.bf16.gmra.mrb[0].mxu0 %v5626
        %v6036 = vpop.f32.mrb[0].mxu0
        %v6037 = vadd.f32 0.0, %v6036
        %v6038 = vpop.f32.mrb[0].mxu0
        %v6039 = vadd.f32 0.0, %v6038
        %v6040 = vpop.f32.mrb[0].mxu0
        %v6041 = vadd.f32 0.0, %v6040
        %v6042 = vpop.f32.mrb[0].mxu0
        %v6043 = vadd.f32 0.0, %v6042
        %6044 = vmatprep.mubr.bf16.mxu0 %v5872
        %6045 = vmatmul.mubr.bf16.gmra.mrb[0].mxu0 %v5628
        %v6046 = vpop.f32.mrb[0].mxu0
        %v6047 = vadd.f32 0.0, %v6046
        %v6048 = vpop.f32.mrb[0].mxu0
        %v6049 = vadd.f32 0.0, %v6048
        %v6050 = vpop.f32.mrb[0].mxu0
        %v6051 = vadd.f32 0.0, %v6050
        %v6052 = vpop.f32.mrb[0].mxu0
        %v6053 = vadd.f32 0.0, %v6052
        %6054 = vmatprep.mubr.bf16.mxu0 %v5875
        %6055 = vmatmul.mubr.bf16.gmra.mrb[0].mxu0 %v5630
        %v6056 = vpop.f32.mrb[0].mxu0
        %v6057 = vadd.f32 0.0, %v6056
        %v6058 = vpop.f32.mrb[0].mxu0
        %v6059 = vadd.f32 0.0, %v6058
        %v6060 = vpop.f32.mrb[0].mxu0
        %v6061 = vadd.f32 0.0, %v6060
        %v6062 = vpop.f32.mrb[0].mxu0
        %v6063 = vadd.f32 0.0, %v6062
        %6064 = vmatprep.mubr.bf16.mxu0 %v5878
        %6065 = vmatmul.mubr.bf16.gmra.mrb[0].mxu0 %v5632
        %v6066 = vpop.f32.mrb[0].mxu0
        %v6067 = vadd.f32 0.0, %v6066
        %v6068 = vpop.f32.mrb[0].mxu0
        %v6069 = vadd.f32 0.0, %v6068
        %v6070 = vpop.f32.mrb[0].mxu0
        %v6071 = vadd.f32 0.0, %v6070
        %v6072 = vpop.f32.mrb[0].mxu0
        %v6073 = vadd.f32 0.0, %v6072
        %6074 = vmatprep.mubr.bf16.mxu0 %v5881
        %6075 = vmatmul.mubr.bf16.gmra.mrb[0].mxu0 %v5634
        %v6076 = vpop.f32.mrb[0].mxu0
        %v6077 = vadd.f32 0.0, %v6076
        %v6078 = vpop.f32.mrb[0].mxu0
        %v6079 = vadd.f32 0.0, %v6078
        %v6080 = vpop.f32.mrb[0].mxu0
        %v6081 = vadd.f32 0.0, %v6080
        %v6082 = vpop.f32.mrb[0].mxu0
        %v6083 = vadd.f32 0.0, %v6082
        %6084 = vmatprep.mubr.bf16.mxu0 %v5884
        %6085 = vmatmul.mubr.bf16.gmra.mrb[0].mxu0 %v5636
        %v6086 = vpop.f32.mrb[0].mxu0
        %v6087 = vadd.f32 0.0, %v6086
        %v6088 = vpop.f32.mrb[0].mxu0
        %v6089 = vadd.f32 0.0, %v6088
        %v6090 = vpop.f32.mrb[0].mxu0
        %v6091 = vadd.f32 0.0, %v6090
        %v6092 = vpop.f32.mrb[0].mxu0
        %v6093 = vadd.f32 0.0, %v6092
        %6094 = vmatprep.mubr.bf16.mxu0 %v5887
        %6095 = vmatmul.mubr.bf16.gmra.mrb[0].mxu0 %v5638
        %v6096 = vpop.f32.mrb[0].mxu0
        %v6097 = vadd.f32 0.0, %v6096
        %v6098 = vpop.f32.mrb[0].mxu0
        %v6099 = vadd.f32 0.0, %v6098
        %v6100 = vpop.f32.mrb[0].mxu0
        %v6101 = vadd.f32 0.0, %v6100
        %v6102 = vpop.f32.mrb[0].mxu0
        %v6103 = vadd.f32 0.0, %v6102
        %6104 = vmatprep.mubr.bf16.mxu0 %v5890
        %6105 = vmatmul.mubr.bf16.gmra.mrb[0].mxu0 %v5640
        %v6106 = vpop.f32.mrb[0].mxu0
        %v6107 = vadd.f32 0.0, %v6106
        %v6108 = vpop.f32.mrb[0].mxu0
        %v6109 = vadd.f32 0.0, %v6108
        %v6110 = vpop.f32.mrb[0].mxu0
        %v6111 = vadd.f32 0.0, %v6110
        %v6112 = vpop.f32.mrb[0].mxu0
        %v6113 = vadd.f32 0.0, %v6112
        %6114 = vmatprep.mubr.bf16.mxu0 %v5893
        %6115 = vmatmul.mubr.bf16.gmra.mrb[0].mxu0 %v5642
        %v6116 = vpop.f32.mrb[0].mxu0
        %v6117 = vadd.f32 0.0, %v6116
        %v6118 = vpop.f32.mrb[0].mxu0
        %v6119 = vadd.f32 0.0, %v6118
        %v6120 = vpop.f32.mrb[0].mxu0
        %v6121 = vadd.f32 0.0, %v6120
        %v6122 = vpop.f32.mrb[0].mxu0
        %v6123 = vadd.f32 0.0, %v6122
        %6124 = vmatprep.mubr.bf16.mxu0 %v5896
        %6125 = vmatmul.mubr.bf16.gmra.mrb[0].mxu0 %v5644
        %v6126 = vpop.f32.mrb[0].mxu0
        %v6127 = vadd.f32 0.0, %v6126
        %v6128 = vpop.f32.mrb[0].mxu0
        %v6129 = vadd.f32 0.0, %v6128
        %v6130 = vpop.f32.mrb[0].mxu0
        %v6131 = vadd.f32 0.0, %v6130
        %v6132 = vpop.f32.mrb[0].mxu0
        %v6133 = vadd.f32 0.0, %v6132
        %6134 = vmatprep.mubr.bf16.mxu0 %v5899
        %6135 = vmatmul.mubr.bf16.gmra.mrb[0].mxu0 %v5646
        %v6136 = vpop.f32.mrb[0].mxu0
        %v6137 = vadd.f32 0.0, %v6136
        %v6138 = vpop.f32.mrb[0].mxu0
        %v6139 = vadd.f32 0.0, %v6138
        %v6140 = vpop.f32.mrb[0].mxu0
        %v6141 = vadd.f32 0.0, %v6140
        %v6142 = vpop.f32.mrb[0].mxu0
        %v6143 = vadd.f32 0.0, %v6142
        %6144 = vmatprep.mubr.bf16.mxu0 %v5902
        %6145 = vmatmul.mubr.bf16.gmra.mrb[0].mxu0 %v5648
        %v6146 = vpop.f32.mrb[0].mxu0
        %v6147 = vadd.f32 0.0, %v6146
        %v6148 = vpop.f32.mrb[0].mxu0
        %v6149 = vadd.f32 0.0, %v6148
        %v6150 = vpop.f32.mrb[0].mxu0
        %v6151 = vadd.f32 0.0, %v6150
        %v6152 = vpop.f32.mrb[0].mxu0
        %v6153 = vadd.f32 0.0, %v6152
        %6154 = vmatprep.mubr.bf16.mxu0 %v5905
        %6155 = vmatmul.mubr.bf16.gmra.mrb[0].mxu0 %v5650
        %v6156 = vpop.f32.mrb[0].mxu0
        %v6157 = vadd.f32 0.0, %v6156
        %v6158 = vpop.f32.mrb[0].mxu0
        %v6159 = vadd.f32 0.0, %v6158
        %v6160 = vpop.f32.mrb[0].mxu0
        %v6161 = vadd.f32 0.0, %v6160
        %v6162 = vpop.f32.mrb[0].mxu0
        %v6163 = vadd.f32 0.0, %v6162
        %6164 = vmatprep.mubr.bf16.mxu0 %v5908
        %6165 = vmatmul.mubr.bf16.gmra.mrb[0].mxu0 %v5652
        %v6166 = vpop.f32.mrb[0].mxu0
        %v6167 = vadd.f32 0.0, %v6166
        %v6168 = vpop.f32.mrb[0].mxu0
        %v6169 = vadd.f32 0.0, %v6168
        %v6170 = vpop.f32.mrb[0].mxu0
        %v6171 = vadd.f32 0.0, %v6170
        %v6172 = vpop.f32.mrb[0].mxu0
        %v6173 = vadd.f32 0.0, %v6172
        %6174 = vmatprep.mubr.bf16.mxu0 %v5911
        %6175 = vmatmul.mubr.bf16.gmra.mrb[0].mxu0 %v5654
        %v6176 = vpop.f32.mrb[0].mxu0
        %v6177 = vadd.f32 0.0, %v6176
        %v6178 = vpop.f32.mrb[0].mxu0
        %v6179 = vadd.f32 0.0, %v6178
        %v6180 = vpop.f32.mrb[0].mxu0
        %v6181 = vadd.f32 0.0, %v6180
        %v6182 = vpop.f32.mrb[0].mxu0
        %v6183 = vadd.f32 0.0, %v6182
        %6184 = vmatprep.mubr.bf16.mxu0 %v5914
        %6185 = vmatmul.mubr.bf16.gmra.mrb[0].mxu0 %v5656
        %v6186 = vpop.f32.mrb[0].mxu0
        %v6187 = vadd.f32 0.0, %v6186
        %v6188 = vpop.f32.mrb[0].mxu0
        %v6189 = vadd.f32 0.0, %v6188
        %v6190 = vpop.f32.mrb[0].mxu0
        %v6191 = vadd.f32 0.0, %v6190
        %v6192 = vpop.f32.mrb[0].mxu0
        %v6193 = vadd.f32 0.0, %v6192
        %6194 = vmatprep.mubr.bf16.mxu0 %v5917
        %6195 = vmatmul.mubr.bf16.gmra.mrb[0].mxu0 %v5658
        %v6196 = vpop.f32.mrb[0].mxu0
        %v6197 = vadd.f32 0.0, %v6196
        %v6198 = vpop.f32.mrb[0].mxu0
        %v6199 = vadd.f32 0.0, %v6198
        %v6200 = vpop.f32.mrb[0].mxu0
        %v6201 = vadd.f32 0.0, %v6200
        %v6202 = vpop.f32.mrb[0].mxu0
        %v6203 = vadd.f32 0.0, %v6202
        %6204 = vmatprep.mubr.bf16.mxu0 %v5920
        %6205 = vmatmul.mubr.bf16.gmra.mrb[0].mxu0 %v5660
        %v6206 = vpop.f32.mrb[0].mxu0
        %v6207 = vadd.f32 0.0, %v6206
        %v6208 = vpop.f32.mrb[0].mxu0
        %v6209 = vadd.f32 0.0, %v6208
        %v6210 = vpop.f32.mrb[0].mxu0
        %v6211 = vadd.f32 0.0, %v6210
        %v6212 = vpop.f32.mrb[0].mxu0
        %v6213 = vadd.f32 0.0, %v6212
        %6214 = vmatprep.mubr.bf16.mxu0 %v5923
        %6215 = vmatmul.mubr.bf16.gmra.mrb[0].mxu0 %v5662
        %v6216 = vpop.f32.mrb[0].mxu0
        %v6217 = vadd.f32 0.0, %v6216
        %v6218 = vpop.f32.mrb[0].mxu0
        %v6219 = vadd.f32 0.0, %v6218
        %v6220 = vpop.f32.mrb[0].mxu0
        %v6221 = vadd.f32 0.0, %v6220
        %v6222 = vpop.f32.mrb[0].mxu0
        %v6223 = vadd.f32 0.0, %v6222
        %6224 = vmatprep.mubr.bf16.mxu0 %v5926
        %6225 = vmatmul.mubr.bf16.gmra.mrb[0].mxu0 %v5664
        %v6226 = vpop.f32.mrb[0].mxu0
        %v6227 = vadd.f32 0.0, %v6226
        %v6228 = vpop.f32.mrb[0].mxu0
        %v6229 = vadd.f32 0.0, %v6228
        %v6230 = vpop.f32.mrb[0].mxu0
        %v6231 = vadd.f32 0.0, %v6230
        %v6232 = vpop.f32.mrb[0].mxu0
        %v6233 = vadd.f32 0.0, %v6232
        %6234 = vmatprep.mubr.bf16.mxu0 %v5929
        %6235 = vmatmul.mubr.bf16.gmra.mrb[0].mxu0 %v5666
        %v6236 = vpop.f32.mrb[0].mxu0
        %v6237 = vadd.f32 0.0, %v6236
        %v6238 = vpop.f32.mrb[0].mxu0
        %v6239 = vadd.f32 0.0, %v6238
        %v6240 = vpop.f32.mrb[0].mxu0
        %v6241 = vadd.f32 0.0, %v6240
        %v6242 = vpop.f32.mrb[0].mxu0
        %v6243 = vadd.f32 0.0, %v6242
        %6244 = vmatprep.mubr.bf16.mxu0 %v5932
        %6245 = vmatmul.mubr.bf16.gmra.mrb[0].mxu0 %v5668
        %v6246 = vpop.f32.mrb[0].mxu0
        %v6247 = vadd.f32 0.0, %v6246
        %v6248 = vpop.f32.mrb[0].mxu0
        %v6249 = vadd.f32 0.0, %v6248
        %v6250 = vpop.f32.mrb[0].mxu0
        %v6251 = vadd.f32 0.0, %v6250
        %v6252 = vpop.f32.mrb[0].mxu0
        %v6253 = vadd.f32 0.0, %v6252
        %6254 = vmatprep.mubr.bf16.mxu0 %v5935
        %6255 = vmatmul.mubr.bf16.gmra.mrb[0].mxu0 %v5670
        %v6256 = vpop.f32.mrb[0].mxu0
        %v6257 = vadd.f32 0.0, %v6256
        %v6258 = vpop.f32.mrb[0].mxu0
        %v6259 = vadd.f32 0.0, %v6258
        %v6260 = vpop.f32.mrb[0].mxu0
        %v6261 = vadd.f32 0.0, %v6260
        %v6262 = vpop.f32.mrb[0].mxu0
        %v6263 = vadd.f32 0.0, %v6262
        %6264 = vmatprep.mubr.bf16.mxu0 %v5938
        %6265 = vmatmul.mubr.bf16.gmra.mrb[0].mxu0 %v5672
        %v6266 = vpop.f32.mrb[0].mxu0
        %v6267 = vadd.f32 0.0, %v6266
        %v6268 = vpop.f32.mrb[0].mxu0
        %v6269 = vadd.f32 0.0, %v6268
        %v6270 = vpop.f32.mrb[0].mxu0
        %v6271 = vadd.f32 0.0, %v6270
        %v6272 = vpop.f32.mrb[0].mxu0
        %v6273 = vadd.f32 0.0, %v6272
        %6274 = vmatprep.mubr.bf16.mxu0 %v5941
        %6275 = vmatmul.mubr.bf16.gmra.mrb[0].mxu0 %v5674
        %v6276 = vpop.f32.mrb[0].mxu0
        %v6277 = vadd.f32 0.0, %v6276
        %v6278 = vpop.f32.mrb[0].mxu0
        %v6279 = vadd.f32 0.0, %v6278
        %v6280 = vpop.f32.mrb[0].mxu0
        %v6281 = vadd.f32 0.0, %v6280
        %v6282 = vpop.f32.mrb[0].mxu0
        %v6283 = vadd.f32 0.0, %v6282
        %6284 = vmatprep.mubr.bf16.mxu0 %v5944
        %6285 = vmatmul.mubr.bf16.gmra.mrb[0].mxu0 %v5676
        %v6286 = vpop.f32.mrb[0].mxu0
        %v6287 = vadd.f32 0.0, %v6286
        %v6288 = vpop.f32.mrb[0].mxu0
        %v6289 = vadd.f32 0.0, %v6288
        %v6290 = vpop.f32.mrb[0].mxu0
        %v6291 = vadd.f32 0.0, %v6290
        %v6292 = vpop.f32.mrb[0].mxu0
        %v6293 = vadd.f32 0.0, %v6292
        %6294 = vmatprep.mubr.bf16.mxu0 %v5947
        %6295 = vmatmul.mubr.bf16.gmra.mrb[0].mxu0 %v5678
        %v6296 = vpop.f32.mrb[0].mxu0
        %v6297 = vadd.f32 0.0, %v6296
        %v6298 = vpop.f32.mrb[0].mxu0
        %v6299 = vadd.f32 0.0, %v6298
        %v6300 = vpop.f32.mrb[0].mxu0
        %v6301 = vadd.f32 0.0, %v6300
        %v6302 = vpop.f32.mrb[0].mxu0
        %v6303 = vadd.f32 0.0, %v6302
        %6304 = vmatprep.mubr.bf16.mxu0 %v5950
        %6305 = vmatmul.mubr.bf16.gmra.mrb[0].mxu0 %v5680
        %v6306 = vpop.f32.mrb[0].mxu0
        %v6307 = vadd.f32 0.0, %v6306
        %v6308 = vpop.f32.mrb[0].mxu0
        %v6309 = vadd.f32 0.0, %v6308
        %v6310 = vpop.f32.mrb[0].mxu0
        %v6311 = vadd.f32 0.0, %v6310
        %v6312 = vpop.f32.mrb[0].mxu0
        %v6313 = vadd.f32 0.0, %v6312
        %6314 = vmatprep.mubr.bf16.mxu0 %v5953
        %6315 = vmatmul.mubr.bf16.gmra.mrb[0].mxu0 %v5682
        %v6316 = vpop.f32.mrb[0].mxu0
        %v6317 = vadd.f32 0.0, %v6316
        %v6318 = vpop.f32.mrb[0].mxu0
        %v6319 = vadd.f32 0.0, %v6318
        %v6320 = vpop.f32.mrb[0].mxu0
        %v6321 = vadd.f32 0.0, %v6320
        %v6322 = vpop.f32.mrb[0].mxu0
        %v6323 = vadd.f32 0.0, %v6322
        %6324 = vmatprep.mubr.bf16.mxu0 %v5956
        %6325 = vmatmul.mubr.bf16.gmra.mrb[0].mxu0 %v5684
        %v6326 = vpop.f32.mrb[0].mxu0
        %v6327 = vadd.f32 0.0, %v6326
        %v6328 = vpop.f32.mrb[0].mxu0
        %v6329 = vadd.f32 0.0, %v6328
        %v6330 = vpop.f32.mrb[0].mxu0
        %v6331 = vadd.f32 0.0, %v6330
        %v6332 = vpop.f32.mrb[0].mxu0
        %v6333 = vadd.f32 0.0, %v6332
        %6334 = vmatprep.mubr.bf16.mxu0 %v5959
        %6335 = vmatmul.mubr.bf16.gmra.mrb[0].mxu0 %v5686
        %v6336 = vpop.f32.mrb[0].mxu0
        %v6337 = vadd.f32 0.0, %v6336
        %v6338 = vpop.f32.mrb[0].mxu0
        %v6339 = vadd.f32 0.0, %v6338
        %v6340 = vpop.f32.mrb[0].mxu0
        %v6341 = vadd.f32 0.0, %v6340
        %v6342 = vpop.f32.mrb[0].mxu0
        %v6343 = vadd.f32 0.0, %v6342
        %6344 = vmatprep.mubr.bf16.mxu0 %v5962
        %6345 = vmatmul.mubr.bf16.gmra.mrb[0].mxu0 %v5688
        %v6346 = vpop.f32.mrb[0].mxu0
        %v6347 = vadd.f32 0.0, %v6346
        %v6348 = vpop.f32.mrb[0].mxu0
        %v6349 = vadd.f32 0.0, %v6348
        %v6350 = vpop.f32.mrb[0].mxu0
        %v6351 = vadd.f32 0.0, %v6350
        %v6352 = vpop.f32.mrb[0].mxu0
        %v6353 = vadd.f32 0.0, %v6352
        %6354 = vmatprep.mubr.bf16.mxu0 %v5965
        %6355 = vmatmul.mubr.bf16.gmra.mrb[0].mxu0 %v5690
        %v6356 = vpop.f32.mrb[0].mxu0
        %v6357 = vadd.f32 0.0, %v6356
        %v6358 = vpop.f32.mrb[0].mxu0
        %v6359 = vadd.f32 0.0, %v6358
        %v6360 = vpop.f32.mrb[0].mxu0
        %v6361 = vadd.f32 0.0, %v6360
        %v6362 = vpop.f32.mrb[0].mxu0
        %v6363 = vadd.f32 0.0, %v6362
        %6364 = vmatprep.mubr.bf16.mxu0 %v5968
        %6365 = vmatmul.mubr.bf16.gmra.mrb[0].mxu0 %v5692
        %v6366 = vpop.f32.mrb[0].mxu0
        %v6367 = vadd.f32 0.0, %v6366
        %v6368 = vpop.f32.mrb[0].mxu0
        %v6369 = vadd.f32 0.0, %v6368
        %v6370 = vpop.f32.mrb[0].mxu0
        %v6371 = vadd.f32 0.0, %v6370
        %v6372 = vpop.f32.mrb[0].mxu0
        %v6373 = vadd.f32 0.0, %v6372
        %6374 = vmatprep.mubr.bf16.mxu0 %v5971
        %6375 = vmatmul.mubr.bf16.gmra.mrb[0].mxu0 %v5694
        %v6376 = vpop.f32.mrb[0].mxu0
        %v6377 = vadd.f32 0.0, %v6376
        %v6378 = vpop.f32.mrb[0].mxu0
        %v6379 = vadd.f32 0.0, %v6378
        %v6380 = vpop.f32.mrb[0].mxu0
        %v6381 = vadd.f32 0.0, %v6380
        %v6382 = vpop.f32.mrb[0].mxu0
        %v6383 = vadd.f32 0.0, %v6382
        %6384 = vmatprep.mubr.bf16.mxu0 %v5974
        %6385 = vmatmul.mubr.bf16.gmra.mrb[0].mxu0 %v5696
        %v6386 = vpop.f32.mrb[0].mxu0
        %v6387 = vadd.f32 0.0, %v6386
        %v6388 = vpop.f32.mrb[0].mxu0
        %v6389 = vadd.f32 0.0, %v6388
        %v6390 = vpop.f32.mrb[0].mxu0
        %v6391 = vadd.f32 0.0, %v6390
        %v6392 = vpop.f32.mrb[0].mxu0
        %v6393 = vadd.f32 0.0, %v6392
        %6394 = vmatprep.mubr.bf16.mxu0 %v5977
        %6395 = vmatmul.mubr.bf16.gmra.mrb[0].mxu0 %v5698
        %v6396 = vpop.f32.mrb[0].mxu0
        %v6397 = vadd.f32 0.0, %v6396
        %v6398 = vpop.f32.mrb[0].mxu0
        %v6399 = vadd.f32 0.0, %v6398
        %v6400 = vpop.f32.mrb[0].mxu0
        %v6401 = vadd.f32 0.0, %v6400
        %v6402 = vpop.f32.mrb[0].mxu0
        %v6403 = vadd.f32 0.0, %v6402
        %6404 = vmatprep.mubr.bf16.mxu0 %v5980
        %6405 = vmatmul.mubr.bf16.gmra.mrb[0].mxu0 %v5700
        %v6406 = vpop.f32.mrb[0].mxu0
        %v6407 = vadd.f32 0.0, %v6406
        %v6408 = vpop.f32.mrb[0].mxu0
        %v6409 = vadd.f32 0.0, %v6408
        %v6410 = vpop.f32.mrb[0].mxu0
        %v6411 = vadd.f32 0.0, %v6410
        %v6412 = vpop.f32.mrb[0].mxu0
        %v6413 = vadd.f32 0.0, %v6412
        %6414 = vdwg.mxu0
        %v6415 = vld [vmem:[#allocation3] sm:$0xff]
        %v6416 = vld [vmem:[#allocation3 + $0x8] sm:$0xff]
        %v6417 = vld [vmem:[#allocation3 + $0x10] sm:$0xff]
        %v6418 = vld [vmem:[#allocation3 + $0x18] sm:$0xff]
        %v6419 = vld [vmem:[#allocation3 + $0x20] sm:$0xff]
        %v6420 = vld [vmem:[#allocation3 + $0x28] sm:$0xff]
        %v6421 = vld [vmem:[#allocation3 + $0x30] sm:$0xff]
        %v6422 = vld [vmem:[#allocation3 + $0x38] sm:$0xff]
        %v6423 = vld [vmem:[#allocation3 + $0x40] sm:$0xff]
        %v6424 = vld [vmem:[#allocation3 + $0x48] sm:$0xff]
        %v6425 = vld [vmem:[#allocation3 + $0x50] sm:$0xff]
        %v6426 = vld [vmem:[#allocation3 + $0x58] sm:$0xff]
        %v6427 = vld [vmem:[#allocation3 + $0x60] sm:$0xff]
        %v6428 = vld [vmem:[#allocation3 + $0x68] sm:$0xff]
        %v6429 = vld [vmem:[#allocation3 + $0x70] sm:$0xff]
        %v6430 = vld [vmem:[#allocation3 + $0x78] sm:$0xff]
        %v6431 = vld [vmem:[#allocation3 + $0x80] sm:$0xff]
        %v6432 = vld [vmem:[#allocation3 + $0x88] sm:$0xff]
        %v6433 = vld [vmem:[#allocation3 + $0x90] sm:$0xff]
        %v6434 = vld [vmem:[#allocation3 + $0x98] sm:$0xff]
        %v6435 = vld [vmem:[#allocation3 + $0xa0] sm:$0xff]
        %v6436 = vld [vmem:[#allocation3 + $0xa8] sm:$0xff]
        %v6437 = vld [vmem:[#allocation3 + $0xb0] sm:$0xff]
        %v6438 = vld [vmem:[#allocation3 + $0xb8] sm:$0xff]
        %v6439 = vld [vmem:[#allocation3 + $0xc0] sm:$0xff]
        %v6440 = vld [vmem:[#allocation3 + $0xc8] sm:$0xff]
        %v6441 = vld [vmem:[#allocation3 + $0xd0] sm:$0xff]
        %v6442 = vld [vmem:[#allocation3 + $0xd8] sm:$0xff]
        %v6443 = vld [vmem:[#allocation3 + $0xe0] sm:$0xff]
        %v6444 = vld [vmem:[#allocation3 + $0xe8] sm:$0xff]
        %v6445 = vld [vmem:[#allocation3 + $0xf0] sm:$0xff]
        %v6446 = vld [vmem:[#allocation3 + $0xf8] sm:$0xff]
        %v6447 = vld [vmem:[#allocation3 + $0x100] sm:$0xff]
        %v6448 = vld [vmem:[#allocation3 + $0x108] sm:$0xff]
        %v6449 = vld [vmem:[#allocation3 + $0x110] sm:$0xff]
        %v6450 = vld [vmem:[#allocation3 + $0x118] sm:$0xff]
        %v6451 = vld [vmem:[#allocation3 + $0x120] sm:$0xff]
        %v6452 = vld [vmem:[#allocation3 + $0x128] sm:$0xff]
        %v6453 = vld [vmem:[#allocation3 + $0x130] sm:$0xff]
        %v6454 = vld [vmem:[#allocation3 + $0x138] sm:$0xff]
        %v6455 = vld [vmem:[#allocation3 + $0x140] sm:$0xff]
        %v6456 = vld [vmem:[#allocation3 + $0x148] sm:$0xff]
        %v6457 = vld [vmem:[#allocation3 + $0x150] sm:$0xff]
        %v6458 = vld [vmem:[#allocation3 + $0x158] sm:$0xff]
        %v6459 = vld [vmem:[#allocation3 + $0x160] sm:$0xff]
        %v6460 = vld [vmem:[#allocation3 + $0x168] sm:$0xff]
        %v6461 = vld [vmem:[#allocation3 + $0x170] sm:$0xff]
        %v6462 = vld [vmem:[#allocation3 + $0x178] sm:$0xff]
        %v6463 = vld [vmem:[#allocation3 + $0x180] sm:$0xff]
        %v6464 = vld [vmem:[#allocation3 + $0x188] sm:$0xff]
        %v6465 = vld [vmem:[#allocation3 + $0x190] sm:$0xff]
        %v6466 = vld [vmem:[#allocation3 + $0x198] sm:$0xff]
        %v6467 = vld [vmem:[#allocation3 + $0x1a0] sm:$0xff]
        %v6468 = vld [vmem:[#allocation3 + $0x1a8] sm:$0xff]
        %v6469 = vld [vmem:[#allocation3 + $0x1b0] sm:$0xff]
        %v6470 = vld [vmem:[#allocation3 + $0x1b8] sm:$0xff]
        %v6471 = vld [vmem:[#allocation3 + $0x1c0] sm:$0xff]
        %v6472 = vld [vmem:[#allocation3 + $0x1c8] sm:$0xff]
        %v6473 = vld [vmem:[#allocation3 + $0x1d0] sm:$0xff]
        %v6474 = vld [vmem:[#allocation3 + $0x1d8] sm:$0xff]
        %v6475 = vld [vmem:[#allocation3 + $0x1e0] sm:$0xff]
        %v6476 = vld [vmem:[#allocation3 + $0x1e8] sm:$0xff]
        %v6477 = vld [vmem:[#allocation3 + $0x1f0] sm:$0xff]
        %v6478 = vld [vmem:[#allocation3 + $0x1f8] sm:$0xff]
        %v6479 = vld [vmem:[#allocation3 + $0x200] sm:$0xff]
        %v6480 = vld [vmem:[#allocation3 + $0x208] sm:$0xff]
        %v6481 = vld [vmem:[#allocation3 + $0x210] sm:$0xff]
        %v6482 = vld [vmem:[#allocation3 + $0x218] sm:$0xff]
        %v6483 = vld [vmem:[#allocation3 + $0x220] sm:$0xff]
        %v6484 = vld [vmem:[#allocation3 + $0x228] sm:$0xff]
        %v6485 = vld [vmem:[#allocation3 + $0x230] sm:$0xff]
        %v6486 = vld [vmem:[#allocation3 + $0x238] sm:$0xff]
        %v6487 = vld [vmem:[#allocation3 + $0x240] sm:$0xff]
        %v6488 = vld [vmem:[#allocation3 + $0x248] sm:$0xff]
        %v6489 = vld [vmem:[#allocation3 + $0x250] sm:$0xff]
        %v6490 = vld [vmem:[#allocation3 + $0x258] sm:$0xff]
        %v6491 = vld [vmem:[#allocation3 + $0x260] sm:$0xff]
        %v6492 = vld [vmem:[#allocation3 + $0x268] sm:$0xff]
        %v6493 = vld [vmem:[#allocation3 + $0x270] sm:$0xff]
        %v6494 = vld [vmem:[#allocation3 + $0x278] sm:$0xff]
        %v6495 = vld [vmem:[#allocation3 + $0x280] sm:$0xff]
        %v6496 = vld [vmem:[#allocation3 + $0x288] sm:$0xff]
        %v6497 = vld [vmem:[#allocation3 + $0x290] sm:$0xff]
        %v6498 = vld [vmem:[#allocation3 + $0x298] sm:$0xff]
        %v6499 = vld [vmem:[#allocation3 + $0x2a0] sm:$0xff]
        %v6500 = vld [vmem:[#allocation3 + $0x2a8] sm:$0xff]
        %v6501 = vld [vmem:[#allocation3 + $0x2b0] sm:$0xff]
        %v6502 = vld [vmem:[#allocation3 + $0x2b8] sm:$0xff]
        %v6503 = vld [vmem:[#allocation3 + $0x2c0] sm:$0xff]
        %v6504 = vld [vmem:[#allocation3 + $0x2c8] sm:$0xff]
        %v6505 = vld [vmem:[#allocation3 + $0x2d0] sm:$0xff]
        %v6506 = vld [vmem:[#allocation3 + $0x2d8] sm:$0xff]
        %v6507 = vld [vmem:[#allocation3 + $0x2e0] sm:$0xff]
        %v6508 = vld [vmem:[#allocation3 + $0x2e8] sm:$0xff]
        %v6509 = vld [vmem:[#allocation3 + $0x2f0] sm:$0xff]
        %v6510 = vld [vmem:[#allocation3 + $0x2f8] sm:$0xff]
        %v6511 = vld [vmem:[#allocation3 + $0x300] sm:$0xff]
        %v6512 = vld [vmem:[#allocation3 + $0x308] sm:$0xff]
        %v6513 = vld [vmem:[#allocation3 + $0x310] sm:$0xff]
        %v6514 = vld [vmem:[#allocation3 + $0x318] sm:$0xff]
        %v6515 = vld [vmem:[#allocation3 + $0x320] sm:$0xff]
        %v6516 = vld [vmem:[#allocation3 + $0x328] sm:$0xff]
        %v6517 = vld [vmem:[#allocation3 + $0x330] sm:$0xff]
        %v6518 = vld [vmem:[#allocation3 + $0x338] sm:$0xff]
        %v6519 = vld [vmem:[#allocation3 + $0x340] sm:$0xff]
        %v6520 = vld [vmem:[#allocation3 + $0x348] sm:$0xff]
        %v6521 = vld [vmem:[#allocation3 + $0x350] sm:$0xff]
        %v6522 = vld [vmem:[#allocation3 + $0x358] sm:$0xff]
        %v6523 = vld [vmem:[#allocation3 + $0x360] sm:$0xff]
        %v6524 = vld [vmem:[#allocation3 + $0x368] sm:$0xff]
        %v6525 = vld [vmem:[#allocation3 + $0x370] sm:$0xff]
        %v6526 = vld [vmem:[#allocation3 + $0x378] sm:$0xff]
        %v6527 = vld [vmem:[#allocation3 + $0x380] sm:$0xff]
        %v6528 = vld [vmem:[#allocation3 + $0x388] sm:$0xff]
        %v6529 = vld [vmem:[#allocation3 + $0x390] sm:$0xff]
        %v6530 = vld [vmem:[#allocation3 + $0x398] sm:$0xff]
        %v6531 = vld [vmem:[#allocation3 + $0x3a0] sm:$0xff]
        %v6532 = vld [vmem:[#allocation3 + $0x3a8] sm:$0xff]
        %v6533 = vld [vmem:[#allocation3 + $0x3b0] sm:$0xff]
        %v6534 = vld [vmem:[#allocation3 + $0x3b8] sm:$0xff]
        %v6535 = vld [vmem:[#allocation3 + $0x3c0] sm:$0xff]
        %v6536 = vld [vmem:[#allocation3 + $0x3c8] sm:$0xff]
        %v6537 = vld [vmem:[#allocation3 + $0x3d0] sm:$0xff]
        %v6538 = vld [vmem:[#allocation3 + $0x3d8] sm:$0xff]
        %v6539 = vld [vmem:[#allocation3 + $0x3e0] sm:$0xff]
        %v6540 = vld [vmem:[#allocation3 + $0x3e8] sm:$0xff]
        %v6541 = vld [vmem:[#allocation3 + $0x3f0] sm:$0xff]
        %v6542 = vld [vmem:[#allocation3 + $0x3f8] sm:$0xff]
        %v6543 = vld [vmem:[#allocation3 + $0x400] sm:$0xff]
        %v6544 = vld [vmem:[#allocation3 + $0x408] sm:$0xff]
        %v6545 = vld [vmem:[#allocation3 + $0x410] sm:$0xff]
        %v6546 = vld [vmem:[#allocation3 + $0x418] sm:$0xff]
        %v6547 = vld [vmem:[#allocation3 + $0x420] sm:$0xff]
        %v6548 = vld [vmem:[#allocation3 + $0x428] sm:$0xff]
        %v6549 = vld [vmem:[#allocation3 + $0x430] sm:$0xff]
        %v6550 = vld [vmem:[#allocation3 + $0x438] sm:$0xff]
        %v6551 = vld [vmem:[#allocation3 + $0x440] sm:$0xff]
        %v6552 = vld [vmem:[#allocation3 + $0x448] sm:$0xff]
        %v6553 = vld [vmem:[#allocation3 + $0x450] sm:$0xff]
        %v6554 = vld [vmem:[#allocation3 + $0x458] sm:$0xff]
        %v6555 = vld [vmem:[#allocation3 + $0x460] sm:$0xff]
        %v6556 = vld [vmem:[#allocation3 + $0x468] sm:$0xff]
        %v6557 = vld [vmem:[#allocation3 + $0x470] sm:$0xff]
        %v6558 = vld [vmem:[#allocation3 + $0x478] sm:$0xff]
        %v6559 = vld [vmem:[#allocation3 + $0x480] sm:$0xff]
        %v6560 = vld [vmem:[#allocation3 + $0x488] sm:$0xff]
        %v6561 = vld [vmem:[#allocation3 + $0x490] sm:$0xff]
        %v6562 = vld [vmem:[#allocation3 + $0x498] sm:$0xff]
        %v6563 = vld [vmem:[#allocation3 + $0x4a0] sm:$0xff]
        %v6564 = vld [vmem:[#allocation3 + $0x4a8] sm:$0xff]
        %v6565 = vld [vmem:[#allocation3 + $0x4b0] sm:$0xff]
        %v6566 = vld [vmem:[#allocation3 + $0x4b8] sm:$0xff]
        %v6567 = vld [vmem:[#allocation3 + $0x4c0] sm:$0xff]
        %v6568 = vld [vmem:[#allocation3 + $0x4c8] sm:$0xff]
        %v6569 = vld [vmem:[#allocation3 + $0x4d0] sm:$0xff]
        %v6570 = vld [vmem:[#allocation3 + $0x4d8] sm:$0xff]
        %v6571 = vld [vmem:[#allocation3 + $0x4e0] sm:$0xff]
        %v6572 = vld [vmem:[#allocation3 + $0x4e8] sm:$0xff]
        %v6573 = vld [vmem:[#allocation3 + $0x4f0] sm:$0xff]
        %v6574 = vld [vmem:[#allocation3 + $0x4f8] sm:$0xff]
        %v6575 = vadd.f32 %v6415, %v6017
        %v6576 = vadd.f32 %v6416, %v6019
        %v6577 = vadd.f32 %v6417, %v6021
        %v6578 = vadd.f32 %v6418, %v6023
        %v6579 = vadd.f32 %v6419, %v6027
        %v6580 = vadd.f32 %v6420, %v6029
        %v6581 = vadd.f32 %v6421, %v6031
        %v6582 = vadd.f32 %v6422, %v6033
        %v6583 = vadd.f32 %v6423, %v6037
        %v6584 = vadd.f32 %v6424, %v6039
        %v6585 = vadd.f32 %v6425, %v6041
        %v6586 = vadd.f32 %v6426, %v6043
        %v6587 = vadd.f32 %v6427, %v6047
        %v6588 = vadd.f32 %v6428, %v6049
        %v6589 = vadd.f32 %v6429, %v6051
        %v6590 = vadd.f32 %v6430, %v6053
        %v6591 = vadd.f32 %v6431, %v6057
        %v6592 = vadd.f32 %v6432, %v6059
        %v6593 = vadd.f32 %v6433, %v6061
        %v6594 = vadd.f32 %v6434, %v6063
        %v6595 = vadd.f32 %v6435, %v6067
        %v6596 = vadd.f32 %v6436, %v6069
        %v6597 = vadd.f32 %v6437, %v6071
        %v6598 = vadd.f32 %v6438, %v6073
        %v6599 = vadd.f32 %v6439, %v6077
        %v6600 = vadd.f32 %v6440, %v6079
        %v6601 = vadd.f32 %v6441, %v6081
        %v6602 = vadd.f32 %v6442, %v6083
        %v6603 = vadd.f32 %v6443, %v6087
        %v6604 = vadd.f32 %v6444, %v6089
        %v6605 = vadd.f32 %v6445, %v6091
        %v6606 = vadd.f32 %v6446, %v6093
        %v6607 = vadd.f32 %v6447, %v6097
        %v6608 = vadd.f32 %v6448, %v6099
        %v6609 = vadd.f32 %v6449, %v6101
        %v6610 = vadd.f32 %v6450, %v6103
        %v6611 = vadd.f32 %v6451, %v6107
        %v6612 = vadd.f32 %v6452, %v6109
        %v6613 = vadd.f32 %v6453, %v6111
        %v6614 = vadd.f32 %v6454, %v6113
        %v6615 = vadd.f32 %v6455, %v6117
        %v6616 = vadd.f32 %v6456, %v6119
        %v6617 = vadd.f32 %v6457, %v6121
        %v6618 = vadd.f32 %v6458, %v6123
        %v6619 = vadd.f32 %v6459, %v6127
        %v6620 = vadd.f32 %v6460, %v6129
        %v6621 = vadd.f32 %v6461, %v6131
        %v6622 = vadd.f32 %v6462, %v6133
        %v6623 = vadd.f32 %v6463, %v6137
        %v6624 = vadd.f32 %v6464, %v6139
        %v6625 = vadd.f32 %v6465, %v6141
        %v6626 = vadd.f32 %v6466, %v6143
        %v6627 = vadd.f32 %v6467, %v6147
        %v6628 = vadd.f32 %v6468, %v6149
        %v6629 = vadd.f32 %v6469, %v6151
        %v6630 = vadd.f32 %v6470, %v6153
        %v6631 = vadd.f32 %v6471, %v6157
        %v6632 = vadd.f32 %v6472, %v6159
        %v6633 = vadd.f32 %v6473, %v6161
        %v6634 = vadd.f32 %v6474, %v6163
        %v6635 = vadd.f32 %v6475, %v6167
        %v6636 = vadd.f32 %v6476, %v6169
        %v6637 = vadd.f32 %v6477, %v6171
        %v6638 = vadd.f32 %v6478, %v6173
        %v6639 = vadd.f32 %v6479, %v6177
        %v6640 = vadd.f32 %v6480, %v6179
        %v6641 = vadd.f32 %v6481, %v6181
        %v6642 = vadd.f32 %v6482, %v6183
        %v6643 = vadd.f32 %v6483, %v6187
        %v6644 = vadd.f32 %v6484, %v6189
        %v6645 = vadd.f32 %v6485, %v6191
        %v6646 = vadd.f32 %v6486, %v6193
        %v6647 = vadd.f32 %v6487, %v6197
        %v6648 = vadd.f32 %v6488, %v6199
        %v6649 = vadd.f32 %v6489, %v6201
        %v6650 = vadd.f32 %v6490, %v6203
        %v6651 = vadd.f32 %v6491, %v6207
        %v6652 = vadd.f32 %v6492, %v6209
        %v6653 = vadd.f32 %v6493, %v6211
        %v6654 = vadd.f32 %v6494, %v6213
        %v6655 = vadd.f32 %v6495, %v6217
        %v6656 = vadd.f32 %v6496, %v6219
        %v6657 = vadd.f32 %v6497, %v6221
        %v6658 = vadd.f32 %v6498, %v6223
        %v6659 = vadd.f32 %v6499, %v6227
        %v6660 = vadd.f32 %v6500, %v6229
        %v6661 = vadd.f32 %v6501, %v6231
        %v6662 = vadd.f32 %v6502, %v6233
        %v6663 = vadd.f32 %v6503, %v6237
        %v6664 = vadd.f32 %v6504, %v6239
        %v6665 = vadd.f32 %v6505, %v6241
        %v6666 = vadd.f32 %v6506, %v6243
        %v6667 = vadd.f32 %v6507, %v6247
        %v6668 = vadd.f32 %v6508, %v6249
        %v6669 = vadd.f32 %v6509, %v6251
        %v6670 = vadd.f32 %v6510, %v6253
        %v6671 = vadd.f32 %v6511, %v6257
        %v6672 = vadd.f32 %v6512, %v6259
        %v6673 = vadd.f32 %v6513, %v6261
        %v6674 = vadd.f32 %v6514, %v6263
        %v6675 = vadd.f32 %v6515, %v6267
        %v6676 = vadd.f32 %v6516, %v6269
        %v6677 = vadd.f32 %v6517, %v6271
        %v6678 = vadd.f32 %v6518, %v6273
        %v6679 = vadd.f32 %v6519, %v6277
        %v6680 = vadd.f32 %v6520, %v6279
        %v6681 = vadd.f32 %v6521, %v6281
        %v6682 = vadd.f32 %v6522, %v6283
        %v6683 = vadd.f32 %v6523, %v6287
        %v6684 = vadd.f32 %v6524, %v6289
        %v6685 = vadd.f32 %v6525, %v6291
        %v6686 = vadd.f32 %v6526, %v6293
        %v6687 = vadd.f32 %v6527, %v6297
        %v6688 = vadd.f32 %v6528, %v6299
        %v6689 = vadd.f32 %v6529, %v6301
        %v6690 = vadd.f32 %v6530, %v6303
        %v6691 = vadd.f32 %v6531, %v6307
        %v6692 = vadd.f32 %v6532, %v6309
        %v6693 = vadd.f32 %v6533, %v6311
        %v6694 = vadd.f32 %v6534, %v6313
        %v6695 = vadd.f32 %v6535, %v6317
        %v6696 = vadd.f32 %v6536, %v6319
        %v6697 = vadd.f32 %v6537, %v6321
        %v6698 = vadd.f32 %v6538, %v6323
        %v6699 = vadd.f32 %v6539, %v6327
        %v6700 = vadd.f32 %v6540, %v6329
        %v6701 = vadd.f32 %v6541, %v6331
        %v6702 = vadd.f32 %v6542, %v6333
        %v6703 = vadd.f32 %v6543, %v6337
        %v6704 = vadd.f32 %v6544, %v6339
        %v6705 = vadd.f32 %v6545, %v6341
        %v6706 = vadd.f32 %v6546, %v6343
        %v6707 = vadd.f32 %v6547, %v6347
        %v6708 = vadd.f32 %v6548, %v6349
        %v6709 = vadd.f32 %v6549, %v6351
        %v6710 = vadd.f32 %v6550, %v6353
        %v6711 = vadd.f32 %v6551, %v6357
        %v6712 = vadd.f32 %v6552, %v6359
        %v6713 = vadd.f32 %v6553, %v6361
        %v6714 = vadd.f32 %v6554, %v6363
        %v6715 = vadd.f32 %v6555, %v6367
        %v6716 = vadd.f32 %v6556, %v6369
        %v6717 = vadd.f32 %v6557, %v6371
        %v6718 = vadd.f32 %v6558, %v6373
        %v6719 = vadd.f32 %v6559, %v6377
        %v6720 = vadd.f32 %v6560, %v6379
        %v6721 = vadd.f32 %v6561, %v6381
        %v6722 = vadd.f32 %v6562, %v6383
        %v6723 = vadd.f32 %v6563, %v6387
        %v6724 = vadd.f32 %v6564, %v6389
        %v6725 = vadd.f32 %v6565, %v6391
        %v6726 = vadd.f32 %v6566, %v6393
        %v6727 = vadd.f32 %v6567, %v6397
        %v6728 = vadd.f32 %v6568, %v6399
        %v6729 = vadd.f32 %v6569, %v6401
        %v6730 = vadd.f32 %v6570, %v6403
        %v6731 = vadd.f32 %v6571, %v6407
        %v6732 = vadd.f32 %v6572, %v6409
        %v6733 = vadd.f32 %v6573, %v6411
        %v6734 = vadd.f32 %v6574, %v6413
        %6735 = vst [vmem:[#allocation3] sm:$0xff] %v6575
        %6736 = vst.msk [vmem:[#allocation3 + $0x8] sm:$0xff] %vm528, %v6576
        %6737 = vst [vmem:[#allocation3 + $0x10] sm:$0xff] %v6577
        %6738 = vst.msk [vmem:[#allocation3 + $0x18] sm:$0xff] %vm528, %v6578
        %6739 = vst [vmem:[#allocation3 + $0x20] sm:$0xff] %v6579
        %6740 = vst.msk [vmem:[#allocation3 + $0x28] sm:$0xff] %vm528, %v6580
        %6741 = vst [vmem:[#allocation3 + $0x30] sm:$0xff] %v6581
        %6742 = vst.msk [vmem:[#allocation3 + $0x38] sm:$0xff] %vm528, %v6582
        %6743 = vst [vmem:[#allocation3 + $0x40] sm:$0xff] %v6583
        %6744 = vst.msk [vmem:[#allocation3 + $0x48] sm:$0xff] %vm528, %v6584
        %6745 = vst [vmem:[#allocation3 + $0x50] sm:$0xff] %v6585
        %6746 = vst.msk [vmem:[#allocation3 + $0x58] sm:$0xff] %vm528, %v6586
        %6747 = vst [vmem:[#allocation3 + $0x60] sm:$0xff] %v6587
        %6748 = vst.msk [vmem:[#allocation3 + $0x68] sm:$0xff] %vm528, %v6588
        %6749 = vst [vmem:[#allocation3 + $0x70] sm:$0xff] %v6589
        %6750 = vst.msk [vmem:[#allocation3 + $0x78] sm:$0xff] %vm528, %v6590
        %6751 = vst [vmem:[#allocation3 + $0x80] sm:$0xff] %v6591
        %6752 = vst.msk [vmem:[#allocation3 + $0x88] sm:$0xff] %vm528, %v6592
        %6753 = vst [vmem:[#allocation3 + $0x90] sm:$0xff] %v6593
        %6754 = vst.msk [vmem:[#allocation3 + $0x98] sm:$0xff] %vm528, %v6594
        %6755 = vst [vmem:[#allocation3 + $0xa0] sm:$0xff] %v6595
        %6756 = vst.msk [vmem:[#allocation3 + $0xa8] sm:$0xff] %vm528, %v6596
        %6757 = vst [vmem:[#allocation3 + $0xb0] sm:$0xff] %v6597
        %6758 = vst.msk [vmem:[#allocation3 + $0xb8] sm:$0xff] %vm528, %v6598
        %6759 = vst [vmem:[#allocation3 + $0xc0] sm:$0xff] %v6599
        %6760 = vst.msk [vmem:[#allocation3 + $0xc8] sm:$0xff] %vm528, %v6600
        %6761 = vst [vmem:[#allocation3 + $0xd0] sm:$0xff] %v6601
        %6762 = vst.msk [vmem:[#allocation3 + $0xd8] sm:$0xff] %vm528, %v6602
        %6763 = vst [vmem:[#allocation3 + $0xe0] sm:$0xff] %v6603
        %6764 = vst.msk [vmem:[#allocation3 + $0xe8] sm:$0xff] %vm528, %v6604
        %6765 = vst [vmem:[#allocation3 + $0xf0] sm:$0xff] %v6605
        %6766 = vst.msk [vmem:[#allocation3 + $0xf8] sm:$0xff] %vm528, %v6606
        %6767 = vst [vmem:[#allocation3 + $0x100] sm:$0xff] %v6607
        %6768 = vst.msk [vmem:[#allocation3 + $0x108] sm:$0xff] %vm528, %v6608
        %6769 = vst [vmem:[#allocation3 + $0x110] sm:$0xff] %v6609
        %6770 = vst.msk [vmem:[#allocation3 + $0x118] sm:$0xff] %vm528, %v6610
        %6771 = vst [vmem:[#allocation3 + $0x120] sm:$0xff] %v6611
        %6772 = vst.msk [vmem:[#allocation3 + $0x128] sm:$0xff] %vm528, %v6612
        %6773 = vst [vmem:[#allocation3 + $0x130] sm:$0xff] %v6613
        %6774 = vst.msk [vmem:[#allocation3 + $0x138] sm:$0xff] %vm528, %v6614
        %6775 = vst [vmem:[#allocation3 + $0x140] sm:$0xff] %v6615
        %6776 = vst.msk [vmem:[#allocation3 + $0x148] sm:$0xff] %vm528, %v6616
        %6777 = vst [vmem:[#allocation3 + $0x150] sm:$0xff] %v6617
        %6778 = vst.msk [vmem:[#allocation3 + $0x158] sm:$0xff] %vm528, %v6618
        %6779 = vst [vmem:[#allocation3 + $0x160] sm:$0xff] %v6619
        %6780 = vst.msk [vmem:[#allocation3 + $0x168] sm:$0xff] %vm528, %v6620
        %6781 = vst [vmem:[#allocation3 + $0x170] sm:$0xff] %v6621
        %6782 = vst.msk [vmem:[#allocation3 + $0x178] sm:$0xff] %vm528, %v6622
        %6783 = vst [vmem:[#allocation3 + $0x180] sm:$0xff] %v6623
        %6784 = vst.msk [vmem:[#allocation3 + $0x188] sm:$0xff] %vm528, %v6624
        %6785 = vst [vmem:[#allocation3 + $0x190] sm:$0xff] %v6625
        %6786 = vst.msk [vmem:[#allocation3 + $0x198] sm:$0xff] %vm528, %v6626
        %6787 = vst [vmem:[#allocation3 + $0x1a0] sm:$0xff] %v6627
        %6788 = vst.msk [vmem:[#allocation3 + $0x1a8] sm:$0xff] %vm528, %v6628
        %6789 = vst [vmem:[#allocation3 + $0x1b0] sm:$0xff] %v6629
        %6790 = vst.msk [vmem:[#allocation3 + $0x1b8] sm:$0xff] %vm528, %v6630
        %6791 = vst [vmem:[#allocation3 + $0x1c0] sm:$0xff] %v6631
        %6792 = vst.msk [vmem:[#allocation3 + $0x1c8] sm:$0xff] %vm528, %v6632
        %6793 = vst [vmem:[#allocation3 + $0x1d0] sm:$0xff] %v6633
        %6794 = vst.msk [vmem:[#allocation3 + $0x1d8] sm:$0xff] %vm528, %v6634
        %6795 = vst [vmem:[#allocation3 + $0x1e0] sm:$0xff] %v6635
        %6796 = vst.msk [vmem:[#allocation3 + $0x1e8] sm:$0xff] %vm528, %v6636
        %6797 = vst [vmem:[#allocation3 + $0x1f0] sm:$0xff] %v6637
        %6798 = vst.msk [vmem:[#allocation3 + $0x1f8] sm:$0xff] %vm528, %v6638
        %6799 = vst [vmem:[#allocation3 + $0x200] sm:$0xff] %v6639
        %6800 = vst.msk [vmem:[#allocation3 + $0x208] sm:$0xff] %vm528, %v6640
        %6801 = vst [vmem:[#allocation3 + $0x210] sm:$0xff] %v6641
        %6802 = vst.msk [vmem:[#allocation3 + $0x218] sm:$0xff] %vm528, %v6642
        %6803 = vst [vmem:[#allocation3 + $0x220] sm:$0xff] %v6643
        %6804 = vst.msk [vmem:[#allocation3 + $0x228] sm:$0xff] %vm528, %v6644
        %6805 = vst [vmem:[#allocation3 + $0x230] sm:$0xff] %v6645
        %6806 = vst.msk [vmem:[#allocation3 + $0x238] sm:$0xff] %vm528, %v6646
        %6807 = vst [vmem:[#allocation3 + $0x240] sm:$0xff] %v6647
        %6808 = vst.msk [vmem:[#allocation3 + $0x248] sm:$0xff] %vm528, %v6648
        %6809 = vst [vmem:[#allocation3 + $0x250] sm:$0xff] %v6649
        %6810 = vst.msk [vmem:[#allocation3 + $0x258] sm:$0xff] %vm528, %v6650
        %6811 = vst [vmem:[#allocation3 + $0x260] sm:$0xff] %v6651
        %6812 = vst.msk [vmem:[#allocation3 + $0x268] sm:$0xff] %vm528, %v6652
        %6813 = vst [vmem:[#allocation3 + $0x270] sm:$0xff] %v6653
        %6814 = vst.msk [vmem:[#allocation3 + $0x278] sm:$0xff] %vm528, %v6654
        %6815 = vst [vmem:[#allocation3 + $0x280] sm:$0xff] %v6655
        %6816 = vst.msk [vmem:[#allocation3 + $0x288] sm:$0xff] %vm528, %v6656
        %6817 = vst [vmem:[#allocation3 + $0x290] sm:$0xff] %v6657
        %6818 = vst.msk [vmem:[#allocation3 + $0x298] sm:$0xff] %vm528, %v6658
        %6819 = vst [vmem:[#allocation3 + $0x2a0] sm:$0xff] %v6659
        %6820 = vst.msk [vmem:[#allocation3 + $0x2a8] sm:$0xff] %vm528, %v6660
        %6821 = vst [vmem:[#allocation3 + $0x2b0] sm:$0xff] %v6661
        %6822 = vst.msk [vmem:[#allocation3 + $0x2b8] sm:$0xff] %vm528, %v6662
        %6823 = vst [vmem:[#allocation3 + $0x2c0] sm:$0xff] %v6663
        %6824 = vst.msk [vmem:[#allocation3 + $0x2c8] sm:$0xff] %vm528, %v6664
        %6825 = vst [vmem:[#allocation3 + $0x2d0] sm:$0xff] %v6665
        %6826 = vst.msk [vmem:[#allocation3 + $0x2d8] sm:$0xff] %vm528, %v6666
        %6827 = vst [vmem:[#allocation3 + $0x2e0] sm:$0xff] %v6667
        %6828 = vst.msk [vmem:[#allocation3 + $0x2e8] sm:$0xff] %vm528, %v6668
        %6829 = vst [vmem:[#allocation3 + $0x2f0] sm:$0xff] %v6669
        %6830 = vst.msk [vmem:[#allocation3 + $0x2f8] sm:$0xff] %vm528, %v6670
        %6831 = vst [vmem:[#allocation3 + $0x300] sm:$0xff] %v6671
        %6832 = vst.msk [vmem:[#allocation3 + $0x308] sm:$0xff] %vm528, %v6672
        %6833 = vst [vmem:[#allocation3 + $0x310] sm:$0xff] %v6673
        %6834 = vst.msk [vmem:[#allocation3 + $0x318] sm:$0xff] %vm528, %v6674
        %6835 = vst [vmem:[#allocation3 + $0x320] sm:$0xff] %v6675
        %6836 = vst.msk [vmem:[#allocation3 + $0x328] sm:$0xff] %vm528, %v6676
        %6837 = vst [vmem:[#allocation3 + $0x330] sm:$0xff] %v6677
        %6838 = vst.msk [vmem:[#allocation3 + $0x338] sm:$0xff] %vm528, %v6678
        %6839 = vst [vmem:[#allocation3 + $0x340] sm:$0xff] %v6679
        %6840 = vst.msk [vmem:[#allocation3 + $0x348] sm:$0xff] %vm528, %v6680
        %6841 = vst [vmem:[#allocation3 + $0x350] sm:$0xff] %v6681
        %6842 = vst.msk [vmem:[#allocation3 + $0x358] sm:$0xff] %vm528, %v6682
        %6843 = vst [vmem:[#allocation3 + $0x360] sm:$0xff] %v6683
        %6844 = vst.msk [vmem:[#allocation3 + $0x368] sm:$0xff] %vm528, %v6684
        %6845 = vst [vmem:[#allocation3 + $0x370] sm:$0xff] %v6685
        %6846 = vst.msk [vmem:[#allocation3 + $0x378] sm:$0xff] %vm528, %v6686
        %6847 = vst [vmem:[#allocation3 + $0x380] sm:$0xff] %v6687
        %6848 = vst.msk [vmem:[#allocation3 + $0x388] sm:$0xff] %vm528, %v6688
        %6849 = vst [vmem:[#allocation3 + $0x390] sm:$0xff] %v6689
        %6850 = vst.msk [vmem:[#allocation3 + $0x398] sm:$0xff] %vm528, %v6690
        %6851 = vst [vmem:[#allocation3 + $0x3a0] sm:$0xff] %v6691
        %6852 = vst.msk [vmem:[#allocation3 + $0x3a8] sm:$0xff] %vm528, %v6692
        %6853 = vst [vmem:[#allocation3 + $0x3b0] sm:$0xff] %v6693
        %6854 = vst.msk [vmem:[#allocation3 + $0x3b8] sm:$0xff] %vm528, %v6694
        %6855 = vst [vmem:[#allocation3 + $0x3c0] sm:$0xff] %v6695
        %6856 = vst.msk [vmem:[#allocation3 + $0x3c8] sm:$0xff] %vm528, %v6696
        %6857 = vst [vmem:[#allocation3 + $0x3d0] sm:$0xff] %v6697
        %6858 = vst.msk [vmem:[#allocation3 + $0x3d8] sm:$0xff] %vm528, %v6698
        %6859 = vst [vmem:[#allocation3 + $0x3e0] sm:$0xff] %v6699
        %6860 = vst.msk [vmem:[#allocation3 + $0x3e8] sm:$0xff] %vm528, %v6700
        %6861 = vst [vmem:[#allocation3 + $0x3f0] sm:$0xff] %v6701
        %6862 = vst.msk [vmem:[#allocation3 + $0x3f8] sm:$0xff] %vm528, %v6702
        %6863 = vst [vmem:[#allocation3 + $0x400] sm:$0xff] %v6703
        %6864 = vst.msk [vmem:[#allocation3 + $0x408] sm:$0xff] %vm528, %v6704
        %6865 = vst [vmem:[#allocation3 + $0x410] sm:$0xff] %v6705
        %6866 = vst.msk [vmem:[#allocation3 + $0x418] sm:$0xff] %vm528, %v6706
        %6867 = vst [vmem:[#allocation3 + $0x420] sm:$0xff] %v6707
        %6868 = vst.msk [vmem:[#allocation3 + $0x428] sm:$0xff] %vm528, %v6708
        %6869 = vst [vmem:[#allocation3 + $0x430] sm:$0xff] %v6709
        %6870 = vst.msk [vmem:[#allocation3 + $0x438] sm:$0xff] %vm528, %v6710
        %6871 = vst [vmem:[#allocation3 + $0x440] sm:$0xff] %v6711
        %6872 = vst.msk [vmem:[#allocation3 + $0x448] sm:$0xff] %vm528, %v6712
        %6873 = vst [vmem:[#allocation3 + $0x450] sm:$0xff] %v6713
        %6874 = vst.msk [vmem:[#allocation3 + $0x458] sm:$0xff] %vm528, %v6714
        %6875 = vst [vmem:[#allocation3 + $0x460] sm:$0xff] %v6715
        %6876 = vst.msk [vmem:[#allocation3 + $0x468] sm:$0xff] %vm528, %v6716
        %6877 = vst [vmem:[#allocation3 + $0x470] sm:$0xff] %v6717
        %6878 = vst.msk [vmem:[#allocation3 + $0x478] sm:$0xff] %vm528, %v6718
        %6879 = vst [vmem:[#allocation3 + $0x480] sm:$0xff] %v6719
        %6880 = vst.msk [vmem:[#allocation3 + $0x488] sm:$0xff] %vm528, %v6720
        %6881 = vst [vmem:[#allocation3 + $0x490] sm:$0xff] %v6721
        %6882 = vst.msk [vmem:[#allocation3 + $0x498] sm:$0xff] %vm528, %v6722
        %6883 = vst [vmem:[#allocation3 + $0x4a0] sm:$0xff] %v6723
        %6884 = vst.msk [vmem:[#allocation3 + $0x4a8] sm:$0xff] %vm528, %v6724
        %6885 = vst [vmem:[#allocation3 + $0x4b0] sm:$0xff] %v6725
        %6886 = vst.msk [vmem:[#allocation3 + $0x4b8] sm:$0xff] %vm528, %v6726
        %6887 = vst [vmem:[#allocation3 + $0x4c0] sm:$0xff] %v6727
        %6888 = vst.msk [vmem:[#allocation3 + $0x4c8] sm:$0xff] %vm528, %v6728
        %6889 = vst [vmem:[#allocation3 + $0x4d0] sm:$0xff] %v6729
        %6890 = vst.msk [vmem:[#allocation3 + $0x4d8] sm:$0xff] %vm528, %v6730
        %6891 = vst [vmem:[#allocation3 + $0x4e0] sm:$0xff] %v6731
        %6892 = vst.msk [vmem:[#allocation3 + $0x4e8] sm:$0xff] %vm528, %v6732
        %6893 = vst [vmem:[#allocation3 + $0x4f0] sm:$0xff] %v6733
        %6894 = vst.msk [vmem:[#allocation3 + $0x4f8] sm:$0xff] %vm528, %v6734
        %v6895 = vld [vmem:[#allocation3] sm:$0xff]
        %v6896 = vld [vmem:[#allocation3 + $0x10] sm:$0xff]
        %v6897 = vld [vmem:[#allocation3 + $0x20] sm:$0xff]
        %v6898 = vld [vmem:[#allocation3 + $0x30] sm:$0xff]
        %v6899 = vld [vmem:[#allocation3 + $0x40] sm:$0xff]
        %v6900 = vld [vmem:[#allocation3 + $0x50] sm:$0xff]
        %v6901 = vld [vmem:[#allocation3 + $0x60] sm:$0xff]
        %v6902 = vld [vmem:[#allocation3 + $0x70] sm:$0xff]
        %v6903 = vld [vmem:[#allocation3 + $0x80] sm:$0xff]
        %v6904 = vld [vmem:[#allocation3 + $0x90] sm:$0xff]
        %v6905 = vld [vmem:[#allocation3 + $0xa0] sm:$0xff]
        %v6906 = vld [vmem:[#allocation3 + $0xb0] sm:$0xff]
        %v6907 = vld [vmem:[#allocation3 + $0xc0] sm:$0xff]
        %v6908 = vld [vmem:[#allocation3 + $0xd0] sm:$0xff]
        %v6909 = vld [vmem:[#allocation3 + $0xe0] sm:$0xff]
        %v6910 = vld [vmem:[#allocation3 + $0xf0] sm:$0xff]
        %v6911 = vld [vmem:[#allocation3 + $0x108] sm:$0xff]
        %v6912 = vld [vmem:[#allocation3 + $0x118] sm:$0xff]
        %v6913 = vld [vmem:[#allocation3 + $0x128] sm:$0xff]
        %v6914 = vld [vmem:[#allocation3 + $0x138] sm:$0xff]
        %v6915 = vld [vmem:[#allocation3 + $0x148] sm:$0xff]
        %v6916 = vld [vmem:[#allocation3 + $0x158] sm:$0xff]
        %v6917 = vld [vmem:[#allocation3 + $0x168] sm:$0xff]
        %v6918 = vld [vmem:[#allocation3 + $0x178] sm:$0xff]
        %6927 = vrot.lane.b32.xlu0 %v6903, 64
        %v6928 = vpop.permute.xlu0 %6927
        %6929 = vrot.lane.b32.xlu0 %v6904, 64
        %v6930 = vpop.permute.xlu0 %6929
        %6931 = vrot.lane.b32.xlu0 %v6905, 64
        %v6932 = vpop.permute.xlu0 %6931
        %6933 = vrot.lane.b32.xlu0 %v6906, 64
        %v6934 = vpop.permute.xlu0 %6933
        %6935 = vrot.lane.b32.xlu0 %v6907, 64
        %v6936 = vpop.permute.xlu0 %6935
        %6937 = vrot.lane.b32.xlu0 %v6908, 64
        %v6938 = vpop.permute.xlu0 %6937
        %6939 = vrot.lane.b32.xlu0 %v6909, 64
        %v6940 = vpop.permute.xlu0 %6939
        %6941 = vrot.lane.b32.xlu0 %v6910, 64
        %v6942 = vpop.permute.xlu0 %6941
        %v6951 = vadd.f32 %v6895, %v6928
        %v6952 = vadd.f32 %v6896, %v6930
        %v6953 = vadd.f32 %v6897, %v6932
        %v6954 = vadd.f32 %v6898, %v6934
        %v6955 = vadd.f32 %v6899, %v6936
        %v6956 = vadd.f32 %v6900, %v6938
        %v6957 = vadd.f32 %v6901, %v6940
        %v6958 = vadd.f32 %v6902, %v6942
        %v6959 = vadd.f32 %v6951, %v6911
        %v6960 = vadd.f32 %v6952, %v6912
        %v6961 = vadd.f32 %v6953, %v6913
        %v6962 = vadd.f32 %v6954, %v6914
        %v6963 = vadd.f32 %v6955, %v6915
        %v6964 = vadd.f32 %v6956, %v6916
        %v6965 = vadd.f32 %v6957, %v6917
        %v6966 = vadd.f32 %v6958, %v6918
        %v6968 = vlaneseq
        %v6969 = vshrl.u32 %v6968, 7
        %v6970 = vsub.s32 0, %v6969
        %v6971 = vrot.slane %v299, %v6970
        %v6973 = vadd.f32 %v6959, %v6971
        %v6974 = vadd.f32 %v6960, %v6971
        %v6975 = vadd.f32 %v6961, %v6971
        %v6976 = vadd.f32 %v6962, %v6971
        %v6977 = vadd.f32 %v6963, %v6971
        %v6978 = vadd.f32 %v6964, %v6971
        %v6979 = vadd.f32 %v6965, %v6971
        %v6980 = vadd.f32 %v6966, %v6971
        %v6981 = vsel %vm528, %v6973, 0.0
        %v6982 = vsel %vm528, %v6974, 0.0
        %v6983 = vadd.f32 %v6981, %v6982
        %v6984 = vsel %vm528, %v6975, 0.0
        %v6985 = vadd.f32 %v6983, %v6984
        %v6986 = vsel %vm528, %v6976, 0.0
        %v6987 = vadd.f32 %v6985, %v6986
        %v6988 = vsel %vm528, %v6977, 0.0
        %v6989 = vadd.f32 %v6987, %v6988
        %v6990 = vsel %vm528, %v6978, 0.0
        %v6991 = vadd.f32 %v6989, %v6990
        %v6992 = vsel %vm528, %v6979, 0.0
        %v6993 = vadd.f32 %v6991, %v6992
        %v6994 = vsel %vm528, %v6980, 0.0
        %v6995 = vadd.f32 %v6993, %v6994
        %v6996 = vrot.slane %v6995, 4
        %v6997 = vadd.f32 %v6995, %v6996
        %v6998 = vrot.slane %v6997, 2
        %v6999 = vadd.f32 %v6997, %v6998
        %v7000 = vrot.slane %v6999, 1
        %v7001 = vadd.f32 %v6999, %v7000
        %v7002 = vadd.f32 %v7001, 0.0
        %v7003 = vmul.f32 %v6973, %v6973
        %v7004 = vmul.f32 %v6974, %v6974
        %v7005 = vmul.f32 %v6975, %v6975
        %v7006 = vmul.f32 %v6976, %v6976
        %v7007 = vmul.f32 %v6977, %v6977
        %v7008 = vmul.f32 %v6978, %v6978
        %v7009 = vmul.f32 %v6979, %v6979
        %v7010 = vmul.f32 %v6980, %v6980
        %v7011 = vsel %vm528, %v7003, 0.0
        %v7012 = vsel %vm528, %v7004, 0.0
        %v7013 = vadd.f32 %v7011, %v7012
        %v7014 = vsel %vm528, %v7005, 0.0
        %v7015 = vadd.f32 %v7013, %v7014
        %v7016 = vsel %vm528, %v7006, 0.0
        %v7017 = vadd.f32 %v7015, %v7016
        %v7018 = vsel %vm528, %v7007, 0.0
        %v7019 = vadd.f32 %v7017, %v7018
        %v7020 = vsel %vm528, %v7008, 0.0
        %v7021 = vadd.f32 %v7019, %v7020
        %v7022 = vsel %vm528, %v7009, 0.0
        %v7023 = vadd.f32 %v7021, %v7022
        %v7024 = vsel %vm528, %v7010, 0.0
        %v7025 = vadd.f32 %v7023, %v7024
        %v7026 = vrot.slane %v7025, 4
        %v7027 = vadd.f32 %v7025, %v7026
        %v7028 = vrot.slane %v7027, 2
        %v7029 = vadd.f32 %v7027, %v7028
        %v7030 = vrot.slane %v7029, 1
        %v7031 = vadd.f32 %v7029, %v7030
        %v7032 = vadd.f32 %v7031, 0.0
        %v7033 = vpack.c.bf16 %v6973, %v6973
        %v7034 = vpack.c.bf16 %v6974, %v6974
        %v7035 = vpack.c.bf16 %v6975, %v6975
        %v7036 = vpack.c.bf16 %v6976, %v6976
        %v7037 = vpack.c.bf16 %v6977, %v6977
        %v7038 = vpack.c.bf16 %v6978, %v6978
        %v7039 = vpack.c.bf16 %v6979, %v6979
        %v7040 = vpack.c.bf16 %v6980, %v6980
        %vm7041 = vcmask 519168
        %7042 = vst.msk [vmem:[%s288] sm:$0xf] %vm7041, %v7033
        %7043 = vst.msk [vmem:[%s288 + $0x4] sm:$0xf] %vm7041, %v7034
        %7044 = vst.msk [vmem:[%s288 + $0x8] sm:$0xf] %vm7041, %v7035
        %7045 = vst.msk [vmem:[%s288 + $0xc] sm:$0xf] %vm7041, %v7036
        %7046 = vst.msk [vmem:[%s288 + $0x10] sm:$0xf] %vm7041, %v7037
        %7047 = vst.msk [vmem:[%s288 + $0x14] sm:$0xf] %vm7041, %v7038
        %7048 = vst.msk [vmem:[%s288 + $0x18] sm:$0xf] %vm7041, %v7039
        %7049 = vst.msk [vmem:[%s288 + $0x1c] sm:$0xf] %vm7041, %v7040
        %v7050 = vld [vmem:[#allocation3 + $0x80] sm:$0xff]
        %v7051 = vld [vmem:[#allocation3 + $0x90] sm:$0xff]
        %v7052 = vld [vmem:[#allocation3 + $0xa0] sm:$0xff]
        %v7053 = vld [vmem:[#allocation3 + $0xb0] sm:$0xff]
        %v7054 = vld [vmem:[#allocation3 + $0xc0] sm:$0xff]
        %v7055 = vld [vmem:[#allocation3 + $0xd0] sm:$0xff]
        %v7056 = vld [vmem:[#allocation3 + $0xe0] sm:$0xff]
        %v7057 = vld [vmem:[#allocation3 + $0xf0] sm:$0xff]
        %v7058 = vld [vmem:[#allocation3 + $0x100] sm:$0xff]
        %v7059 = vld [vmem:[#allocation3 + $0x110] sm:$0xff]
        %v7060 = vld [vmem:[#allocation3 + $0x120] sm:$0xff]
        %v7061 = vld [vmem:[#allocation3 + $0x130] sm:$0xff]
        %v7062 = vld [vmem:[#allocation3 + $0x140] sm:$0xff]
        %v7063 = vld [vmem:[#allocation3 + $0x150] sm:$0xff]
        %v7064 = vld [vmem:[#allocation3 + $0x160] sm:$0xff]
        %v7065 = vld [vmem:[#allocation3 + $0x170] sm:$0xff]
        %v7066 = vld [vmem:[#allocation3 + $0x188] sm:$0xff]
        %v7067 = vld [vmem:[#allocation3 + $0x198] sm:$0xff]
        %v7068 = vld [vmem:[#allocation3 + $0x1a8] sm:$0xff]
        %v7069 = vld [vmem:[#allocation3 + $0x1b8] sm:$0xff]
        %v7070 = vld [vmem:[#allocation3 + $0x1c8] sm:$0xff]
        %v7071 = vld [vmem:[#allocation3 + $0x1d8] sm:$0xff]
        %v7072 = vld [vmem:[#allocation3 + $0x1e8] sm:$0xff]
        %v7073 = vld [vmem:[#allocation3 + $0x1f8] sm:$0xff]
        %7082 = vrot.lane.b32.xlu0 %v7058, 64
        %v7083 = vpop.permute.xlu0 %7082
        %7084 = vrot.lane.b32.xlu0 %v7059, 64
        %v7085 = vpop.permute.xlu0 %7084
        %7086 = vrot.lane.b32.xlu0 %v7060, 64
        %v7087 = vpop.permute.xlu0 %7086
        %7088 = vrot.lane.b32.xlu0 %v7061, 64
        %v7089 = vpop.permute.xlu0 %7088
        %7090 = vrot.lane.b32.xlu0 %v7062, 64
        %v7091 = vpop.permute.xlu0 %7090
        %7092 = vrot.lane.b32.xlu0 %v7063, 64
        %v7093 = vpop.permute.xlu0 %7092
        %7094 = vrot.lane.b32.xlu0 %v7064, 64
        %v7095 = vpop.permute.xlu0 %7094
        %7096 = vrot.lane.b32.xlu0 %v7065, 64
        %v7097 = vpop.permute.xlu0 %7096
        %v7106 = vadd.f32 %v7050, %v7083
        %v7107 = vadd.f32 %v7051, %v7085
        %v7108 = vadd.f32 %v7052, %v7087
        %v7109 = vadd.f32 %v7053, %v7089
        %v7110 = vadd.f32 %v7054, %v7091
        %v7111 = vadd.f32 %v7055, %v7093
        %v7112 = vadd.f32 %v7056, %v7095
        %v7113 = vadd.f32 %v7057, %v7097
        %v7114 = vadd.f32 %v7106, %v7066
        %v7115 = vadd.f32 %v7107, %v7067
        %v7116 = vadd.f32 %v7108, %v7068
        %v7117 = vadd.f32 %v7109, %v7069
        %v7118 = vadd.f32 %v7110, %v7070
        %v7119 = vadd.f32 %v7111, %v7071
        %v7120 = vadd.f32 %v7112, %v7072
        %v7121 = vadd.f32 %v7113, %v7073
        %v7122 = vadd.f32 %v7114, %v6971
        %v7123 = vadd.f32 %v7115, %v6971
        %v7124 = vadd.f32 %v7116, %v6971
        %v7125 = vadd.f32 %v7117, %v6971
        %v7126 = vadd.f32 %v7118, %v6971
        %v7127 = vadd.f32 %v7119, %v6971
        %v7128 = vadd.f32 %v7120, %v6971
        %v7129 = vadd.f32 %v7121, %v6971
        %v7130 = vsel %vm528, %v7122, 0.0
        %v7131 = vsel %vm528, %v7123, 0.0
        %v7132 = vadd.f32 %v7130, %v7131
        %v7133 = vsel %vm528, %v7124, 0.0
        %v7134 = vadd.f32 %v7132, %v7133
        %v7135 = vsel %vm528, %v7125, 0.0
        %v7136 = vadd.f32 %v7134, %v7135
        %v7137 = vsel %vm528, %v7126, 0.0
        %v7138 = vadd.f32 %v7136, %v7137
        %v7139 = vsel %vm528, %v7127, 0.0
        %v7140 = vadd.f32 %v7138, %v7139
        %v7141 = vsel %vm528, %v7128, 0.0
        %v7142 = vadd.f32 %v7140, %v7141
        %v7143 = vsel %vm528, %v7129, 0.0
        %v7144 = vadd.f32 %v7142, %v7143
        %v7145 = vrot.slane %v7144, 4
        %v7146 = vadd.f32 %v7144, %v7145
        %v7147 = vrot.slane %v7146, 2
        %v7148 = vadd.f32 %v7146, %v7147
        %v7149 = vrot.slane %v7148, 1
        %v7150 = vadd.f32 %v7148, %v7149
        %v7151 = vadd.f32 %v7002, %v7150
        %v7152 = vmul.f32 %v7122, %v7122
        %v7153 = vmul.f32 %v7123, %v7123
        %v7154 = vmul.f32 %v7124, %v7124
        %v7155 = vmul.f32 %v7125, %v7125
        %v7156 = vmul.f32 %v7126, %v7126
        %v7157 = vmul.f32 %v7127, %v7127
        %v7158 = vmul.f32 %v7128, %v7128
        %v7159 = vmul.f32 %v7129, %v7129
        %v7160 = vsel %vm528, %v7152, 0.0
        %v7161 = vsel %vm528, %v7153, 0.0
        %v7162 = vadd.f32 %v7160, %v7161
        %v7163 = vsel %vm528, %v7154, 0.0
        %v7164 = vadd.f32 %v7162, %v7163
        %v7165 = vsel %vm528, %v7155, 0.0
        %v7166 = vadd.f32 %v7164, %v7165
        %v7167 = vsel %vm528, %v7156, 0.0
        %v7168 = vadd.f32 %v7166, %v7167
        %v7169 = vsel %vm528, %v7157, 0.0
        %v7170 = vadd.f32 %v7168, %v7169
        %v7171 = vsel %vm528, %v7158, 0.0
        %v7172 = vadd.f32 %v7170, %v7171
        %v7173 = vsel %vm528, %v7159, 0.0
        %v7174 = vadd.f32 %v7172, %v7173
        %v7175 = vrot.slane %v7174, 4
        %v7176 = vadd.f32 %v7174, %v7175
        %v7177 = vrot.slane %v7176, 2
        %v7178 = vadd.f32 %v7176, %v7177
        %v7179 = vrot.slane %v7178, 1
        %v7180 = vadd.f32 %v7178, %v7179
        %v7181 = vadd.f32 %v7032, %v7180
        %v7182 = vpack.c.bf16 %v7122, %v7122
        %v7183 = vpack.c.bf16 %v7123, %v7123
        %v7184 = vpack.c.bf16 %v7124, %v7124
        %v7185 = vpack.c.bf16 %v7125, %v7125
        %v7186 = vpack.c.bf16 %v7126, %v7126
        %v7187 = vpack.c.bf16 %v7127, %v7127
        %v7188 = vpack.c.bf16 %v7128, %v7128
        %v7189 = vpack.c.bf16 %v7129, %v7129
        %s7190 = scalar_lea.vmem %s288, 32 [#allocation9]
        %7191 = vst.msk [vmem:[%s7190] sm:$0xf] %vm7041, %v7182
        %7192 = vst.msk [vmem:[%s7190 + $0x4] sm:$0xf] %vm7041, %v7183
        %7193 = vst.msk [vmem:[%s7190 + $0x8] sm:$0xf] %vm7041, %v7184
        %7194 = vst.msk [vmem:[%s7190 + $0xc] sm:$0xf] %vm7041, %v7185
        %7195 = vst.msk [vmem:[%s7190 + $0x10] sm:$0xf] %vm7041, %v7186
        %7196 = vst.msk [vmem:[%s7190 + $0x14] sm:$0xf] %vm7041, %v7187
        %7197 = vst.msk [vmem:[%s7190 + $0x18] sm:$0xf] %vm7041, %v7188
        %7198 = vst.msk [vmem:[%s7190 + $0x1c] sm:$0xf] %vm7041, %v7189
        %v7199 = vld [vmem:[#allocation3 + $0x100] sm:$0xff]
        %v7200 = vld [vmem:[#allocation3 + $0x110] sm:$0xff]
        %v7201 = vld [vmem:[#allocation3 + $0x120] sm:$0xff]
        %v7202 = vld [vmem:[#allocation3 + $0x130] sm:$0xff]
        %v7203 = vld [vmem:[#allocation3 + $0x140] sm:$0xff]
        %v7204 = vld [vmem:[#allocation3 + $0x150] sm:$0xff]
        %v7205 = vld [vmem:[#allocation3 + $0x160] sm:$0xff]
        %v7206 = vld [vmem:[#allocation3 + $0x170] sm:$0xff]
        %v7207 = vld [vmem:[#allocation3 + $0x180] sm:$0xff]
        %v7208 = vld [vmem:[#allocation3 + $0x190] sm:$0xff]
        %v7209 = vld [vmem:[#allocation3 + $0x1a0] sm:$0xff]
        %v7210 = vld [vmem:[#allocation3 + $0x1b0] sm:$0xff]
        %v7211 = vld [vmem:[#allocation3 + $0x1c0] sm:$0xff]
        %v7212 = vld [vmem:[#allocation3 + $0x1d0] sm:$0xff]
        %v7213 = vld [vmem:[#allocation3 + $0x1e0] sm:$0xff]
        %v7214 = vld [vmem:[#allocation3 + $0x1f0] sm:$0xff]
        %v7215 = vld [vmem:[#allocation3 + $0x208] sm:$0xff]
        %v7216 = vld [vmem:[#allocation3 + $0x218] sm:$0xff]
        %v7217 = vld [vmem:[#allocation3 + $0x228] sm:$0xff]
        %v7218 = vld [vmem:[#allocation3 + $0x238] sm:$0xff]
        %v7219 = vld [vmem:[#allocation3 + $0x248] sm:$0xff]
        %v7220 = vld [vmem:[#allocation3 + $0x258] sm:$0xff]
        %v7221 = vld [vmem:[#allocation3 + $0x268] sm:$0xff]
        %v7222 = vld [vmem:[#allocation3 + $0x278] sm:$0xff]
        %7231 = vrot.lane.b32.xlu0 %v7207, 64
        %v7232 = vpop.permute.xlu0 %7231
        %7233 = vrot.lane.b32.xlu0 %v7208, 64
        %v7234 = vpop.permute.xlu0 %7233
        %7235 = vrot.lane.b32.xlu0 %v7209, 64
        %v7236 = vpop.permute.xlu0 %7235
        %7237 = vrot.lane.b32.xlu0 %v7210, 64
        %v7238 = vpop.permute.xlu0 %7237
        %7239 = vrot.lane.b32.xlu0 %v7211, 64
        %v7240 = vpop.permute.xlu0 %7239
        %7241 = vrot.lane.b32.xlu0 %v7212, 64
        %v7242 = vpop.permute.xlu0 %7241
        %7243 = vrot.lane.b32.xlu0 %v7213, 64
        %v7244 = vpop.permute.xlu0 %7243
        %7245 = vrot.lane.b32.xlu0 %v7214, 64
        %v7246 = vpop.permute.xlu0 %7245
        %v7255 = vadd.f32 %v7199, %v7232
        %v7256 = vadd.f32 %v7200, %v7234
        %v7257 = vadd.f32 %v7201, %v7236
        %v7258 = vadd.f32 %v7202, %v7238
        %v7259 = vadd.f32 %v7203, %v7240
        %v7260 = vadd.f32 %v7204, %v7242
        %v7261 = vadd.f32 %v7205, %v7244
        %v7262 = vadd.f32 %v7206, %v7246
        %v7263 = vadd.f32 %v7255, %v7215
        %v7264 = vadd.f32 %v7256, %v7216
        %v7265 = vadd.f32 %v7257, %v7217
        %v7266 = vadd.f32 %v7258, %v7218
        %v7267 = vadd.f32 %v7259, %v7219
        %v7268 = vadd.f32 %v7260, %v7220
        %v7269 = vadd.f32 %v7261, %v7221
        %v7270 = vadd.f32 %v7262, %v7222
        %v7271 = vadd.f32 %v7263, %v6971
        %v7272 = vadd.f32 %v7264, %v6971
        %v7273 = vadd.f32 %v7265, %v6971
        %v7274 = vadd.f32 %v7266, %v6971
        %v7275 = vadd.f32 %v7267, %v6971
        %v7276 = vadd.f32 %v7268, %v6971
        %v7277 = vadd.f32 %v7269, %v6971
        %v7278 = vadd.f32 %v7270, %v6971
        %v7279 = vsel %vm528, %v7271, 0.0
        %v7280 = vsel %vm528, %v7272, 0.0
        %v7281 = vadd.f32 %v7279, %v7280
        %v7282 = vsel %vm528, %v7273, 0.0
        %v7283 = vadd.f32 %v7281, %v7282
        %v7284 = vsel %vm528, %v7274, 0.0
        %v7285 = vadd.f32 %v7283, %v7284
        %v7286 = vsel %vm528, %v7275, 0.0
        %v7287 = vadd.f32 %v7285, %v7286
        %v7288 = vsel %vm528, %v7276, 0.0
        %v7289 = vadd.f32 %v7287, %v7288
        %v7290 = vsel %vm528, %v7277, 0.0
        %v7291 = vadd.f32 %v7289, %v7290
        %v7292 = vsel %vm528, %v7278, 0.0
        %v7293 = vadd.f32 %v7291, %v7292
        %v7294 = vrot.slane %v7293, 4
        %v7295 = vadd.f32 %v7293, %v7294
        %v7296 = vrot.slane %v7295, 2
        %v7297 = vadd.f32 %v7295, %v7296
        %v7298 = vrot.slane %v7297, 1
        %v7299 = vadd.f32 %v7297, %v7298
        %v7300 = vadd.f32 %v7151, %v7299
        %v7301 = vmul.f32 %v7271, %v7271
        %v7302 = vmul.f32 %v7272, %v7272
        %v7303 = vmul.f32 %v7273, %v7273
        %v7304 = vmul.f32 %v7274, %v7274
        %v7305 = vmul.f32 %v7275, %v7275
        %v7306 = vmul.f32 %v7276, %v7276
        %v7307 = vmul.f32 %v7277, %v7277
        %v7308 = vmul.f32 %v7278, %v7278
        %v7309 = vsel %vm528, %v7301, 0.0
        %v7310 = vsel %vm528, %v7302, 0.0
        %v7311 = vadd.f32 %v7309, %v7310
        %v7312 = vsel %vm528, %v7303, 0.0
        %v7313 = vadd.f32 %v7311, %v7312
        %v7314 = vsel %vm528, %v7304, 0.0
        %v7315 = vadd.f32 %v7313, %v7314
        %v7316 = vsel %vm528, %v7305, 0.0
        %v7317 = vadd.f32 %v7315, %v7316
        %v7318 = vsel %vm528, %v7306, 0.0
        %v7319 = vadd.f32 %v7317, %v7318
        %v7320 = vsel %vm528, %v7307, 0.0
        %v7321 = vadd.f32 %v7319, %v7320
        %v7322 = vsel %vm528, %v7308, 0.0
        %v7323 = vadd.f32 %v7321, %v7322
        %v7324 = vrot.slane %v7323, 4
        %v7325 = vadd.f32 %v7323, %v7324
        %v7326 = vrot.slane %v7325, 2
        %v7327 = vadd.f32 %v7325, %v7326
        %v7328 = vrot.slane %v7327, 1
        %v7329 = vadd.f32 %v7327, %v7328
        %v7330 = vadd.f32 %v7181, %v7329
        %v7331 = vpack.c.bf16 %v7271, %v7271
        %v7332 = vpack.c.bf16 %v7272, %v7272
        %v7333 = vpack.c.bf16 %v7273, %v7273
        %v7334 = vpack.c.bf16 %v7274, %v7274
        %v7335 = vpack.c.bf16 %v7275, %v7275
        %v7336 = vpack.c.bf16 %v7276, %v7276
        %v7337 = vpack.c.bf16 %v7277, %v7277
        %v7338 = vpack.c.bf16 %v7278, %v7278
        %s7339 = scalar_lea.vmem %s288, 64 [#allocation9]
        %7340 = vst.msk [vmem:[%s7339] sm:$0xf] %vm7041, %v7331
        %7341 = vst.msk [vmem:[%s7339 + $0x4] sm:$0xf] %vm7041, %v7332
        %7342 = vst.msk [vmem:[%s7339 + $0x8] sm:$0xf] %vm7041, %v7333
        %7343 = vst.msk [vmem:[%s7339 + $0xc] sm:$0xf] %vm7041, %v7334
        %7344 = vst.msk [vmem:[%s7339 + $0x10] sm:$0xf] %vm7041, %v7335
        %7345 = vst.msk [vmem:[%s7339 + $0x14] sm:$0xf] %vm7041, %v7336
        %7346 = vst.msk [vmem:[%s7339 + $0x18] sm:$0xf] %vm7041, %v7337
        %7347 = vst.msk [vmem:[%s7339 + $0x1c] sm:$0xf] %vm7041, %v7338
        %v7348 = vld [vmem:[#allocation3 + $0x180] sm:$0xff]
        %v7349 = vld [vmem:[#allocation3 + $0x190] sm:$0xff]
        %v7350 = vld [vmem:[#allocation3 + $0x1a0] sm:$0xff]
        %v7351 = vld [vmem:[#allocation3 + $0x1b0] sm:$0xff]
        %v7352 = vld [vmem:[#allocation3 + $0x1c0] sm:$0xff]
        %v7353 = vld [vmem:[#allocation3 + $0x1d0] sm:$0xff]
        %v7354 = vld [vmem:[#allocation3 + $0x1e0] sm:$0xff]
        %v7355 = vld [vmem:[#allocation3 + $0x1f0] sm:$0xff]
        %v7356 = vld [vmem:[#allocation3 + $0x200] sm:$0xff]
        %v7357 = vld [vmem:[#allocation3 + $0x210] sm:$0xff]
        %v7358 = vld [vmem:[#allocation3 + $0x220] sm:$0xff]
        %v7359 = vld [vmem:[#allocation3 + $0x230] sm:$0xff]
        %v7360 = vld [vmem:[#allocation3 + $0x240] sm:$0xff]
        %v7361 = vld [vmem:[#allocation3 + $0x250] sm:$0xff]
        %v7362 = vld [vmem:[#allocation3 + $0x260] sm:$0xff]
        %v7363 = vld [vmem:[#allocation3 + $0x270] sm:$0xff]
        %v7364 = vld [vmem:[#allocation3 + $0x288] sm:$0xff]
        %v7365 = vld [vmem:[#allocation3 + $0x298] sm:$0xff]
        %v7366 = vld [vmem:[#allocation3 + $0x2a8] sm:$0xff]
        %v7367 = vld [vmem:[#allocation3 + $0x2b8] sm:$0xff]
        %v7368 = vld [vmem:[#allocation3 + $0x2c8] sm:$0xff]
        %v7369 = vld [vmem:[#allocation3 + $0x2d8] sm:$0xff]
        %v7370 = vld [vmem:[#allocation3 + $0x2e8] sm:$0xff]
        %v7371 = vld [vmem:[#allocation3 + $0x2f8] sm:$0xff]
        %7380 = vrot.lane.b32.xlu0 %v7356, 64
        %v7381 = vpop.permute.xlu0 %7380
        %7382 = vrot.lane.b32.xlu0 %v7357, 64
        %v7383 = vpop.permute.xlu0 %7382
        %7384 = vrot.lane.b32.xlu0 %v7358, 64
        %v7385 = vpop.permute.xlu0 %7384
        %7386 = vrot.lane.b32.xlu0 %v7359, 64
        %v7387 = vpop.permute.xlu0 %7386
        %7388 = vrot.lane.b32.xlu0 %v7360, 64
        %v7389 = vpop.permute.xlu0 %7388
        %7390 = vrot.lane.b32.xlu0 %v7361, 64
        %v7391 = vpop.permute.xlu0 %7390
        %7392 = vrot.lane.b32.xlu0 %v7362, 64
        %v7393 = vpop.permute.xlu0 %7392
        %7394 = vrot.lane.b32.xlu0 %v7363, 64
        %v7395 = vpop.permute.xlu0 %7394
        %v7404 = vadd.f32 %v7348, %v7381
        %v7405 = vadd.f32 %v7349, %v7383
        %v7406 = vadd.f32 %v7350, %v7385
        %v7407 = vadd.f32 %v7351, %v7387
        %v7408 = vadd.f32 %v7352, %v7389
        %v7409 = vadd.f32 %v7353, %v7391
        %v7410 = vadd.f32 %v7354, %v7393
        %v7411 = vadd.f32 %v7355, %v7395
        %v7412 = vadd.f32 %v7404, %v7364
        %v7413 = vadd.f32 %v7405, %v7365
        %v7414 = vadd.f32 %v7406, %v7366
        %v7415 = vadd.f32 %v7407, %v7367
        %v7416 = vadd.f32 %v7408, %v7368
        %v7417 = vadd.f32 %v7409, %v7369
        %v7418 = vadd.f32 %v7410, %v7370
        %v7419 = vadd.f32 %v7411, %v7371
        %v7420 = vadd.f32 %v7412, %v6971
        %v7421 = vadd.f32 %v7413, %v6971
        %v7422 = vadd.f32 %v7414, %v6971
        %v7423 = vadd.f32 %v7415, %v6971
        %v7424 = vadd.f32 %v7416, %v6971
        %v7425 = vadd.f32 %v7417, %v6971
        %v7426 = vadd.f32 %v7418, %v6971
        %v7427 = vadd.f32 %v7419, %v6971
        %v7428 = vsel %vm528, %v7420, 0.0
        %v7429 = vsel %vm528, %v7421, 0.0
        %v7430 = vadd.f32 %v7428, %v7429
        %v7431 = vsel %vm528, %v7422, 0.0
        %v7432 = vadd.f32 %v7430, %v7431
        %v7433 = vsel %vm528, %v7423, 0.0
        %v7434 = vadd.f32 %v7432, %v7433
        %v7435 = vsel %vm528, %v7424, 0.0
        %v7436 = vadd.f32 %v7434, %v7435
        %v7437 = vsel %vm528, %v7425, 0.0
        %v7438 = vadd.f32 %v7436, %v7437
        %v7439 = vsel %vm528, %v7426, 0.0
        %v7440 = vadd.f32 %v7438, %v7439
        %v7441 = vsel %vm528, %v7427, 0.0
        %v7442 = vadd.f32 %v7440, %v7441
        %v7443 = vrot.slane %v7442, 4
        %v7444 = vadd.f32 %v7442, %v7443
        %v7445 = vrot.slane %v7444, 2
        %v7446 = vadd.f32 %v7444, %v7445
        %v7447 = vrot.slane %v7446, 1
        %v7448 = vadd.f32 %v7446, %v7447
        %v7449 = vadd.f32 %v7300, %v7448
        %v7450 = vmul.f32 %v7420, %v7420
        %v7451 = vmul.f32 %v7421, %v7421
        %v7452 = vmul.f32 %v7422, %v7422
        %v7453 = vmul.f32 %v7423, %v7423
        %v7454 = vmul.f32 %v7424, %v7424
        %v7455 = vmul.f32 %v7425, %v7425
        %v7456 = vmul.f32 %v7426, %v7426
        %v7457 = vmul.f32 %v7427, %v7427
        %v7458 = vsel %vm528, %v7450, 0.0
        %v7459 = vsel %vm528, %v7451, 0.0
        %v7460 = vadd.f32 %v7458, %v7459
        %v7461 = vsel %vm528, %v7452, 0.0
        %v7462 = vadd.f32 %v7460, %v7461
        %v7463 = vsel %vm528, %v7453, 0.0
        %v7464 = vadd.f32 %v7462, %v7463
        %v7465 = vsel %vm528, %v7454, 0.0
        %v7466 = vadd.f32 %v7464, %v7465
        %v7467 = vsel %vm528, %v7455, 0.0
        %v7468 = vadd.f32 %v7466, %v7467
        %v7469 = vsel %vm528, %v7456, 0.0
        %v7470 = vadd.f32 %v7468, %v7469
        %v7471 = vsel %vm528, %v7457, 0.0
        %v7472 = vadd.f32 %v7470, %v7471
        %v7473 = vrot.slane %v7472, 4
        %v7474 = vadd.f32 %v7472, %v7473
        %v7475 = vrot.slane %v7474, 2
        %v7476 = vadd.f32 %v7474, %v7475
        %v7477 = vrot.slane %v7476, 1
        %v7478 = vadd.f32 %v7476, %v7477
        %v7479 = vadd.f32 %v7330, %v7478
        %v7480 = vpack.c.bf16 %v7420, %v7420
        %v7481 = vpack.c.bf16 %v7421, %v7421
        %v7482 = vpack.c.bf16 %v7422, %v7422
        %v7483 = vpack.c.bf16 %v7423, %v7423
        %v7484 = vpack.c.bf16 %v7424, %v7424
        %v7485 = vpack.c.bf16 %v7425, %v7425
        %v7486 = vpack.c.bf16 %v7426, %v7426
        %v7487 = vpack.c.bf16 %v7427, %v7427
        %s7488 = scalar_lea.vmem %s288, 96 [#allocation9]
        %7489 = vst.msk [vmem:[%s7488] sm:$0xf] %vm7041, %v7480
        %7490 = vst.msk [vmem:[%s7488 + $0x4] sm:$0xf] %vm7041, %v7481
        %7491 = vst.msk [vmem:[%s7488 + $0x8] sm:$0xf] %vm7041, %v7482
        %7492 = vst.msk [vmem:[%s7488 + $0xc] sm:$0xf] %vm7041, %v7483
        %7493 = vst.msk [vmem:[%s7488 + $0x10] sm:$0xf] %vm7041, %v7484
        %7494 = vst.msk [vmem:[%s7488 + $0x14] sm:$0xf] %vm7041, %v7485
        %7495 = vst.msk [vmem:[%s7488 + $0x18] sm:$0xf] %vm7041, %v7486
        %7496 = vst.msk [vmem:[%s7488 + $0x1c] sm:$0xf] %vm7041, %v7487
        %v7497 = vld [vmem:[#allocation3 + $0x200] sm:$0xff]
        %v7498 = vld [vmem:[#allocation3 + $0x210] sm:$0xff]
        %v7499 = vld [vmem:[#allocation3 + $0x220] sm:$0xff]
        %v7500 = vld [vmem:[#allocation3 + $0x230] sm:$0xff]
        %v7501 = vld [vmem:[#allocation3 + $0x240] sm:$0xff]
        %v7502 = vld [vmem:[#allocation3 + $0x250] sm:$0xff]
        %v7503 = vld [vmem:[#allocation3 + $0x260] sm:$0xff]
        %v7504 = vld [vmem:[#allocation3 + $0x270] sm:$0xff]
        %v7505 = vld [vmem:[#allocation3 + $0x280] sm:$0xff]
        %v7506 = vld [vmem:[#allocation3 + $0x290] sm:$0xff]
        %v7507 = vld [vmem:[#allocation3 + $0x2a0] sm:$0xff]
        %v7508 = vld [vmem:[#allocation3 + $0x2b0] sm:$0xff]
        %v7509 = vld [vmem:[#allocation3 + $0x2c0] sm:$0xff]
        %v7510 = vld [vmem:[#allocation3 + $0x2d0] sm:$0xff]
        %v7511 = vld [vmem:[#allocation3 + $0x2e0] sm:$0xff]
        %v7512 = vld [vmem:[#allocation3 + $0x2f0] sm:$0xff]
        %v7513 = vld [vmem:[#allocation3 + $0x308] sm:$0xff]
        %v7514 = vld [vmem:[#allocation3 + $0x318] sm:$0xff]
        %v7515 = vld [vmem:[#allocation3 + $0x328] sm:$0xff]
        %v7516 = vld [vmem:[#allocation3 + $0x338] sm:$0xff]
        %v7517 = vld [vmem:[#allocation3 + $0x348] sm:$0xff]
        %v7518 = vld [vmem:[#allocation3 + $0x358] sm:$0xff]
        %v7519 = vld [vmem:[#allocation3 + $0x368] sm:$0xff]
        %v7520 = vld [vmem:[#allocation3 + $0x378] sm:$0xff]
        %7529 = vrot.lane.b32.xlu0 %v7505, 64
        %v7530 = vpop.permute.xlu0 %7529
        %7531 = vrot.lane.b32.xlu0 %v7506, 64
        %v7532 = vpop.permute.xlu0 %7531
        %7533 = vrot.lane.b32.xlu0 %v7507, 64
        %v7534 = vpop.permute.xlu0 %7533
        %7535 = vrot.lane.b32.xlu0 %v7508, 64
        %v7536 = vpop.permute.xlu0 %7535
        %7537 = vrot.lane.b32.xlu0 %v7509, 64
        %v7538 = vpop.permute.xlu0 %7537
        %7539 = vrot.lane.b32.xlu0 %v7510, 64
        %v7540 = vpop.permute.xlu0 %7539
        %7541 = vrot.lane.b32.xlu0 %v7511, 64
        %v7542 = vpop.permute.xlu0 %7541
        %7543 = vrot.lane.b32.xlu0 %v7512, 64
        %v7544 = vpop.permute.xlu0 %7543
        %v7553 = vadd.f32 %v7497, %v7530
        %v7554 = vadd.f32 %v7498, %v7532
        %v7555 = vadd.f32 %v7499, %v7534
        %v7556 = vadd.f32 %v7500, %v7536
        %v7557 = vadd.f32 %v7501, %v7538
        %v7558 = vadd.f32 %v7502, %v7540
        %v7559 = vadd.f32 %v7503, %v7542
        %v7560 = vadd.f32 %v7504, %v7544
        %v7561 = vadd.f32 %v7553, %v7513
        %v7562 = vadd.f32 %v7554, %v7514
        %v7563 = vadd.f32 %v7555, %v7515
        %v7564 = vadd.f32 %v7556, %v7516
        %v7565 = vadd.f32 %v7557, %v7517
        %v7566 = vadd.f32 %v7558, %v7518
        %v7567 = vadd.f32 %v7559, %v7519
        %v7568 = vadd.f32 %v7560, %v7520
        %v7569 = vadd.f32 %v7561, %v6971
        %v7570 = vadd.f32 %v7562, %v6971
        %v7571 = vadd.f32 %v7563, %v6971
        %v7572 = vadd.f32 %v7564, %v6971
        %v7573 = vadd.f32 %v7565, %v6971
        %v7574 = vadd.f32 %v7566, %v6971
        %v7575 = vadd.f32 %v7567, %v6971
        %v7576 = vadd.f32 %v7568, %v6971
        %v7577 = vsel %vm528, %v7569, 0.0
        %v7578 = vsel %vm528, %v7570, 0.0
        %v7579 = vadd.f32 %v7577, %v7578
        %v7580 = vsel %vm528, %v7571, 0.0
        %v7581 = vadd.f32 %v7579, %v7580
        %v7582 = vsel %vm528, %v7572, 0.0
        %v7583 = vadd.f32 %v7581, %v7582
        %v7584 = vsel %vm528, %v7573, 0.0
        %v7585 = vadd.f32 %v7583, %v7584
        %v7586 = vsel %vm528, %v7574, 0.0
        %v7587 = vadd.f32 %v7585, %v7586
        %v7588 = vsel %vm528, %v7575, 0.0
        %v7589 = vadd.f32 %v7587, %v7588
        %v7590 = vsel %vm528, %v7576, 0.0
        %v7591 = vadd.f32 %v7589, %v7590
        %v7592 = vrot.slane %v7591, 4
        %v7593 = vadd.f32 %v7591, %v7592
        %v7594 = vrot.slane %v7593, 2
        %v7595 = vadd.f32 %v7593, %v7594
        %v7596 = vrot.slane %v7595, 1
        %v7597 = vadd.f32 %v7595, %v7596
        %v7598 = vadd.f32 %v7449, %v7597
        %v7599 = vmul.f32 %v7569, %v7569
        %v7600 = vmul.f32 %v7570, %v7570
        %v7601 = vmul.f32 %v7571, %v7571
        %v7602 = vmul.f32 %v7572, %v7572
        %v7603 = vmul.f32 %v7573, %v7573
        %v7604 = vmul.f32 %v7574, %v7574
        %v7605 = vmul.f32 %v7575, %v7575
        %v7606 = vmul.f32 %v7576, %v7576
        %v7607 = vsel %vm528, %v7599, 0.0
        %v7608 = vsel %vm528, %v7600, 0.0
        %v7609 = vadd.f32 %v7607, %v7608
        %v7610 = vsel %vm528, %v7601, 0.0
        %v7611 = vadd.f32 %v7609, %v7610
        %v7612 = vsel %vm528, %v7602, 0.0
        %v7613 = vadd.f32 %v7611, %v7612
        %v7614 = vsel %vm528, %v7603, 0.0
        %v7615 = vadd.f32 %v7613, %v7614
        %v7616 = vsel %vm528, %v7604, 0.0
        %v7617 = vadd.f32 %v7615, %v7616
        %v7618 = vsel %vm528, %v7605, 0.0
        %v7619 = vadd.f32 %v7617, %v7618
        %v7620 = vsel %vm528, %v7606, 0.0
        %v7621 = vadd.f32 %v7619, %v7620
        %v7622 = vrot.slane %v7621, 4
        %v7623 = vadd.f32 %v7621, %v7622
        %v7624 = vrot.slane %v7623, 2
        %v7625 = vadd.f32 %v7623, %v7624
        %v7626 = vrot.slane %v7625, 1
        %v7627 = vadd.f32 %v7625, %v7626
        %v7628 = vadd.f32 %v7479, %v7627
        %v7629 = vpack.c.bf16 %v7569, %v7569
        %v7630 = vpack.c.bf16 %v7570, %v7570
        %v7631 = vpack.c.bf16 %v7571, %v7571
        %v7632 = vpack.c.bf16 %v7572, %v7572
        %v7633 = vpack.c.bf16 %v7573, %v7573
        %v7634 = vpack.c.bf16 %v7574, %v7574
        %v7635 = vpack.c.bf16 %v7575, %v7575
        %v7636 = vpack.c.bf16 %v7576, %v7576
        %s7637 = scalar_lea.vmem %s288, 128 [#allocation9]
        %7638 = vst.msk [vmem:[%s7637] sm:$0xf] %vm7041, %v7629
        %7639 = vst.msk [vmem:[%s7637 + $0x4] sm:$0xf] %vm7041, %v7630
        %7640 = vst.msk [vmem:[%s7637 + $0x8] sm:$0xf] %vm7041, %v7631
        %7641 = vst.msk [vmem:[%s7637 + $0xc] sm:$0xf] %vm7041, %v7632
        %7642 = vst.msk [vmem:[%s7637 + $0x10] sm:$0xf] %vm7041, %v7633
        %7643 = vst.msk [vmem:[%s7637 + $0x14] sm:$0xf] %vm7041, %v7634
        %7644 = vst.msk [vmem:[%s7637 + $0x18] sm:$0xf] %vm7041, %v7635
        %7645 = vst.msk [vmem:[%s7637 + $0x1c] sm:$0xf] %vm7041, %v7636
        %v7646 = vld [vmem:[#allocation3 + $0x280] sm:$0xff]
        %v7647 = vld [vmem:[#allocation3 + $0x290] sm:$0xff]
        %v7648 = vld [vmem:[#allocation3 + $0x2a0] sm:$0xff]
        %v7649 = vld [vmem:[#allocation3 + $0x2b0] sm:$0xff]
        %v7650 = vld [vmem:[#allocation3 + $0x2c0] sm:$0xff]
        %v7651 = vld [vmem:[#allocation3 + $0x2d0] sm:$0xff]
        %v7652 = vld [vmem:[#allocation3 + $0x2e0] sm:$0xff]
        %v7653 = vld [vmem:[#allocation3 + $0x2f0] sm:$0xff]
        %v7654 = vld [vmem:[#allocation3 + $0x300] sm:$0xff]
        %v7655 = vld [vmem:[#allocation3 + $0x310] sm:$0xff]
        %v7656 = vld [vmem:[#allocation3 + $0x320] sm:$0xff]
        %v7657 = vld [vmem:[#allocation3 + $0x330] sm:$0xff]
        %v7658 = vld [vmem:[#allocation3 + $0x340] sm:$0xff]
        %v7659 = vld [vmem:[#allocation3 + $0x350] sm:$0xff]
        %v7660 = vld [vmem:[#allocation3 + $0x360] sm:$0xff]
        %v7661 = vld [vmem:[#allocation3 + $0x370] sm:$0xff]
        %v7662 = vld [vmem:[#allocation3 + $0x388] sm:$0xff]
        %v7663 = vld [vmem:[#allocation3 + $0x398] sm:$0xff]
        %v7664 = vld [vmem:[#allocation3 + $0x3a8] sm:$0xff]
        %v7665 = vld [vmem:[#allocation3 + $0x3b8] sm:$0xff]
        %v7666 = vld [vmem:[#allocation3 + $0x3c8] sm:$0xff]
        %v7667 = vld [vmem:[#allocation3 + $0x3d8] sm:$0xff]
        %v7668 = vld [vmem:[#allocation3 + $0x3e8] sm:$0xff]
        %v7669 = vld [vmem:[#allocation3 + $0x3f8] sm:$0xff]
        %7678 = vrot.lane.b32.xlu0 %v7654, 64
        %v7679 = vpop.permute.xlu0 %7678
        %7680 = vrot.lane.b32.xlu0 %v7655, 64
        %v7681 = vpop.permute.xlu0 %7680
        %7682 = vrot.lane.b32.xlu0 %v7656, 64
        %v7683 = vpop.permute.xlu0 %7682
        %7684 = vrot.lane.b32.xlu0 %v7657, 64
        %v7685 = vpop.permute.xlu0 %7684
        %7686 = vrot.lane.b32.xlu0 %v7658, 64
        %v7687 = vpop.permute.xlu0 %7686
        %7688 = vrot.lane.b32.xlu0 %v7659, 64
        %v7689 = vpop.permute.xlu0 %7688
        %7690 = vrot.lane.b32.xlu0 %v7660, 64
        %v7691 = vpop.permute.xlu0 %7690
        %7692 = vrot.lane.b32.xlu0 %v7661, 64
        %v7693 = vpop.permute.xlu0 %7692
        %v7702 = vadd.f32 %v7646, %v7679
        %v7703 = vadd.f32 %v7647, %v7681
        %v7704 = vadd.f32 %v7648, %v7683
        %v7705 = vadd.f32 %v7649, %v7685
        %v7706 = vadd.f32 %v7650, %v7687
        %v7707 = vadd.f32 %v7651, %v7689
        %v7708 = vadd.f32 %v7652, %v7691
        %v7709 = vadd.f32 %v7653, %v7693
        %v7710 = vadd.f32 %v7702, %v7662
        %v7711 = vadd.f32 %v7703, %v7663
        %v7712 = vadd.f32 %v7704, %v7664
        %v7713 = vadd.f32 %v7705, %v7665
        %v7714 = vadd.f32 %v7706, %v7666
        %v7715 = vadd.f32 %v7707, %v7667
        %v7716 = vadd.f32 %v7708, %v7668
        %v7717 = vadd.f32 %v7709, %v7669
        %v7718 = vadd.f32 %v7710, %v6971
        %v7719 = vadd.f32 %v7711, %v6971
        %v7720 = vadd.f32 %v7712, %v6971
        %v7721 = vadd.f32 %v7713, %v6971
        %v7722 = vadd.f32 %v7714, %v6971
        %v7723 = vadd.f32 %v7715, %v6971
        %v7724 = vadd.f32 %v7716, %v6971
        %v7725 = vadd.f32 %v7717, %v6971
        %v7726 = vsel %vm528, %v7718, 0.0
        %v7727 = vsel %vm528, %v7719, 0.0
        %v7728 = vadd.f32 %v7726, %v7727
        %v7729 = vsel %vm528, %v7720, 0.0
        %v7730 = vadd.f32 %v7728, %v7729
        %v7731 = vsel %vm528, %v7721, 0.0
        %v7732 = vadd.f32 %v7730, %v7731
        %v7733 = vsel %vm528, %v7722, 0.0
        %v7734 = vadd.f32 %v7732, %v7733
        %v7735 = vsel %vm528, %v7723, 0.0
        %v7736 = vadd.f32 %v7734, %v7735
        %v7737 = vsel %vm528, %v7724, 0.0
        %v7738 = vadd.f32 %v7736, %v7737
        %v7739 = vsel %vm528, %v7725, 0.0
        %v7740 = vadd.f32 %v7738, %v7739
        %v7741 = vrot.slane %v7740, 4
        %v7742 = vadd.f32 %v7740, %v7741
        %v7743 = vrot.slane %v7742, 2
        %v7744 = vadd.f32 %v7742, %v7743
        %v7745 = vrot.slane %v7744, 1
        %v7746 = vadd.f32 %v7744, %v7745
        %v7747 = vadd.f32 %v7598, %v7746
        %v7748 = vmul.f32 %v7718, %v7718
        %v7749 = vmul.f32 %v7719, %v7719
        %v7750 = vmul.f32 %v7720, %v7720
        %v7751 = vmul.f32 %v7721, %v7721
        %v7752 = vmul.f32 %v7722, %v7722
        %v7753 = vmul.f32 %v7723, %v7723
        %v7754 = vmul.f32 %v7724, %v7724
        %v7755 = vmul.f32 %v7725, %v7725
        %v7756 = vsel %vm528, %v7748, 0.0
        %v7757 = vsel %vm528, %v7749, 0.0
        %v7758 = vadd.f32 %v7756, %v7757
        %v7759 = vsel %vm528, %v7750, 0.0
        %v7760 = vadd.f32 %v7758, %v7759
        %v7761 = vsel %vm528, %v7751, 0.0
        %v7762 = vadd.f32 %v7760, %v7761
        %v7763 = vsel %vm528, %v7752, 0.0
        %v7764 = vadd.f32 %v7762, %v7763
        %v7765 = vsel %vm528, %v7753, 0.0
        %v7766 = vadd.f32 %v7764, %v7765
        %v7767 = vsel %vm528, %v7754, 0.0
        %v7768 = vadd.f32 %v7766, %v7767
        %v7769 = vsel %vm528, %v7755, 0.0
        %v7770 = vadd.f32 %v7768, %v7769
        %v7771 = vrot.slane %v7770, 4
        %v7772 = vadd.f32 %v7770, %v7771
        %v7773 = vrot.slane %v7772, 2
        %v7774 = vadd.f32 %v7772, %v7773
        %v7775 = vrot.slane %v7774, 1
        %v7776 = vadd.f32 %v7774, %v7775
        %v7777 = vadd.f32 %v7628, %v7776
        %v7778 = vpack.c.bf16 %v7718, %v7718
        %v7779 = vpack.c.bf16 %v7719, %v7719
        %v7780 = vpack.c.bf16 %v7720, %v7720
        %v7781 = vpack.c.bf16 %v7721, %v7721
        %v7782 = vpack.c.bf16 %v7722, %v7722
        %v7783 = vpack.c.bf16 %v7723, %v7723
        %v7784 = vpack.c.bf16 %v7724, %v7724
        %v7785 = vpack.c.bf16 %v7725, %v7725
        %s7786 = scalar_lea.vmem %s288, 160 [#allocation9]
        %7787 = vst.msk [vmem:[%s7786] sm:$0xf] %vm7041, %v7778
        %7788 = vst.msk [vmem:[%s7786 + $0x4] sm:$0xf] %vm7041, %v7779
        %7789 = vst.msk [vmem:[%s7786 + $0x8] sm:$0xf] %vm7041, %v7780
        %7790 = vst.msk [vmem:[%s7786 + $0xc] sm:$0xf] %vm7041, %v7781
        %7791 = vst.msk [vmem:[%s7786 + $0x10] sm:$0xf] %vm7041, %v7782
        %7792 = vst.msk [vmem:[%s7786 + $0x14] sm:$0xf] %vm7041, %v7783
        %7793 = vst.msk [vmem:[%s7786 + $0x18] sm:$0xf] %vm7041, %v7784
        %7794 = vst.msk [vmem:[%s7786 + $0x1c] sm:$0xf] %vm7041, %v7785
        %v7795 = vld [vmem:[#allocation3 + $0x300] sm:$0xff]
        %v7796 = vld [vmem:[#allocation3 + $0x310] sm:$0xff]
        %v7797 = vld [vmem:[#allocation3 + $0x320] sm:$0xff]
        %v7798 = vld [vmem:[#allocation3 + $0x330] sm:$0xff]
        %v7799 = vld [vmem:[#allocation3 + $0x340] sm:$0xff]
        %v7800 = vld [vmem:[#allocation3 + $0x350] sm:$0xff]
        %v7801 = vld [vmem:[#allocation3 + $0x360] sm:$0xff]
        %v7802 = vld [vmem:[#allocation3 + $0x370] sm:$0xff]
        %v7803 = vld [vmem:[#allocation3 + $0x380] sm:$0xff]
        %v7804 = vld [vmem:[#allocation3 + $0x390] sm:$0xff]
        %v7805 = vld [vmem:[#allocation3 + $0x3a0] sm:$0xff]
        %v7806 = vld [vmem:[#allocation3 + $0x3b0] sm:$0xff]
        %v7807 = vld [vmem:[#allocation3 + $0x3c0] sm:$0xff]
        %v7808 = vld [vmem:[#allocation3 + $0x3d0] sm:$0xff]
        %v7809 = vld [vmem:[#allocation3 + $0x3e0] sm:$0xff]
        %v7810 = vld [vmem:[#allocation3 + $0x3f0] sm:$0xff]
        %v7811 = vld [vmem:[#allocation3 + $0x408] sm:$0xff]
        %v7812 = vld [vmem:[#allocation3 + $0x418] sm:$0xff]
        %v7813 = vld [vmem:[#allocation3 + $0x428] sm:$0xff]
        %v7814 = vld [vmem:[#allocation3 + $0x438] sm:$0xff]
        %v7815 = vld [vmem:[#allocation3 + $0x448] sm:$0xff]
        %v7816 = vld [vmem:[#allocation3 + $0x458] sm:$0xff]
        %v7817 = vld [vmem:[#allocation3 + $0x468] sm:$0xff]
        %v7818 = vld [vmem:[#allocation3 + $0x478] sm:$0xff]
        %7827 = vrot.lane.b32.xlu0 %v7803, 64
        %v7828 = vpop.permute.xlu0 %7827
        %7829 = vrot.lane.b32.xlu0 %v7804, 64
        %v7830 = vpop.permute.xlu0 %7829
        %7831 = vrot.lane.b32.xlu0 %v7805, 64
        %v7832 = vpop.permute.xlu0 %7831
        %7833 = vrot.lane.b32.xlu0 %v7806, 64
        %v7834 = vpop.permute.xlu0 %7833
        %7835 = vrot.lane.b32.xlu0 %v7807, 64
        %v7836 = vpop.permute.xlu0 %7835
        %7837 = vrot.lane.b32.xlu0 %v7808, 64
        %v7838 = vpop.permute.xlu0 %7837
        %7839 = vrot.lane.b32.xlu0 %v7809, 64
        %v7840 = vpop.permute.xlu0 %7839
        %7841 = vrot.lane.b32.xlu0 %v7810, 64
        %v7842 = vpop.permute.xlu0 %7841
        %v7851 = vadd.f32 %v7795, %v7828
        %v7852 = vadd.f32 %v7796, %v7830
        %v7853 = vadd.f32 %v7797, %v7832
        %v7854 = vadd.f32 %v7798, %v7834
        %v7855 = vadd.f32 %v7799, %v7836
        %v7856 = vadd.f32 %v7800, %v7838
        %v7857 = vadd.f32 %v7801, %v7840
        %v7858 = vadd.f32 %v7802, %v7842
        %v7859 = vadd.f32 %v7851, %v7811
        %v7860 = vadd.f32 %v7852, %v7812
        %v7861 = vadd.f32 %v7853, %v7813
        %v7862 = vadd.f32 %v7854, %v7814
        %v7863 = vadd.f32 %v7855, %v7815
        %v7864 = vadd.f32 %v7856, %v7816
        %v7865 = vadd.f32 %v7857, %v7817
        %v7866 = vadd.f32 %v7858, %v7818
        %v7867 = vadd.f32 %v7859, %v6971
        %v7868 = vadd.f32 %v7860, %v6971
        %v7869 = vadd.f32 %v7861, %v6971
        %v7870 = vadd.f32 %v7862, %v6971
        %v7871 = vadd.f32 %v7863, %v6971
        %v7872 = vadd.f32 %v7864, %v6971
        %v7873 = vadd.f32 %v7865, %v6971
        %v7874 = vadd.f32 %v7866, %v6971
        %v7875 = vsel %vm528, %v7867, 0.0
        %v7876 = vsel %vm528, %v7868, 0.0
        %v7877 = vadd.f32 %v7875, %v7876
        %v7878 = vsel %vm528, %v7869, 0.0
        %v7879 = vadd.f32 %v7877, %v7878
        %v7880 = vsel %vm528, %v7870, 0.0
        %v7881 = vadd.f32 %v7879, %v7880
        %v7882 = vsel %vm528, %v7871, 0.0
        %v7883 = vadd.f32 %v7881, %v7882
        %v7884 = vsel %vm528, %v7872, 0.0
        %v7885 = vadd.f32 %v7883, %v7884
        %v7886 = vsel %vm528, %v7873, 0.0
        %v7887 = vadd.f32 %v7885, %v7886
        %v7888 = vsel %vm528, %v7874, 0.0
        %v7889 = vadd.f32 %v7887, %v7888
        %v7890 = vrot.slane %v7889, 4
        %v7891 = vadd.f32 %v7889, %v7890
        %v7892 = vrot.slane %v7891, 2
        %v7893 = vadd.f32 %v7891, %v7892
        %v7894 = vrot.slane %v7893, 1
        %v7895 = vadd.f32 %v7893, %v7894
        %v7896 = vadd.f32 %v7747, %v7895
        %v7897 = vmul.f32 %v7867, %v7867
        %v7898 = vmul.f32 %v7868, %v7868
        %v7899 = vmul.f32 %v7869, %v7869
        %v7900 = vmul.f32 %v7870, %v7870
        %v7901 = vmul.f32 %v7871, %v7871
        %v7902 = vmul.f32 %v7872, %v7872
        %v7903 = vmul.f32 %v7873, %v7873
        %v7904 = vmul.f32 %v7874, %v7874
        %v7905 = vsel %vm528, %v7897, 0.0
        %v7906 = vsel %vm528, %v7898, 0.0
        %v7907 = vadd.f32 %v7905, %v7906
        %v7908 = vsel %vm528, %v7899, 0.0
        %v7909 = vadd.f32 %v7907, %v7908
        %v7910 = vsel %vm528, %v7900, 0.0
        %v7911 = vadd.f32 %v7909, %v7910
        %v7912 = vsel %vm528, %v7901, 0.0
        %v7913 = vadd.f32 %v7911, %v7912
        %v7914 = vsel %vm528, %v7902, 0.0
        %v7915 = vadd.f32 %v7913, %v7914
        %v7916 = vsel %vm528, %v7903, 0.0
        %v7917 = vadd.f32 %v7915, %v7916
        %v7918 = vsel %vm528, %v7904, 0.0
        %v7919 = vadd.f32 %v7917, %v7918
        %v7920 = vrot.slane %v7919, 4
        %v7921 = vadd.f32 %v7919, %v7920
        %v7922 = vrot.slane %v7921, 2
        %v7923 = vadd.f32 %v7921, %v7922
        %v7924 = vrot.slane %v7923, 1
        %v7925 = vadd.f32 %v7923, %v7924
        %v7926 = vadd.f32 %v7777, %v7925
        %v7927 = vpack.c.bf16 %v7867, %v7867
        %v7928 = vpack.c.bf16 %v7868, %v7868
        %v7929 = vpack.c.bf16 %v7869, %v7869
        %v7930 = vpack.c.bf16 %v7870, %v7870
        %v7931 = vpack.c.bf16 %v7871, %v7871
        %v7932 = vpack.c.bf16 %v7872, %v7872
        %v7933 = vpack.c.bf16 %v7873, %v7873
        %v7934 = vpack.c.bf16 %v7874, %v7874
        %s7935 = scalar_lea.vmem %s288, 192 [#allocation9]
        %7936 = vst.msk [vmem:[%s7935] sm:$0xf] %vm7041, %v7927
        %7937 = vst.msk [vmem:[%s7935 + $0x4] sm:$0xf] %vm7041, %v7928
        %7938 = vst.msk [vmem:[%s7935 + $0x8] sm:$0xf] %vm7041, %v7929
        %7939 = vst.msk [vmem:[%s7935 + $0xc] sm:$0xf] %vm7041, %v7930
        %7940 = vst.msk [vmem:[%s7935 + $0x10] sm:$0xf] %vm7041, %v7931
        %7941 = vst.msk [vmem:[%s7935 + $0x14] sm:$0xf] %vm7041, %v7932
        %7942 = vst.msk [vmem:[%s7935 + $0x18] sm:$0xf] %vm7041, %v7933
        %7943 = vst.msk [vmem:[%s7935 + $0x1c] sm:$0xf] %vm7041, %v7934
        %v7944 = vld [vmem:[#allocation3 + $0x380] sm:$0xff]
        %v7945 = vld [vmem:[#allocation3 + $0x390] sm:$0xff]
        %v7946 = vld [vmem:[#allocation3 + $0x3a0] sm:$0xff]
        %v7947 = vld [vmem:[#allocation3 + $0x3b0] sm:$0xff]
        %v7948 = vld [vmem:[#allocation3 + $0x3c0] sm:$0xff]
        %v7949 = vld [vmem:[#allocation3 + $0x3d0] sm:$0xff]
        %v7950 = vld [vmem:[#allocation3 + $0x3e0] sm:$0xff]
        %v7951 = vld [vmem:[#allocation3 + $0x3f0] sm:$0xff]
        %v7952 = vld [vmem:[#allocation3 + $0x400] sm:$0xff]
        %v7953 = vld [vmem:[#allocation3 + $0x410] sm:$0xff]
        %v7954 = vld [vmem:[#allocation3 + $0x420] sm:$0xff]
        %v7955 = vld [vmem:[#allocation3 + $0x430] sm:$0xff]
        %v7956 = vld [vmem:[#allocation3 + $0x440] sm:$0xff]
        %v7957 = vld [vmem:[#allocation3 + $0x450] sm:$0xff]
        %v7958 = vld [vmem:[#allocation3 + $0x460] sm:$0xff]
        %v7959 = vld [vmem:[#allocation3 + $0x470] sm:$0xff]
        %v7960 = vld [vmem:[#allocation3 + $0x488] sm:$0xff]
        %v7961 = vld [vmem:[#allocation3 + $0x498] sm:$0xff]
        %v7962 = vld [vmem:[#allocation3 + $0x4a8] sm:$0xff]
        %v7963 = vld [vmem:[#allocation3 + $0x4b8] sm:$0xff]
        %v7964 = vld [vmem:[#allocation3 + $0x4c8] sm:$0xff]
        %v7965 = vld [vmem:[#allocation3 + $0x4d8] sm:$0xff]
        %v7966 = vld [vmem:[#allocation3 + $0x4e8] sm:$0xff]
        %v7967 = vld [vmem:[#allocation3 + $0x4f8] sm:$0xff]
        %7976 = vrot.lane.b32.xlu0 %v7952, 64
        %v7977 = vpop.permute.xlu0 %7976
        %7978 = vrot.lane.b32.xlu0 %v7953, 64
        %v7979 = vpop.permute.xlu0 %7978
        %7980 = vrot.lane.b32.xlu0 %v7954, 64
        %v7981 = vpop.permute.xlu0 %7980
        %7982 = vrot.lane.b32.xlu0 %v7955, 64
        %v7983 = vpop.permute.xlu0 %7982
        %7984 = vrot.lane.b32.xlu0 %v7956, 64
        %v7985 = vpop.permute.xlu0 %7984
        %7986 = vrot.lane.b32.xlu0 %v7957, 64
        %v7987 = vpop.permute.xlu0 %7986
        %7988 = vrot.lane.b32.xlu0 %v7958, 64
        %v7989 = vpop.permute.xlu0 %7988
        %7990 = vrot.lane.b32.xlu0 %v7959, 64
        %v7991 = vpop.permute.xlu0 %7990
        %v8000 = vadd.f32 %v7944, %v7977
        %v8001 = vadd.f32 %v7945, %v7979
        %v8002 = vadd.f32 %v7946, %v7981
        %v8003 = vadd.f32 %v7947, %v7983
        %v8004 = vadd.f32 %v7948, %v7985
        %v8005 = vadd.f32 %v7949, %v7987
        %v8006 = vadd.f32 %v7950, %v7989
        %v8007 = vadd.f32 %v7951, %v7991
        %v8008 = vadd.f32 %v8000, %v7960
        %v8009 = vadd.f32 %v8001, %v7961
        %v8010 = vadd.f32 %v8002, %v7962
        %v8011 = vadd.f32 %v8003, %v7963
        %v8012 = vadd.f32 %v8004, %v7964
        %v8013 = vadd.f32 %v8005, %v7965
        %v8014 = vadd.f32 %v8006, %v7966
        %v8015 = vadd.f32 %v8007, %v7967
        %v8016 = vadd.f32 %v8008, %v6971
        %v8017 = vadd.f32 %v8009, %v6971
        %v8018 = vadd.f32 %v8010, %v6971
        %v8019 = vadd.f32 %v8011, %v6971
        %v8020 = vadd.f32 %v8012, %v6971
        %v8021 = vadd.f32 %v8013, %v6971
        %v8022 = vadd.f32 %v8014, %v6971
        %v8023 = vadd.f32 %v8015, %v6971
        %v8024 = vsel %vm528, %v8016, 0.0
        %v8025 = vsel %vm528, %v8017, 0.0
        %v8026 = vadd.f32 %v8024, %v8025
        %v8027 = vsel %vm528, %v8018, 0.0
        %v8028 = vadd.f32 %v8026, %v8027
        %v8029 = vsel %vm528, %v8019, 0.0
        %v8030 = vadd.f32 %v8028, %v8029
        %v8031 = vsel %vm528, %v8020, 0.0
        %v8032 = vadd.f32 %v8030, %v8031
        %v8033 = vsel %vm528, %v8021, 0.0
        %v8034 = vadd.f32 %v8032, %v8033
        %v8035 = vsel %vm528, %v8022, 0.0
        %v8036 = vadd.f32 %v8034, %v8035
        %v8037 = vsel %vm528, %v8023, 0.0
        %v8038 = vadd.f32 %v8036, %v8037
        %v8039 = vrot.slane %v8038, 4
        %v8040 = vadd.f32 %v8038, %v8039
        %v8041 = vrot.slane %v8040, 2
        %v8042 = vadd.f32 %v8040, %v8041
        %v8043 = vrot.slane %v8042, 1
        %v8044 = vadd.f32 %v8042, %v8043
        %v8045 = vadd.f32 %v7896, %v8044
        %v8046 = vmul.f32 %v8016, %v8016
        %v8047 = vmul.f32 %v8017, %v8017
        %v8048 = vmul.f32 %v8018, %v8018
        %v8049 = vmul.f32 %v8019, %v8019
        %v8050 = vmul.f32 %v8020, %v8020
        %v8051 = vmul.f32 %v8021, %v8021
        %v8052 = vmul.f32 %v8022, %v8022
        %v8053 = vmul.f32 %v8023, %v8023
        %v8054 = vsel %vm528, %v8046, 0.0
        %v8055 = vsel %vm528, %v8047, 0.0
        %v8056 = vadd.f32 %v8054, %v8055
        %v8057 = vsel %vm528, %v8048, 0.0
        %v8058 = vadd.f32 %v8056, %v8057
        %v8059 = vsel %vm528, %v8049, 0.0
        %v8060 = vadd.f32 %v8058, %v8059
        %v8061 = vsel %vm528, %v8050, 0.0
        %v8062 = vadd.f32 %v8060, %v8061
        %v8063 = vsel %vm528, %v8051, 0.0
        %v8064 = vadd.f32 %v8062, %v8063
        %v8065 = vsel %vm528, %v8052, 0.0
        %v8066 = vadd.f32 %v8064, %v8065
        %v8067 = vsel %vm528, %v8053, 0.0
        %v8068 = vadd.f32 %v8066, %v8067
        %v8069 = vrot.slane %v8068, 4
        %v8070 = vadd.f32 %v8068, %v8069
        %v8071 = vrot.slane %v8070, 2
        %v8072 = vadd.f32 %v8070, %v8071
        %v8073 = vrot.slane %v8072, 1
        %v8074 = vadd.f32 %v8072, %v8073
        %v8075 = vadd.f32 %v7926, %v8074
        %v8076 = vpack.c.bf16 %v8016, %v8016
        %v8077 = vpack.c.bf16 %v8017, %v8017
        %v8078 = vpack.c.bf16 %v8018, %v8018
        %v8079 = vpack.c.bf16 %v8019, %v8019
        %v8080 = vpack.c.bf16 %v8020, %v8020
        %v8081 = vpack.c.bf16 %v8021, %v8021
        %v8082 = vpack.c.bf16 %v8022, %v8022
        %v8083 = vpack.c.bf16 %v8023, %v8023
        %s8084 = scalar_lea.vmem %s288, 224 [#allocation9]
        %8085 = vst.msk [vmem:[%s8084] sm:$0xf] %vm7041, %v8076
        %8086 = vst.msk [vmem:[%s8084 + $0x4] sm:$0xf] %vm7041, %v8077
        %8087 = vst.msk [vmem:[%s8084 + $0x8] sm:$0xf] %vm7041, %v8078
        %8088 = vst.msk [vmem:[%s8084 + $0xc] sm:$0xf] %vm7041, %v8079
        %8089 = vst.msk [vmem:[%s8084 + $0x10] sm:$0xf] %vm7041, %v8080
        %8090 = vst.msk [vmem:[%s8084 + $0x14] sm:$0xf] %vm7041, %v8081
        %8091 = vst.msk [vmem:[%s8084 + $0x18] sm:$0xf] %vm7041, %v8082
        %8092 = vst.msk [vmem:[%s8084 + $0x1c] sm:$0xf] %vm7041, %v8083
        %vm8093 = vcmask 516096
        %8094 = vst.msk [vmem:[%s295] sm:$0x1] %vm8093, %v8045
        %8095 = vst.msk [vmem:[%s295 + $0x1] sm:$0x1] %vm8093, %v8075
        %s8096 = sand.u32 %s146, 1
        %s8097 = scalar_lea.sflag [#allocation6], %s8096
        %s8098 = sand.u32 %s146, 1
        %s8099 = smul.addr %s8098, 256
        %s8100 = scalar_lea.vmem [#allocation9], %s8099
        %s8101 = sand.u32 %s172, 1
        %s8102 = scalar_lea.sflag [#allocation11], %s8101
        %s8103 = sand.u32 %s172, 1
        %s8104 = smul.addr %s8103, 2
        %s8105 = scalar_lea.vmem [#allocation10], %s8104
        // Predicated region
        $region49: #{tpu_custom_call.1} parent=39 // pred_check
          %p8106 = pneg %p156
        $region50: #{tpu_custom_call.1} parent=39 // pred_check_branch
          %8108 = sbr.rel (%p8106) target = $region52
        $region51: #{tpu_custom_call.1} parent=39 // pred_region
          %s8110 = ssub.s32 4096, 4096
          %8111 = vsyncadd %s8097, %s8110
          %s8112 = smul.addr %s28, 64
          %s8113 = smul.addr %s8112, 64
          %s8114 = scalar_lea.hbm %s5, %s8113
          %s8115 = sshll.u32 %s8100, 4
          %s8116 = int_to_ptr.vmem [resolvable:$true] %s8115
          %8121 = dma.vmem_to_hbm [thread:$0]  %s8116, 4096, %s8114, %s8097, 64, 64, 4
        $region52: #{tpu_custom_call.1} parent=39 // pred_fallthru
          _
        // Predicated region
        $region53: #{tpu_custom_call.1} parent=39 // pred_check
          %p8122 = pneg %p182
        $region54: #{tpu_custom_call.1} parent=39 // pred_check_branch
          %8124 = sbr.rel (%p8122) target = $region56
        $region55: #{tpu_custom_call.1} parent=39 // pred_region
          %s8126 = ssub.s32 32, 32
          %8127 = vsyncadd %s8102, %s8126
          %s8128 = smul.addr %s28, 32
          %s8129 = scalar_lea.hbm %s6, %s8128
          %s8131 = sshll.u32 %s8105, 4
          %s8132 = int_to_ptr.vmem [resolvable:$true] %s8131
          %8134 = dma.vmem_to_hbm [thread:$0]  %s8132, 32, %s8129, %s8102
        $region56: #{tpu_custom_call.1} parent=39 // pred_fallthru
          _
      $region40: #{tpu_custom_call.1} parent=5 // pred_fallthru
        _
      %p8135 = scmp.le.s32.totalorder 2, %s23
      // Predicated region
      $region57: #{tpu_custom_call.1} parent=5 // pred_check
        %p8136 = pneg %p8135
      $region58: #{tpu_custom_call.1} parent=5 // pred_check_branch
        %8138 = sbr.rel (%p8136) target = $region60
      $region59: #{tpu_custom_call.1} parent=5 // pred_region
        %s8139 = ssub.s32 %s23, 2
        // Predicated region
        $region61: #{tpu_custom_call.1} parent=59 // pred_check
          %p8140 = pneg %p162
        $region62: #{tpu_custom_call.1} parent=59 // pred_check_branch
          %8142 = sbr.rel (%p8140) target = $region64
        $region63: #{tpu_custom_call.1} parent=59 // pred_region
          %s8143 = sand.u32 %s147, 1
          %s8144 = scalar_lea.sflag [#allocation6], %s8143
          %s8145 = sand.u32 %s147, 1
          %s8146 = smul.addr %s8145, 256
          %s8147 = scalar_lea.vmem [#allocation9], %s8146
          %8148 = dma.done %s8144, 4096
        $region64: #{tpu_custom_call.1} parent=59 // pred_fallthru
          _
        // Predicated region
        $region65: #{tpu_custom_call.1} parent=59 // pred_check
          %p8149 = pneg %p188
        $region66: #{tpu_custom_call.1} parent=59 // pred_check_branch
          %8151 = sbr.rel (%p8149) target = $region68
        $region67: #{tpu_custom_call.1} parent=59 // pred_region
          %s8152 = sand.u32 %s173, 1
          %s8153 = scalar_lea.sflag [#allocation11], %s8152
          %s8154 = sand.u32 %s173, 1
          %s8155 = smul.addr %s8154, 2
          %s8156 = scalar_lea.vmem [#allocation10], %s8155
          %8157 = dma.done %s8153, 32
        $region68: #{tpu_custom_call.1} parent=59 // pred_fallthru
          _
      $region60: #{tpu_custom_call.1} parent=5 // pred_fallthru
        _
    $region6: #{tpu_custom_call.1} parent=1 // loop_footer
      %s27 = sadd.s32 1, %s23
    $region7: #{tpu_custom_call.1} parent=1 // loop_footer_branch
      %22 = sbr.rel target = $region3
    $region8: #{tpu_custom_call.1} parent=1 // loop_exit
      _
    %8158 = vsyncpa [#allocation5], 1
    %s8159 = scalar_lea.sflag [#allocation5], 1
    %8160 = vsyncpa %s8159, 1
    %8161 = vsyncpa [#allocation8], 1
    %8162 = vsyncpa [#allocation6], 1
    %s8163 = scalar_lea.sflag [#allocation6], 1
    %8164 = vsyncpa %s8163, 1
    %8165 = vsyncpa [#allocation11], 1
    %s8166 = scalar_lea.sflag [#allocation11], 1
    %8167 = vsyncpa %s8166, 1

</llo_original>
